<compile_context>
chip_gen: v7x
topology: tpu7x:2x2x1
jax: 0.10.0
libtpu: 0.0.40
codegen_flags: <defaults>
</compile_context>

<pallas_src>
import functools
import math

import jax
import jax.numpy as jnp
from jax import lax
from jax.experimental import pallas as pl
from jax.experimental.pallas import tpu as pltpu

_EPS = 1e-5  # torch BatchNorm2d default eps


# ----------------------------------------------------------------------------------------------
# shared math helpers
# ----------------------------------------------------------------------------------------------
def _activation(x, activation, beta):
    if activation == "ternarytanh":
        # ternaryTanh, beta >= 1.0 branch (UpConv uses beta=2.0).
        # TODO(synk): ternaryTanh branches for beta < 1.0 are not used by this module and are omitted.
        return 0.5 * jnp.tanh(x * beta * 2.0 - beta) - 0.5 * jnp.tanh(-x * beta * 2.0 - beta)
    return jnp.maximum(x, 0.0)  # F.relu


def _round_up(v, m):
    return (v + m - 1) // m * m


def _vmem_limit_bytes():
    """Per-generation VMEM budget (conservative on v7x: 64 MiB physical per core)."""
    try:
        kind = jax.devices()[0].device_kind.lower()
    except Exception:
        kind = ""
    if any(t in kind for t in ("v2", "v3", "v4", "v5", "v6")):
        return 64 * 1024 * 1024          # 128 MiB physical VMEM
    return 32 * 1024 * 1024              # v7x / unknown: stay well under 64 MiB


def _pick_row_tile(H, W, cx_p, cy_p, cmid_p, cout_p, budget):
    """Largest row tile (multiple of 8) whose estimated per-step VMEM footprint fits budget."""
    best = 8
    hi = max(8, _round_up(min(H, 256), 8))
    for th in range(8, hi + 8, 8):
        thh = th // 2
        # kernel 1: double-buffered I/O blocks + f32 lerp/acc temporaries + weights
        io1 = 2 * ((thh + 4) * (W + 2) * cx_p * 2
                   + (th + 4) * (W + 2) * cy_p * 2
                   + (th + 2) * (W + 2) * cmid_p * 2
                   + 8 * cmid_p * 4)
        tmp1 = ((thh + 4) * (W + 2) * cx_p * 4
                + 3 * (th + 4) * (W + 2) * cx_p * 4
                + 2 * (th + 2) * W * (cx_p + cy_p) * 2
                + 2 * (th + 2) * W * cmid_p * 4)
        wsz1 = 2 * 9 * (cx_p + cy_p) * cmid_p * 2
        # kernel 2
        io2 = 2 * ((th + 2) * (W + 2) * cmid_p * 2
                   + th * W * cout_p * 2
                   + 8 * cout_p * 4)
        tmp2 = (2 * (th + 2) * (W + 2) * cmid_p * 4
                + 2 * (th + 2) * W * cmid_p * 2
                + 2 * th * W * cout_p * 4)
        wsz2 = 2 * 9 * cmid_p * cout_p * 2
        if max(io1 + tmp1 + wsz1, io2 + tmp2 + wsz2) <= budget:
            best = th
    return best


# ----------------------------------------------------------------------------------------------
# kernel 1: in-register 2x row-upsample of the decoder feature + "concat" with the skip feature
#           (split per-tap weight slabs) + 3x3 conv (9 accumulated MXU matmuls) + bias + act
#           + per-block BN1 statistics.  Writes a 1-row halo (recomputed) and zero side columns
#           so kernel 2 needs no overlapping reads and no width padding.
# ----------------------------------------------------------------------------------------------
def _upconv_conv1_kernel(x_ref, y_ref, wx_ref, wy_ref, b_ref, h_ref, stats_ref, *,
                         th, H, W, activation, beta):
    # x_ref:    (1, 1, th//2+4, W+2, Cx_p)  bf16  width-upsampled decoder rows (clamped row halo)
    # y_ref:    (1, 1, th+4,    W+2, Cy_p)  bf16  skip-connection rows (zero-padded halo/cols)
    # wx_ref:   (9, Cx_p, Cmid_p) bf16 ; wy_ref: (9, Cy_p, Cmid_p) bf16
    # b_ref:    (1, Cmid_p) f32
    # h_ref:    (1, 1, th+2, W+2, Cmid_p)   bf16  conv1 activations (pre-BN), zero side columns
    # stats_ref:(1, 1, 8, Cmid_p) f32  row0 = sum, row1 = sum-of-squares over owned valid rows
    rb = pl.program_id(1)
    thh = th // 2
    rows = th + 2
    cmid_p = wx_ref.shape[2]

    # ---- bilinear 2x row-upsample (align_corners=False); width was upsampled by the wrapper.
    xv = x_ref[0, 0].astype(jnp.float32)                                   # (thh+4, W+2, Cx_p)
    r_even = 0.25 * xv[0:thh + 2] + 0.75 * xv[1:thh + 3]
    r_odd = 0.75 * xv[1:thh + 3] + 0.25 * xv[2:thh + 4]
    xu = jnp.stack([r_even, r_odd], axis=1).reshape(th + 4, W + 2, xv.shape[-1])
    # rows outside [0, H) are conv zero padding (also masks the ragged last row block)
    grow = lax.broadcasted_iota(jnp.int32, (th + 4, W + 2, 1), 0) + (rb * th - 2)
    xu = jnp.where(jnp.logical_and(grow >= 0, grow < H), xu, 0.0).astype(jnp.bfloat16)
    yv = y_ref[0, 0]                                                       # (th+4, W+2, Cy_p)

    # ---- 3x3 conv: 9 accumulated full-lane MXU matmuls (no im2col temp, f32 accumulation)
    acc = jnp.zeros((rows * W, cmid_p), jnp.float32)
    for tap in range(9):
        ky, kx = tap // 3, tap % 3
        xs = xu[ky:ky + rows, kx:kx + W, :].reshape(rows * W, -1)
        ys = yv[ky:ky + rows, kx:kx + W, :].reshape(rows * W, -1)
        acc = acc + jnp.dot(xs, wx_ref[tap], preferred_element_type=jnp.float32)
        acc = acc + jnp.dot(ys, wy_ref[tap], preferred_element_type=jnp.float32)

    act = _activation(acc + b_ref[...], activation, beta)                  # f32 (rows*W, Cmid_p)
    a3 = act.reshape(rows, W, cmid_p)

    # ---- BN1 partial statistics (f32, owned in-range rows only; halo + pad rows excluded)
    owned = a3[1:th + 1]
    orow = lax.broadcasted_iota(jnp.int32, (th, W, 1), 0) + rb * th
    ow = jnp.where(orow < H, owned, 0.0)
    psum = jnp.sum(ow.reshape(th * W, cmid_p), axis=0, keepdims=True)
    psq = jnp.sum((ow * owned).reshape(th * W, cmid_p), axis=0, keepdims=True)
    stats_ref[...] = jnp.concatenate(
        [psum, psq, jnp.zeros((6, cmid_p), jnp.float32)], axis=0)[None, None]

    # ---- bf16 activations with pre-padded (zero) side columns for conv2
    hb = a3.astype(jnp.bfloat16)
    zc = jnp.zeros((rows, 1, cmid_p), jnp.bfloat16)
    h_ref[...] = jnp.concatenate([zc, hb, zc], axis=1)[None, None]


# ----------------------------------------------------------------------------------------------
# kernel 2: BN1 (folded scale/shift) + 3x3 conv2 (9 accumulated MXU matmuls) + bias + act
#           + per-block BN2 statistics.
# ----------------------------------------------------------------------------------------------
def _upconv_conv2_kernel(h_ref, s_ref, t_ref, w_ref, b_ref, o_ref, stats_ref, *,
                         th, H, W, activation, beta):
    # h_ref:  (1, 1, th+2, W+2, Cmid_p) bf16 ; s_ref / t_ref: (1, Cmid_p) f32 folded BN1
    # w_ref:  (9, Cmid_p, Cout_p) bf16 ; b_ref: (1, Cout_p) f32
    # o_ref:  (1, th, W, Cout_p) bf16 ; stats_ref: (1, 1, 8, Cout_p) f32
    rb = pl.program_id(1)
    cout_p = w_ref.shape[2]

    hv = h_ref[0, 0].astype(jnp.float32)                                   # (th+2, W+2, Cmid_p)
    hn = hv * s_ref[...] + t_ref[...]                                      # BN1 affine (f32)
    # conv2 zero padding: side columns and rows outside [0, H) must be exactly 0 after BN1
    grow = lax.broadcasted_iota(jnp.int32, (th + 2, W + 2, 1), 0) + (rb * th - 1)
    gcol = lax.broadcasted_iota(jnp.int32, (th + 2, W + 2, 1), 1)
    inside = jnp.logical_and(jnp.logical_and(grow >= 0, grow < H),
                             jnp.logical_and(gcol >= 1, gcol <= W))
    hb = jnp.where(inside, hn, 0.0).astype(jnp.bfloat16)

    acc = jnp.zeros((th * W, cout_p), jnp.float32)
    for tap in range(9):
        ky, kx = tap // 3, tap % 3
        hs = hb[ky:ky + th, kx:kx + W, :].reshape(th * W, -1)
        acc = acc + jnp.dot(hs, w_ref[tap], preferred_element_type=jnp.float32)

    act = _activation(acc + b_ref[...], activation, beta)                  # f32 (th*W, Cout_p)
    a3 = act.reshape(th, W, cout_p)

    orow = lax.broadcasted_iota(jnp.int32, (th, W, 1), 0) + rb * th
    aw = jnp.where(orow < H, a3, 0.0)
    psum = jnp.sum(aw.reshape(th * W, cout_p), axis=0, keepdims=True)
    psq = jnp.sum((aw * a3).reshape(th * W, cout_p), axis=0, keepdims=True)
    stats_ref[...] = jnp.concatenate(
        [psum, psq, jnp.zeros((6, cout_p), jnp.float32)], axis=0)[None, None]
    o_ref[...] = a3.astype(o_ref.dtype)[None]


# ----------------------------------------------------------------------------------------------
# wrapper
# ----------------------------------------------------------------------------------------------
def _upsample_width_2x(x):
    """x: (N, Hh, Wh, C) -> (N, Hh, 2*Wh, C); width-only torch bilinear (align_corners=False)."""
    Wh = x.shape[2]
    o = jnp.arange(2 * Wh, dtype=jnp.float32)
    src = jnp.maximum((o + 0.5) * 0.5 - 0.5, 0.0)
    i0 = jnp.floor(src).astype(jnp.int32)
    frac = (src - i0.astype(jnp.float32))[None, None, :, None]
    i1 = jnp.minimum(i0 + 1, Wh - 1)
    return x[:, :, i0] * (1.0 - frac) + x[:, :, i1] * frac


def _bilinear_upsample_2x_nhwc(x):
    """Full 2x bilinear upsample (reference path only)."""
    N, H, W, C = x.shape

    def idx(n_in):
        o = jnp.arange(2 * n_in, dtype=jnp.float32)
        src = jnp.maximum((o + 0.5) * 0.5 - 0.5, 0.0)
        i0 = jnp.floor(src).astype(jnp.int32)
        frac = src - i0.astype(jnp.float32)
        i1 = jnp.minimum(i0 + 1, n_in - 1)
        return i0, i1, frac

    hi0, hi1, hf = idx(H)
    wi0, wi1, wf = idx(W)
    xh = x[:, hi0] * (1.0 - hf)[None, :, None, None] + x[:, hi1] * hf[None, :, None, None]
    return (xh[:, :, wi0] * (1.0 - wf)[None, None, :, None]
            + xh[:, :, wi1] * wf[None, None, :, None])


def upconv_forward(x, y, params, activation="relu", beta=2.0, row_tile=None):
    """x: (N, Cx, H/2, W/2) NCHW decoder feature; y: (N, Cy, H, W) NCHW skip connection."""
    activation = activation.lower()
    N, Cx, Hh, Wh = x.shape
    _, Cy, H, W = y.shape
    assert H == 2 * Hh and W == 2 * Wh, (x.shape, y.shape)

    Cmid = params["w1"].shape[0]
    Cout = params["w2"].shape[0]
    # Channels padded to full 128-lane width (lane-dense stores / full MXU K).  This is a no-op
    # for realistic UNet stages (channels >= 128); for tiny configs it trades zero-work for layout.
    cx_p, cy_p, cmid_p, cout_p = (_round_up(c, 128) for c in (Cx, Cy, Cmid, Cout))

    vmem_limit = _vmem_limit_bytes()
    if row_tile is None:
        row_tile = _pick_row_tile(H, W, cx_p, cy_p, cmid_p, cout_p,
                                  budget=(vmem_limit * 45) // 100)
    th = max(8, _round_up(row_tile, 8))
    if N == 1 and H > 8 and -(-H // th) < 2:
        th = max(8, _round_up((H + 1) // 2, 8))   # keep >=2 row blocks so both v7x cores get work
    thh = th // 2
    nrb = -(-H // th)
    Hp = nrb * th                                 # padded extent; pad rows masked out of BN stats

    f32 = jnp.float32
    # --- decoder feature: width lerp (XLA, on the low-res tensor), lane/col pad, clamped row halos
    x_nhwc = jnp.transpose(x, (0, 2, 3, 1)).astype(f32)
    xw = _upsample_width_2x(x_nhwc)                                         # (N, Hh, W, Cx)
    xw = jnp.pad(xw, ((0, 0), (0, 0), (1, 1), (0, cx_p - Cx))).astype(jnp.bfloat16)
    rx = jnp.clip(jnp.arange(nrb)[:, None] * thh - 2 + jnp.arange(thh + 4)[None, :], 0, Hh - 1)
    x_halo = xw[:, rx]                                                      # (N,nrb,thh+4,W+2,Cx_p)

    # --- skip connection: lane pad, zero row/col pad, row-halo windows
    y_nhwc = jnp.transpose(y, (0, 2, 3, 1)).astype(f32)
    ye = jnp.pad(y_nhwc, ((0, 0), (2, Hp - H + 2), (1, 1), (0, cy_p - Cy))).astype(jnp.bfloat16)
    ry = jnp.arange(nrb)[:, None] * th + jnp.arange(th + 4)[None, :]
    y_halo = ye[:, ry]                                                      # (N,nrb,th+4,W+2,Cy_p)

    # --- parameters: per-tap weight slabs (9, Cin_group_p, Cout_p), bf16
    def prep_w_split(w, cix, cix_p, ciy, ciy_p, co, co_p):
        wt = jnp.transpose(w.astype(f32), (2, 3, 1, 0)).reshape(9, cix + ciy, co)
        wx = jnp.pad(wt[:, :cix, :], ((0, 0), (0, cix_p - cix), (0, co_p - co)))
        wy = jnp.pad(wt[:, cix:, :], ((0, 0), (0, ciy_p - ciy), (0, co_p - co)))
        return wx.astype(jnp.bfloat16), wy.astype(jnp.bfloat16)

    def prep_w(w, ci, ci_p, co, co_p):
        wt = jnp.transpose(w.astype(f32), (2, 3, 1, 0)).reshape(9, ci, co)
        return jnp.pad(wt, ((0, 0), (0, ci_p - ci), (0, co_p - co))).astype(jnp.bfloat16)

    def prep_v(v, c, c_p):
        return jnp.pad(v.astype(f32), (0, c_p - c)).reshape(1, c_p)

    w1x, w1y = prep_w_split(params["w1"], Cx, cx_p, Cy, cy_p, Cmid, cmid_p)
    w2 = prep_w(params["w2"], Cmid, cmid_p, Cout, cout_p)
    b1 = prep_v(params["b1"], Cmid, cmid_p)
    b2 = prep_v(params["b2"], Cout, cout_p)
    g1 = prep_v(params["g1"], Cmid, cmid_p)
    bt1 = prep_v(params["bt1"], Cmid, cmid_p)
    g2 = prep_v(params["g2"], Cout, cout_p)
    bt2 = prep_v(params["bt2"], Cout, cout_p)

    grid = (N, nrb)
    cparams = pltpu.CompilerParams(
        dimension_semantics=("parallel", "parallel"),
        vmem_limit_bytes=vmem_limit,
    )

    # --- pass 1: upsample + concat + conv1 + act + BN1 partial statistics ------------------------
    k1 = functools.partial(_upconv_conv1_kernel, th=th, H=H, W=W,
                           activation=activation, beta=float(beta))
    h, stats1 = pl.pallas_call(
        k1,
        grid=grid,
        in_specs=[
            pl.BlockSpec((1, 1, thh + 4, W + 2, cx_p), lambda n, r: (n, r, 0, 0, 0)),
            pl.BlockSpec((1, 1, th + 4, W + 2, cy_p), lambda n, r: (n, r, 0, 0, 0)),
            pl.BlockSpec((9, cx_p, cmid_p), lambda n, r: (0, 0, 0)),
            pl.BlockSpec((9, cy_p, cmid_p), lambda n, r: (0, 0, 0)),
            pl.BlockSpec((1, cmid_p), lambda n, r: (0, 0)),
        ],
        out_specs=[
            pl.BlockSpec((1, 1, th + 2, W + 2, cmid_p), lambda n, r: (n, r, 0, 0, 0)),
            pl.BlockSpec((1, 1, 8, cmid_p), lambda n, r: (n, r, 0, 0)),
        ],
        out_shape=[
            jax.ShapeDtypeStruct((N, nrb, th + 2, W + 2, cmid_p), jnp.bfloat16),
            jax.ShapeDtypeStruct((N, nrb, 8, cmid_p), jnp.float32),
        ],
        compiler_params=cparams,
    )(x_halo, y_halo, w1x, w1y, b1)

    # tiny per-channel reduction + fold BN1 into scale/shift (training-mode biased variance).
    # NOTE: variance uses E[x^2]-E[x]^2 in f32 (clamped at 0); adequate for activation-scale data.
    cnt = float(N * H * W)
    s1 = jnp.sum(stats1[:, :, 0, :], axis=(0, 1))
    q1 = jnp.sum(stats1[:, :, 1, :], axis=(0, 1))
    mu1 = s1 / cnt
    var1 = jnp.maximum(q1 / cnt - mu1 * mu1, 0.0)
    scale1 = (g1[0] * lax.rsqrt(var1 + _EPS)).reshape(1, cmid_p)
    shift1 = (bt1[0] - mu1 * scale1[0]).reshape(1, cmid_p)
    # TODO(synk): QuantLayer definition not provided; identity for config['quantization']=='normal'.

    # --- pass 2: BN1 apply + conv2 + act + BN2 partial statistics --------------------------------
    k2 = functools.partial(_upconv_conv2_kernel, th=th, H=H, W=W,
                           activation=activation, beta=float(beta))
    h2, stats2 = pl.pallas_call(
        k2,
        grid=grid,
        in_specs=[
            pl.BlockSpec((1, 1, th + 2, W + 2, cmid_p), lambda n, r: (n, r, 0, 0, 0)),
            pl.BlockSpec((1, cmid_p), lambda n, r: (0, 0)),
            pl.BlockSpec((1, cmid_p), lambda n, r: (0, 0)),
            pl.BlockSpec((9, cmid_p, cout_p), lambda n, r: (0, 0, 0)),
            pl.BlockSpec((1, cout_p), lambda n, r: (0, 0)),
        ],
        out_specs=[
            pl.BlockSpec((1, th, W, cout_p), lambda n, r: (n, r, 0, 0)),
            pl.BlockSpec((1, 1, 8, cout_p), lambda n, r: (n, r, 0, 0)),
        ],
        out_shape=[
            jax.ShapeDtypeStruct((N, Hp, W, cout_p), jnp.bfloat16),
            jax.ShapeDtypeStruct((N, nrb, 8, cout_p), jnp.float32),
        ],
        compiler_params=cparams,
    )(h, scale1, shift1, w2, b2)

    # --- BN2 apply, fused by XLA with the channel/row slice + NCHW layout change -----------------
    s2 = jnp.sum(stats2[:, :, 0, :], axis=(0, 1))
    q2 = jnp.sum(stats2[:, :, 1, :], axis=(0, 1))
    mu2 = s2 / cnt
    var2 = jnp.maximum(q2 / cnt - mu2 * mu2, 0.0)
    sc2 = g2[0] * lax.rsqrt(var2 + _EPS)
    sh2 = bt2[0] - mu2 * sc2
    out = (h2[:, :H, :, :Cout].astype(jnp.float32)
           * sc2[:Cout].reshape(1, 1, 1, Cout) + sh2[:Cout].reshape(1, 1, 1, Cout))
    return jnp.transpose(out, (0, 3, 1, 2))


# ----------------------------------------------------------------------------------------------
# pure-JAX reference (f32) for a relaxed-tolerance self check
# ----------------------------------------------------------------------------------------------
def _reference_forward(x, y, params, activation="relu", beta=2.0):
    activation = activation.lower()
    xu = _bilinear_upsample_2x_nhwc(jnp.transpose(x, (0, 2, 3, 1)))
    cat = jnp.concatenate([xu, jnp.transpose(y, (0, 2, 3, 1))], axis=-1)

    def conv3x3(v, w, b):
        wt = jnp.transpose(w, (2, 3, 1, 0))
        o = lax.conv_general_dilated(
            v, wt, (1, 1), ((1, 1), (1, 1)),
            dimension_numbers=("NHWC", "HWIO", "NHWC"))
        return o + b.reshape(1, 1, 1, -1)

    def bn(v, g, bt):
        mu = jnp.mean(v, axis=(0, 1, 2), keepdims=True)
        var = jnp.mean((v - mu) ** 2, axis=(0, 1, 2), keepdims=True)
        return (v - mu) * lax.rsqrt(var + _EPS) * g.reshape(1, 1, 1, -1) + bt.reshape(1, 1, 1, -1)

    h = bn(_activation(conv3x3(cat, params["w1"], params["b1"]), activation, beta),
           params["g1"], params["bt1"])
    h2 = bn(_activation(conv3x3(h, params["w2"], params["b2"]), activation, beta),
            params["g2"], params["bt2"])
    return jnp.transpose(h2, (0, 3, 1, 2))


def init_params(key, in_feat, out_feat):
    """Deterministic synthetic parameters matching the module's shapes."""
    ks = jax.random.split(key, 8)
    k1 = 1.0 / math.sqrt(in_feat * 9)
    k2 = 1.0 / math.sqrt(out_feat * 9)
    return {
        "w1": jax.random.uniform(ks[0], (out_feat, in_feat, 3, 3), jnp.float32, -k1, k1),
        "b1": jax.random.uniform(ks[1], (out_feat,), jnp.float32, -k1, k1),
        "g1": jax.random.uniform(ks[2], (out_feat,), jnp.float32, 0.5, 1.5),
        "bt1": jax.random.uniform(ks[3], (out_feat,), jnp.float32, -0.1, 0.1),
        "w2": jax.random.uniform(ks[4], (out_feat, out_feat, 3, 3), jnp.float32, -k2, k2),
        "b2": jax.random.uniform(ks[5], (out_feat,), jnp.float32, -k2, k2),
        "g2": jax.random.uniform(ks[6], (out_feat,), jnp.float32, 0.5, 1.5),
        "bt2": jax.random.uniform(ks[7], (out_feat,), jnp.float32, -0.1, 0.1),
    }


if __name__ == "__main__":
    key = jax.random.PRNGKey(0)
    kx, kyy, kp = jax.random.split(key, 3)

    N, Cx, Cy = 2, 4, 4          # decoder channels / skip-connection channels
    H, W = 16, 16                # output spatial size (x comes in at H/2 x W/2)
    in_feat, out_feat = Cx + Cy, 4

    x = jax.random.normal(kx, (N, Cx, H // 2, W // 2), jnp.float32)
    y = jax.random.normal(kyy, (N, Cy, H, W), jnp.float32)
    params = init_params(kp, in_feat, out_feat)

    # row_tile=8 -> 2 row blocks per image, exercising the halo-recompute / multi-block path.
    fwd = jax.jit(lambda a, b, p: upconv_forward(a, b, p, activation="relu", beta=2.0,
                                                 row_tile=8))
    out = jax.block_until_ready(fwd(x, y, params))

    assert out.shape == (N, out_feat, H, W), out.shape
    assert bool(jnp.all(jnp.isfinite(out)))

    # relaxed tolerance: kernel uses bf16 MXU operands and bf16 inter-pass tensors, reference is f32
    ref = jax.block_until_ready(_reference_forward(x, y, params, activation="relu", beta=2.0))
    max_err = float(jnp.max(jnp.abs(out - ref)))
    assert bool(jnp.all(jnp.abs(out - ref) <= 0.15 + 0.05 * jnp.abs(ref))), max_err

    print("KERNEL_OK")
</pallas_src>

<mosaic_0001>
module attributes {stable_mosaic.version = 11 : i64} {
  func.func @_upconv_conv1_kernel(%arg0: i32, %arg1: i32, %arg2: memref<1x1x8x18x128xbf16, #tpu.memory_space<vmem>>, %arg3: memref<1x1x12x18x128xbf16, #tpu.memory_space<vmem>>, %arg4: memref<9x128x128xbf16, #tpu.memory_space<vmem>>, %arg5: memref<9x128x128xbf16, #tpu.memory_space<vmem>>, %arg6: memref<1x128xf32, #tpu.memory_space<vmem>>, %arg7: memref<1x1x10x18x128xbf16, #tpu.memory_space<vmem>>, %arg8: memref<1x1x8x128xf32, #tpu.memory_space<vmem>>) attributes {dimension_semantics = [#tpu.dimension_semantics<parallel>, #tpu.dimension_semantics<parallel>], iteration_bounds = array<i64: 2, 2>, scalar_prefetch = 0 : i64, scratch_operands = 0 : i64, tpu.core_type = #tpu.core_type<tc>, window_params = [{transform_indices = @transform_0, window_bounds = array<i64: 1, 1, 8, 18, 128>}, {transform_indices = @transform_1, window_bounds = array<i64: 1, 1, 12, 18, 128>}, {pipeline_mode = #tpu.pipeline_mode<synchronous>, transform_indices = @transform_2, window_bounds = array<i64: 9, 128, 128>}, {pipeline_mode = #tpu.pipeline_mode<synchronous>, transform_indices = @transform_3, window_bounds = array<i64: 9, 128, 128>}, {pipeline_mode = #tpu.pipeline_mode<synchronous>, transform_indices = @transform_4, window_bounds = array<i64: 1, 128>}, {transform_indices = @transform_5, window_bounds = array<i64: 1, 1, 10, 18, 128>}, {transform_indices = @transform_6, window_bounds = array<i64: 1, 1, 8, 128>}]} {
    %c0 = arith.constant 0 : index
    %c0_0 = arith.constant 0 : index
    %c0_1 = arith.constant 0 : index
    %c0_2 = arith.constant 0 : index
    %c0_3 = arith.constant 0 : index
    %0 = vector.load %arg2[%c0, %c0_0, %c0_1, %c0_2, %c0_3] : memref<1x1x8x18x128xbf16, #tpu.memory_space<vmem>>, vector<1x1x8x18x128xbf16>
    %1 = vector.shape_cast %0 : vector<1x1x8x18x128xbf16> to vector<8x18x128xbf16>
    %2 = arith.extf %1 : vector<8x18x128xbf16> to vector<8x18x128xf32>
    %3 = vector.extract_strided_slice %2 {offsets = [0, 0, 0], sizes = [6, 18, 128], strides = [1, 1, 1]} : vector<8x18x128xf32> to vector<6x18x128xf32>
    %cst = arith.constant 2.500000e-01 : f32
    %4 = vector.broadcast %cst : f32 to vector<6x18x128xf32>
    %5 = arith.mulf %4, %3 : vector<6x18x128xf32>
    %6 = vector.extract_strided_slice %2 {offsets = [1, 0, 0], sizes = [6, 18, 128], strides = [1, 1, 1]} : vector<8x18x128xf32> to vector<6x18x128xf32>
    %cst_4 = arith.constant 7.500000e-01 : f32
    %7 = vector.broadcast %cst_4 : f32 to vector<6x18x128xf32>
    %8 = arith.mulf %7, %6 : vector<6x18x128xf32>
    %9 = arith.addf %5, %8 : vector<6x18x128xf32>
    %10 = vector.extract_strided_slice %2 {offsets = [1, 0, 0], sizes = [6, 18, 128], strides = [1, 1, 1]} : vector<8x18x128xf32> to vector<6x18x128xf32>
    %cst_5 = arith.constant 7.500000e-01 : f32
    %11 = vector.broadcast %cst_5 : f32 to vector<6x18x128xf32>
    %12 = arith.mulf %11, %10 : vector<6x18x128xf32>
    %13 = vector.extract_strided_slice %2 {offsets = [2, 0, 0], sizes = [6, 18, 128], strides = [1, 1, 1]} : vector<8x18x128xf32> to vector<6x18x128xf32>
    %cst_6 = arith.constant 2.500000e-01 : f32
    %14 = vector.broadcast %cst_6 : f32 to vector<6x18x128xf32>
    %15 = arith.mulf %14, %13 : vector<6x18x128xf32>
    %16 = arith.addf %12, %15 : vector<6x18x128xf32>
    %17 = vector.shape_cast %9 : vector<6x18x128xf32> to vector<6x1x18x128xf32>
    %18 = vector.shape_cast %16 : vector<6x18x128xf32> to vector<6x1x18x128xf32>
    %19 = tpu.concatenate %17, %18 in 1 : vector<6x1x18x128xf32>, vector<6x1x18x128xf32> -> vector<6x2x18x128xf32>
    %20 = vector.shape_cast %19 : vector<6x2x18x128xf32> to vector<12x18x128xf32>
    %21 = tpu.iota {dimensions = array<i32: 0>} : vector<12x18x1xi32>
    %c8_i32 = arith.constant 8 : i32
    %22 = arith.muli %arg1, %c8_i32 : i32
    %c2_i32 = arith.constant 2 : i32
    %23 = arith.subi %22, %c2_i32 : i32
    %24 = vector.broadcast %23 : i32 to vector<12x18x1xi32>
    %25 = arith.addi %21, %24 : vector<12x18x1xi32>
    %c0_i32 = arith.constant 0 : i32
    %26 = vector.broadcast %c0_i32 : i32 to vector<12x18x1xi32>
    %27 = arith.cmpi sge, %25, %26 : vector<12x18x1xi32>
    %c16_i32 = arith.constant 16 : i32
    %28 = vector.broadcast %c16_i32 : i32 to vector<12x18x1xi32>
    %29 = arith.cmpi slt, %25, %28 : vector<12x18x1xi32>
    %30 = arith.andi %27, %29 : vector<12x18x1xi1>
    %cst_7 = arith.constant 0.000000e+00 : f32
    %31 = vector.shape_cast %30 : vector<12x18x1xi1> to vector<12x18x1xi1>
    %32 = vector.broadcast %31 : vector<12x18x1xi1> to vector<12x18x128xi1>
    %33 = vector.broadcast %cst_7 : f32 to vector<12x18x128xf32>
    %34 = arith.select %32, %20, %33 : vector<12x18x128xi1>, vector<12x18x128xf32>
    %35 = arith.truncf %34 : vector<12x18x128xf32> to vector<12x18x128xbf16>
    %c0_8 = arith.constant 0 : index
    %c0_9 = arith.constant 0 : index
    %c0_10 = arith.constant 0 : index
    %c0_11 = arith.constant 0 : index
    %c0_12 = arith.constant 0 : index
    %36 = vector.load %arg3[%c0_8, %c0_9, %c0_10, %c0_11, %c0_12] : memref<1x1x12x18x128xbf16, #tpu.memory_space<vmem>>, vector<1x1x12x18x128xbf16>
    %37 = vector.shape_cast %36 : vector<1x1x12x18x128xbf16> to vector<12x18x128xbf16>
    %cst_13 = arith.constant 0.000000e+00 : f32
    %38 = vector.broadcast %cst_13 : f32 to vector<160x128xf32>
    %39 = vector.extract_strided_slice %35 {offsets = [0, 0, 0], sizes = [10, 16, 128], strides = [1, 1, 1]} : vector<12x18x128xbf16> to vector<10x16x128xbf16>
    %40 = vector.shape_cast %39 : vector<10x16x128xbf16> to vector<160x128xbf16>
    %41 = vector.extract_strided_slice %37 {offsets = [0, 0, 0], sizes = [10, 16, 128], strides = [1, 1, 1]} : vector<12x18x128xbf16> to vector<10x16x128xbf16>
    %42 = vector.shape_cast %41 : vector<10x16x128xbf16> to vector<160x128xbf16>
    %c0_14 = arith.constant 0 : index
    %c0_15 = arith.constant 0 : index
    %c0_16 = arith.constant 0 : index
    %43 = vector.load %arg4[%c0_14, %c0_15, %c0_16] : memref<9x128x128xbf16, #tpu.memory_space<vmem>>, vector<1x128x128xbf16>
    %44 = vector.shape_cast %43 : vector<1x128x128xbf16> to vector<128x128xbf16>
    %cst_17 = arith.constant dense<0.000000e+00> : vector<160x128xf32>
    %45 = tpu.matmul %40, %44, %cst_17 {dimension_numbers = #tpu.dot_dimension_numbers<[1], [0], [0], [1], [0, 0, 1, 1], [], []>} : vector<160x128xbf16>, vector<128x128xbf16>, vector<160x128xf32> -> vector<160x128xf32>
    %46 = arith.addf %38, %45 : vector<160x128xf32>
    %c0_18 = arith.constant 0 : index
    %c0_19 = arith.constant 0 : index
    %c0_20 = arith.constant 0 : index
    %47 = vector.load %arg5[%c0_18, %c0_19, %c0_20] : memref<9x128x128xbf16, #tpu.memory_space<vmem>>, vector<1x128x128xbf16>
    %48 = vector.shape_cast %47 : vector<1x128x128xbf16> to vector<128x128xbf16>
    %cst_21 = arith.constant dense<0.000000e+00> : vector<160x128xf32>
    %49 = tpu.matmul %42, %48, %cst_21 {dimension_numbers = #tpu.dot_dimension_numbers<[1], [0], [0], [1], [0, 0, 1, 1], [], []>} : vector<160x128xbf16>, vector<128x128xbf16>, vector<160x128xf32> -> vector<160x128xf32>
    %50 = arith.addf %46, %49 : vector<160x128xf32>
    %51 = vector.extract_strided_slice %35 {offsets = [0, 1, 0], sizes = [10, 16, 128], strides = [1, 1, 1]} : vector<12x18x128xbf16> to vector<10x16x128xbf16>
    %52 = vector.shape_cast %51 : vector<10x16x128xbf16> to vector<160x128xbf16>
    %53 = vector.extract_strided_slice %37 {offsets = [0, 1, 0], sizes = [10, 16, 128], strides = [1, 1, 1]} : vector<12x18x128xbf16> to vector<10x16x128xbf16>
    %54 = vector.shape_cast %53 : vector<10x16x128xbf16> to vector<160x128xbf16>
    %c1 = arith.constant 1 : index
    %c0_22 = arith.constant 0 : index
    %c0_23 = arith.constant 0 : index
    %55 = vector.load %arg4[%c1, %c0_22, %c0_23] : memref<9x128x128xbf16, #tpu.memory_space<vmem>>, vector<1x128x128xbf16>
    %56 = vector.shape_cast %55 : vector<1x128x128xbf16> to vector<128x128xbf16>
    %cst_24 = arith.constant dense<0.000000e+00> : vector<160x128xf32>
    %57 = tpu.matmul %52, %56, %cst_24 {dimension_numbers = #tpu.dot_dimension_numbers<[1], [0], [0], [1], [0, 0, 1, 1], [], []>} : vector<160x128xbf16>, vector<128x128xbf16>, vector<160x128xf32> -> vector<160x128xf32>
    %58 = arith.addf %50, %57 : vector<160x128xf32>
    %c1_25 = arith.constant 1 : index
    %c0_26 = arith.constant 0 : index
    %c0_27 = arith.constant 0 : index
    %59 = vector.load %arg5[%c1_25, %c0_26, %c0_27] : memref<9x128x128xbf16, #tpu.memory_space<vmem>>, vector<1x128x128xbf16>
    %60 = vector.shape_cast %59 : vector<1x128x128xbf16> to vector<128x128xbf16>
    %cst_28 = arith.constant dense<0.000000e+00> : vector<160x128xf32>
    %61 = tpu.matmul %54, %60, %cst_28 {dimension_numbers = #tpu.dot_dimension_numbers<[1], [0], [0], [1], [0, 0, 1, 1], [], []>} : vector<160x128xbf16>, vector<128x128xbf16>, vector<160x128xf32> -> vector<160x128xf32>
    %62 = arith.addf %58, %61 : vector<160x128xf32>
    %63 = vector.extract_strided_slice %35 {offsets = [0, 2, 0], sizes = [10, 16, 128], strides = [1, 1, 1]} : vector<12x18x128xbf16> to vector<10x16x128xbf16>
    %64 = vector.shape_cast %63 : vector<10x16x128xbf16> to vector<160x128xbf16>
    %65 = vector.extract_strided_slice %37 {offsets = [0, 2, 0], sizes = [10, 16, 128], strides = [1, 1, 1]} : vector<12x18x128xbf16> to vector<10x16x128xbf16>
    %66 = vector.shape_cast %65 : vector<10x16x128xbf16> to vector<160x128xbf16>
    %c2 = arith.constant 2 : index
    %c0_29 = arith.constant 0 : index
    %c0_30 = arith.constant 0 : index
    %67 = vector.load %arg4[%c2, %c0_29, %c0_30] : memref<9x128x128xbf16, #tpu.memory_space<vmem>>, vector<1x128x128xbf16>
    %68 = vector.shape_cast %67 : vector<1x128x128xbf16> to vector<128x128xbf16>
    %cst_31 = arith.constant dense<0.000000e+00> : vector<160x128xf32>
    %69 = tpu.matmul %64, %68, %cst_31 {dimension_numbers = #tpu.dot_dimension_numbers<[1], [0], [0], [1], [0, 0, 1, 1], [], []>} : vector<160x128xbf16>, vector<128x128xbf16>, vector<160x128xf32> -> vector<160x128xf32>
    %70 = arith.addf %62, %69 : vector<160x128xf32>
    %c2_32 = arith.constant 2 : index
    %c0_33 = arith.constant 0 : index
    %c0_34 = arith.constant 0 : index
    %71 = vector.load %arg5[%c2_32, %c0_33, %c0_34] : memref<9x128x128xbf16, #tpu.memory_space<vmem>>, vector<1x128x128xbf16>
    %72 = vector.shape_cast %71 : vector<1x128x128xbf16> to vector<128x128xbf16>
    %cst_35 = arith.constant dense<0.000000e+00> : vector<160x128xf32>
    %73 = tpu.matmul %66, %72, %cst_35 {dimension_numbers = #tpu.dot_dimension_numbers<[1], [0], [0], [1], [0, 0, 1, 1], [], []>} : vector<160x128xbf16>, vector<128x128xbf16>, vector<160x128xf32> -> vector<160x128xf32>
    %74 = arith.addf %70, %73 : vector<160x128xf32>
    %75 = vector.extract_strided_slice %35 {offsets = [1, 0, 0], sizes = [10, 16, 128], strides = [1, 1, 1]} : vector<12x18x128xbf16> to vector<10x16x128xbf16>
    %76 = vector.shape_cast %75 : vector<10x16x128xbf16> to vector<160x128xbf16>
    %77 = vector.extract_strided_slice %37 {offsets = [1, 0, 0], sizes = [10, 16, 128], strides = [1, 1, 1]} : vector<12x18x128xbf16> to vector<10x16x128xbf16>
    %78 = vector.shape_cast %77 : vector<10x16x128xbf16> to vector<160x128xbf16>
    %c3 = arith.constant 3 : index
    %c0_36 = arith.constant 0 : index
    %c0_37 = arith.constant 0 : index
    %79 = vector.load %arg4[%c3, %c0_36, %c0_37] : memref<9x128x128xbf16, #tpu.memory_space<vmem>>, vector<1x128x128xbf16>
    %80 = vector.shape_cast %79 : vector<1x128x128xbf16> to vector<128x128xbf16>
    %cst_38 = arith.constant dense<0.000000e+00> : vector<160x128xf32>
    %81 = tpu.matmul %76, %80, %cst_38 {dimension_numbers = #tpu.dot_dimension_numbers<[1], [0], [0], [1], [0, 0, 1, 1], [], []>} : vector<160x128xbf16>, vector<128x128xbf16>, vector<160x128xf32> -> vector<160x128xf32>
    %82 = arith.addf %74, %81 : vector<160x128xf32>
    %c3_39 = arith.constant 3 : index
    %c0_40 = arith.constant 0 : index
    %c0_41 = arith.constant 0 : index
    %83 = vector.load %arg5[%c3_39, %c0_40, %c0_41] : memref<9x128x128xbf16, #tpu.memory_space<vmem>>, vector<1x128x128xbf16>
    %84 = vector.shape_cast %83 : vector<1x128x128xbf16> to vector<128x128xbf16>
    %cst_42 = arith.constant dense<0.000000e+00> : vector<160x128xf32>
    %85 = tpu.matmul %78, %84, %cst_42 {dimension_numbers = #tpu.dot_dimension_numbers<[1], [0], [0], [1], [0, 0, 1, 1], [], []>} : vector<160x128xbf16>, vector<128x128xbf16>, vector<160x128xf32> -> vector<160x128xf32>
    %86 = arith.addf %82, %85 : vector<160x128xf32>
    %87 = vector.extract_strided_slice %35 {offsets = [1, 1, 0], sizes = [10, 16, 128], strides = [1, 1, 1]} : vector<12x18x128xbf16> to vector<10x16x128xbf16>
    %88 = vector.shape_cast %87 : vector<10x16x128xbf16> to vector<160x128xbf16>
    %89 = vector.extract_strided_slice %37 {offsets = [1, 1, 0], sizes = [10, 16, 128], strides = [1, 1, 1]} : vector<12x18x128xbf16> to vector<10x16x128xbf16>
    %90 = vector.shape_cast %89 : vector<10x16x128xbf16> to vector<160x128xbf16>
    %c4 = arith.constant 4 : index
    %c0_43 = arith.constant 0 : index
    %c0_44 = arith.constant 0 : index
    %91 = vector.load %arg4[%c4, %c0_43, %c0_44] : memref<9x128x128xbf16, #tpu.memory_space<vmem>>, vector<1x128x128xbf16>
    %92 = vector.shape_cast %91 : vector<1x128x128xbf16> to vector<128x128xbf16>
    %cst_45 = arith.constant dense<0.000000e+00> : vector<160x128xf32>
    %93 = tpu.matmul %88, %92, %cst_45 {dimension_numbers = #tpu.dot_dimension_numbers<[1], [0], [0], [1], [0, 0, 1, 1], [], []>} : vector<160x128xbf16>, vector<128x128xbf16>, vector<160x128xf32> -> vector<160x128xf32>
    %94 = arith.addf %86, %93 : vector<160x128xf32>
    %c4_46 = arith.constant 4 : index
    %c0_47 = arith.constant 0 : index
    %c0_48 = arith.constant 0 : index
    %95 = vector.load %arg5[%c4_46, %c0_47, %c0_48] : memref<9x128x128xbf16, #tpu.memory_space<vmem>>, vector<1x128x128xbf16>
    %96 = vector.shape_cast %95 : vector<1x128x128xbf16> to vector<128x128xbf16>
    %cst_49 = arith.constant dense<0.000000e+00> : vector<160x128xf32>
    %97 = tpu.matmul %90, %96, %cst_49 {dimension_numbers = #tpu.dot_dimension_numbers<[1], [0], [0], [1], [0, 0, 1, 1], [], []>} : vector<160x128xbf16>, vector<128x128xbf16>, vector<160x128xf32> -> vector<160x128xf32>
    %98 = arith.addf %94, %97 : vector<160x128xf32>
    %99 = vector.extract_strided_slice %35 {offsets = [1, 2, 0], sizes = [10, 16, 128], strides = [1, 1, 1]} : vector<12x18x128xbf16> to vector<10x16x128xbf16>
    %100 = vector.shape_cast %99 : vector<10x16x128xbf16> to vector<160x128xbf16>
    %101 = vector.extract_strided_slice %37 {offsets = [1, 2, 0], sizes = [10, 16, 128], strides = [1, 1, 1]} : vector<12x18x128xbf16> to vector<10x16x128xbf16>
    %102 = vector.shape_cast %101 : vector<10x16x128xbf16> to vector<160x128xbf16>
    %c5 = arith.constant 5 : index
    %c0_50 = arith.constant 0 : index
    %c0_51 = arith.constant 0 : index
    %103 = vector.load %arg4[%c5, %c0_50, %c0_51] : memref<9x128x128xbf16, #tpu.memory_space<vmem>>, vector<1x128x128xbf16>
    %104 = vector.shape_cast %103 : vector<1x128x128xbf16> to vector<128x128xbf16>
    %cst_52 = arith.constant dense<0.000000e+00> : vector<160x128xf32>
    %105 = tpu.matmul %100, %104, %cst_52 {dimension_numbers = #tpu.dot_dimension_numbers<[1], [0], [0], [1], [0, 0, 1, 1], [], []>} : vector<160x128xbf16>, vector<128x128xbf16>, vector<160x128xf32> -> vector<160x128xf32>
    %106 = arith.addf %98, %105 : vector<160x128xf32>
    %c5_53 = arith.constant 5 : index
    %c0_54 = arith.constant 0 : index
    %c0_55 = arith.constant 0 : index
    %107 = vector.load %arg5[%c5_53, %c0_54, %c0_55] : memref<9x128x128xbf16, #tpu.memory_space<vmem>>, vector<1x128x128xbf16>
    %108 = vector.shape_cast %107 : vector<1x128x128xbf16> to vector<128x128xbf16>
    %cst_56 = arith.constant dense<0.000000e+00> : vector<160x128xf32>
    %109 = tpu.matmul %102, %108, %cst_56 {dimension_numbers = #tpu.dot_dimension_numbers<[1], [0], [0], [1], [0, 0, 1, 1], [], []>} : vector<160x128xbf16>, vector<128x128xbf16>, vector<160x128xf32> -> vector<160x128xf32>
    %110 = arith.addf %106, %109 : vector<160x128xf32>
    %111 = vector.extract_strided_slice %35 {offsets = [2, 0, 0], sizes = [10, 16, 128], strides = [1, 1, 1]} : vector<12x18x128xbf16> to vector<10x16x128xbf16>
    %112 = vector.shape_cast %111 : vector<10x16x128xbf16> to vector<160x128xbf16>
    %113 = vector.extract_strided_slice %37 {offsets = [2, 0, 0], sizes = [10, 16, 128], strides = [1, 1, 1]} : vector<12x18x128xbf16> to vector<10x16x128xbf16>
    %114 = vector.shape_cast %113 : vector<10x16x128xbf16> to vector<160x128xbf16>
    %c6 = arith.constant 6 : index
    %c0_57 = arith.constant 0 : index
    %c0_58 = arith.constant 0 : index
    %115 = vector.load %arg4[%c6, %c0_57, %c0_58] : memref<9x128x128xbf16, #tpu.memory_space<vmem>>, vector<1x128x128xbf16>
    %116 = vector.shape_cast %115 : vector<1x128x128xbf16> to vector<128x128xbf16>
    %cst_59 = arith.constant dense<0.000000e+00> : vector<160x128xf32>
    %117 = tpu.matmul %112, %116, %cst_59 {dimension_numbers = #tpu.dot_dimension_numbers<[1], [0], [0], [1], [0, 0, 1, 1], [], []>} : vector<160x128xbf16>, vector<128x128xbf16>, vector<160x128xf32> -> vector<160x128xf32>
    %118 = arith.addf %110, %117 : vector<160x128xf32>
    %c6_60 = arith.constant 6 : index
    %c0_61 = arith.constant 0 : index
    %c0_62 = arith.constant 0 : index
    %119 = vector.load %arg5[%c6_60, %c0_61, %c0_62] : memref<9x128x128xbf16, #tpu.memory_space<vmem>>, vector<1x128x128xbf16>
    %120 = vector.shape_cast %119 : vector<1x128x128xbf16> to vector<128x128xbf16>
    %cst_63 = arith.constant dense<0.000000e+00> : vector<160x128xf32>
    %121 = tpu.matmul %114, %120, %cst_63 {dimension_numbers = #tpu.dot_dimension_numbers<[1], [0], [0], [1], [0, 0, 1, 1], [], []>} : vector<160x128xbf16>, vector<128x128xbf16>, vector<160x128xf32> -> vector<160x128xf32>
    %122 = arith.addf %118, %121 : vector<160x128xf32>
    %123 = vector.extract_strided_slice %35 {offsets = [2, 1, 0], sizes = [10, 16, 128], strides = [1, 1, 1]} : vector<12x18x128xbf16> to vector<10x16x128xbf16>
    %124 = vector.shape_cast %123 : vector<10x16x128xbf16> to vector<160x128xbf16>
    %125 = vector.extract_strided_slice %37 {offsets = [2, 1, 0], sizes = [10, 16, 128], strides = [1, 1, 1]} : vector<12x18x128xbf16> to vector<10x16x128xbf16>
    %126 = vector.shape_cast %125 : vector<10x16x128xbf16> to vector<160x128xbf16>
    %c7 = arith.constant 7 : index
    %c0_64 = arith.constant 0 : index
    %c0_65 = arith.constant 0 : index
    %127 = vector.load %arg4[%c7, %c0_64, %c0_65] : memref<9x128x128xbf16, #tpu.memory_space<vmem>>, vector<1x128x128xbf16>
    %128 = vector.shape_cast %127 : vector<1x128x128xbf16> to vector<128x128xbf16>
    %cst_66 = arith.constant dense<0.000000e+00> : vector<160x128xf32>
    %129 = tpu.matmul %124, %128, %cst_66 {dimension_numbers = #tpu.dot_dimension_numbers<[1], [0], [0], [1], [0, 0, 1, 1], [], []>} : vector<160x128xbf16>, vector<128x128xbf16>, vector<160x128xf32> -> vector<160x128xf32>
    %130 = arith.addf %122, %129 : vector<160x128xf32>
    %c7_67 = arith.constant 7 : index
    %c0_68 = arith.constant 0 : index
    %c0_69 = arith.constant 0 : index
    %131 = vector.load %arg5[%c7_67, %c0_68, %c0_69] : memref<9x128x128xbf16, #tpu.memory_space<vmem>>, vector<1x128x128xbf16>
    %132 = vector.shape_cast %131 : vector<1x128x128xbf16> to vector<128x128xbf16>
    %cst_70 = arith.constant dense<0.000000e+00> : vector<160x128xf32>
    %133 = tpu.matmul %126, %132, %cst_70 {dimension_numbers = #tpu.dot_dimension_numbers<[1], [0], [0], [1], [0, 0, 1, 1], [], []>} : vector<160x128xbf16>, vector<128x128xbf16>, vector<160x128xf32> -> vector<160x128xf32>
    %134 = arith.addf %130, %133 : vector<160x128xf32>
    %135 = vector.extract_strided_slice %35 {offsets = [2, 2, 0], sizes = [10, 16, 128], strides = [1, 1, 1]} : vector<12x18x128xbf16> to vector<10x16x128xbf16>
    %136 = vector.shape_cast %135 : vector<10x16x128xbf16> to vector<160x128xbf16>
    %137 = vector.extract_strided_slice %37 {offsets = [2, 2, 0], sizes = [10, 16, 128], strides = [1, 1, 1]} : vector<12x18x128xbf16> to vector<10x16x128xbf16>
    %138 = vector.shape_cast %137 : vector<10x16x128xbf16> to vector<160x128xbf16>
    %c8 = arith.constant 8 : index
    %c0_71 = arith.constant 0 : index
    %c0_72 = arith.constant 0 : index
    %139 = vector.load %arg4[%c8, %c0_71, %c0_72] : memref<9x128x128xbf16, #tpu.memory_space<vmem>>, vector<1x128x128xbf16>
    %140 = vector.shape_cast %139 : vector<1x128x128xbf16> to vector<128x128xbf16>
    %cst_73 = arith.constant dense<0.000000e+00> : vector<160x128xf32>
    %141 = tpu.matmul %136, %140, %cst_73 {dimension_numbers = #tpu.dot_dimension_numbers<[1], [0], [0], [1], [0, 0, 1, 1], [], []>} : vector<160x128xbf16>, vector<128x128xbf16>, vector<160x128xf32> -> vector<160x128xf32>
    %142 = arith.addf %134, %141 : vector<160x128xf32>
    %c8_74 = arith.constant 8 : index
    %c0_75 = arith.constant 0 : index
    %c0_76 = arith.constant 0 : index
    %143 = vector.load %arg5[%c8_74, %c0_75, %c0_76] : memref<9x128x128xbf16, #tpu.memory_space<vmem>>, vector<1x128x128xbf16>
    %144 = vector.shape_cast %143 : vector<1x128x128xbf16> to vector<128x128xbf16>
    %cst_77 = arith.constant dense<0.000000e+00> : vector<160x128xf32>
    %145 = tpu.matmul %138, %144, %cst_77 {dimension_numbers = #tpu.dot_dimension_numbers<[1], [0], [0], [1], [0, 0, 1, 1], [], []>} : vector<160x128xbf16>, vector<128x128xbf16>, vector<160x128xf32> -> vector<160x128xf32>
    %146 = arith.addf %142, %145 : vector<160x128xf32>
    %c0_78 = arith.constant 0 : index
    %c0_79 = arith.constant 0 : index
    %147 = vector.load %arg6[%c0_78, %c0_79] : memref<1x128xf32, #tpu.memory_space<vmem>>, vector<1x128xf32>
    %148 = vector.broadcast %147 : vector<1x128xf32> to vector<160x128xf32>
    %149 = arith.addf %146, %148 : vector<160x128xf32>
    %cst_80 = arith.constant 0.000000e+00 : f32
    %150 = vector.broadcast %cst_80 : f32 to vector<160x128xf32>
    %151 = arith.maximumf %149, %150 : vector<160x128xf32>
    %152 = vector.shape_cast %151 : vector<160x128xf32> to vector<10x16x128xf32>
    %153 = vector.extract_strided_slice %152 {offsets = [1, 0, 0], sizes = [8, 16, 128], strides = [1, 1, 1]} : vector<10x16x128xf32> to vector<8x16x128xf32>
    %154 = tpu.iota {dimensions = array<i32: 0>} : vector<8x16x1xi32>
    %c8_i32_81 = arith.constant 8 : i32
    %155 = arith.muli %arg1, %c8_i32_81 : i32
    %156 = vector.broadcast %155 : i32 to vector<8x16x1xi32>
    %157 = arith.addi %154, %156 : vector<8x16x1xi32>
    %c16_i32_82 = arith.constant 16 : i32
    %158 = vector.broadcast %c16_i32_82 : i32 to vector<8x16x1xi32>
    %159 = arith.cmpi slt, %157, %158 : vector<8x16x1xi32>
    %cst_83 = arith.constant 0.000000e+00 : f32
    %160 = vector.shape_cast %159 : vector<8x16x1xi1> to vector<8x16x1xi1>
    %161 = vector.broadcast %160 : vector<8x16x1xi1> to vector<8x16x128xi1>
    %162 = vector.broadcast %cst_83 : f32 to vector<8x16x128xf32>
    %163 = arith.select %161, %153, %162 : vector<8x16x128xi1>, vector<8x16x128xf32>
    %164 = vector.shape_cast %163 : vector<8x16x128xf32> to vector<128x128xf32>
    %cst_84 = arith.constant dense<0.000000e+00> : vector<128xf32>
    %165 = vector.multi_reduction <add>, %164, %cst_84 [0] : vector<128x128xf32> to vector<128xf32>
    %166 = vector.shape_cast %165 : vector<128xf32> to vector<1x128xf32>
    %167 = arith.mulf %163, %153 : vector<8x16x128xf32>
    %168 = vector.shape_cast %167 : vector<8x16x128xf32> to vector<128x128xf32>
    %cst_85 = arith.constant dense<0.000000e+00> : vector<128xf32>
    %169 = vector.multi_reduction <add>, %168, %cst_85 [0] : vector<128x128xf32> to vector<128xf32>
    %170 = vector.shape_cast %169 : vector<128xf32> to vector<1x128xf32>
    %cst_86 = arith.constant 0.000000e+00 : f32
    %171 = vector.broadcast %cst_86 : f32 to vector<6x128xf32>
    %172 = tpu.concatenate %166, %170, %171 in 0 : vector<1x128xf32>, vector<1x128xf32>, vector<6x128xf32> -> vector<8x128xf32>
    %173 = vector.shape_cast %172 : vector<8x128xf32> to vector<1x1x8x128xf32>
    %c0_87 = arith.constant 0 : index
    %c0_88 = arith.constant 0 : index
    %c0_89 = arith.constant 0 : index
    %c0_90 = arith.constant 0 : index
    %174 = vector.load %arg8[%c0_87, %c0_88, %c0_89, %c0_90] : memref<1x1x8x128xf32, #tpu.memory_space<vmem>>, vector<1x1x8x128xf32>
    tpu.vector_store %arg8[%c0_87, %c0_88, %c0_89, %c0_90], %173 {strides = array<i32>} : memref<1x1x8x128xf32, #tpu.memory_space<vmem>>, vector<1x1x8x128xf32>,
    %175 = arith.truncf %152 : vector<10x16x128xf32> to vector<10x16x128xbf16>
    %cst_91 = arith.constant 0.000000e+00 : bf16
    %176 = vector.broadcast %cst_91 : bf16 to vector<10x1x128xbf16>
    %177 = tpu.concatenate %176, %175, %176 in 1 : vector<10x1x128xbf16>, vector<10x16x128xbf16>, vector<10x1x128xbf16> -> vector<10x18x128xbf16>
    %178 = vector.shape_cast %177 : vector<10x18x128xbf16> to vector<1x1x10x18x128xbf16>
    %c0_92 = arith.constant 0 : index
    %c0_93 = arith.constant 0 : index
    %c0_94 = arith.constant 0 : index
    %c0_95 = arith.constant 0 : index
    %c0_96 = arith.constant 0 : index
    %179 = vector.load %arg7[%c0_92, %c0_93, %c0_94, %c0_95, %c0_96] : memref<1x1x10x18x128xbf16, #tpu.memory_space<vmem>>, vector<1x1x10x18x128xbf16>
    tpu.vector_store %arg7[%c0_92, %c0_93, %c0_94, %c0_95, %c0_96], %178 {strides = array<i32>} : memref<1x1x10x18x128xbf16, #tpu.memory_space<vmem>>, vector<1x1x10x18x128xbf16>,
    return
  }
  func.func @transform_0(%arg0: i32, %arg1: i32) -> (i32, i32, i32, i32, i32) {
    %c0_i32 = arith.constant 0 : i32
    %c0_i32_0 = arith.constant 0 : i32
    %c0_i32_1 = arith.constant 0 : i32
    %c0_i32_2 = arith.constant 0 : i32
    return %arg0, %arg1, %c0_i32, %c0_i32_0, %c0_i32_1 : i32, i32, i32, i32, i32
  }
  func.func @transform_1(%arg0: i32, %arg1: i32) -> (i32, i32, i32, i32, i32) {
    %c0_i32 = arith.constant 0 : i32
    %c0_i32_0 = arith.constant 0 : i32
    %c0_i32_1 = arith.constant 0 : i32
    %c0_i32_2 = arith.constant 0 : i32
    return %arg0, %arg1, %c0_i32, %c0_i32_0, %c0_i32_1 : i32, i32, i32, i32, i32
  }
  func.func @transform_2(%arg0: i32, %arg1: i32) -> (i32, i32, i32) {
    %c0_i32 = arith.constant 0 : i32
    %c0_i32_0 = arith.constant 0 : i32
    %c0_i32_1 = arith.constant 0 : i32
    %c0_i32_2 = arith.constant 0 : i32
    return %c0_i32, %c0_i32_0, %c0_i32_1 : i32, i32, i32
  }
  func.func @transform_3(%arg0: i32, %arg1: i32) -> (i32, i32, i32) {
    %c0_i32 = arith.constant 0 : i32
    %c0_i32_0 = arith.constant 0 : i32
    %c0_i32_1 = arith.constant 0 : i32
    %c0_i32_2 = arith.constant 0 : i32
    return %c0_i32, %c0_i32_0, %c0_i32_1 : i32, i32, i32
  }
  func.func @transform_4(%arg0: i32, %arg1: i32) -> (i32, i32) {
    %c0_i32 = arith.constant 0 : i32
    %c0_i32_0 = arith.constant 0 : i32
    %c0_i32_1 = arith.constant 0 : i32
    return %c0_i32, %c0_i32_0 : i32, i32
  }
  func.func @transform_5(%arg0: i32, %arg1: i32) -> (i32, i32, i32, i32, i32) {
    %c0_i32 = arith.constant 0 : i32
    %c0_i32_0 = arith.constant 0 : i32
    %c0_i32_1 = arith.constant 0 : i32
    %c0_i32_2 = arith.constant 0 : i32
    return %arg0, %arg1, %c0_i32, %c0_i32_0, %c0_i32_1 : i32, i32, i32, i32, i32
  }
  func.func @transform_6(%arg0: i32, %arg1: i32) -> (i32, i32, i32, i32) {
    %c0_i32 = arith.constant 0 : i32
    %c0_i32_0 = arith.constant 0 : i32
    %c0_i32_1 = arith.constant 0 : i32
    return %arg0, %arg1, %c0_i32, %c0_i32_0 : i32, i32, i32, i32
  }
}

module attributes {stable_mosaic.version = 11 : i64} {
  func.func @_upconv_conv2_kernel(%arg0: i32, %arg1: i32, %arg2: memref<1x1x10x18x128xbf16, #tpu.memory_space<vmem>>, %arg3: memref<1x128xf32, #tpu.memory_space<vmem>>, %arg4: memref<1x128xf32, #tpu.memory_space<vmem>>, %arg5: memref<9x128x128xbf16, #tpu.memory_space<vmem>>, %arg6: memref<1x128xf32, #tpu.memory_space<vmem>>, %arg7: memref<1x8x16x128xbf16, #tpu.memory_space<vmem>>, %arg8: memref<1x1x8x128xf32, #tpu.memory_space<vmem>>) attributes {dimension_semantics = [#tpu.dimension_semantics<parallel>, #tpu.dimension_semantics<parallel>], iteration_bounds = array<i64: 2, 2>, scalar_prefetch = 0 : i64, scratch_operands = 0 : i64, tpu.core_type = #tpu.core_type<tc>, window_params = [{transform_indices = @transform_0, window_bounds = array<i64: 1, 1, 10, 18, 128>}, {pipeline_mode = #tpu.pipeline_mode<synchronous>, transform_indices = @transform_1, window_bounds = array<i64: 1, 128>}, {pipeline_mode = #tpu.pipeline_mode<synchronous>, transform_indices = @transform_2, window_bounds = array<i64: 1, 128>}, {pipeline_mode = #tpu.pipeline_mode<synchronous>, transform_indices = @transform_3, window_bounds = array<i64: 9, 128, 128>}, {pipeline_mode = #tpu.pipeline_mode<synchronous>, transform_indices = @transform_4, window_bounds = array<i64: 1, 128>}, {transform_indices = @transform_5, window_bounds = array<i64: 1, 8, 16, 128>}, {transform_indices = @transform_6, window_bounds = array<i64: 1, 1, 8, 128>}]} {
    %c0 = arith.constant 0 : index
    %c0_0 = arith.constant 0 : index
    %c0_1 = arith.constant 0 : index
    %c0_2 = arith.constant 0 : index
    %c0_3 = arith.constant 0 : index
    %0 = vector.load %arg2[%c0, %c0_0, %c0_1, %c0_2, %c0_3] : memref<1x1x10x18x128xbf16, #tpu.memory_space<vmem>>, vector<1x1x10x18x128xbf16>
    %1 = vector.shape_cast %0 : vector<1x1x10x18x128xbf16> to vector<10x18x128xbf16>
    %2 = arith.extf %1 : vector<10x18x128xbf16> to vector<10x18x128xf32>
    %c0_4 = arith.constant 0 : index
    %c0_5 = arith.constant 0 : index
    %3 = vector.load %arg3[%c0_4, %c0_5] : memref<1x128xf32, #tpu.memory_space<vmem>>, vector<1x128xf32>
    %4 = vector.shape_cast %3 : vector<1x128xf32> to vector<1x1x128xf32>
    %5 = vector.broadcast %4 : vector<1x1x128xf32> to vector<10x18x128xf32>
    %6 = arith.mulf %2, %5 : vector<10x18x128xf32>
    %c0_6 = arith.constant 0 : index
    %c0_7 = arith.constant 0 : index
    %7 = vector.load %arg4[%c0_6, %c0_7] : memref<1x128xf32, #tpu.memory_space<vmem>>, vector<1x128xf32>
    %8 = vector.shape_cast %7 : vector<1x128xf32> to vector<1x1x128xf32>
    %9 = vector.broadcast %8 : vector<1x1x128xf32> to vector<10x18x128xf32>
    %10 = arith.addf %6, %9 : vector<10x18x128xf32>
    %11 = tpu.iota {dimensions = array<i32: 0>} : vector<10x18x1xi32>
    %c8_i32 = arith.constant 8 : i32
    %12 = arith.muli %arg1, %c8_i32 : i32
    %c1_i32 = arith.constant 1 : i32
    %13 = arith.subi %12, %c1_i32 : i32
    %14 = vector.broadcast %13 : i32 to vector<10x18x1xi32>
    %15 = arith.addi %11, %14 : vector<10x18x1xi32>
    %16 = tpu.iota {dimensions = array<i32: 1>} : vector<10x18x1xi32>
    %c0_i32 = arith.constant 0 : i32
    %17 = vector.broadcast %c0_i32 : i32 to vector<10x18x1xi32>
    %18 = arith.cmpi sge, %15, %17 : vector<10x18x1xi32>
    %c16_i32 = arith.constant 16 : i32
    %19 = vector.broadcast %c16_i32 : i32 to vector<10x18x1xi32>
    %20 = arith.cmpi slt, %15, %19 : vector<10x18x1xi32>
    %21 = arith.andi %18, %20 : vector<10x18x1xi1>
    %c1_i32_8 = arith.constant 1 : i32
    %22 = vector.broadcast %c1_i32_8 : i32 to vector<10x18x1xi32>
    %23 = arith.cmpi sge, %16, %22 : vector<10x18x1xi32>
    %c16_i32_9 = arith.constant 16 : i32
    %24 = vector.broadcast %c16_i32_9 : i32 to vector<10x18x1xi32>
    %25 = arith.cmpi sle, %16, %24 : vector<10x18x1xi32>
    %26 = arith.andi %23, %25 : vector<10x18x1xi1>
    %27 = arith.andi %21, %26 : vector<10x18x1xi1>
    %cst = arith.constant 0.000000e+00 : f32
    %28 = vector.shape_cast %27 : vector<10x18x1xi1> to vector<10x18x1xi1>
    %29 = vector.broadcast %28 : vector<10x18x1xi1> to vector<10x18x128xi1>
    %30 = vector.broadcast %cst : f32 to vector<10x18x128xf32>
    %31 = arith.select %29, %10, %30 : vector<10x18x128xi1>, vector<10x18x128xf32>
    %32 = arith.truncf %31 : vector<10x18x128xf32> to vector<10x18x128xbf16>
    %cst_10 = arith.constant 0.000000e+00 : f32
    %33 = vector.broadcast %cst_10 : f32 to vector<128x128xf32>
    %34 = vector.extract_strided_slice %32 {offsets = [0, 0, 0], sizes = [8, 16, 128], strides = [1, 1, 1]} : vector<10x18x128xbf16> to vector<8x16x128xbf16>
    %35 = vector.shape_cast %34 : vector<8x16x128xbf16> to vector<128x128xbf16>
    %c0_11 = arith.constant 0 : index
    %c0_12 = arith.constant 0 : index
    %c0_13 = arith.constant 0 : index
    %36 = vector.load %arg5[%c0_11, %c0_12, %c0_13] : memref<9x128x128xbf16, #tpu.memory_space<vmem>>, vector<1x128x128xbf16>
    %37 = vector.shape_cast %36 : vector<1x128x128xbf16> to vector<128x128xbf16>
    %cst_14 = arith.constant dense<0.000000e+00> : vector<128x128xf32>
    %38 = tpu.matmul %35, %37, %cst_14 {dimension_numbers = #tpu.dot_dimension_numbers<[1], [0], [0], [1], [0, 0, 1, 1], [], []>} : vector<128x128xbf16>, vector<128x128xbf16>, vector<128x128xf32> -> vector<128x128xf32>
    %39 = arith.addf %33, %38 : vector<128x128xf32>
    %40 = vector.extract_strided_slice %32 {offsets = [0, 1, 0], sizes = [8, 16, 128], strides = [1, 1, 1]} : vector<10x18x128xbf16> to vector<8x16x128xbf16>
    %41 = vector.shape_cast %40 : vector<8x16x128xbf16> to vector<128x128xbf16>
    %c1 = arith.constant 1 : index
    %c0_15 = arith.constant 0 : index
    %c0_16 = arith.constant 0 : index
    %42 = vector.load %arg5[%c1, %c0_15, %c0_16] : memref<9x128x128xbf16, #tpu.memory_space<vmem>>, vector<1x128x128xbf16>
    %43 = vector.shape_cast %42 : vector<1x128x128xbf16> to vector<128x128xbf16>
    %cst_17 = arith.constant dense<0.000000e+00> : vector<128x128xf32>
    %44 = tpu.matmul %41, %43, %cst_17 {dimension_numbers = #tpu.dot_dimension_numbers<[1], [0], [0], [1], [0, 0, 1, 1], [], []>} : vector<128x128xbf16>, vector<128x128xbf16>, vector<128x128xf32> -> vector<128x128xf32>
    %45 = arith.addf %39, %44 : vector<128x128xf32>
    %46 = vector.extract_strided_slice %32 {offsets = [0, 2, 0], sizes = [8, 16, 128], strides = [1, 1, 1]} : vector<10x18x128xbf16> to vector<8x16x128xbf16>
    %47 = vector.shape_cast %46 : vector<8x16x128xbf16> to vector<128x128xbf16>
    %c2 = arith.constant 2 : index
    %c0_18 = arith.constant 0 : index
    %c0_19 = arith.constant 0 : index
    %48 = vector.load %arg5[%c2, %c0_18, %c0_19] : memref<9x128x128xbf16, #tpu.memory_space<vmem>>, vector<1x128x128xbf16>
    %49 = vector.shape_cast %48 : vector<1x128x128xbf16> to vector<128x128xbf16>
    %cst_20 = arith.constant dense<0.000000e+00> : vector<128x128xf32>
    %50 = tpu.matmul %47, %49, %cst_20 {dimension_numbers = #tpu.dot_dimension_numbers<[1], [0], [0], [1], [0, 0, 1, 1], [], []>} : vector<128x128xbf16>, vector<128x128xbf16>, vector<128x128xf32> -> vector<128x128xf32>
    %51 = arith.addf %45, %50 : vector<128x128xf32>
    %52 = vector.extract_strided_slice %32 {offsets = [1, 0, 0], sizes = [8, 16, 128], strides = [1, 1, 1]} : vector<10x18x128xbf16> to vector<8x16x128xbf16>
    %53 = vector.shape_cast %52 : vector<8x16x128xbf16> to vector<128x128xbf16>
    %c3 = arith.constant 3 : index
    %c0_21 = arith.constant 0 : index
    %c0_22 = arith.constant 0 : index
    %54 = vector.load %arg5[%c3, %c0_21, %c0_22] : memref<9x128x128xbf16, #tpu.memory_space<vmem>>, vector<1x128x128xbf16>
    %55 = vector.shape_cast %54 : vector<1x128x128xbf16> to vector<128x128xbf16>
    %cst_23 = arith.constant dense<0.000000e+00> : vector<128x128xf32>
    %56 = tpu.matmul %53, %55, %cst_23 {dimension_numbers = #tpu.dot_dimension_numbers<[1], [0], [0], [1], [0, 0, 1, 1], [], []>} : vector<128x128xbf16>, vector<128x128xbf16>, vector<128x128xf32> -> vector<128x128xf32>
    %57 = arith.addf %51, %56 : vector<128x128xf32>
    %58 = vector.extract_strided_slice %32 {offsets = [1, 1, 0], sizes = [8, 16, 128], strides = [1, 1, 1]} : vector<10x18x128xbf16> to vector<8x16x128xbf16>
    %59 = vector.shape_cast %58 : vector<8x16x128xbf16> to vector<128x128xbf16>
    %c4 = arith.constant 4 : index
    %c0_24 = arith.constant 0 : index
    %c0_25 = arith.constant 0 : index
    %60 = vector.load %arg5[%c4, %c0_24, %c0_25] : memref<9x128x128xbf16, #tpu.memory_space<vmem>>, vector<1x128x128xbf16>
    %61 = vector.shape_cast %60 : vector<1x128x128xbf16> to vector<128x128xbf16>
    %cst_26 = arith.constant dense<0.000000e+00> : vector<128x128xf32>
    %62 = tpu.matmul %59, %61, %cst_26 {dimension_numbers = #tpu.dot_dimension_numbers<[1], [0], [0], [1], [0, 0, 1, 1], [], []>} : vector<128x128xbf16>, vector<128x128xbf16>, vector<128x128xf32> -> vector<128x128xf32>
    %63 = arith.addf %57, %62 : vector<128x128xf32>
    %64 = vector.extract_strided_slice %32 {offsets = [1, 2, 0], sizes = [8, 16, 128], strides = [1, 1, 1]} : vector<10x18x128xbf16> to vector<8x16x128xbf16>
    %65 = vector.shape_cast %64 : vector<8x16x128xbf16> to vector<128x128xbf16>
    %c5 = arith.constant 5 : index
    %c0_27 = arith.constant 0 : index
    %c0_28 = arith.constant 0 : index
    %66 = vector.load %arg5[%c5, %c0_27, %c0_28] : memref<9x128x128xbf16, #tpu.memory_space<vmem>>, vector<1x128x128xbf16>
    %67 = vector.shape_cast %66 : vector<1x128x128xbf16> to vector<128x128xbf16>
    %cst_29 = arith.constant dense<0.000000e+00> : vector<128x128xf32>
    %68 = tpu.matmul %65, %67, %cst_29 {dimension_numbers = #tpu.dot_dimension_numbers<[1], [0], [0], [1], [0, 0, 1, 1], [], []>} : vector<128x128xbf16>, vector<128x128xbf16>, vector<128x128xf32> -> vector<128x128xf32>
    %69 = arith.addf %63, %68 : vector<128x128xf32>
    %70 = vector.extract_strided_slice %32 {offsets = [2, 0, 0], sizes = [8, 16, 128], strides = [1, 1, 1]} : vector<10x18x128xbf16> to vector<8x16x128xbf16>
    %71 = vector.shape_cast %70 : vector<8x16x128xbf16> to vector<128x128xbf16>
    %c6 = arith.constant 6 : index
    %c0_30 = arith.constant 0 : index
    %c0_31 = arith.constant 0 : index
    %72 = vector.load %arg5[%c6, %c0_30, %c0_31] : memref<9x128x128xbf16, #tpu.memory_space<vmem>>, vector<1x128x128xbf16>
    %73 = vector.shape_cast %72 : vector<1x128x128xbf16> to vector<128x128xbf16>
    %cst_32 = arith.constant dense<0.000000e+00> : vector<128x128xf32>
    %74 = tpu.matmul %71, %73, %cst_32 {dimension_numbers = #tpu.dot_dimension_numbers<[1], [0], [0], [1], [0, 0, 1, 1], [], []>} : vector<128x128xbf16>, vector<128x128xbf16>, vector<128x128xf32> -> vector<128x128xf32>
    %75 = arith.addf %69, %74 : vector<128x128xf32>
    %76 = vector.extract_strided_slice %32 {offsets = [2, 1, 0], sizes = [8, 16, 128], strides = [1, 1, 1]} : vector<10x18x128xbf16> to vector<8x16x128xbf16>
    %77 = vector.shape_cast %76 : vector<8x16x128xbf16> to vector<128x128xbf16>
    %c7 = arith.constant 7 : index
    %c0_33 = arith.constant 0 : index
    %c0_34 = arith.constant 0 : index
    %78 = vector.load %arg5[%c7, %c0_33, %c0_34] : memref<9x128x128xbf16, #tpu.memory_space<vmem>>, vector<1x128x128xbf16>
    %79 = vector.shape_cast %78 : vector<1x128x128xbf16> to vector<128x128xbf16>
    %cst_35 = arith.constant dense<0.000000e+00> : vector<128x128xf32>
    %80 = tpu.matmul %77, %79, %cst_35 {dimension_numbers = #tpu.dot_dimension_numbers<[1], [0], [0], [1], [0, 0, 1, 1], [], []>} : vector<128x128xbf16>, vector<128x128xbf16>, vector<128x128xf32> -> vector<128x128xf32>
    %81 = arith.addf %75, %80 : vector<128x128xf32>
    %82 = vector.extract_strided_slice %32 {offsets = [2, 2, 0], sizes = [8, 16, 128], strides = [1, 1, 1]} : vector<10x18x128xbf16> to vector<8x16x128xbf16>
    %83 = vector.shape_cast %82 : vector<8x16x128xbf16> to vector<128x128xbf16>
    %c8 = arith.constant 8 : index
    %c0_36 = arith.constant 0 : index
    %c0_37 = arith.constant 0 : index
    %84 = vector.load %arg5[%c8, %c0_36, %c0_37] : memref<9x128x128xbf16, #tpu.memory_space<vmem>>, vector<1x128x128xbf16>
    %85 = vector.shape_cast %84 : vector<1x128x128xbf16> to vector<128x128xbf16>
    %cst_38 = arith.constant dense<0.000000e+00> : vector<128x128xf32>
    %86 = tpu.matmul %83, %85, %cst_38 {dimension_numbers = #tpu.dot_dimension_numbers<[1], [0], [0], [1], [0, 0, 1, 1], [], []>} : vector<128x128xbf16>, vector<128x128xbf16>, vector<128x128xf32> -> vector<128x128xf32>
    %87 = arith.addf %81, %86 : vector<128x128xf32>
    %c0_39 = arith.constant 0 : index
    %c0_40 = arith.constant 0 : index
    %88 = vector.load %arg6[%c0_39, %c0_40] : memref<1x128xf32, #tpu.memory_space<vmem>>, vector<1x128xf32>
    %89 = vector.broadcast %88 : vector<1x128xf32> to vector<128x128xf32>
    %90 = arith.addf %87, %89 : vector<128x128xf32>
    %cst_41 = arith.constant 0.000000e+00 : f32
    %91 = vector.broadcast %cst_41 : f32 to vector<128x128xf32>
    %92 = arith.maximumf %90, %91 : vector<128x128xf32>
    %93 = vector.shape_cast %92 : vector<128x128xf32> to vector<8x16x128xf32>
    %94 = tpu.iota {dimensions = array<i32: 0>} : vector<8x16x1xi32>
    %c8_i32_42 = arith.constant 8 : i32
    %95 = arith.muli %arg1, %c8_i32_42 : i32
    %96 = vector.broadcast %95 : i32 to vector<8x16x1xi32>
    %97 = arith.addi %94, %96 : vector<8x16x1xi32>
    %c16_i32_43 = arith.constant 16 : i32
    %98 = vector.broadcast %c16_i32_43 : i32 to vector<8x16x1xi32>
    %99 = arith.cmpi slt, %97, %98 : vector<8x16x1xi32>
    %cst_44 = arith.constant 0.000000e+00 : f32
    %100 = vector.shape_cast %99 : vector<8x16x1xi1> to vector<8x16x1xi1>
    %101 = vector.broadcast %100 : vector<8x16x1xi1> to vector<8x16x128xi1>
    %102 = vector.broadcast %cst_44 : f32 to vector<8x16x128xf32>
    %103 = arith.select %101, %93, %102 : vector<8x16x128xi1>, vector<8x16x128xf32>
    %104 = vector.shape_cast %103 : vector<8x16x128xf32> to vector<128x128xf32>
    %cst_45 = arith.constant dense<0.000000e+00> : vector<128xf32>
    %105 = vector.multi_reduction <add>, %104, %cst_45 [0] : vector<128x128xf32> to vector<128xf32>
    %106 = vector.shape_cast %105 : vector<128xf32> to vector<1x128xf32>
    %107 = arith.mulf %103, %93 : vector<8x16x128xf32>
    %108 = vector.shape_cast %107 : vector<8x16x128xf32> to vector<128x128xf32>
    %cst_46 = arith.constant dense<0.000000e+00> : vector<128xf32>
    %109 = vector.multi_reduction <add>, %108, %cst_46 [0] : vector<128x128xf32> to vector<128xf32>
    %110 = vector.shape_cast %109 : vector<128xf32> to vector<1x128xf32>
    %cst_47 = arith.constant 0.000000e+00 : f32
    %111 = vector.broadcast %cst_47 : f32 to vector<6x128xf32>
    %112 = tpu.concatenate %106, %110, %111 in 0 : vector<1x128xf32>, vector<1x128xf32>, vector<6x128xf32> -> vector<8x128xf32>
    %113 = vector.shape_cast %112 : vector<8x128xf32> to vector<1x1x8x128xf32>
    %c0_48 = arith.constant 0 : index
    %c0_49 = arith.constant 0 : index
    %c0_50 = arith.constant 0 : index
    %c0_51 = arith.constant 0 : index
    %114 = vector.load %arg8[%c0_48, %c0_49, %c0_50, %c0_51] : memref<1x1x8x128xf32, #tpu.memory_space<vmem>>, vector<1x1x8x128xf32>
    tpu.vector_store %arg8[%c0_48, %c0_49, %c0_50, %c0_51], %113 {strides = array<i32>} : memref<1x1x8x128xf32, #tpu.memory_space<vmem>>, vector<1x1x8x128xf32>,
    %115 = arith.truncf %93 : vector<8x16x128xf32> to vector<8x16x128xbf16>
    %116 = vector.shape_cast %115 : vector<8x16x128xbf16> to vector<1x8x16x128xbf16>
    %c0_52 = arith.constant 0 : index
    %c0_53 = arith.constant 0 : index
    %c0_54 = arith.constant 0 : index
    %c0_55 = arith.constant 0 : index
    %117 = vector.load %arg7[%c0_52, %c0_53, %c0_54, %c0_55] : memref<1x8x16x128xbf16, #tpu.memory_space<vmem>>, vector<1x8x16x128xbf16>
    tpu.vector_store %arg7[%c0_52, %c0_53, %c0_54, %c0_55], %116 {strides = array<i32>} : memref<1x8x16x128xbf16, #tpu.memory_space<vmem>>, vector<1x8x16x128xbf16>,
    return
  }
  func.func @transform_0(%arg0: i32, %arg1: i32) -> (i32, i32, i32, i32, i32) {
    %c0_i32 = arith.constant 0 : i32
    %c0_i32_0 = arith.constant 0 : i32
    %c0_i32_1 = arith.constant 0 : i32
    %c0_i32_2 = arith.constant 0 : i32
    return %arg0, %arg1, %c0_i32, %c0_i32_0, %c0_i32_1 : i32, i32, i32, i32, i32
  }
  func.func @transform_1(%arg0: i32, %arg1: i32) -> (i32, i32) {
    %c0_i32 = arith.constant 0 : i32
    %c0_i32_0 = arith.constant 0 : i32
    %c0_i32_1 = arith.constant 0 : i32
    return %c0_i32, %c0_i32_0 : i32, i32
  }
  func.func @transform_2(%arg0: i32, %arg1: i32) -> (i32, i32) {
    %c0_i32 = arith.constant 0 : i32
    %c0_i32_0 = arith.constant 0 : i32
    %c0_i32_1 = arith.constant 0 : i32
    return %c0_i32, %c0_i32_0 : i32, i32
  }
  func.func @transform_3(%arg0: i32, %arg1: i32) -> (i32, i32, i32) {
    %c0_i32 = arith.constant 0 : i32
    %c0_i32_0 = arith.constant 0 : i32
    %c0_i32_1 = arith.constant 0 : i32
    %c0_i32_2 = arith.constant 0 : i32
    return %c0_i32, %c0_i32_0, %c0_i32_1 : i32, i32, i32
  }
  func.func @transform_4(%arg0: i32, %arg1: i32) -> (i32, i32) {
    %c0_i32 = arith.constant 0 : i32
    %c0_i32_0 = arith.constant 0 : i32
    %c0_i32_1 = arith.constant 0 : i32
    return %c0_i32, %c0_i32_0 : i32, i32
  }
  func.func @transform_5(%arg0: i32, %arg1: i32) -> (i32, i32, i32, i32) {
    %c0_i32 = arith.constant 0 : i32
    %c0_i32_0 = arith.constant 0 : i32
    %c0_i32_1 = arith.constant 0 : i32
    return %arg0, %arg1, %c0_i32, %c0_i32_0 : i32, i32, i32, i32
  }
  func.func @transform_6(%arg0: i32, %arg1: i32) -> (i32, i32, i32, i32) {
    %c0_i32 = arith.constant 0 : i32
    %c0_i32_0 = arith.constant 0 : i32
    %c0_i32_1 = arith.constant 0 : i32
    return %arg0, %arg1, %c0_i32, %c0_i32_0 : i32, i32, i32, i32
  }
}

</mosaic_0001>

<llo_original>
// kernel: _lambda_.3
$region0: #{_lambda_.3}
  #allocation0 [shape = 'u32[]', space=smem, size = 0x4, offset = 0x4, fixed_abs, tag = 'smem constant byte address 0x4 - core index']
  #allocation1 [shape = 'u32[144,128]{1,0:T(1,128)}', space=vmem, size = 0x12000, scoped, tag = 'internal scratch']
  %s0 = inlined_call_operand.vmem [shape: bf16[2,2,10,18,128], index: 0, kind: input, shape index: {}]
  %s1 = inlined_call_operand.vmem [shape: f32[1,128], index: 1, kind: input, shape index: {}]
  %s2 = inlined_call_operand.vmem [shape: f32[1,128], index: 2, kind: input, shape index: {}]
  %s3 = inlined_call_operand.vmem [shape: bf16[9,128,128], index: 3, kind: input, shape index: {}]
  %s4 = inlined_call_operand.vmem [shape: f32[1,128], index: 4, kind: input, shape index: {}]
  %s5 = inlined_call_operand.vmem [shape: bf16[2,16,16,128], index: 5, kind: output, shape index: {0}]
  %s6 = inlined_call_operand.vmem [shape: f32[2,2,8,128], index: 6, kind: output, shape index: {1}]
  %7 = xla_tuple %s5, %s6
  %s8 = sld [smem:[#allocation0]]
  $region61: #{_lambda_.3} parent=0
    _
  %s10 = ssub.s32 1, %s8
  %s11 = scalar_select 0, %s10, %s8
  loop: start=0, step=1, limit=6
  $region2: #{_lambda_.3} parent=0 // loop_pre_header
    _
  $region3: #{_lambda_.3} parent=0 // loop_header
    %s13 = sphi 0, %s17
    %p14 = scmp.ge.s32.totalorder %s13, 6
    %s20 = sphi 0, %s32
    %s21 = sphi 0, %s28
    %s22 = sphi 0, %s20
    %s23 = sphi 0, %s21
    %s24 = sphi 0, %s22
    %s25 = sphi 0, %s23
    %s37 = sphi 0, %s39
    %s40 = sphi 0, %s37
    %s41 = sphi 0, %s40
    %s57 = sphi 0, %s41
    %s61 = sphi 0, %s61
    %s63 = sphi 0, %s61
    %s64 = sphi 0, %s63
    %s78 = sphi 0, %s64
    %s82 = sphi 0, %s82
    %s84 = sphi 0, %s82
    %s85 = sphi 0, %s84
    %s99 = sphi 0, %s85
    %s103 = sphi 0, %s103
    %s105 = sphi 0, %s103
    %s106 = sphi 0, %s105
    %s120 = sphi 0, %s106
    %s124 = sphi 0, %s124
    %s126 = sphi 0, %s124
    %s127 = sphi 0, %s126
    %s141 = sphi 0, %s127
    %s149 = sphi 0, %s151
    %s152 = sphi 0, %s149
    %s153 = sphi 0, %s152
    %s169 = sphi 0, %s153
    %s177 = sphi 0, %s179
    %s180 = sphi 0, %s177
    %s181 = sphi 0, %s180
    %s197 = sphi 0, %s181
  $region4: #{_lambda_.3} parent=0 // loop_header_branch
    %16 = sbr.rel (%p14) target = $region8
  $region5: #{_lambda_.3} parent=0 // loop_body
    %s18 = ssub.s32 %s13, 1
    %s19 = ssub.s32 %s13, 2
    %s26 = sadd.s32 1, %s21
    %p27 = scmp.ge.s32.totalorder %s26, 2
    %s28 = scalar_select %p27, 0, %s26
    %s29 = sadd.s32 1, %s20
    %s30 = scalar_select %p27, %s29, %s20
    %p31 = scmp.ge.s32.totalorder %s30, 2
    %s32 = scalar_select %p31, 0, %s30
    %s33 = ssub.s32 %s20, %s32
    %s34 = ssub.s32 %s21, %s28
    %s35 = sor.u32 %s33, %s34
    %p36 = scmp.eq.s32.totalorder %s35, 0
    %s38 = sadd.s32 %s37, 1
    %s39 = scalar_select %p36, %s37, %s38
    %p42 = pneg %p36
    %p43 = scmp.eq.s32.totalorder %s13, 3
    %p44 = por %p42, %p43
    %p45 = scmp.ne.s32.totalorder %s37, %s40
    %p46 = scmp.eq.s32.totalorder %s13, 0
    %p47 = por %p45, %p46
    %p48 = scmp.ne.s32.totalorder %s37, %s40
    %p49 = scmp.eq.s32.totalorder %s18, 3
    %p50 = por %p48, %p49
    %p51 = scmp.ne.s32.totalorder %s40, %s41
    %p52 = scmp.eq.s32.totalorder %s18, 0
    %p53 = por %p51, %p52
    %p54 = scmp.ne.s32.totalorder %s40, %s41
    %p55 = scmp.eq.s32.totalorder %s19, 3
    %p56 = por %p54, %p55
    %p58 = scmp.ne.s32.totalorder %s41, %s57
    %p59 = scmp.eq.s32.totalorder %s19, 0
    %p60 = por %p58, %p59
    %s62 = sadd.s32 %s61, 1
    %p65 = scmp.eq.s32.totalorder %s13, 3
    %p66 = scmp.ne.s32.totalorder %s61, %s63
    %p67 = scmp.eq.s32.totalorder %s13, 0
    %p68 = por %p66, %p67
    %p69 = scmp.ne.s32.totalorder %s61, %s63
    %p70 = scmp.eq.s32.totalorder %s18, 3
    %p71 = por %p69, %p70
    %p72 = scmp.ne.s32.totalorder %s63, %s64
    %p73 = scmp.eq.s32.totalorder %s18, 0
    %p74 = por %p72, %p73
    %p75 = scmp.ne.s32.totalorder %s63, %s64
    %p76 = scmp.eq.s32.totalorder %s19, 3
    %p77 = por %p75, %p76
    %p79 = scmp.ne.s32.totalorder %s64, %s78
    %p80 = scmp.eq.s32.totalorder %s19, 0
    %p81 = por %p79, %p80
    %s83 = sadd.s32 %s82, 1
    %p86 = scmp.eq.s32.totalorder %s13, 3
    %p87 = scmp.ne.s32.totalorder %s82, %s84
    %p88 = scmp.eq.s32.totalorder %s13, 0
    %p89 = por %p87, %p88
    %p90 = scmp.ne.s32.totalorder %s82, %s84
    %p91 = scmp.eq.s32.totalorder %s18, 3
    %p92 = por %p90, %p91
    %p93 = scmp.ne.s32.totalorder %s84, %s85
    %p94 = scmp.eq.s32.totalorder %s18, 0
    %p95 = por %p93, %p94
    %p96 = scmp.ne.s32.totalorder %s84, %s85
    %p97 = scmp.eq.s32.totalorder %s19, 3
    %p98 = por %p96, %p97
    %p100 = scmp.ne.s32.totalorder %s85, %s99
    %p101 = scmp.eq.s32.totalorder %s19, 0
    %p102 = por %p100, %p101
    %s104 = sadd.s32 %s103, 1
    %p107 = scmp.eq.s32.totalorder %s13, 3
    %p108 = scmp.ne.s32.totalorder %s103, %s105
    %p109 = scmp.eq.s32.totalorder %s13, 0
    %p110 = por %p108, %p109
    %p111 = scmp.ne.s32.totalorder %s103, %s105
    %p112 = scmp.eq.s32.totalorder %s18, 3
    %p113 = por %p111, %p112
    %p114 = scmp.ne.s32.totalorder %s105, %s106
    %p115 = scmp.eq.s32.totalorder %s18, 0
    %p116 = por %p114, %p115
    %p117 = scmp.ne.s32.totalorder %s105, %s106
    %p118 = scmp.eq.s32.totalorder %s19, 3
    %p119 = por %p117, %p118
    %p121 = scmp.ne.s32.totalorder %s106, %s120
    %p122 = scmp.eq.s32.totalorder %s19, 0
    %p123 = por %p121, %p122
    %s125 = sadd.s32 %s124, 1
    %p128 = scmp.eq.s32.totalorder %s13, 3
    %p129 = scmp.ne.s32.totalorder %s124, %s126
    %p130 = scmp.eq.s32.totalorder %s13, 0
    %p131 = por %p129, %p130
    %p132 = scmp.ne.s32.totalorder %s124, %s126
    %p133 = scmp.eq.s32.totalorder %s18, 3
    %p134 = por %p132, %p133
    %p135 = scmp.ne.s32.totalorder %s126, %s127
    %p136 = scmp.eq.s32.totalorder %s18, 0
    %p137 = por %p135, %p136
    %p138 = scmp.ne.s32.totalorder %s126, %s127
    %p139 = scmp.eq.s32.totalorder %s19, 3
    %p140 = por %p138, %p139
    %p142 = scmp.ne.s32.totalorder %s127, %s141
    %p143 = scmp.eq.s32.totalorder %s19, 0
    %p144 = por %p142, %p143
    %s145 = ssub.s32 %s20, %s32
    %s146 = ssub.s32 %s21, %s28
    %s147 = sor.u32 %s145, %s146
    %p148 = scmp.eq.s32.totalorder %s147, 0
    %s150 = sadd.s32 %s149, 1
    %s151 = scalar_select %p148, %s149, %s150
    %p154 = pneg %p148
    %p155 = scmp.eq.s32.totalorder %s13, 3
    %p156 = por %p154, %p155
    %p157 = scmp.ne.s32.totalorder %s149, %s152
    %p158 = scmp.eq.s32.totalorder %s13, 0
    %p159 = por %p157, %p158
    %p160 = scmp.ne.s32.totalorder %s149, %s152
    %p161 = scmp.eq.s32.totalorder %s18, 3
    %p162 = por %p160, %p161
    %p163 = scmp.ne.s32.totalorder %s152, %s153
    %p164 = scmp.eq.s32.totalorder %s18, 0
    %p165 = por %p163, %p164
    %p166 = scmp.ne.s32.totalorder %s152, %s153
    %p167 = scmp.eq.s32.totalorder %s19, 3
    %p168 = por %p166, %p167
    %p170 = scmp.ne.s32.totalorder %s153, %s169
    %p171 = scmp.eq.s32.totalorder %s19, 0
    %p172 = por %p170, %p171
    %s173 = ssub.s32 %s20, %s32
    %s174 = ssub.s32 %s21, %s28
    %s175 = sor.u32 %s173, %s174
    %p176 = scmp.eq.s32.totalorder %s175, 0
    %s178 = sadd.s32 %s177, 1
    %s179 = scalar_select %p176, %s177, %s178
    %p182 = pneg %p176
    %p183 = scmp.eq.s32.totalorder %s13, 3
    %p184 = por %p182, %p183
    %p185 = scmp.ne.s32.totalorder %s177, %s180
    %p186 = scmp.eq.s32.totalorder %s13, 0
    %p187 = por %p185, %p186
    %p188 = scmp.ne.s32.totalorder %s177, %s180
    %p189 = scmp.eq.s32.totalorder %s18, 3
    %p190 = por %p188, %p189
    %p191 = scmp.ne.s32.totalorder %s180, %s181
    %p192 = scmp.eq.s32.totalorder %s18, 0
    %p193 = por %p191, %p192
    %p194 = scmp.ne.s32.totalorder %s180, %s181
    %p195 = scmp.eq.s32.totalorder %s19, 3
    %p196 = por %p194, %p195
    %p198 = scmp.ne.s32.totalorder %s181, %s197
    %p199 = scmp.eq.s32.totalorder %s19, 0
    %p200 = por %p198, %p199
    %p201 = scmp.le.s32.totalorder 1, %s13
    %p202 = scmp.lt.s32.totalorder %s13, 5
    %p203 = pnand %p201, %p202
    %p204 = pneg %p203
    // Predicated region
    $region9: #{_lambda_.3} parent=5 // pred_check
      _
    $region10: #{_lambda_.3} parent=5 // pred_check_branch
      %206 = sbr.rel (%p203) target = $region12
    $region11: #{_lambda_.3} parent=5 // pred_region
      %s207 = ssub.s32 %s13, 1
      // Predicated region
      $region13: #{_lambda_.3} parent=11 // pred_check
        %p208 = pneg %p74
      $region14: #{_lambda_.3} parent=11 // pred_check_branch
        %210 = sbr.rel (%p208) target = $region16
      $region15: #{_lambda_.3} parent=11 // pred_region
        _
      $region16: #{_lambda_.3} parent=11 // pred_fallthru
        _
      // Predicated region
      $region17: #{_lambda_.3} parent=11 // pred_check
        %p211 = pneg %p95
      $region18: #{_lambda_.3} parent=11 // pred_check_branch
        %213 = sbr.rel (%p211) target = $region20
      $region19: #{_lambda_.3} parent=11 // pred_region
        _
      $region20: #{_lambda_.3} parent=11 // pred_fallthru
        _
      // Predicated region
      $region21: #{_lambda_.3} parent=11 // pred_check
        %p214 = pneg %p116
      $region22: #{_lambda_.3} parent=11 // pred_check_branch
        %216 = sbr.rel (%p214) target = $region24
      $region23: #{_lambda_.3} parent=11 // pred_region
        _
      $region24: #{_lambda_.3} parent=11 // pred_fallthru
        _
      // Predicated region
      $region25: #{_lambda_.3} parent=11 // pred_check
        %p217 = pneg %p137
      $region26: #{_lambda_.3} parent=11 // pred_check_branch
        %219 = sbr.rel (%p217) target = $region28
      $region27: #{_lambda_.3} parent=11 // pred_region
        _
      $region28: #{_lambda_.3} parent=11 // pred_fallthru
        _
    $region12: #{_lambda_.3} parent=5 // pred_fallthru
      _
    %p220 = scmp.lt.s32.totalorder %s13, 4
    // Predicated region
    $region29: #{_lambda_.3} parent=5 // pred_check
      %p221 = pneg %p220
    $region30: #{_lambda_.3} parent=5 // pred_check_branch
      %223 = sbr.rel (%p221) target = $region32
    $region31: #{_lambda_.3} parent=5 // pred_region
      // Predicated region
      $region33: #{_lambda_.3} parent=31 // pred_check
        %p224 = pneg %p47
      $region34: #{_lambda_.3} parent=31 // pred_check_branch
        %226 = sbr.rel (%p224) target = $region36
      $region35: #{_lambda_.3} parent=31 // pred_region
        %p227 = scmp.lt.s32.totalorder %s20, 1
        %s228 = scalar_select %p227, %s20, 1
        %p229 = scmp.lt.s32.totalorder %s21, 1
        %s230 = scalar_select %p229, %s21, 1
        %s231 = smul.addr %s230, 30
        %s232 = smul.addr %s228, 60
        %s233 = sadd.s32 %s231, %s232
        %s234 = smul.addr %s233, 4
        %s235 = scalar_lea.vmem %s0, %s234
      $region36: #{_lambda_.3} parent=31 // pred_fallthru
        _
    $region32: #{_lambda_.3} parent=5 // pred_fallthru
      _
    %p236 = scmp.le.s32.totalorder 1, %s13
    %p237 = scmp.lt.s32.totalorder %s13, 5
    %p238 = pnand %p236, %p237
    %p239 = pneg %p238
    // Predicated region
    $region37: #{_lambda_.3} parent=5 // pred_check
      _
    $region38: #{_lambda_.3} parent=5 // pred_check_branch
      %241 = sbr.rel (%p238) target = $region40
    $region39: #{_lambda_.3} parent=5 // pred_region
      %s242 = ssub.s32 %s13, 1
      %p243 = scmp.lt.s32.totalorder %s22, 1
      %s244 = scalar_select %p243, %s22, 1
      %p245 = scmp.lt.s32.totalorder %s23, 1
      %s246 = scalar_select %p245, %s23, 1
      %s247 = smul.addr %s246, 30
      %s248 = smul.addr %s244, 60
      %s249 = sadd.s32 %s247, %s248
      %s250 = smul.addr %s249, 4
      %s251 = scalar_lea.vmem %s0, %s250
      %p252 = pneg %p53
      %p253 = pneg %p50
      %p254 = pneg %p74
      %p255 = pneg %p71
      %p256 = pneg %p95
      %p257 = pneg %p92
      %p258 = pneg %p116
      %p259 = pneg %p113
      %p260 = pneg %p137
      %p261 = pneg %p134
      %p262 = pneg %p165
      %p263 = pneg %p162
      %s264 = smul.u32 8, %s23
      %p265 = scmp.lt.s32.totalorder %s22, 1
      %s266 = scalar_select %p265, %s22, 1
      %p267 = scmp.lt.s32.totalorder %s264, 15
      %s268 = scalar_select %p267, %s264, 15
      %s269 = smul.addr %s268, 2
      %s270 = smul.addr %s266, 32
      %s271 = sadd.s32 %s269, %s270
      %s272 = smul.addr %s271, 4
      %s273 = scalar_lea.vmem %s5, %s272
      %p274 = pneg %p193
      %p275 = pneg %p190
      %p276 = scmp.lt.s32.totalorder %s22, 1
      %s277 = scalar_select %p276, %s22, 1
      %p278 = scmp.lt.s32.totalorder %s23, 1
      %s279 = scalar_select %p278, %s23, 1
      %s280 = smul.addr %s277, 2
      %s281 = sadd.s32 %s279, %s280
      %s282 = smul.addr %s281, 8
      %s283 = scalar_lea.vmem %s6, %s282
      %p284 = scmp.lt.s32.totalorder %s22, 1
      %s285 = scalar_select %p284, %s22, 1
      %p286 = scmp.lt.s32.totalorder %s23, 1
      %s287 = scalar_select %p286, %s23, 1
      %s288 = smul.addr %s287, 30
      %s289 = smul.addr %s285, 60
      %s290 = sadd.s32 %s288, %s289
      %s291 = smul.addr %s290, 4
      %s292 = scalar_lea.vmem %s0, %s291
      %s293 = smul.u32 8, %s23
      %p294 = scmp.lt.s32.totalorder %s22, 1
      %s295 = scalar_select %p294, %s22, 1
      %p296 = scmp.lt.s32.totalorder %s293, 15
      %s297 = scalar_select %p296, %s293, 15
      %s298 = smul.addr %s297, 2
      %s299 = smul.addr %s295, 32
      %s300 = sadd.s32 %s298, %s299
      %s301 = smul.addr %s300, 4
      %s302 = scalar_lea.vmem %s5, %s301
      %s303 = smul.u32 8, %s23
      %p304 = scmp.lt.s32.totalorder %s22, 1
      %s305 = scalar_select %p304, %s22, 1
      %p306 = scmp.lt.s32.totalorder %s23, 1
      %s307 = scalar_select %p306, %s23, 1
      %s308 = smul.addr %s305, 2
      %s309 = sadd.s32 %s307, %s308
      %s310 = smul.addr %s309, 8
      %s311 = scalar_lea.vmem %s6, %s310
      %v313 = vld [vmem:[%s292] sm:$0xf]
      %v314 = vld [vmem:[%s292 + $0x4] sm:$0xf]
      %v315 = vld [vmem:[%s292 + $0x8] sm:$0x1]
      %v316 = vld [vmem:[%s292 + $0xc] sm:$0xf]
      %v317 = vld [vmem:[%s292 + $0x10] sm:$0xf]
      %v318 = vld [vmem:[%s292 + $0x14] sm:$0x1]
      %v319 = vld [vmem:[%s292 + $0x18] sm:$0xf]
      %v320 = vld [vmem:[%s292 + $0x1c] sm:$0xf]
      %v321 = vld [vmem:[%s292 + $0x20] sm:$0x1]
      %v322 = vld [vmem:[%s292 + $0x24] sm:$0xf]
      %v323 = vld [vmem:[%s292 + $0x28] sm:$0xf]
      %v324 = vld [vmem:[%s292 + $0x2c] sm:$0x1]
      %v325 = vld [vmem:[%s292 + $0x30] sm:$0xf]
      %v326 = vld [vmem:[%s292 + $0x34] sm:$0xf]
      %v327 = vld [vmem:[%s292 + $0x38] sm:$0x1]
      %v328 = vld [vmem:[%s292 + $0x3c] sm:$0xf]
      %v329 = vld [vmem:[%s292 + $0x40] sm:$0xf]
      %v330 = vld [vmem:[%s292 + $0x44] sm:$0x1]
      %v331 = vld [vmem:[%s292 + $0x48] sm:$0xf]
      %v332 = vld [vmem:[%s292 + $0x4c] sm:$0xf]
      %v333 = vld [vmem:[%s292 + $0x50] sm:$0x1]
      %v334 = vld [vmem:[%s292 + $0x54] sm:$0xf]
      %v335 = vld [vmem:[%s292 + $0x58] sm:$0xf]
      %v336 = vld [vmem:[%s292 + $0x5c] sm:$0x1]
      %v337 = vld [vmem:[%s292 + $0x60] sm:$0xf]
      %v338 = vld [vmem:[%s292 + $0x64] sm:$0xf]
      %v339 = vld [vmem:[%s292 + $0x68] sm:$0x1]
      %v340 = vld [vmem:[%s292 + $0x6c] sm:$0xf]
      %v341 = vld [vmem:[%s292 + $0x70] sm:$0xf]
      %v342 = vld [vmem:[%s292 + $0x74] sm:$0x1]
      %v343 = vunpack.c.l.bf16 %v313
      %v344 = vunpack.c.l.bf16 %v314
      %v345 = vunpack.c.l.bf16 %v315
      %v346 = vunpack.c.l.bf16 %v316
      %v347 = vunpack.c.l.bf16 %v317
      %v348 = vunpack.c.l.bf16 %v318
      %v349 = vunpack.c.l.bf16 %v319
      %v350 = vunpack.c.l.bf16 %v320
      %v351 = vunpack.c.l.bf16 %v321
      %v352 = vunpack.c.l.bf16 %v322
      %v353 = vunpack.c.l.bf16 %v323
      %v354 = vunpack.c.l.bf16 %v324
      %v355 = vunpack.c.l.bf16 %v325
      %v356 = vunpack.c.l.bf16 %v326
      %v357 = vunpack.c.l.bf16 %v327
      %v358 = vunpack.c.l.bf16 %v328
      %v359 = vunpack.c.l.bf16 %v329
      %v360 = vunpack.c.l.bf16 %v330
      %v361 = vunpack.c.l.bf16 %v331
      %v362 = vunpack.c.l.bf16 %v332
      %v363 = vunpack.c.l.bf16 %v333
      %v364 = vunpack.c.l.bf16 %v334
      %v365 = vunpack.c.l.bf16 %v335
      %v366 = vunpack.c.l.bf16 %v336
      %v367 = vunpack.c.l.bf16 %v337
      %v368 = vunpack.c.l.bf16 %v338
      %v369 = vunpack.c.l.bf16 %v339
      %v370 = vunpack.c.l.bf16 %v340
      %v371 = vunpack.c.l.bf16 %v341
      %v372 = vunpack.c.l.bf16 %v342
      %v373 = vld [vmem:[%s1] sm:$0x1]
      %v375 = vlaneseq
      %v376 = vshrl.u32 %v375, 7
      %v377 = vsub.s32 0, %v376
      %v378 = vrot.slane %v373, %v377
      %v380 = vmul.f32 %v343, %v378
      %v381 = vmul.f32 %v344, %v378
      %v382 = vmul.f32 %v345, %v378
      %v383 = vmul.f32 %v346, %v378
      %v384 = vmul.f32 %v347, %v378
      %v385 = vmul.f32 %v348, %v378
      %v386 = vmul.f32 %v349, %v378
      %v387 = vmul.f32 %v350, %v378
      %v388 = vmul.f32 %v351, %v378
      %v389 = vmul.f32 %v352, %v378
      %v390 = vmul.f32 %v353, %v378
      %v391 = vmul.f32 %v354, %v378
      %v392 = vmul.f32 %v355, %v378
      %v393 = vmul.f32 %v356, %v378
      %v394 = vmul.f32 %v357, %v378
      %v395 = vmul.f32 %v358, %v378
      %v396 = vmul.f32 %v359, %v378
      %v397 = vmul.f32 %v360, %v378
      %v398 = vmul.f32 %v361, %v378
      %v399 = vmul.f32 %v362, %v378
      %v400 = vmul.f32 %v363, %v378
      %v401 = vmul.f32 %v364, %v378
      %v402 = vmul.f32 %v365, %v378
      %v403 = vmul.f32 %v366, %v378
      %v404 = vmul.f32 %v367, %v378
      %v405 = vmul.f32 %v368, %v378
      %v406 = vmul.f32 %v369, %v378
      %v407 = vmul.f32 %v370, %v378
      %v408 = vmul.f32 %v371, %v378
      %v409 = vmul.f32 %v372, %v378
      %v410 = vld [vmem:[%s2] sm:$0x1]
      %v412 = vlaneseq
      %v413 = vshrl.u32 %v412, 7
      %v414 = vsub.s32 0, %v413
      %v415 = vrot.slane %v410, %v414
      %v417 = vadd.f32 %v380, %v415
      %v418 = vadd.f32 %v381, %v415
      %v419 = vadd.f32 %v382, %v415
      %v420 = vadd.f32 %v383, %v415
      %v421 = vadd.f32 %v384, %v415
      %v422 = vadd.f32 %v385, %v415
      %v423 = vadd.f32 %v386, %v415
      %v424 = vadd.f32 %v387, %v415
      %v425 = vadd.f32 %v388, %v415
      %v426 = vadd.f32 %v389, %v415
      %v427 = vadd.f32 %v390, %v415
      %v428 = vadd.f32 %v391, %v415
      %v429 = vadd.f32 %v392, %v415
      %v430 = vadd.f32 %v393, %v415
      %v431 = vadd.f32 %v394, %v415
      %v432 = vadd.f32 %v395, %v415
      %v433 = vadd.f32 %v396, %v415
      %v434 = vadd.f32 %v397, %v415
      %v435 = vadd.f32 %v398, %v415
      %v436 = vadd.f32 %v399, %v415
      %v437 = vadd.f32 %v400, %v415
      %v438 = vadd.f32 %v401, %v415
      %v439 = vadd.f32 %v402, %v415
      %v440 = vadd.f32 %v403, %v415
      %v441 = vadd.f32 %v404, %v415
      %v442 = vadd.f32 %v405, %v415
      %v443 = vadd.f32 %v406, %v415
      %v444 = vadd.f32 %v407, %v415
      %v445 = vadd.f32 %v408, %v415
      %v446 = vadd.f32 %v409, %v415
      %s447 = smul.u32 %s23, 8
      %s448 = ssub.s32 %s447, 1
      %v449 = vstv %s448
      %v450 = vadd.s32 %v449, 1
      %v451 = vadd.s32 %v449, 2
      %v452 = vadd.s32 %v449, 3
      %v453 = vadd.s32 %v449, 4
      %v454 = vadd.s32 %v449, 5
      %v455 = vadd.s32 %v449, 6
      %v456 = vadd.s32 %v449, 7
      %v457 = vadd.s32 %v449, 8
      %v458 = vadd.s32 %v449, 9
      %v459 = vlaneseq
      %v460 = vshrl.u32 %v459, 7
      %v461 = vadd.s32 %v460, 8
      %v462 = vadd.s32 %v460, 16
      %vm463 = vcmp.ge.s32.totalorder %v449, 0
      %vm464 = vcmp.ge.s32.totalorder %v450, 0
      %vm465 = vcmp.ge.s32.totalorder %v451, 0
      %vm466 = vcmp.ge.s32.totalorder %v452, 0
      %vm467 = vcmp.ge.s32.totalorder %v453, 0
      %vm468 = vcmp.ge.s32.totalorder %v454, 0
      %vm469 = vcmp.ge.s32.totalorder %v455, 0
      %vm470 = vcmp.ge.s32.totalorder %v456, 0
      %vm471 = vcmp.ge.s32.totalorder %v457, 0
      %vm472 = vcmp.ge.s32.totalorder %v458, 0
      %vm473 = vcmp.lt.s32.totalorder %v449, 16
      %vm474 = vcmp.lt.s32.totalorder %v450, 16
      %vm475 = vcmp.lt.s32.totalorder %v451, 16
      %vm476 = vcmp.lt.s32.totalorder %v452, 16
      %vm477 = vcmp.lt.s32.totalorder %v453, 16
      %vm478 = vcmp.lt.s32.totalorder %v454, 16
      %vm479 = vcmp.lt.s32.totalorder %v455, 16
      %vm480 = vcmp.lt.s32.totalorder %v456, 16
      %vm481 = vcmp.lt.s32.totalorder %v457, 16
      %vm482 = vcmp.lt.s32.totalorder %v458, 16
      %vm483 = vmand %vm463, %vm473
      %vm484 = vmand %vm464, %vm474
      %vm485 = vmand %vm465, %vm475
      %vm486 = vmand %vm466, %vm476
      %vm487 = vmand %vm467, %vm477
      %vm488 = vmand %vm468, %vm478
      %vm489 = vmand %vm469, %vm479
      %vm490 = vmand %vm470, %vm480
      %vm491 = vmand %vm471, %vm481
      %vm492 = vmand %vm472, %vm482
      %vm493 = vcmp.ge.s32.totalorder %v460, 1
      %vm494 = vcmp.ge.s32.totalorder %v461, 1
      %vm495 = vcmp.ge.s32.totalorder %v462, 1
      %vm496 = vcmp.le.s32.totalorder %v460, 16
      %vm497 = vcmp.le.s32.totalorder %v461, 16
      %vm498 = vcmp.le.s32.totalorder %v462, 16
      %vm499 = vmand %vm493, %vm496
      %vm500 = vmand %vm494, %vm497
      %vm501 = vmand %vm495, %vm498
      %vm502 = vmand %vm483, %vm499
      %vm503 = vmand %vm483, %vm500
      %vm504 = vmand %vm483, %vm501
      %vm505 = vmand %vm484, %vm499
      %vm506 = vmand %vm484, %vm500
      %vm507 = vmand %vm484, %vm501
      %vm508 = vmand %vm485, %vm499
      %vm509 = vmand %vm485, %vm500
      %vm510 = vmand %vm485, %vm501
      %vm511 = vmand %vm486, %vm499
      %vm512 = vmand %vm486, %vm500
      %vm513 = vmand %vm486, %vm501
      %vm514 = vmand %vm487, %vm499
      %vm515 = vmand %vm487, %vm500
      %vm516 = vmand %vm487, %vm501
      %vm517 = vmand %vm488, %vm499
      %vm518 = vmand %vm488, %vm500
      %vm519 = vmand %vm488, %vm501
      %vm520 = vmand %vm489, %vm499
      %vm521 = vmand %vm489, %vm500
      %vm522 = vmand %vm489, %vm501
      %vm523 = vmand %vm490, %vm499
      %vm524 = vmand %vm490, %vm500
      %vm525 = vmand %vm490, %vm501
      %vm526 = vmand %vm491, %vm499
      %vm527 = vmand %vm491, %vm500
      %vm528 = vmand %vm491, %vm501
      %vm529 = vmand %vm492, %vm499
      %vm530 = vmand %vm492, %vm500
      %vm531 = vmand %vm492, %vm501
      %v532 = vsel %vm502, 1, 0
      %v533 = vsel %vm503, 1, 0
      %v534 = vsel %vm504, 1, 0
      %v535 = vsel %vm505, 1, 0
      %v536 = vsel %vm506, 1, 0
      %v537 = vsel %vm507, 1, 0
      %v538 = vsel %vm508, 1, 0
      %v539 = vsel %vm509, 1, 0
      %v540 = vsel %vm510, 1, 0
      %v541 = vsel %vm511, 1, 0
      %v542 = vsel %vm512, 1, 0
      %v543 = vsel %vm513, 1, 0
      %v544 = vsel %vm514, 1, 0
      %v545 = vsel %vm515, 1, 0
      %v546 = vsel %vm516, 1, 0
      %v547 = vsel %vm517, 1, 0
      %v548 = vsel %vm518, 1, 0
      %v549 = vsel %vm519, 1, 0
      %v550 = vsel %vm520, 1, 0
      %v551 = vsel %vm521, 1, 0
      %v552 = vsel %vm522, 1, 0
      %v553 = vsel %vm523, 1, 0
      %v554 = vsel %vm524, 1, 0
      %v555 = vsel %vm525, 1, 0
      %v556 = vsel %vm526, 1, 0
      %v557 = vsel %vm527, 1, 0
      %v558 = vsel %vm528, 1, 0
      %v559 = vsel %vm529, 1, 0
      %v560 = vsel %vm530, 1, 0
      %v561 = vsel %vm531, 1, 0
      %vm562 = vcmp.eq.s32.totalorder %v532, 1
      %vm563 = vcmp.eq.s32.totalorder %v533, 1
      %vm564 = vcmp.eq.s32.totalorder %v534, 1
      %vm565 = vcmp.eq.s32.totalorder %v535, 1
      %vm566 = vcmp.eq.s32.totalorder %v536, 1
      %vm567 = vcmp.eq.s32.totalorder %v537, 1
      %vm568 = vcmp.eq.s32.totalorder %v538, 1
      %vm569 = vcmp.eq.s32.totalorder %v539, 1
      %vm570 = vcmp.eq.s32.totalorder %v540, 1
      %vm571 = vcmp.eq.s32.totalorder %v541, 1
      %vm572 = vcmp.eq.s32.totalorder %v542, 1
      %vm573 = vcmp.eq.s32.totalorder %v543, 1
      %vm574 = vcmp.eq.s32.totalorder %v544, 1
      %vm575 = vcmp.eq.s32.totalorder %v545, 1
      %vm576 = vcmp.eq.s32.totalorder %v546, 1
      %vm577 = vcmp.eq.s32.totalorder %v547, 1
      %vm578 = vcmp.eq.s32.totalorder %v548, 1
      %vm579 = vcmp.eq.s32.totalorder %v549, 1
      %vm580 = vcmp.eq.s32.totalorder %v550, 1
      %vm581 = vcmp.eq.s32.totalorder %v551, 1
      %vm582 = vcmp.eq.s32.totalorder %v552, 1
      %vm583 = vcmp.eq.s32.totalorder %v553, 1
      %vm584 = vcmp.eq.s32.totalorder %v554, 1
      %vm585 = vcmp.eq.s32.totalorder %v555, 1
      %vm586 = vcmp.eq.s32.totalorder %v556, 1
      %vm587 = vcmp.eq.s32.totalorder %v557, 1
      %vm588 = vcmp.eq.s32.totalorder %v558, 1
      %vm589 = vcmp.eq.s32.totalorder %v559, 1
      %vm590 = vcmp.eq.s32.totalorder %v560, 1
      %vm591 = vcmp.eq.s32.totalorder %v561, 1
      %v592 = vsel %vm562, %v417, 0.0
      %v593 = vsel %vm563, %v418, 0.0
      %v594 = vsel %vm564, %v419, 0.0
      %v595 = vsel %vm565, %v420, 0.0
      %v596 = vsel %vm566, %v421, 0.0
      %v597 = vsel %vm567, %v422, 0.0
      %v598 = vsel %vm568, %v423, 0.0
      %v599 = vsel %vm569, %v424, 0.0
      %v600 = vsel %vm570, %v425, 0.0
      %v601 = vsel %vm571, %v426, 0.0
      %v602 = vsel %vm572, %v427, 0.0
      %v603 = vsel %vm573, %v428, 0.0
      %v604 = vsel %vm574, %v429, 0.0
      %v605 = vsel %vm575, %v430, 0.0
      %v606 = vsel %vm576, %v431, 0.0
      %v607 = vsel %vm577, %v432, 0.0
      %v608 = vsel %vm578, %v433, 0.0
      %v609 = vsel %vm579, %v434, 0.0
      %v610 = vsel %vm580, %v435, 0.0
      %v611 = vsel %vm581, %v436, 0.0
      %v612 = vsel %vm582, %v437, 0.0
      %v613 = vsel %vm583, %v438, 0.0
      %v614 = vsel %vm584, %v439, 0.0
      %v615 = vsel %vm585, %v440, 0.0
      %v616 = vsel %vm586, %v441, 0.0
      %v617 = vsel %vm587, %v442, 0.0
      %v618 = vsel %vm588, %v443, 0.0
      %v619 = vsel %vm589, %v444, 0.0
      %v620 = vsel %vm590, %v445, 0.0
      %v621 = vsel %vm591, %v446, 0.0
      %v622 = vpack.c.bf16 %v593, %v592
      %v623 = vpack.c.bf16 %v594, %v594
      %v624 = vpack.c.bf16 %v596, %v595
      %v625 = vpack.c.bf16 %v597, %v597
      %v626 = vpack.c.bf16 %v599, %v598
      %v627 = vpack.c.bf16 %v600, %v600
      %v628 = vpack.c.bf16 %v602, %v601
      %v629 = vpack.c.bf16 %v603, %v603
      %v630 = vpack.c.bf16 %v605, %v604
      %v631 = vpack.c.bf16 %v606, %v606
      %v632 = vpack.c.bf16 %v608, %v607
      %v633 = vpack.c.bf16 %v609, %v609
      %v634 = vpack.c.bf16 %v611, %v610
      %v635 = vpack.c.bf16 %v612, %v612
      %v636 = vpack.c.bf16 %v614, %v613
      %v637 = vpack.c.bf16 %v615, %v615
      %v638 = vpack.c.bf16 %v617, %v616
      %v639 = vpack.c.bf16 %v618, %v618
      %v640 = vpack.c.bf16 %v620, %v619
      %v641 = vpack.c.bf16 %v621, %v621
      %v642 = vld [vmem:[%s3] sm:$0xf]
      %v643 = vld [vmem:[%s3 + $0x4] sm:$0xf]
      %v644 = vld [vmem:[%s3 + $0x8] sm:$0xf]
      %v645 = vld [vmem:[%s3 + $0xc] sm:$0xf]
      %v646 = vld [vmem:[%s3 + $0x10] sm:$0xf]
      %v647 = vld [vmem:[%s3 + $0x14] sm:$0xf]
      %v648 = vld [vmem:[%s3 + $0x18] sm:$0xf]
      %v649 = vld [vmem:[%s3 + $0x1c] sm:$0xf]
      %v650 = vld [vmem:[%s3 + $0x20] sm:$0xf]
      %v651 = vld [vmem:[%s3 + $0x24] sm:$0xf]
      %v652 = vld [vmem:[%s3 + $0x28] sm:$0xf]
      %v653 = vld [vmem:[%s3 + $0x2c] sm:$0xf]
      %v654 = vld [vmem:[%s3 + $0x30] sm:$0xf]
      %v655 = vld [vmem:[%s3 + $0x34] sm:$0xf]
      %v656 = vld [vmem:[%s3 + $0x38] sm:$0xf]
      %v657 = vld [vmem:[%s3 + $0x3c] sm:$0xf]
      %vm658 = vsmask.f32 7424
      %v660 = vshrl.u32 %v622, 16
      %v662 = vshll.u32 %v622, 16
      %v664 = vrot.slane %v662, 1
      %v665 = vor.u32 %v660, %v664
      %v667 = vshll.u32 %v623, 16
      %v669 = vrot.slane %v667, 1
      %v670 = vsel %vm658, %v665, %v669
      %v672 = vshrl.u32 %v624, 16
      %v674 = vshll.u32 %v624, 16
      %v676 = vrot.slane %v674, 1
      %v677 = vor.u32 %v672, %v676
      %v679 = vshll.u32 %v625, 16
      %v681 = vrot.slane %v679, 1
      %v682 = vsel %vm658, %v677, %v681
      %v684 = vshrl.u32 %v626, 16
      %v686 = vshll.u32 %v626, 16
      %v688 = vrot.slane %v686, 1
      %v689 = vor.u32 %v684, %v688
      %v691 = vshll.u32 %v627, 16
      %v693 = vrot.slane %v691, 1
      %v694 = vsel %vm658, %v689, %v693
      %v696 = vshrl.u32 %v628, 16
      %v698 = vshll.u32 %v628, 16
      %v700 = vrot.slane %v698, 1
      %v701 = vor.u32 %v696, %v700
      %v703 = vshll.u32 %v629, 16
      %v705 = vrot.slane %v703, 1
      %v706 = vsel %vm658, %v701, %v705
      %v708 = vshrl.u32 %v630, 16
      %v710 = vshll.u32 %v630, 16
      %v712 = vrot.slane %v710, 1
      %v713 = vor.u32 %v708, %v712
      %v715 = vshll.u32 %v631, 16
      %v717 = vrot.slane %v715, 1
      %v718 = vsel %vm658, %v713, %v717
      %v720 = vshrl.u32 %v632, 16
      %v722 = vshll.u32 %v632, 16
      %v724 = vrot.slane %v722, 1
      %v725 = vor.u32 %v720, %v724
      %v727 = vshll.u32 %v633, 16
      %v729 = vrot.slane %v727, 1
      %v730 = vsel %vm658, %v725, %v729
      %v732 = vshrl.u32 %v634, 16
      %v734 = vshll.u32 %v634, 16
      %v736 = vrot.slane %v734, 1
      %v737 = vor.u32 %v732, %v736
      %v739 = vshll.u32 %v635, 16
      %v741 = vrot.slane %v739, 1
      %v742 = vsel %vm658, %v737, %v741
      %v744 = vshrl.u32 %v636, 16
      %v746 = vshll.u32 %v636, 16
      %v748 = vrot.slane %v746, 1
      %v749 = vor.u32 %v744, %v748
      %v751 = vshll.u32 %v637, 16
      %v753 = vrot.slane %v751, 1
      %v754 = vsel %vm658, %v749, %v753
      %s763 = scalar_lea.vmem %s3, 64
      %v764 = vld [vmem:[%s763] sm:$0xf]
      %v765 = vld [vmem:[%s763 + $0x4] sm:$0xf]
      %v766 = vld [vmem:[%s763 + $0x8] sm:$0xf]
      %v767 = vld [vmem:[%s763 + $0xc] sm:$0xf]
      %v768 = vld [vmem:[%s763 + $0x10] sm:$0xf]
      %v769 = vld [vmem:[%s763 + $0x14] sm:$0xf]
      %v770 = vld [vmem:[%s763 + $0x18] sm:$0xf]
      %v771 = vld [vmem:[%s763 + $0x1c] sm:$0xf]
      %v772 = vld [vmem:[%s763 + $0x20] sm:$0xf]
      %v773 = vld [vmem:[%s763 + $0x24] sm:$0xf]
      %v774 = vld [vmem:[%s763 + $0x28] sm:$0xf]
      %v775 = vld [vmem:[%s763 + $0x2c] sm:$0xf]
      %v776 = vld [vmem:[%s763 + $0x30] sm:$0xf]
      %v777 = vld [vmem:[%s763 + $0x34] sm:$0xf]
      %v778 = vld [vmem:[%s763 + $0x38] sm:$0xf]
      %v779 = vld [vmem:[%s763 + $0x3c] sm:$0xf]
      %v796 = vunpack.c.l.b16 %v764
      %v797 = vunpack.c.l.b16 %v765
      %v798 = vunpack.c.l.b16 %v766
      %v799 = vunpack.c.l.b16 %v767
      %v800 = vunpack.c.l.b16 %v768
      %v801 = vunpack.c.l.b16 %v769
      %v802 = vunpack.c.l.b16 %v770
      %v803 = vunpack.c.l.b16 %v771
      %v804 = vunpack.c.l.b16 %v772
      %v805 = vunpack.c.l.b16 %v773
      %v806 = vunpack.c.l.b16 %v774
      %v807 = vunpack.c.l.b16 %v775
      %v808 = vunpack.c.l.b16 %v776
      %v809 = vunpack.c.l.b16 %v777
      %v810 = vunpack.c.l.b16 %v778
      %v811 = vunpack.c.l.b16 %v779
      %v812 = vpack.c.b16 %v797, %v796
      %v813 = vpack.c.b16 %v799, %v798
      %v814 = vpack.c.b16 %v801, %v800
      %v815 = vpack.c.b16 %v803, %v802
      %v816 = vpack.c.b16 %v805, %v804
      %v817 = vpack.c.b16 %v807, %v806
      %v818 = vpack.c.b16 %v809, %v808
      %v819 = vpack.c.b16 %v811, %v810
      %828 = vmatprep.subr.bf16.mxu0 0
      %829 = vmatpush1.bf16.msra.mxu0 %v812
      %830 = vmatprep.subr.bf16.mxu0 0
      %831 = vmatpush1.bf16.msra.mxu0 %v813
      %832 = vmatprep.subr.bf16.mxu0 0
      %833 = vmatpush1.bf16.msra.mxu0 %v814
      %834 = vmatprep.subr.bf16.mxu0 0
      %835 = vmatpush1.bf16.msra.mxu0 %v815
      %836 = vmatprep.subr.bf16.mxu0 0
      %837 = vmatpush1.bf16.msra.mxu0 %v816
      %838 = vmatprep.subr.bf16.mxu0 0
      %839 = vmatpush1.bf16.msra.mxu0 %v817
      %840 = vmatprep.subr.bf16.mxu0 0
      %841 = vmatpush1.bf16.msra.mxu0 %v818
      %842 = vmatprep.subr.bf16.mxu0 0
      %843 = vmatpush1.bf16.msra.mxu0 %v819
      %844 = vmatprep.subr.bf16.mxu0 0
      %845 = vmatpush1.bf16.msra.mxu0 0
      %846 = vmatprep.subr.bf16.mxu0 0
      %847 = vmatpush1.bf16.msra.mxu0 0
      %848 = vmatprep.subr.bf16.mxu0 0
      %849 = vmatpush1.bf16.msra.mxu0 0
      %850 = vmatprep.subr.bf16.mxu0 0
      %851 = vmatpush1.bf16.msra.mxu0 0
      %852 = vmatprep.subr.bf16.mxu0 0
      %853 = vmatpush1.bf16.msra.mxu0 0
      %854 = vmatprep.subr.bf16.mxu0 0
      %855 = vmatpush1.bf16.msra.mxu0 0
      %856 = vmatprep.subr.bf16.mxu0 0
      %857 = vmatpush1.bf16.msra.mxu0 0
      %858 = vmatprep.subr.bf16.mxu0 0
      %859 = vmatpush1.bf16.msra.mxu0 0
      %860 = vmatprep.mubr.bf16.mxu0 0
      %861 = vmatmul.mubr.bf16.gmra.mrb[0].mxu0 %v670
      %v862 = vpop.f32.mrb[0].mxu0
      %v863 = vadd.f32 0.0, %v862
      %v864 = vpop.f32.mrb[0].mxu0
      %v865 = vpop.f32.mrb[0].mxu0
      %v866 = vadd.f32 0.0, %v865
      %v867 = vpop.f32.mrb[0].mxu0
      %868 = vmatprep.mubr.bf16.mxu0 0
      %869 = vmatmul.mubr.bf16.gmra.mrb[0].mxu0 %v682
      %v870 = vpop.f32.mrb[0].mxu0
      %v871 = vadd.f32 0.0, %v870
      %v872 = vpop.f32.mrb[0].mxu0
      %v873 = vpop.f32.mrb[0].mxu0
      %v874 = vadd.f32 0.0, %v873
      %v875 = vpop.f32.mrb[0].mxu0
      %876 = vmatprep.mubr.bf16.mxu0 0
      %877 = vmatmul.mubr.bf16.gmra.mrb[0].mxu0 %v694
      %v878 = vpop.f32.mrb[0].mxu0
      %v879 = vadd.f32 0.0, %v878
      %v880 = vpop.f32.mrb[0].mxu0
      %v881 = vpop.f32.mrb[0].mxu0
      %v882 = vadd.f32 0.0, %v881
      %v883 = vpop.f32.mrb[0].mxu0
      %884 = vmatprep.mubr.bf16.mxu0 0
      %885 = vmatmul.mubr.bf16.gmra.mrb[0].mxu0 %v706
      %v886 = vpop.f32.mrb[0].mxu0
      %v887 = vadd.f32 0.0, %v886
      %v888 = vpop.f32.mrb[0].mxu0
      %v889 = vpop.f32.mrb[0].mxu0
      %v890 = vadd.f32 0.0, %v889
      %v891 = vpop.f32.mrb[0].mxu0
      %892 = vmatprep.mubr.bf16.mxu0 0
      %893 = vmatmul.mubr.bf16.gmra.mrb[0].mxu0 %v718
      %v894 = vpop.f32.mrb[0].mxu0
      %v895 = vadd.f32 0.0, %v894
      %v896 = vpop.f32.mrb[0].mxu0
      %v897 = vpop.f32.mrb[0].mxu0
      %v898 = vadd.f32 0.0, %v897
      %v899 = vpop.f32.mrb[0].mxu0
      %900 = vmatprep.mubr.bf16.mxu0 0
      %901 = vmatmul.mubr.bf16.gmra.mrb[0].mxu0 %v730
      %v902 = vpop.f32.mrb[0].mxu0
      %v903 = vadd.f32 0.0, %v902
      %v904 = vpop.f32.mrb[0].mxu0
      %v905 = vpop.f32.mrb[0].mxu0
      %v906 = vadd.f32 0.0, %v905
      %v907 = vpop.f32.mrb[0].mxu0
      %908 = vmatprep.mubr.bf16.mxu0 0
      %909 = vmatmul.mubr.bf16.gmra.mrb[0].mxu0 %v742
      %v910 = vpop.f32.mrb[0].mxu0
      %v911 = vadd.f32 0.0, %v910
      %v912 = vpop.f32.mrb[0].mxu0
      %v913 = vpop.f32.mrb[0].mxu0
      %v914 = vadd.f32 0.0, %v913
      %v915 = vpop.f32.mrb[0].mxu0
      %916 = vmatprep.mubr.bf16.mxu0 0
      %917 = vmatmul.mubr.bf16.gmra.mrb[0].mxu0 %v754
      %v918 = vpop.f32.mrb[0].mxu0
      %v919 = vadd.f32 0.0, %v918
      %v920 = vpop.f32.mrb[0].mxu0
      %v921 = vpop.f32.mrb[0].mxu0
      %v922 = vadd.f32 0.0, %v921
      %v923 = vpop.f32.mrb[0].mxu0
      %924 = vdwg.mxu0
      %v941 = vunpack.c.l.b16 %v642
      %v942 = vunpack.c.l.b16 %v643
      %v943 = vunpack.c.l.b16 %v644
      %v944 = vunpack.c.l.b16 %v645
      %v945 = vunpack.c.l.b16 %v646
      %v946 = vunpack.c.l.b16 %v647
      %v947 = vunpack.c.l.b16 %v648
      %v948 = vunpack.c.l.b16 %v649
      %v949 = vunpack.c.l.b16 %v650
      %v950 = vunpack.c.l.b16 %v651
      %v951 = vunpack.c.l.b16 %v652
      %v952 = vunpack.c.l.b16 %v653
      %v953 = vunpack.c.l.b16 %v654
      %v954 = vunpack.c.l.b16 %v655
      %v955 = vunpack.c.l.b16 %v656
      %v956 = vunpack.c.l.b16 %v657
      %v957 = vpack.c.b16 %v942, %v941
      %v958 = vpack.c.b16 %v944, %v943
      %v959 = vpack.c.b16 %v946, %v945
      %v960 = vpack.c.b16 %v948, %v947
      %v961 = vpack.c.b16 %v950, %v949
      %v962 = vpack.c.b16 %v952, %v951
      %v963 = vpack.c.b16 %v954, %v953
      %v964 = vpack.c.b16 %v956, %v955
      %973 = vmatprep.subr.bf16.mxu0 0
      %974 = vmatpush1.bf16.msra.mxu0 %v957
      %975 = vmatprep.subr.bf16.mxu0 0
      %976 = vmatpush1.bf16.msra.mxu0 %v958
      %977 = vmatprep.subr.bf16.mxu0 0
      %978 = vmatpush1.bf16.msra.mxu0 %v959
      %979 = vmatprep.subr.bf16.mxu0 0
      %980 = vmatpush1.bf16.msra.mxu0 %v960
      %981 = vmatprep.subr.bf16.mxu0 0
      %982 = vmatpush1.bf16.msra.mxu0 %v961
      %983 = vmatprep.subr.bf16.mxu0 0
      %984 = vmatpush1.bf16.msra.mxu0 %v962
      %985 = vmatprep.subr.bf16.mxu0 0
      %986 = vmatpush1.bf16.msra.mxu0 %v963
      %987 = vmatprep.subr.bf16.mxu0 0
      %988 = vmatpush1.bf16.msra.mxu0 %v964
      %989 = vmatprep.subr.bf16.mxu0 0
      %990 = vmatpush1.bf16.msra.mxu0 0
      %991 = vmatprep.subr.bf16.mxu0 0
      %992 = vmatpush1.bf16.msra.mxu0 0
      %993 = vmatprep.subr.bf16.mxu0 0
      %994 = vmatpush1.bf16.msra.mxu0 0
      %995 = vmatprep.subr.bf16.mxu0 0
      %996 = vmatpush1.bf16.msra.mxu0 0
      %997 = vmatprep.subr.bf16.mxu0 0
      %998 = vmatpush1.bf16.msra.mxu0 0
      %999 = vmatprep.subr.bf16.mxu0 0
      %1000 = vmatpush1.bf16.msra.mxu0 0
      %1001 = vmatprep.subr.bf16.mxu0 0
      %1002 = vmatpush1.bf16.msra.mxu0 0
      %1003 = vmatprep.subr.bf16.mxu0 0
      %1004 = vmatpush1.bf16.msra.mxu0 0
      %1005 = vmatprep.mubr.bf16.mxu0 0
      %1006 = vmatmul.mubr.bf16.gmra.mrb[0].mxu0 %v622
      %v1007 = vpop.f32.mrb[0].mxu0
      %v1008 = vadd.f32 %v863, %v1007
      %v1009 = vpop.f32.mrb[0].mxu0
      %v1010 = vpop.f32.mrb[0].mxu0
      %v1011 = vadd.f32 %v866, %v1010
      %v1012 = vpop.f32.mrb[0].mxu0
      %1013 = vmatprep.mubr.bf16.mxu0 0
      %1014 = vmatmul.mubr.bf16.gmra.mrb[0].mxu0 %v624
      %v1015 = vpop.f32.mrb[0].mxu0
      %v1016 = vadd.f32 %v871, %v1015
      %v1017 = vpop.f32.mrb[0].mxu0
      %v1018 = vpop.f32.mrb[0].mxu0
      %v1019 = vadd.f32 %v874, %v1018
      %v1020 = vpop.f32.mrb[0].mxu0
      %1021 = vmatprep.mubr.bf16.mxu0 0
      %1022 = vmatmul.mubr.bf16.gmra.mrb[0].mxu0 %v626
      %v1023 = vpop.f32.mrb[0].mxu0
      %v1024 = vadd.f32 %v879, %v1023
      %v1025 = vpop.f32.mrb[0].mxu0
      %v1026 = vpop.f32.mrb[0].mxu0
      %v1027 = vadd.f32 %v882, %v1026
      %v1028 = vpop.f32.mrb[0].mxu0
      %1029 = vmatprep.mubr.bf16.mxu0 0
      %1030 = vmatmul.mubr.bf16.gmra.mrb[0].mxu0 %v628
      %v1031 = vpop.f32.mrb[0].mxu0
      %v1032 = vadd.f32 %v887, %v1031
      %v1033 = vpop.f32.mrb[0].mxu0
      %v1034 = vpop.f32.mrb[0].mxu0
      %v1035 = vadd.f32 %v890, %v1034
      %v1036 = vpop.f32.mrb[0].mxu0
      %1037 = vmatprep.mubr.bf16.mxu0 0
      %1038 = vmatmul.mubr.bf16.gmra.mrb[0].mxu0 %v630
      %v1039 = vpop.f32.mrb[0].mxu0
      %v1040 = vadd.f32 %v895, %v1039
      %v1041 = vpop.f32.mrb[0].mxu0
      %v1042 = vpop.f32.mrb[0].mxu0
      %v1043 = vadd.f32 %v898, %v1042
      %v1044 = vpop.f32.mrb[0].mxu0
      %1045 = vmatprep.mubr.bf16.mxu0 0
      %1046 = vmatmul.mubr.bf16.gmra.mrb[0].mxu0 %v632
      %v1047 = vpop.f32.mrb[0].mxu0
      %v1048 = vadd.f32 %v903, %v1047
      %v1049 = vpop.f32.mrb[0].mxu0
      %v1050 = vpop.f32.mrb[0].mxu0
      %v1051 = vadd.f32 %v906, %v1050
      %v1052 = vpop.f32.mrb[0].mxu0
      %1053 = vmatprep.mubr.bf16.mxu0 0
      %1054 = vmatmul.mubr.bf16.gmra.mrb[0].mxu0 %v634
      %v1055 = vpop.f32.mrb[0].mxu0
      %v1056 = vadd.f32 %v911, %v1055
      %v1057 = vpop.f32.mrb[0].mxu0
      %v1058 = vpop.f32.mrb[0].mxu0
      %v1059 = vadd.f32 %v914, %v1058
      %v1060 = vpop.f32.mrb[0].mxu0
      %1061 = vmatprep.mubr.bf16.mxu0 0
      %1062 = vmatmul.mubr.bf16.gmra.mrb[0].mxu0 %v636
      %v1063 = vpop.f32.mrb[0].mxu0
      %v1064 = vadd.f32 %v919, %v1063
      %v1065 = vpop.f32.mrb[0].mxu0
      %v1066 = vpop.f32.mrb[0].mxu0
      %v1067 = vadd.f32 %v922, %v1066
      %v1068 = vpop.f32.mrb[0].mxu0
      %1069 = vdwg.mxu0
      %vm1086 = vcmask 1046528
      %v1087 = vrot.slane %v622, 1
      %v1088 = vrot.slane %v623, 1
      %v1089 = vsel %vm1086, %v1087, %v1088
      %v1090 = vrot.slane %v624, 1
      %v1091 = vrot.slane %v625, 1
      %v1092 = vsel %vm1086, %v1090, %v1091
      %v1093 = vrot.slane %v626, 1
      %v1094 = vrot.slane %v627, 1
      %v1095 = vsel %vm1086, %v1093, %v1094
      %v1096 = vrot.slane %v628, 1
      %v1097 = vrot.slane %v629, 1
      %v1098 = vsel %vm1086, %v1096, %v1097
      %v1099 = vrot.slane %v630, 1
      %v1100 = vrot.slane %v631, 1
      %v1101 = vsel %vm1086, %v1099, %v1100
      %v1102 = vrot.slane %v632, 1
      %v1103 = vrot.slane %v633, 1
      %v1104 = vsel %vm1086, %v1102, %v1103
      %v1105 = vrot.slane %v634, 1
      %v1106 = vrot.slane %v635, 1
      %v1107 = vsel %vm1086, %v1105, %v1106
      %v1108 = vrot.slane %v636, 1
      %v1109 = vrot.slane %v637, 1
      %v1110 = vsel %vm1086, %v1108, %v1109
      %s1119 = scalar_lea.vmem %s3, 128
      %v1120 = vld [vmem:[%s1119] sm:$0xf]
      %v1121 = vld [vmem:[%s1119 + $0x4] sm:$0xf]
      %v1122 = vld [vmem:[%s1119 + $0x8] sm:$0xf]
      %v1123 = vld [vmem:[%s1119 + $0xc] sm:$0xf]
      %v1124 = vld [vmem:[%s1119 + $0x10] sm:$0xf]
      %v1125 = vld [vmem:[%s1119 + $0x14] sm:$0xf]
      %v1126 = vld [vmem:[%s1119 + $0x18] sm:$0xf]
      %v1127 = vld [vmem:[%s1119 + $0x1c] sm:$0xf]
      %v1128 = vld [vmem:[%s1119 + $0x20] sm:$0xf]
      %v1129 = vld [vmem:[%s1119 + $0x24] sm:$0xf]
      %v1130 = vld [vmem:[%s1119 + $0x28] sm:$0xf]
      %v1131 = vld [vmem:[%s1119 + $0x2c] sm:$0xf]
      %v1132 = vld [vmem:[%s1119 + $0x30] sm:$0xf]
      %v1133 = vld [vmem:[%s1119 + $0x34] sm:$0xf]
      %v1134 = vld [vmem:[%s1119 + $0x38] sm:$0xf]
      %v1135 = vld [vmem:[%s1119 + $0x3c] sm:$0xf]
      %v1152 = vunpack.c.l.b16 %v1120
      %v1153 = vunpack.c.l.b16 %v1121
      %v1154 = vunpack.c.l.b16 %v1122
      %v1155 = vunpack.c.l.b16 %v1123
      %v1156 = vunpack.c.l.b16 %v1124
      %v1157 = vunpack.c.l.b16 %v1125
      %v1158 = vunpack.c.l.b16 %v1126
      %v1159 = vunpack.c.l.b16 %v1127
      %v1160 = vunpack.c.l.b16 %v1128
      %v1161 = vunpack.c.l.b16 %v1129
      %v1162 = vunpack.c.l.b16 %v1130
      %v1163 = vunpack.c.l.b16 %v1131
      %v1164 = vunpack.c.l.b16 %v1132
      %v1165 = vunpack.c.l.b16 %v1133
      %v1166 = vunpack.c.l.b16 %v1134
      %v1167 = vunpack.c.l.b16 %v1135
      %v1168 = vpack.c.b16 %v1153, %v1152
      %v1169 = vpack.c.b16 %v1155, %v1154
      %v1170 = vpack.c.b16 %v1157, %v1156
      %v1171 = vpack.c.b16 %v1159, %v1158
      %v1172 = vpack.c.b16 %v1161, %v1160
      %v1173 = vpack.c.b16 %v1163, %v1162
      %v1174 = vpack.c.b16 %v1165, %v1164
      %v1175 = vpack.c.b16 %v1167, %v1166
      %1184 = vmatprep.subr.bf16.mxu0 0
      %1185 = vmatpush1.bf16.msra.mxu0 %v1168
      %1186 = vmatprep.subr.bf16.mxu0 0
      %1187 = vmatpush1.bf16.msra.mxu0 %v1169
      %1188 = vmatprep.subr.bf16.mxu0 0
      %1189 = vmatpush1.bf16.msra.mxu0 %v1170
      %1190 = vmatprep.subr.bf16.mxu0 0
      %1191 = vmatpush1.bf16.msra.mxu0 %v1171
      %1192 = vmatprep.subr.bf16.mxu0 0
      %1193 = vmatpush1.bf16.msra.mxu0 %v1172
      %1194 = vmatprep.subr.bf16.mxu0 0
      %1195 = vmatpush1.bf16.msra.mxu0 %v1173
      %1196 = vmatprep.subr.bf16.mxu0 0
      %1197 = vmatpush1.bf16.msra.mxu0 %v1174
      %1198 = vmatprep.subr.bf16.mxu0 0
      %1199 = vmatpush1.bf16.msra.mxu0 %v1175
      %1200 = vmatprep.subr.bf16.mxu0 0
      %1201 = vmatpush1.bf16.msra.mxu0 0
      %1202 = vmatprep.subr.bf16.mxu0 0
      %1203 = vmatpush1.bf16.msra.mxu0 0
      %1204 = vmatprep.subr.bf16.mxu0 0
      %1205 = vmatpush1.bf16.msra.mxu0 0
      %1206 = vmatprep.subr.bf16.mxu0 0
      %1207 = vmatpush1.bf16.msra.mxu0 0
      %1208 = vmatprep.subr.bf16.mxu0 0
      %1209 = vmatpush1.bf16.msra.mxu0 0
      %1210 = vmatprep.subr.bf16.mxu0 0
      %1211 = vmatpush1.bf16.msra.mxu0 0
      %1212 = vmatprep.subr.bf16.mxu0 0
      %1213 = vmatpush1.bf16.msra.mxu0 0
      %1214 = vmatprep.subr.bf16.mxu0 0
      %1215 = vmatpush1.bf16.msra.mxu0 0
      %1216 = vmatprep.mubr.bf16.mxu0 0
      %1217 = vmatmul.mubr.bf16.gmra.mrb[0].mxu0 %v1089
      %v1218 = vpop.f32.mrb[0].mxu0
      %v1219 = vadd.f32 0.0, %v1218
      %v1220 = vpop.f32.mrb[0].mxu0
      %v1221 = vpop.f32.mrb[0].mxu0
      %v1222 = vadd.f32 0.0, %v1221
      %v1223 = vpop.f32.mrb[0].mxu0
      %1224 = vmatprep.mubr.bf16.mxu0 0
      %1225 = vmatmul.mubr.bf16.gmra.mrb[0].mxu0 %v1092
      %v1226 = vpop.f32.mrb[0].mxu0
      %v1227 = vadd.f32 0.0, %v1226
      %v1228 = vpop.f32.mrb[0].mxu0
      %v1229 = vpop.f32.mrb[0].mxu0
      %v1230 = vadd.f32 0.0, %v1229
      %v1231 = vpop.f32.mrb[0].mxu0
      %1232 = vmatprep.mubr.bf16.mxu0 0
      %1233 = vmatmul.mubr.bf16.gmra.mrb[0].mxu0 %v1095
      %v1234 = vpop.f32.mrb[0].mxu0
      %v1235 = vadd.f32 0.0, %v1234
      %v1236 = vpop.f32.mrb[0].mxu0
      %v1237 = vpop.f32.mrb[0].mxu0
      %v1238 = vadd.f32 0.0, %v1237
      %v1239 = vpop.f32.mrb[0].mxu0
      %1240 = vmatprep.mubr.bf16.mxu0 0
      %1241 = vmatmul.mubr.bf16.gmra.mrb[0].mxu0 %v1098
      %v1242 = vpop.f32.mrb[0].mxu0
      %v1243 = vadd.f32 0.0, %v1242
      %v1244 = vpop.f32.mrb[0].mxu0
      %v1245 = vpop.f32.mrb[0].mxu0
      %v1246 = vadd.f32 0.0, %v1245
      %v1247 = vpop.f32.mrb[0].mxu0
      %1248 = vmatprep.mubr.bf16.mxu0 0
      %1249 = vmatmul.mubr.bf16.gmra.mrb[0].mxu0 %v1101
      %v1250 = vpop.f32.mrb[0].mxu0
      %v1251 = vadd.f32 0.0, %v1250
      %v1252 = vpop.f32.mrb[0].mxu0
      %v1253 = vpop.f32.mrb[0].mxu0
      %v1254 = vadd.f32 0.0, %v1253
      %v1255 = vpop.f32.mrb[0].mxu0
      %1256 = vmatprep.mubr.bf16.mxu0 0
      %1257 = vmatmul.mubr.bf16.gmra.mrb[0].mxu0 %v1104
      %v1258 = vpop.f32.mrb[0].mxu0
      %v1259 = vadd.f32 0.0, %v1258
      %v1260 = vpop.f32.mrb[0].mxu0
      %v1261 = vpop.f32.mrb[0].mxu0
      %v1262 = vadd.f32 0.0, %v1261
      %v1263 = vpop.f32.mrb[0].mxu0
      %1264 = vmatprep.mubr.bf16.mxu0 0
      %1265 = vmatmul.mubr.bf16.gmra.mrb[0].mxu0 %v1107
      %v1266 = vpop.f32.mrb[0].mxu0
      %v1267 = vadd.f32 0.0, %v1266
      %v1268 = vpop.f32.mrb[0].mxu0
      %v1269 = vpop.f32.mrb[0].mxu0
      %v1270 = vadd.f32 0.0, %v1269
      %v1271 = vpop.f32.mrb[0].mxu0
      %1272 = vmatprep.mubr.bf16.mxu0 0
      %1273 = vmatmul.mubr.bf16.gmra.mrb[0].mxu0 %v1110
      %v1274 = vpop.f32.mrb[0].mxu0
      %v1275 = vadd.f32 0.0, %v1274
      %v1276 = vpop.f32.mrb[0].mxu0
      %v1277 = vpop.f32.mrb[0].mxu0
      %v1278 = vadd.f32 0.0, %v1277
      %v1279 = vpop.f32.mrb[0].mxu0
      %1280 = vdwg.mxu0
      %v1281 = vadd.f32 %v1008, %v1219
      %v1282 = vadd.f32 %v1011, %v1222
      %v1283 = vadd.f32 %v1016, %v1227
      %v1284 = vadd.f32 %v1019, %v1230
      %v1285 = vadd.f32 %v1024, %v1235
      %v1286 = vadd.f32 %v1027, %v1238
      %v1287 = vadd.f32 %v1032, %v1243
      %v1288 = vadd.f32 %v1035, %v1246
      %v1289 = vadd.f32 %v1040, %v1251
      %v1290 = vadd.f32 %v1043, %v1254
      %v1291 = vadd.f32 %v1048, %v1259
      %v1292 = vadd.f32 %v1051, %v1262
      %v1293 = vadd.f32 %v1056, %v1267
      %v1294 = vadd.f32 %v1059, %v1270
      %v1295 = vadd.f32 %v1064, %v1275
      %v1296 = vadd.f32 %v1067, %v1278
      %s1297 = scalar_lea.vmem %s3, 192
      %v1298 = vld [vmem:[%s1297] sm:$0xf]
      %v1299 = vld [vmem:[%s1297 + $0x4] sm:$0xf]
      %v1300 = vld [vmem:[%s1297 + $0x8] sm:$0xf]
      %v1301 = vld [vmem:[%s1297 + $0xc] sm:$0xf]
      %v1302 = vld [vmem:[%s1297 + $0x10] sm:$0xf]
      %v1303 = vld [vmem:[%s1297 + $0x14] sm:$0xf]
      %v1304 = vld [vmem:[%s1297 + $0x18] sm:$0xf]
      %v1305 = vld [vmem:[%s1297 + $0x1c] sm:$0xf]
      %v1306 = vld [vmem:[%s1297 + $0x20] sm:$0xf]
      %v1307 = vld [vmem:[%s1297 + $0x24] sm:$0xf]
      %v1308 = vld [vmem:[%s1297 + $0x28] sm:$0xf]
      %v1309 = vld [vmem:[%s1297 + $0x2c] sm:$0xf]
      %v1310 = vld [vmem:[%s1297 + $0x30] sm:$0xf]
      %v1311 = vld [vmem:[%s1297 + $0x34] sm:$0xf]
      %v1312 = vld [vmem:[%s1297 + $0x38] sm:$0xf]
      %v1313 = vld [vmem:[%s1297 + $0x3c] sm:$0xf]
      %v1330 = vunpack.c.l.b16 %v1298
      %v1331 = vunpack.c.l.b16 %v1299
      %v1332 = vunpack.c.l.b16 %v1300
      %v1333 = vunpack.c.l.b16 %v1301
      %v1334 = vunpack.c.l.b16 %v1302
      %v1335 = vunpack.c.l.b16 %v1303
      %v1336 = vunpack.c.l.b16 %v1304
      %v1337 = vunpack.c.l.b16 %v1305
      %v1338 = vunpack.c.l.b16 %v1306
      %v1339 = vunpack.c.l.b16 %v1307
      %v1340 = vunpack.c.l.b16 %v1308
      %v1341 = vunpack.c.l.b16 %v1309
      %v1342 = vunpack.c.l.b16 %v1310
      %v1343 = vunpack.c.l.b16 %v1311
      %v1344 = vunpack.c.l.b16 %v1312
      %v1345 = vunpack.c.l.b16 %v1313
      %v1346 = vpack.c.b16 %v1331, %v1330
      %v1347 = vpack.c.b16 %v1333, %v1332
      %v1348 = vpack.c.b16 %v1335, %v1334
      %v1349 = vpack.c.b16 %v1337, %v1336
      %v1350 = vpack.c.b16 %v1339, %v1338
      %v1351 = vpack.c.b16 %v1341, %v1340
      %v1352 = vpack.c.b16 %v1343, %v1342
      %v1353 = vpack.c.b16 %v1345, %v1344
      %1362 = vmatprep.subr.bf16.mxu0 0
      %1363 = vmatpush1.bf16.msra.mxu0 %v1346
      %1364 = vmatprep.subr.bf16.mxu0 0
      %1365 = vmatpush1.bf16.msra.mxu0 %v1347
      %1366 = vmatprep.subr.bf16.mxu0 0
      %1367 = vmatpush1.bf16.msra.mxu0 %v1348
      %1368 = vmatprep.subr.bf16.mxu0 0
      %1369 = vmatpush1.bf16.msra.mxu0 %v1349
      %1370 = vmatprep.subr.bf16.mxu0 0
      %1371 = vmatpush1.bf16.msra.mxu0 %v1350
      %1372 = vmatprep.subr.bf16.mxu0 0
      %1373 = vmatpush1.bf16.msra.mxu0 %v1351
      %1374 = vmatprep.subr.bf16.mxu0 0
      %1375 = vmatpush1.bf16.msra.mxu0 %v1352
      %1376 = vmatprep.subr.bf16.mxu0 0
      %1377 = vmatpush1.bf16.msra.mxu0 %v1353
      %1378 = vmatprep.subr.bf16.mxu0 0
      %1379 = vmatpush1.bf16.msra.mxu0 0
      %1380 = vmatprep.subr.bf16.mxu0 0
      %1381 = vmatpush1.bf16.msra.mxu0 0
      %1382 = vmatprep.subr.bf16.mxu0 0
      %1383 = vmatpush1.bf16.msra.mxu0 0
      %1384 = vmatprep.subr.bf16.mxu0 0
      %1385 = vmatpush1.bf16.msra.mxu0 0
      %1386 = vmatprep.subr.bf16.mxu0 0
      %1387 = vmatpush1.bf16.msra.mxu0 0
      %1388 = vmatprep.subr.bf16.mxu0 0
      %1389 = vmatpush1.bf16.msra.mxu0 0
      %1390 = vmatprep.subr.bf16.mxu0 0
      %1391 = vmatpush1.bf16.msra.mxu0 0
      %1392 = vmatprep.subr.bf16.mxu0 0
      %1393 = vmatpush1.bf16.msra.mxu0 0
      %1394 = vmatprep.mubr.bf16.mxu0 0
      %1395 = vmatmul.mubr.bf16.gmra.mrb[0].mxu0 %v624
      %v1396 = vpop.f32.mrb[0].mxu0
      %v1397 = vadd.f32 0.0, %v1396
      %v1398 = vpop.f32.mrb[0].mxu0
      %v1399 = vpop.f32.mrb[0].mxu0
      %v1400 = vadd.f32 0.0, %v1399
      %v1401 = vpop.f32.mrb[0].mxu0
      %1402 = vmatprep.mubr.bf16.mxu0 0
      %1403 = vmatmul.mubr.bf16.gmra.mrb[0].mxu0 %v626
      %v1404 = vpop.f32.mrb[0].mxu0
      %v1405 = vadd.f32 0.0, %v1404
      %v1406 = vpop.f32.mrb[0].mxu0
      %v1407 = vpop.f32.mrb[0].mxu0
      %v1408 = vadd.f32 0.0, %v1407
      %v1409 = vpop.f32.mrb[0].mxu0
      %1410 = vmatprep.mubr.bf16.mxu0 0
      %1411 = vmatmul.mubr.bf16.gmra.mrb[0].mxu0 %v628
      %v1412 = vpop.f32.mrb[0].mxu0
      %v1413 = vadd.f32 0.0, %v1412
      %v1414 = vpop.f32.mrb[0].mxu0
      %v1415 = vpop.f32.mrb[0].mxu0
      %v1416 = vadd.f32 0.0, %v1415
      %v1417 = vpop.f32.mrb[0].mxu0
      %1418 = vmatprep.mubr.bf16.mxu0 0
      %1419 = vmatmul.mubr.bf16.gmra.mrb[0].mxu0 %v630
      %v1420 = vpop.f32.mrb[0].mxu0
      %v1421 = vadd.f32 0.0, %v1420
      %v1422 = vpop.f32.mrb[0].mxu0
      %v1423 = vpop.f32.mrb[0].mxu0
      %v1424 = vadd.f32 0.0, %v1423
      %v1425 = vpop.f32.mrb[0].mxu0
      %1426 = vmatprep.mubr.bf16.mxu0 0
      %1427 = vmatmul.mubr.bf16.gmra.mrb[0].mxu0 %v632
      %v1428 = vpop.f32.mrb[0].mxu0
      %v1429 = vadd.f32 0.0, %v1428
      %v1430 = vpop.f32.mrb[0].mxu0
      %v1431 = vpop.f32.mrb[0].mxu0
      %v1432 = vadd.f32 0.0, %v1431
      %v1433 = vpop.f32.mrb[0].mxu0
      %1434 = vmatprep.mubr.bf16.mxu0 0
      %1435 = vmatmul.mubr.bf16.gmra.mrb[0].mxu0 %v634
      %v1436 = vpop.f32.mrb[0].mxu0
      %v1437 = vadd.f32 0.0, %v1436
      %v1438 = vpop.f32.mrb[0].mxu0
      %v1439 = vpop.f32.mrb[0].mxu0
      %v1440 = vadd.f32 0.0, %v1439
      %v1441 = vpop.f32.mrb[0].mxu0
      %1442 = vmatprep.mubr.bf16.mxu0 0
      %1443 = vmatmul.mubr.bf16.gmra.mrb[0].mxu0 %v636
      %v1444 = vpop.f32.mrb[0].mxu0
      %v1445 = vadd.f32 0.0, %v1444
      %v1446 = vpop.f32.mrb[0].mxu0
      %v1447 = vpop.f32.mrb[0].mxu0
      %v1448 = vadd.f32 0.0, %v1447
      %v1449 = vpop.f32.mrb[0].mxu0
      %1450 = vmatprep.mubr.bf16.mxu0 0
      %1451 = vmatmul.mubr.bf16.gmra.mrb[0].mxu0 %v638
      %v1452 = vpop.f32.mrb[0].mxu0
      %v1453 = vadd.f32 0.0, %v1452
      %v1454 = vpop.f32.mrb[0].mxu0
      %v1455 = vpop.f32.mrb[0].mxu0
      %v1456 = vadd.f32 0.0, %v1455
      %v1457 = vpop.f32.mrb[0].mxu0
      %1458 = vdwg.mxu0
      %v1459 = vadd.f32 %v1281, %v1397
      %v1460 = vadd.f32 %v1282, %v1400
      %v1461 = vadd.f32 %v1283, %v1405
      %v1462 = vadd.f32 %v1284, %v1408
      %v1463 = vadd.f32 %v1285, %v1413
      %v1464 = vadd.f32 %v1286, %v1416
      %v1465 = vadd.f32 %v1287, %v1421
      %v1466 = vadd.f32 %v1288, %v1424
      %v1467 = vadd.f32 %v1289, %v1429
      %v1468 = vadd.f32 %v1290, %v1432
      %v1469 = vadd.f32 %v1291, %v1437
      %v1470 = vadd.f32 %v1292, %v1440
      %v1471 = vadd.f32 %v1293, %v1445
      %v1472 = vadd.f32 %v1294, %v1448
      %v1473 = vadd.f32 %v1295, %v1453
      %v1474 = vadd.f32 %v1296, %v1456
      %v1476 = vshrl.u32 %v638, 16
      %v1478 = vshll.u32 %v638, 16
      %v1480 = vrot.slane %v1478, 1
      %v1481 = vor.u32 %v1476, %v1480
      %v1483 = vshll.u32 %v639, 16
      %v1485 = vrot.slane %v1483, 1
      %v1486 = vsel %vm658, %v1481, %v1485
      %s1488 = scalar_lea.vmem %s3, 256
      %v1489 = vld [vmem:[%s1488] sm:$0xf]
      %v1490 = vld [vmem:[%s1488 + $0x4] sm:$0xf]
      %v1491 = vld [vmem:[%s1488 + $0x8] sm:$0xf]
      %v1492 = vld [vmem:[%s1488 + $0xc] sm:$0xf]
      %v1493 = vld [vmem:[%s1488 + $0x10] sm:$0xf]
      %v1494 = vld [vmem:[%s1488 + $0x14] sm:$0xf]
      %v1495 = vld [vmem:[%s1488 + $0x18] sm:$0xf]
      %v1496 = vld [vmem:[%s1488 + $0x1c] sm:$0xf]
      %v1497 = vld [vmem:[%s1488 + $0x20] sm:$0xf]
      %v1498 = vld [vmem:[%s1488 + $0x24] sm:$0xf]
      %v1499 = vld [vmem:[%s1488 + $0x28] sm:$0xf]
      %v1500 = vld [vmem:[%s1488 + $0x2c] sm:$0xf]
      %v1501 = vld [vmem:[%s1488 + $0x30] sm:$0xf]
      %v1502 = vld [vmem:[%s1488 + $0x34] sm:$0xf]
      %v1503 = vld [vmem:[%s1488 + $0x38] sm:$0xf]
      %v1504 = vld [vmem:[%s1488 + $0x3c] sm:$0xf]
      %v1521 = vunpack.c.l.b16 %v1489
      %v1522 = vunpack.c.l.b16 %v1490
      %v1523 = vunpack.c.l.b16 %v1491
      %v1524 = vunpack.c.l.b16 %v1492
      %v1525 = vunpack.c.l.b16 %v1493
      %v1526 = vunpack.c.l.b16 %v1494
      %v1527 = vunpack.c.l.b16 %v1495
      %v1528 = vunpack.c.l.b16 %v1496
      %v1529 = vunpack.c.l.b16 %v1497
      %v1530 = vunpack.c.l.b16 %v1498
      %v1531 = vunpack.c.l.b16 %v1499
      %v1532 = vunpack.c.l.b16 %v1500
      %v1533 = vunpack.c.l.b16 %v1501
      %v1534 = vunpack.c.l.b16 %v1502
      %v1535 = vunpack.c.l.b16 %v1503
      %v1536 = vunpack.c.l.b16 %v1504
      %v1537 = vpack.c.b16 %v1522, %v1521
      %v1538 = vpack.c.b16 %v1524, %v1523
      %v1539 = vpack.c.b16 %v1526, %v1525
      %v1540 = vpack.c.b16 %v1528, %v1527
      %v1541 = vpack.c.b16 %v1530, %v1529
      %v1542 = vpack.c.b16 %v1532, %v1531
      %v1543 = vpack.c.b16 %v1534, %v1533
      %v1544 = vpack.c.b16 %v1536, %v1535
      %1553 = vmatprep.subr.bf16.mxu0 0
      %1554 = vmatpush1.bf16.msra.mxu0 %v1537
      %1555 = vmatprep.subr.bf16.mxu0 0
      %1556 = vmatpush1.bf16.msra.mxu0 %v1538
      %1557 = vmatprep.subr.bf16.mxu0 0
      %1558 = vmatpush1.bf16.msra.mxu0 %v1539
      %1559 = vmatprep.subr.bf16.mxu0 0
      %1560 = vmatpush1.bf16.msra.mxu0 %v1540
      %1561 = vmatprep.subr.bf16.mxu0 0
      %1562 = vmatpush1.bf16.msra.mxu0 %v1541
      %1563 = vmatprep.subr.bf16.mxu0 0
      %1564 = vmatpush1.bf16.msra.mxu0 %v1542
      %1565 = vmatprep.subr.bf16.mxu0 0
      %1566 = vmatpush1.bf16.msra.mxu0 %v1543
      %1567 = vmatprep.subr.bf16.mxu0 0
      %1568 = vmatpush1.bf16.msra.mxu0 %v1544
      %1569 = vmatprep.subr.bf16.mxu0 0
      %1570 = vmatpush1.bf16.msra.mxu0 0
      %1571 = vmatprep.subr.bf16.mxu0 0
      %1572 = vmatpush1.bf16.msra.mxu0 0
      %1573 = vmatprep.subr.bf16.mxu0 0
      %1574 = vmatpush1.bf16.msra.mxu0 0
      %1575 = vmatprep.subr.bf16.mxu0 0
      %1576 = vmatpush1.bf16.msra.mxu0 0
      %1577 = vmatprep.subr.bf16.mxu0 0
      %1578 = vmatpush1.bf16.msra.mxu0 0
      %1579 = vmatprep.subr.bf16.mxu0 0
      %1580 = vmatpush1.bf16.msra.mxu0 0
      %1581 = vmatprep.subr.bf16.mxu0 0
      %1582 = vmatpush1.bf16.msra.mxu0 0
      %1583 = vmatprep.subr.bf16.mxu0 0
      %1584 = vmatpush1.bf16.msra.mxu0 0
      %1585 = vmatprep.mubr.bf16.mxu0 0
      %1586 = vmatmul.mubr.bf16.gmra.mrb[0].mxu0 %v682
      %v1587 = vpop.f32.mrb[0].mxu0
      %v1588 = vadd.f32 0.0, %v1587
      %v1589 = vpop.f32.mrb[0].mxu0
      %v1590 = vpop.f32.mrb[0].mxu0
      %v1591 = vadd.f32 0.0, %v1590
      %v1592 = vpop.f32.mrb[0].mxu0
      %1593 = vmatprep.mubr.bf16.mxu0 0
      %1594 = vmatmul.mubr.bf16.gmra.mrb[0].mxu0 %v694
      %v1595 = vpop.f32.mrb[0].mxu0
      %v1596 = vadd.f32 0.0, %v1595
      %v1597 = vpop.f32.mrb[0].mxu0
      %v1598 = vpop.f32.mrb[0].mxu0
      %v1599 = vadd.f32 0.0, %v1598
      %v1600 = vpop.f32.mrb[0].mxu0
      %1601 = vmatprep.mubr.bf16.mxu0 0
      %1602 = vmatmul.mubr.bf16.gmra.mrb[0].mxu0 %v706
      %v1603 = vpop.f32.mrb[0].mxu0
      %v1604 = vadd.f32 0.0, %v1603
      %v1605 = vpop.f32.mrb[0].mxu0
      %v1606 = vpop.f32.mrb[0].mxu0
      %v1607 = vadd.f32 0.0, %v1606
      %v1608 = vpop.f32.mrb[0].mxu0
      %1609 = vmatprep.mubr.bf16.mxu0 0
      %1610 = vmatmul.mubr.bf16.gmra.mrb[0].mxu0 %v718
      %v1611 = vpop.f32.mrb[0].mxu0
      %v1612 = vadd.f32 0.0, %v1611
      %v1613 = vpop.f32.mrb[0].mxu0
      %v1614 = vpop.f32.mrb[0].mxu0
      %v1615 = vadd.f32 0.0, %v1614
      %v1616 = vpop.f32.mrb[0].mxu0
      %1617 = vmatprep.mubr.bf16.mxu0 0
      %1618 = vmatmul.mubr.bf16.gmra.mrb[0].mxu0 %v730
      %v1619 = vpop.f32.mrb[0].mxu0
      %v1620 = vadd.f32 0.0, %v1619
      %v1621 = vpop.f32.mrb[0].mxu0
      %v1622 = vpop.f32.mrb[0].mxu0
      %v1623 = vadd.f32 0.0, %v1622
      %v1624 = vpop.f32.mrb[0].mxu0
      %1625 = vmatprep.mubr.bf16.mxu0 0
      %1626 = vmatmul.mubr.bf16.gmra.mrb[0].mxu0 %v742
      %v1627 = vpop.f32.mrb[0].mxu0
      %v1628 = vadd.f32 0.0, %v1627
      %v1629 = vpop.f32.mrb[0].mxu0
      %v1630 = vpop.f32.mrb[0].mxu0
      %v1631 = vadd.f32 0.0, %v1630
      %v1632 = vpop.f32.mrb[0].mxu0
      %1633 = vmatprep.mubr.bf16.mxu0 0
      %1634 = vmatmul.mubr.bf16.gmra.mrb[0].mxu0 %v754
      %v1635 = vpop.f32.mrb[0].mxu0
      %v1636 = vadd.f32 0.0, %v1635
      %v1637 = vpop.f32.mrb[0].mxu0
      %v1638 = vpop.f32.mrb[0].mxu0
      %v1639 = vadd.f32 0.0, %v1638
      %v1640 = vpop.f32.mrb[0].mxu0
      %1641 = vmatprep.mubr.bf16.mxu0 0
      %1642 = vmatmul.mubr.bf16.gmra.mrb[0].mxu0 %v1486
      %v1643 = vpop.f32.mrb[0].mxu0
      %v1644 = vadd.f32 0.0, %v1643
      %v1645 = vpop.f32.mrb[0].mxu0
      %v1646 = vpop.f32.mrb[0].mxu0
      %v1647 = vadd.f32 0.0, %v1646
      %v1648 = vpop.f32.mrb[0].mxu0
      %1649 = vdwg.mxu0
      %v1650 = vadd.f32 %v1459, %v1588
      %v1651 = vadd.f32 %v1460, %v1591
      %v1652 = vadd.f32 %v1461, %v1596
      %v1653 = vadd.f32 %v1462, %v1599
      %v1654 = vadd.f32 %v1463, %v1604
      %v1655 = vadd.f32 %v1464, %v1607
      %v1656 = vadd.f32 %v1465, %v1612
      %v1657 = vadd.f32 %v1466, %v1615
      %v1658 = vadd.f32 %v1467, %v1620
      %v1659 = vadd.f32 %v1468, %v1623
      %v1660 = vadd.f32 %v1469, %v1628
      %v1661 = vadd.f32 %v1470, %v1631
      %v1662 = vadd.f32 %v1471, %v1636
      %v1663 = vadd.f32 %v1472, %v1639
      %v1664 = vadd.f32 %v1473, %v1644
      %v1665 = vadd.f32 %v1474, %v1647
      %v1668 = vrot.slane %v638, 1
      %v1669 = vrot.slane %v639, 1
      %v1670 = vsel %vm1086, %v1668, %v1669
      %s1672 = scalar_lea.vmem %s3, 320
      %v1673 = vld [vmem:[%s1672] sm:$0xf]
      %v1674 = vld [vmem:[%s1672 + $0x4] sm:$0xf]
      %v1675 = vld [vmem:[%s1672 + $0x8] sm:$0xf]
      %v1676 = vld [vmem:[%s1672 + $0xc] sm:$0xf]
      %v1677 = vld [vmem:[%s1672 + $0x10] sm:$0xf]
      %v1678 = vld [vmem:[%s1672 + $0x14] sm:$0xf]
      %v1679 = vld [vmem:[%s1672 + $0x18] sm:$0xf]
      %v1680 = vld [vmem:[%s1672 + $0x1c] sm:$0xf]
      %v1681 = vld [vmem:[%s1672 + $0x20] sm:$0xf]
      %v1682 = vld [vmem:[%s1672 + $0x24] sm:$0xf]
      %v1683 = vld [vmem:[%s1672 + $0x28] sm:$0xf]
      %v1684 = vld [vmem:[%s1672 + $0x2c] sm:$0xf]
      %v1685 = vld [vmem:[%s1672 + $0x30] sm:$0xf]
      %v1686 = vld [vmem:[%s1672 + $0x34] sm:$0xf]
      %v1687 = vld [vmem:[%s1672 + $0x38] sm:$0xf]
      %v1688 = vld [vmem:[%s1672 + $0x3c] sm:$0xf]
      %v1705 = vunpack.c.l.b16 %v1673
      %v1706 = vunpack.c.l.b16 %v1674
      %v1707 = vunpack.c.l.b16 %v1675
      %v1708 = vunpack.c.l.b16 %v1676
      %v1709 = vunpack.c.l.b16 %v1677
      %v1710 = vunpack.c.l.b16 %v1678
      %v1711 = vunpack.c.l.b16 %v1679
      %v1712 = vunpack.c.l.b16 %v1680
      %v1713 = vunpack.c.l.b16 %v1681
      %v1714 = vunpack.c.l.b16 %v1682
      %v1715 = vunpack.c.l.b16 %v1683
      %v1716 = vunpack.c.l.b16 %v1684
      %v1717 = vunpack.c.l.b16 %v1685
      %v1718 = vunpack.c.l.b16 %v1686
      %v1719 = vunpack.c.l.b16 %v1687
      %v1720 = vunpack.c.l.b16 %v1688
      %v1721 = vpack.c.b16 %v1706, %v1705
      %v1722 = vpack.c.b16 %v1708, %v1707
      %v1723 = vpack.c.b16 %v1710, %v1709
      %v1724 = vpack.c.b16 %v1712, %v1711
      %v1725 = vpack.c.b16 %v1714, %v1713
      %v1726 = vpack.c.b16 %v1716, %v1715
      %v1727 = vpack.c.b16 %v1718, %v1717
      %v1728 = vpack.c.b16 %v1720, %v1719
      %1737 = vmatprep.subr.bf16.mxu0 0
      %1738 = vmatpush1.bf16.msra.mxu0 %v1721
      %1739 = vmatprep.subr.bf16.mxu0 0
      %1740 = vmatpush1.bf16.msra.mxu0 %v1722
      %1741 = vmatprep.subr.bf16.mxu0 0
      %1742 = vmatpush1.bf16.msra.mxu0 %v1723
      %1743 = vmatprep.subr.bf16.mxu0 0
      %1744 = vmatpush1.bf16.msra.mxu0 %v1724
      %1745 = vmatprep.subr.bf16.mxu0 0
      %1746 = vmatpush1.bf16.msra.mxu0 %v1725
      %1747 = vmatprep.subr.bf16.mxu0 0
      %1748 = vmatpush1.bf16.msra.mxu0 %v1726
      %1749 = vmatprep.subr.bf16.mxu0 0
      %1750 = vmatpush1.bf16.msra.mxu0 %v1727
      %1751 = vmatprep.subr.bf16.mxu0 0
      %1752 = vmatpush1.bf16.msra.mxu0 %v1728
      %1753 = vmatprep.subr.bf16.mxu0 0
      %1754 = vmatpush1.bf16.msra.mxu0 0
      %1755 = vmatprep.subr.bf16.mxu0 0
      %1756 = vmatpush1.bf16.msra.mxu0 0
      %1757 = vmatprep.subr.bf16.mxu0 0
      %1758 = vmatpush1.bf16.msra.mxu0 0
      %1759 = vmatprep.subr.bf16.mxu0 0
      %1760 = vmatpush1.bf16.msra.mxu0 0
      %1761 = vmatprep.subr.bf16.mxu0 0
      %1762 = vmatpush1.bf16.msra.mxu0 0
      %1763 = vmatprep.subr.bf16.mxu0 0
      %1764 = vmatpush1.bf16.msra.mxu0 0
      %1765 = vmatprep.subr.bf16.mxu0 0
      %1766 = vmatpush1.bf16.msra.mxu0 0
      %1767 = vmatprep.subr.bf16.mxu0 0
      %1768 = vmatpush1.bf16.msra.mxu0 0
      %1769 = vmatprep.mubr.bf16.mxu0 0
      %1770 = vmatmul.mubr.bf16.gmra.mrb[0].mxu0 %v1092
      %v1771 = vpop.f32.mrb[0].mxu0
      %v1772 = vadd.f32 0.0, %v1771
      %v1773 = vpop.f32.mrb[0].mxu0
      %v1774 = vpop.f32.mrb[0].mxu0
      %v1775 = vadd.f32 0.0, %v1774
      %v1776 = vpop.f32.mrb[0].mxu0
      %1777 = vmatprep.mubr.bf16.mxu0 0
      %1778 = vmatmul.mubr.bf16.gmra.mrb[0].mxu0 %v1095
      %v1779 = vpop.f32.mrb[0].mxu0
      %v1780 = vadd.f32 0.0, %v1779
      %v1781 = vpop.f32.mrb[0].mxu0
      %v1782 = vpop.f32.mrb[0].mxu0
      %v1783 = vadd.f32 0.0, %v1782
      %v1784 = vpop.f32.mrb[0].mxu0
      %1785 = vmatprep.mubr.bf16.mxu0 0
      %1786 = vmatmul.mubr.bf16.gmra.mrb[0].mxu0 %v1098
      %v1787 = vpop.f32.mrb[0].mxu0
      %v1788 = vadd.f32 0.0, %v1787
      %v1789 = vpop.f32.mrb[0].mxu0
      %v1790 = vpop.f32.mrb[0].mxu0
      %v1791 = vadd.f32 0.0, %v1790
      %v1792 = vpop.f32.mrb[0].mxu0
      %1793 = vmatprep.mubr.bf16.mxu0 0
      %1794 = vmatmul.mubr.bf16.gmra.mrb[0].mxu0 %v1101
      %v1795 = vpop.f32.mrb[0].mxu0
      %v1796 = vadd.f32 0.0, %v1795
      %v1797 = vpop.f32.mrb[0].mxu0
      %v1798 = vpop.f32.mrb[0].mxu0
      %v1799 = vadd.f32 0.0, %v1798
      %v1800 = vpop.f32.mrb[0].mxu0
      %1801 = vmatprep.mubr.bf16.mxu0 0
      %1802 = vmatmul.mubr.bf16.gmra.mrb[0].mxu0 %v1104
      %v1803 = vpop.f32.mrb[0].mxu0
      %v1804 = vadd.f32 0.0, %v1803
      %v1805 = vpop.f32.mrb[0].mxu0
      %v1806 = vpop.f32.mrb[0].mxu0
      %v1807 = vadd.f32 0.0, %v1806
      %v1808 = vpop.f32.mrb[0].mxu0
      %1809 = vmatprep.mubr.bf16.mxu0 0
      %1810 = vmatmul.mubr.bf16.gmra.mrb[0].mxu0 %v1107
      %v1811 = vpop.f32.mrb[0].mxu0
      %v1812 = vadd.f32 0.0, %v1811
      %v1813 = vpop.f32.mrb[0].mxu0
      %v1814 = vpop.f32.mrb[0].mxu0
      %v1815 = vadd.f32 0.0, %v1814
      %v1816 = vpop.f32.mrb[0].mxu0
      %1817 = vmatprep.mubr.bf16.mxu0 0
      %1818 = vmatmul.mubr.bf16.gmra.mrb[0].mxu0 %v1110
      %v1819 = vpop.f32.mrb[0].mxu0
      %v1820 = vadd.f32 0.0, %v1819
      %v1821 = vpop.f32.mrb[0].mxu0
      %v1822 = vpop.f32.mrb[0].mxu0
      %v1823 = vadd.f32 0.0, %v1822
      %v1824 = vpop.f32.mrb[0].mxu0
      %1825 = vmatprep.mubr.bf16.mxu0 0
      %1826 = vmatmul.mubr.bf16.gmra.mrb[0].mxu0 %v1670
      %v1827 = vpop.f32.mrb[0].mxu0
      %v1828 = vadd.f32 0.0, %v1827
      %v1829 = vpop.f32.mrb[0].mxu0
      %v1830 = vpop.f32.mrb[0].mxu0
      %v1831 = vadd.f32 0.0, %v1830
      %v1832 = vpop.f32.mrb[0].mxu0
      %1833 = vdwg.mxu0
      %v1834 = vadd.f32 %v1650, %v1772
      %v1835 = vadd.f32 %v1651, %v1775
      %v1836 = vadd.f32 %v1652, %v1780
      %v1837 = vadd.f32 %v1653, %v1783
      %v1838 = vadd.f32 %v1654, %v1788
      %v1839 = vadd.f32 %v1655, %v1791
      %v1840 = vadd.f32 %v1656, %v1796
      %v1841 = vadd.f32 %v1657, %v1799
      %v1842 = vadd.f32 %v1658, %v1804
      %v1843 = vadd.f32 %v1659, %v1807
      %v1844 = vadd.f32 %v1660, %v1812
      %v1845 = vadd.f32 %v1661, %v1815
      %v1846 = vadd.f32 %v1662, %v1820
      %v1847 = vadd.f32 %v1663, %v1823
      %v1848 = vadd.f32 %v1664, %v1828
      %v1849 = vadd.f32 %v1665, %v1831
      %s1850 = scalar_lea.vmem %s3, 384
      %v1851 = vld [vmem:[%s1850] sm:$0xf]
      %v1852 = vld [vmem:[%s1850 + $0x4] sm:$0xf]
      %v1853 = vld [vmem:[%s1850 + $0x8] sm:$0xf]
      %v1854 = vld [vmem:[%s1850 + $0xc] sm:$0xf]
      %v1855 = vld [vmem:[%s1850 + $0x10] sm:$0xf]
      %v1856 = vld [vmem:[%s1850 + $0x14] sm:$0xf]
      %v1857 = vld [vmem:[%s1850 + $0x18] sm:$0xf]
      %v1858 = vld [vmem:[%s1850 + $0x1c] sm:$0xf]
      %v1859 = vld [vmem:[%s1850 + $0x20] sm:$0xf]
      %v1860 = vld [vmem:[%s1850 + $0x24] sm:$0xf]
      %v1861 = vld [vmem:[%s1850 + $0x28] sm:$0xf]
      %v1862 = vld [vmem:[%s1850 + $0x2c] sm:$0xf]
      %v1863 = vld [vmem:[%s1850 + $0x30] sm:$0xf]
      %v1864 = vld [vmem:[%s1850 + $0x34] sm:$0xf]
      %v1865 = vld [vmem:[%s1850 + $0x38] sm:$0xf]
      %v1866 = vld [vmem:[%s1850 + $0x3c] sm:$0xf]
      %v1883 = vunpack.c.l.b16 %v1851
      %v1884 = vunpack.c.l.b16 %v1852
      %v1885 = vunpack.c.l.b16 %v1853
      %v1886 = vunpack.c.l.b16 %v1854
      %v1887 = vunpack.c.l.b16 %v1855
      %v1888 = vunpack.c.l.b16 %v1856
      %v1889 = vunpack.c.l.b16 %v1857
      %v1890 = vunpack.c.l.b16 %v1858
      %v1891 = vunpack.c.l.b16 %v1859
      %v1892 = vunpack.c.l.b16 %v1860
      %v1893 = vunpack.c.l.b16 %v1861
      %v1894 = vunpack.c.l.b16 %v1862
      %v1895 = vunpack.c.l.b16 %v1863
      %v1896 = vunpack.c.l.b16 %v1864
      %v1897 = vunpack.c.l.b16 %v1865
      %v1898 = vunpack.c.l.b16 %v1866
      %v1899 = vpack.c.b16 %v1884, %v1883
      %v1900 = vpack.c.b16 %v1886, %v1885
      %v1901 = vpack.c.b16 %v1888, %v1887
      %v1902 = vpack.c.b16 %v1890, %v1889
      %v1903 = vpack.c.b16 %v1892, %v1891
      %v1904 = vpack.c.b16 %v1894, %v1893
      %v1905 = vpack.c.b16 %v1896, %v1895
      %v1906 = vpack.c.b16 %v1898, %v1897
      %1915 = vmatprep.subr.bf16.mxu0 0
      %1916 = vmatpush1.bf16.msra.mxu0 %v1899
      %1917 = vmatprep.subr.bf16.mxu0 0
      %1918 = vmatpush1.bf16.msra.mxu0 %v1900
      %1919 = vmatprep.subr.bf16.mxu0 0
      %1920 = vmatpush1.bf16.msra.mxu0 %v1901
      %1921 = vmatprep.subr.bf16.mxu0 0
      %1922 = vmatpush1.bf16.msra.mxu0 %v1902
      %1923 = vmatprep.subr.bf16.mxu0 0
      %1924 = vmatpush1.bf16.msra.mxu0 %v1903
      %1925 = vmatprep.subr.bf16.mxu0 0
      %1926 = vmatpush1.bf16.msra.mxu0 %v1904
      %1927 = vmatprep.subr.bf16.mxu0 0
      %1928 = vmatpush1.bf16.msra.mxu0 %v1905
      %1929 = vmatprep.subr.bf16.mxu0 0
      %1930 = vmatpush1.bf16.msra.mxu0 %v1906
      %1931 = vmatprep.subr.bf16.mxu0 0
      %1932 = vmatpush1.bf16.msra.mxu0 0
      %1933 = vmatprep.subr.bf16.mxu0 0
      %1934 = vmatpush1.bf16.msra.mxu0 0
      %1935 = vmatprep.subr.bf16.mxu0 0
      %1936 = vmatpush1.bf16.msra.mxu0 0
      %1937 = vmatprep.subr.bf16.mxu0 0
      %1938 = vmatpush1.bf16.msra.mxu0 0
      %1939 = vmatprep.subr.bf16.mxu0 0
      %1940 = vmatpush1.bf16.msra.mxu0 0
      %1941 = vmatprep.subr.bf16.mxu0 0
      %1942 = vmatpush1.bf16.msra.mxu0 0
      %1943 = vmatprep.subr.bf16.mxu0 0
      %1944 = vmatpush1.bf16.msra.mxu0 0
      %1945 = vmatprep.subr.bf16.mxu0 0
      %1946 = vmatpush1.bf16.msra.mxu0 0
      %1947 = vmatprep.mubr.bf16.mxu0 0
      %1948 = vmatmul.mubr.bf16.gmra.mrb[0].mxu0 %v626
      %v1949 = vpop.f32.mrb[0].mxu0
      %v1950 = vadd.f32 0.0, %v1949
      %v1951 = vpop.f32.mrb[0].mxu0
      %v1952 = vpop.f32.mrb[0].mxu0
      %v1953 = vadd.f32 0.0, %v1952
      %v1954 = vpop.f32.mrb[0].mxu0
      %1955 = vmatprep.mubr.bf16.mxu0 0
      %1956 = vmatmul.mubr.bf16.gmra.mrb[0].mxu0 %v628
      %v1957 = vpop.f32.mrb[0].mxu0
      %v1958 = vadd.f32 0.0, %v1957
      %v1959 = vpop.f32.mrb[0].mxu0
      %v1960 = vpop.f32.mrb[0].mxu0
      %v1961 = vadd.f32 0.0, %v1960
      %v1962 = vpop.f32.mrb[0].mxu0
      %1963 = vmatprep.mubr.bf16.mxu0 0
      %1964 = vmatmul.mubr.bf16.gmra.mrb[0].mxu0 %v630
      %v1965 = vpop.f32.mrb[0].mxu0
      %v1966 = vadd.f32 0.0, %v1965
      %v1967 = vpop.f32.mrb[0].mxu0
      %v1968 = vpop.f32.mrb[0].mxu0
      %v1969 = vadd.f32 0.0, %v1968
      %v1970 = vpop.f32.mrb[0].mxu0
      %1971 = vmatprep.mubr.bf16.mxu0 0
      %1972 = vmatmul.mubr.bf16.gmra.mrb[0].mxu0 %v632
      %v1973 = vpop.f32.mrb[0].mxu0
      %v1974 = vadd.f32 0.0, %v1973
      %v1975 = vpop.f32.mrb[0].mxu0
      %v1976 = vpop.f32.mrb[0].mxu0
      %v1977 = vadd.f32 0.0, %v1976
      %v1978 = vpop.f32.mrb[0].mxu0
      %1979 = vmatprep.mubr.bf16.mxu0 0
      %1980 = vmatmul.mubr.bf16.gmra.mrb[0].mxu0 %v634
      %v1981 = vpop.f32.mrb[0].mxu0
      %v1982 = vadd.f32 0.0, %v1981
      %v1983 = vpop.f32.mrb[0].mxu0
      %v1984 = vpop.f32.mrb[0].mxu0
      %v1985 = vadd.f32 0.0, %v1984
      %v1986 = vpop.f32.mrb[0].mxu0
      %1987 = vmatprep.mubr.bf16.mxu0 0
      %1988 = vmatmul.mubr.bf16.gmra.mrb[0].mxu0 %v636
      %v1989 = vpop.f32.mrb[0].mxu0
      %v1990 = vadd.f32 0.0, %v1989
      %v1991 = vpop.f32.mrb[0].mxu0
      %v1992 = vpop.f32.mrb[0].mxu0
      %v1993 = vadd.f32 0.0, %v1992
      %v1994 = vpop.f32.mrb[0].mxu0
      %1995 = vmatprep.mubr.bf16.mxu0 0
      %1996 = vmatmul.mubr.bf16.gmra.mrb[0].mxu0 %v638
      %v1997 = vpop.f32.mrb[0].mxu0
      %v1998 = vadd.f32 0.0, %v1997
      %v1999 = vpop.f32.mrb[0].mxu0
      %v2000 = vpop.f32.mrb[0].mxu0
      %v2001 = vadd.f32 0.0, %v2000
      %v2002 = vpop.f32.mrb[0].mxu0
      %2003 = vmatprep.mubr.bf16.mxu0 0
      %2004 = vmatmul.mubr.bf16.gmra.mrb[0].mxu0 %v640
      %v2005 = vpop.f32.mrb[0].mxu0
      %v2006 = vadd.f32 0.0, %v2005
      %v2007 = vpop.f32.mrb[0].mxu0
      %v2008 = vpop.f32.mrb[0].mxu0
      %v2009 = vadd.f32 0.0, %v2008
      %v2010 = vpop.f32.mrb[0].mxu0
      %2011 = vdwg.mxu0
      %v2012 = vadd.f32 %v1834, %v1950
      %v2013 = vadd.f32 %v1835, %v1953
      %v2014 = vadd.f32 %v1836, %v1958
      %v2015 = vadd.f32 %v1837, %v1961
      %v2016 = vadd.f32 %v1838, %v1966
      %v2017 = vadd.f32 %v1839, %v1969
      %v2018 = vadd.f32 %v1840, %v1974
      %v2019 = vadd.f32 %v1841, %v1977
      %v2020 = vadd.f32 %v1842, %v1982
      %v2021 = vadd.f32 %v1843, %v1985
      %v2022 = vadd.f32 %v1844, %v1990
      %v2023 = vadd.f32 %v1845, %v1993
      %v2024 = vadd.f32 %v1846, %v1998
      %v2025 = vadd.f32 %v1847, %v2001
      %v2026 = vadd.f32 %v1848, %v2006
      %v2027 = vadd.f32 %v1849, %v2009
      %v2029 = vshrl.u32 %v640, 16
      %v2031 = vshll.u32 %v640, 16
      %v2033 = vrot.slane %v2031, 1
      %v2034 = vor.u32 %v2029, %v2033
      %v2036 = vshll.u32 %v641, 16
      %v2038 = vrot.slane %v2036, 1
      %v2039 = vsel %vm658, %v2034, %v2038
      %s2041 = scalar_lea.vmem %s3, 448
      %v2042 = vld [vmem:[%s2041] sm:$0xf]
      %v2043 = vld [vmem:[%s2041 + $0x4] sm:$0xf]
      %v2044 = vld [vmem:[%s2041 + $0x8] sm:$0xf]
      %v2045 = vld [vmem:[%s2041 + $0xc] sm:$0xf]
      %v2046 = vld [vmem:[%s2041 + $0x10] sm:$0xf]
      %v2047 = vld [vmem:[%s2041 + $0x14] sm:$0xf]
      %v2048 = vld [vmem:[%s2041 + $0x18] sm:$0xf]
      %v2049 = vld [vmem:[%s2041 + $0x1c] sm:$0xf]
      %v2050 = vld [vmem:[%s2041 + $0x20] sm:$0xf]
      %v2051 = vld [vmem:[%s2041 + $0x24] sm:$0xf]
      %v2052 = vld [vmem:[%s2041 + $0x28] sm:$0xf]
      %v2053 = vld [vmem:[%s2041 + $0x2c] sm:$0xf]
      %v2054 = vld [vmem:[%s2041 + $0x30] sm:$0xf]
      %v2055 = vld [vmem:[%s2041 + $0x34] sm:$0xf]
      %v2056 = vld [vmem:[%s2041 + $0x38] sm:$0xf]
      %v2057 = vld [vmem:[%s2041 + $0x3c] sm:$0xf]
      %v2074 = vunpack.c.l.b16 %v2042
      %v2075 = vunpack.c.l.b16 %v2043
      %v2076 = vunpack.c.l.b16 %v2044
      %v2077 = vunpack.c.l.b16 %v2045
      %v2078 = vunpack.c.l.b16 %v2046
      %v2079 = vunpack.c.l.b16 %v2047
      %v2080 = vunpack.c.l.b16 %v2048
      %v2081 = vunpack.c.l.b16 %v2049
      %v2082 = vunpack.c.l.b16 %v2050
      %v2083 = vunpack.c.l.b16 %v2051
      %v2084 = vunpack.c.l.b16 %v2052
      %v2085 = vunpack.c.l.b16 %v2053
      %v2086 = vunpack.c.l.b16 %v2054
      %v2087 = vunpack.c.l.b16 %v2055
      %v2088 = vunpack.c.l.b16 %v2056
      %v2089 = vunpack.c.l.b16 %v2057
      %v2090 = vpack.c.b16 %v2075, %v2074
      %v2091 = vpack.c.b16 %v2077, %v2076
      %v2092 = vpack.c.b16 %v2079, %v2078
      %v2093 = vpack.c.b16 %v2081, %v2080
      %v2094 = vpack.c.b16 %v2083, %v2082
      %v2095 = vpack.c.b16 %v2085, %v2084
      %v2096 = vpack.c.b16 %v2087, %v2086
      %v2097 = vpack.c.b16 %v2089, %v2088
      %2106 = vmatprep.subr.bf16.mxu0 0
      %2107 = vmatpush1.bf16.msra.mxu0 %v2090
      %2108 = vmatprep.subr.bf16.mxu0 0
      %2109 = vmatpush1.bf16.msra.mxu0 %v2091
      %2110 = vmatprep.subr.bf16.mxu0 0
      %2111 = vmatpush1.bf16.msra.mxu0 %v2092
      %2112 = vmatprep.subr.bf16.mxu0 0
      %2113 = vmatpush1.bf16.msra.mxu0 %v2093
      %2114 = vmatprep.subr.bf16.mxu0 0
      %2115 = vmatpush1.bf16.msra.mxu0 %v2094
      %2116 = vmatprep.subr.bf16.mxu0 0
      %2117 = vmatpush1.bf16.msra.mxu0 %v2095
      %2118 = vmatprep.subr.bf16.mxu0 0
      %2119 = vmatpush1.bf16.msra.mxu0 %v2096
      %2120 = vmatprep.subr.bf16.mxu0 0
      %2121 = vmatpush1.bf16.msra.mxu0 %v2097
      %2122 = vmatprep.subr.bf16.mxu0 0
      %2123 = vmatpush1.bf16.msra.mxu0 0
      %2124 = vmatprep.subr.bf16.mxu0 0
      %2125 = vmatpush1.bf16.msra.mxu0 0
      %2126 = vmatprep.subr.bf16.mxu0 0
      %2127 = vmatpush1.bf16.msra.mxu0 0
      %2128 = vmatprep.subr.bf16.mxu0 0
      %2129 = vmatpush1.bf16.msra.mxu0 0
      %2130 = vmatprep.subr.bf16.mxu0 0
      %2131 = vmatpush1.bf16.msra.mxu0 0
      %2132 = vmatprep.subr.bf16.mxu0 0
      %2133 = vmatpush1.bf16.msra.mxu0 0
      %2134 = vmatprep.subr.bf16.mxu0 0
      %2135 = vmatpush1.bf16.msra.mxu0 0
      %2136 = vmatprep.subr.bf16.mxu0 0
      %2137 = vmatpush1.bf16.msra.mxu0 0
      %2138 = vmatprep.mubr.bf16.mxu0 0
      %2139 = vmatmul.mubr.bf16.gmra.mrb[0].mxu0 %v694
      %v2140 = vpop.f32.mrb[0].mxu0
      %v2141 = vadd.f32 0.0, %v2140
      %v2142 = vpop.f32.mrb[0].mxu0
      %v2143 = vpop.f32.mrb[0].mxu0
      %v2144 = vadd.f32 0.0, %v2143
      %v2145 = vpop.f32.mrb[0].mxu0
      %2146 = vmatprep.mubr.bf16.mxu0 0
      %2147 = vmatmul.mubr.bf16.gmra.mrb[0].mxu0 %v706
      %v2148 = vpop.f32.mrb[0].mxu0
      %v2149 = vadd.f32 0.0, %v2148
      %v2150 = vpop.f32.mrb[0].mxu0
      %v2151 = vpop.f32.mrb[0].mxu0
      %v2152 = vadd.f32 0.0, %v2151
      %v2153 = vpop.f32.mrb[0].mxu0
      %2154 = vmatprep.mubr.bf16.mxu0 0
      %2155 = vmatmul.mubr.bf16.gmra.mrb[0].mxu0 %v718
      %v2156 = vpop.f32.mrb[0].mxu0
      %v2157 = vadd.f32 0.0, %v2156
      %v2158 = vpop.f32.mrb[0].mxu0
      %v2159 = vpop.f32.mrb[0].mxu0
      %v2160 = vadd.f32 0.0, %v2159
      %v2161 = vpop.f32.mrb[0].mxu0
      %2162 = vmatprep.mubr.bf16.mxu0 0
      %2163 = vmatmul.mubr.bf16.gmra.mrb[0].mxu0 %v730
      %v2164 = vpop.f32.mrb[0].mxu0
      %v2165 = vadd.f32 0.0, %v2164
      %v2166 = vpop.f32.mrb[0].mxu0
      %v2167 = vpop.f32.mrb[0].mxu0
      %v2168 = vadd.f32 0.0, %v2167
      %v2169 = vpop.f32.mrb[0].mxu0
      %2170 = vmatprep.mubr.bf16.mxu0 0
      %2171 = vmatmul.mubr.bf16.gmra.mrb[0].mxu0 %v742
      %v2172 = vpop.f32.mrb[0].mxu0
      %v2173 = vadd.f32 0.0, %v2172
      %v2174 = vpop.f32.mrb[0].mxu0
      %v2175 = vpop.f32.mrb[0].mxu0
      %v2176 = vadd.f32 0.0, %v2175
      %v2177 = vpop.f32.mrb[0].mxu0
      %2178 = vmatprep.mubr.bf16.mxu0 0
      %2179 = vmatmul.mubr.bf16.gmra.mrb[0].mxu0 %v754
      %v2180 = vpop.f32.mrb[0].mxu0
      %v2181 = vadd.f32 0.0, %v2180
      %v2182 = vpop.f32.mrb[0].mxu0
      %v2183 = vpop.f32.mrb[0].mxu0
      %v2184 = vadd.f32 0.0, %v2183
      %v2185 = vpop.f32.mrb[0].mxu0
      %2186 = vmatprep.mubr.bf16.mxu0 0
      %2187 = vmatmul.mubr.bf16.gmra.mrb[0].mxu0 %v1486
      %v2188 = vpop.f32.mrb[0].mxu0
      %v2189 = vadd.f32 0.0, %v2188
      %v2190 = vpop.f32.mrb[0].mxu0
      %v2191 = vpop.f32.mrb[0].mxu0
      %v2192 = vadd.f32 0.0, %v2191
      %v2193 = vpop.f32.mrb[0].mxu0
      %2194 = vmatprep.mubr.bf16.mxu0 0
      %2195 = vmatmul.mubr.bf16.gmra.mrb[0].mxu0 %v2039
      %v2196 = vpop.f32.mrb[0].mxu0
      %v2197 = vadd.f32 0.0, %v2196
      %v2198 = vpop.f32.mrb[0].mxu0
      %v2199 = vpop.f32.mrb[0].mxu0
      %v2200 = vadd.f32 0.0, %v2199
      %v2201 = vpop.f32.mrb[0].mxu0
      %2202 = vdwg.mxu0
      %v2203 = vadd.f32 %v2012, %v2141
      %v2204 = vadd.f32 %v2013, %v2144
      %v2205 = vadd.f32 %v2014, %v2149
      %v2206 = vadd.f32 %v2015, %v2152
      %v2207 = vadd.f32 %v2016, %v2157
      %v2208 = vadd.f32 %v2017, %v2160
      %v2209 = vadd.f32 %v2018, %v2165
      %v2210 = vadd.f32 %v2019, %v2168
      %v2211 = vadd.f32 %v2020, %v2173
      %v2212 = vadd.f32 %v2021, %v2176
      %v2213 = vadd.f32 %v2022, %v2181
      %v2214 = vadd.f32 %v2023, %v2184
      %v2215 = vadd.f32 %v2024, %v2189
      %v2216 = vadd.f32 %v2025, %v2192
      %v2217 = vadd.f32 %v2026, %v2197
      %v2218 = vadd.f32 %v2027, %v2200
      %v2221 = vrot.slane %v640, 1
      %v2222 = vrot.slane %v641, 1
      %v2223 = vsel %vm1086, %v2221, %v2222
      %s2225 = scalar_lea.vmem %s3, 512
      %v2226 = vld [vmem:[%s2225] sm:$0xf]
      %v2227 = vld [vmem:[%s2225 + $0x4] sm:$0xf]
      %v2228 = vld [vmem:[%s2225 + $0x8] sm:$0xf]
      %v2229 = vld [vmem:[%s2225 + $0xc] sm:$0xf]
      %v2230 = vld [vmem:[%s2225 + $0x10] sm:$0xf]
      %v2231 = vld [vmem:[%s2225 + $0x14] sm:$0xf]
      %v2232 = vld [vmem:[%s2225 + $0x18] sm:$0xf]
      %v2233 = vld [vmem:[%s2225 + $0x1c] sm:$0xf]
      %v2234 = vld [vmem:[%s2225 + $0x20] sm:$0xf]
      %v2235 = vld [vmem:[%s2225 + $0x24] sm:$0xf]
      %v2236 = vld [vmem:[%s2225 + $0x28] sm:$0xf]
      %v2237 = vld [vmem:[%s2225 + $0x2c] sm:$0xf]
      %v2238 = vld [vmem:[%s2225 + $0x30] sm:$0xf]
      %v2239 = vld [vmem:[%s2225 + $0x34] sm:$0xf]
      %v2240 = vld [vmem:[%s2225 + $0x38] sm:$0xf]
      %v2241 = vld [vmem:[%s2225 + $0x3c] sm:$0xf]
      %v2258 = vunpack.c.l.b16 %v2226
      %v2259 = vunpack.c.l.b16 %v2227
      %v2260 = vunpack.c.l.b16 %v2228
      %v2261 = vunpack.c.l.b16 %v2229
      %v2262 = vunpack.c.l.b16 %v2230
      %v2263 = vunpack.c.l.b16 %v2231
      %v2264 = vunpack.c.l.b16 %v2232
      %v2265 = vunpack.c.l.b16 %v2233
      %v2266 = vunpack.c.l.b16 %v2234
      %v2267 = vunpack.c.l.b16 %v2235
      %v2268 = vunpack.c.l.b16 %v2236
      %v2269 = vunpack.c.l.b16 %v2237
      %v2270 = vunpack.c.l.b16 %v2238
      %v2271 = vunpack.c.l.b16 %v2239
      %v2272 = vunpack.c.l.b16 %v2240
      %v2273 = vunpack.c.l.b16 %v2241
      %v2274 = vpack.c.b16 %v2259, %v2258
      %v2275 = vpack.c.b16 %v2261, %v2260
      %v2276 = vpack.c.b16 %v2263, %v2262
      %v2277 = vpack.c.b16 %v2265, %v2264
      %v2278 = vpack.c.b16 %v2267, %v2266
      %v2279 = vpack.c.b16 %v2269, %v2268
      %v2280 = vpack.c.b16 %v2271, %v2270
      %v2281 = vpack.c.b16 %v2273, %v2272
      %2290 = vmatprep.subr.bf16.mxu0 0
      %2291 = vmatpush1.bf16.msra.mxu0 %v2274
      %2292 = vmatprep.subr.bf16.mxu0 0
      %2293 = vmatpush1.bf16.msra.mxu0 %v2275
      %2294 = vmatprep.subr.bf16.mxu0 0
      %2295 = vmatpush1.bf16.msra.mxu0 %v2276
      %2296 = vmatprep.subr.bf16.mxu0 0
      %2297 = vmatpush1.bf16.msra.mxu0 %v2277
      %2298 = vmatprep.subr.bf16.mxu0 0
      %2299 = vmatpush1.bf16.msra.mxu0 %v2278
      %2300 = vmatprep.subr.bf16.mxu0 0
      %2301 = vmatpush1.bf16.msra.mxu0 %v2279
      %2302 = vmatprep.subr.bf16.mxu0 0
      %2303 = vmatpush1.bf16.msra.mxu0 %v2280
      %2304 = vmatprep.subr.bf16.mxu0 0
      %2305 = vmatpush1.bf16.msra.mxu0 %v2281
      %2306 = vmatprep.subr.bf16.mxu0 0
      %2307 = vmatpush1.bf16.msra.mxu0 0
      %2308 = vmatprep.subr.bf16.mxu0 0
      %2309 = vmatpush1.bf16.msra.mxu0 0
      %2310 = vmatprep.subr.bf16.mxu0 0
      %2311 = vmatpush1.bf16.msra.mxu0 0
      %2312 = vmatprep.subr.bf16.mxu0 0
      %2313 = vmatpush1.bf16.msra.mxu0 0
      %2314 = vmatprep.subr.bf16.mxu0 0
      %2315 = vmatpush1.bf16.msra.mxu0 0
      %2316 = vmatprep.subr.bf16.mxu0 0
      %2317 = vmatpush1.bf16.msra.mxu0 0
      %2318 = vmatprep.subr.bf16.mxu0 0
      %2319 = vmatpush1.bf16.msra.mxu0 0
      %2320 = vmatprep.subr.bf16.mxu0 0
      %2321 = vmatpush1.bf16.msra.mxu0 0
      %2322 = vmatprep.mubr.bf16.mxu0 0
      %2323 = vmatmul.mubr.bf16.gmra.mrb[0].mxu0 %v1095
      %v2324 = vpop.f32.mrb[0].mxu0
      %v2325 = vadd.f32 0.0, %v2324
      %v2326 = vpop.f32.mrb[0].mxu0
      %v2327 = vpop.f32.mrb[0].mxu0
      %v2328 = vadd.f32 0.0, %v2327
      %v2329 = vpop.f32.mrb[0].mxu0
      %2330 = vmatprep.mubr.bf16.mxu0 0
      %2331 = vmatmul.mubr.bf16.gmra.mrb[0].mxu0 %v1098
      %v2332 = vpop.f32.mrb[0].mxu0
      %v2333 = vadd.f32 0.0, %v2332
      %v2334 = vpop.f32.mrb[0].mxu0
      %v2335 = vpop.f32.mrb[0].mxu0
      %v2336 = vadd.f32 0.0, %v2335
      %v2337 = vpop.f32.mrb[0].mxu0
      %2338 = vmatprep.mubr.bf16.mxu0 0
      %2339 = vmatmul.mubr.bf16.gmra.mrb[0].mxu0 %v1101
      %v2340 = vpop.f32.mrb[0].mxu0
      %v2341 = vadd.f32 0.0, %v2340
      %v2342 = vpop.f32.mrb[0].mxu0
      %v2343 = vpop.f32.mrb[0].mxu0
      %v2344 = vadd.f32 0.0, %v2343
      %v2345 = vpop.f32.mrb[0].mxu0
      %2346 = vmatprep.mubr.bf16.mxu0 0
      %2347 = vmatmul.mubr.bf16.gmra.mrb[0].mxu0 %v1104
      %v2348 = vpop.f32.mrb[0].mxu0
      %v2349 = vadd.f32 0.0, %v2348
      %v2350 = vpop.f32.mrb[0].mxu0
      %v2351 = vpop.f32.mrb[0].mxu0
      %v2352 = vadd.f32 0.0, %v2351
      %v2353 = vpop.f32.mrb[0].mxu0
      %2354 = vmatprep.mubr.bf16.mxu0 0
      %2355 = vmatmul.mubr.bf16.gmra.mrb[0].mxu0 %v1107
      %v2356 = vpop.f32.mrb[0].mxu0
      %v2357 = vadd.f32 0.0, %v2356
      %v2358 = vpop.f32.mrb[0].mxu0
      %v2359 = vpop.f32.mrb[0].mxu0
      %v2360 = vadd.f32 0.0, %v2359
      %v2361 = vpop.f32.mrb[0].mxu0
      %2362 = vmatprep.mubr.bf16.mxu0 0
      %2363 = vmatmul.mubr.bf16.gmra.mrb[0].mxu0 %v1110
      %v2364 = vpop.f32.mrb[0].mxu0
      %v2365 = vadd.f32 0.0, %v2364
      %v2366 = vpop.f32.mrb[0].mxu0
      %v2367 = vpop.f32.mrb[0].mxu0
      %v2368 = vadd.f32 0.0, %v2367
      %v2369 = vpop.f32.mrb[0].mxu0
      %2370 = vmatprep.mubr.bf16.mxu0 0
      %2371 = vmatmul.mubr.bf16.gmra.mrb[0].mxu0 %v1670
      %v2372 = vpop.f32.mrb[0].mxu0
      %v2373 = vadd.f32 0.0, %v2372
      %v2374 = vpop.f32.mrb[0].mxu0
      %v2375 = vpop.f32.mrb[0].mxu0
      %v2376 = vadd.f32 0.0, %v2375
      %v2377 = vpop.f32.mrb[0].mxu0
      %2378 = vmatprep.mubr.bf16.mxu0 0
      %2379 = vmatmul.mubr.bf16.gmra.mrb[0].mxu0 %v2223
      %v2380 = vpop.f32.mrb[0].mxu0
      %v2381 = vadd.f32 0.0, %v2380
      %v2382 = vpop.f32.mrb[0].mxu0
      %v2383 = vpop.f32.mrb[0].mxu0
      %v2384 = vadd.f32 0.0, %v2383
      %v2385 = vpop.f32.mrb[0].mxu0
      %2386 = vdwg.mxu0
      %v2387 = vadd.f32 %v2203, %v2325
      %v2388 = vadd.f32 %v2204, %v2328
      %v2389 = vadd.f32 %v2205, %v2333
      %v2390 = vadd.f32 %v2206, %v2336
      %v2391 = vadd.f32 %v2207, %v2341
      %v2392 = vadd.f32 %v2208, %v2344
      %v2393 = vadd.f32 %v2209, %v2349
      %v2394 = vadd.f32 %v2210, %v2352
      %v2395 = vadd.f32 %v2211, %v2357
      %v2396 = vadd.f32 %v2212, %v2360
      %v2397 = vadd.f32 %v2213, %v2365
      %v2398 = vadd.f32 %v2214, %v2368
      %v2399 = vadd.f32 %v2215, %v2373
      %v2400 = vadd.f32 %v2216, %v2376
      %v2401 = vadd.f32 %v2217, %v2381
      %v2402 = vadd.f32 %v2218, %v2384
      %v2403 = vld [vmem:[%s4] sm:$0x1]
      %v2405 = vlaneseq
      %v2406 = vshrl.u32 %v2405, 7
      %v2407 = vsub.s32 0, %v2406
      %v2408 = vrot.slane %v2403, %v2407
      %v2410 = vadd.f32 %v2387, %v2408
      %v2411 = vadd.f32 %v2388, %v2408
      %v2412 = vadd.f32 %v2389, %v2408
      %v2413 = vadd.f32 %v2390, %v2408
      %v2414 = vadd.f32 %v2391, %v2408
      %v2415 = vadd.f32 %v2392, %v2408
      %v2416 = vadd.f32 %v2393, %v2408
      %v2417 = vadd.f32 %v2394, %v2408
      %v2418 = vadd.f32 %v2395, %v2408
      %v2419 = vadd.f32 %v2396, %v2408
      %v2420 = vadd.f32 %v2397, %v2408
      %v2421 = vadd.f32 %v2398, %v2408
      %v2422 = vadd.f32 %v2399, %v2408
      %v2423 = vadd.f32 %v2400, %v2408
      %v2424 = vadd.f32 %v2401, %v2408
      %v2425 = vadd.f32 %v2402, %v2408
      %v2426 = vmax.f32 %v2410, 0.0
      %v2427 = vmax.f32 %v2411, 0.0
      %v2428 = vmax.f32 %v2412, 0.0
      %v2429 = vmax.f32 %v2413, 0.0
      %v2430 = vmax.f32 %v2414, 0.0
      %v2431 = vmax.f32 %v2415, 0.0
      %v2432 = vmax.f32 %v2416, 0.0
      %v2433 = vmax.f32 %v2417, 0.0
      %v2434 = vmax.f32 %v2418, 0.0
      %v2435 = vmax.f32 %v2419, 0.0
      %v2436 = vmax.f32 %v2420, 0.0
      %v2437 = vmax.f32 %v2421, 0.0
      %v2438 = vmax.f32 %v2422, 0.0
      %v2439 = vmax.f32 %v2423, 0.0
      %v2440 = vmax.f32 %v2424, 0.0
      %v2441 = vmax.f32 %v2425, 0.0
      %v2442 = vstv %s447
      %v2443 = vadd.s32 %v2442, 1
      %v2444 = vadd.s32 %v2442, 2
      %v2445 = vadd.s32 %v2442, 3
      %v2446 = vadd.s32 %v2442, 4
      %v2447 = vadd.s32 %v2442, 5
      %v2448 = vadd.s32 %v2442, 6
      %v2449 = vadd.s32 %v2442, 7
      %vm2450 = vcmp.lt.s32.totalorder %v2442, 16
      %vm2451 = vcmp.lt.s32.totalorder %v2443, 16
      %vm2452 = vcmp.lt.s32.totalorder %v2444, 16
      %vm2453 = vcmp.lt.s32.totalorder %v2445, 16
      %vm2454 = vcmp.lt.s32.totalorder %v2446, 16
      %vm2455 = vcmp.lt.s32.totalorder %v2447, 16
      %vm2456 = vcmp.lt.s32.totalorder %v2448, 16
      %vm2457 = vcmp.lt.s32.totalorder %v2449, 16
      %v2458 = vsel %vm2450, 1, 0
      %v2459 = vsel %vm2451, 1, 0
      %v2460 = vsel %vm2452, 1, 0
      %v2461 = vsel %vm2453, 1, 0
      %v2462 = vsel %vm2454, 1, 0
      %v2463 = vsel %vm2455, 1, 0
      %v2464 = vsel %vm2456, 1, 0
      %v2465 = vsel %vm2457, 1, 0
      %vm2466 = vcmp.eq.s32.totalorder %v2458, 1
      %vm2467 = vcmp.eq.s32.totalorder %v2459, 1
      %vm2468 = vcmp.eq.s32.totalorder %v2460, 1
      %vm2469 = vcmp.eq.s32.totalorder %v2461, 1
      %vm2470 = vcmp.eq.s32.totalorder %v2462, 1
      %vm2471 = vcmp.eq.s32.totalorder %v2463, 1
      %vm2472 = vcmp.eq.s32.totalorder %v2464, 1
      %vm2473 = vcmp.eq.s32.totalorder %v2465, 1
      %v2474 = vsel %vm2466, %v2426, 0.0
      %v2475 = vsel %vm2466, %v2427, 0.0
      %v2476 = vsel %vm2467, %v2428, 0.0
      %v2477 = vsel %vm2467, %v2429, 0.0
      %v2478 = vsel %vm2468, %v2430, 0.0
      %v2479 = vsel %vm2468, %v2431, 0.0
      %v2480 = vsel %vm2469, %v2432, 0.0
      %v2481 = vsel %vm2469, %v2433, 0.0
      %v2482 = vsel %vm2470, %v2434, 0.0
      %v2483 = vsel %vm2470, %v2435, 0.0
      %v2484 = vsel %vm2471, %v2436, 0.0
      %v2485 = vsel %vm2471, %v2437, 0.0
      %v2486 = vsel %vm2472, %v2438, 0.0
      %v2487 = vsel %vm2472, %v2439, 0.0
      %v2488 = vsel %vm2473, %v2440, 0.0
      %v2489 = vsel %vm2473, %v2441, 0.0
      %v2490 = vadd.f32 %v2474, %v2475
      %v2491 = vadd.f32 %v2490, %v2476
      %v2492 = vadd.f32 %v2491, %v2477
      %v2493 = vadd.f32 %v2492, %v2478
      %v2494 = vadd.f32 %v2493, %v2479
      %v2495 = vadd.f32 %v2494, %v2480
      %v2496 = vadd.f32 %v2495, %v2481
      %v2497 = vadd.f32 %v2496, %v2482
      %v2498 = vadd.f32 %v2497, %v2483
      %v2499 = vadd.f32 %v2498, %v2484
      %v2500 = vadd.f32 %v2499, %v2485
      %v2501 = vadd.f32 %v2500, %v2486
      %v2502 = vadd.f32 %v2501, %v2487
      %v2503 = vadd.f32 %v2502, %v2488
      %v2504 = vadd.f32 %v2503, %v2489
      %v2505 = vrot.slane %v2504, 4
      %v2506 = vadd.f32 %v2504, %v2505
      %v2507 = vrot.slane %v2506, 2
      %v2508 = vadd.f32 %v2506, %v2507
      %v2509 = vrot.slane %v2508, 1
      %v2510 = vadd.f32 %v2508, %v2509
      %v2511 = vmul.f32 %v2474, %v2426
      %v2512 = vmul.f32 %v2475, %v2427
      %v2513 = vmul.f32 %v2476, %v2428
      %v2514 = vmul.f32 %v2477, %v2429
      %v2515 = vmul.f32 %v2478, %v2430
      %v2516 = vmul.f32 %v2479, %v2431
      %v2517 = vmul.f32 %v2480, %v2432
      %v2518 = vmul.f32 %v2481, %v2433
      %v2519 = vmul.f32 %v2482, %v2434
      %v2520 = vmul.f32 %v2483, %v2435
      %v2521 = vmul.f32 %v2484, %v2436
      %v2522 = vmul.f32 %v2485, %v2437
      %v2523 = vmul.f32 %v2486, %v2438
      %v2524 = vmul.f32 %v2487, %v2439
      %v2525 = vmul.f32 %v2488, %v2440
      %v2526 = vmul.f32 %v2489, %v2441
      %v2527 = vadd.f32 %v2511, %v2512
      %v2528 = vadd.f32 %v2527, %v2513
      %v2529 = vadd.f32 %v2528, %v2514
      %v2530 = vadd.f32 %v2529, %v2515
      %v2531 = vadd.f32 %v2530, %v2516
      %v2532 = vadd.f32 %v2531, %v2517
      %v2533 = vadd.f32 %v2532, %v2518
      %v2534 = vadd.f32 %v2533, %v2519
      %v2535 = vadd.f32 %v2534, %v2520
      %v2536 = vadd.f32 %v2535, %v2521
      %v2537 = vadd.f32 %v2536, %v2522
      %v2538 = vadd.f32 %v2537, %v2523
      %v2539 = vadd.f32 %v2538, %v2524
      %v2540 = vadd.f32 %v2539, %v2525
      %v2541 = vadd.f32 %v2540, %v2526
      %v2542 = vrot.slane %v2541, 4
      %v2543 = vadd.f32 %v2541, %v2542
      %v2544 = vrot.slane %v2543, 2
      %v2545 = vadd.f32 %v2543, %v2544
      %v2546 = vrot.slane %v2545, 1
      %v2547 = vadd.f32 %v2545, %v2546
      %vm2548 = vcmask 1040384
      %v2549 = vsel %vm2548, %v2510, %v2547
      %vm2550 = vcmask 1041408
      %v2551 = vsel %vm2550, %v2549, 0.0
      %2552 = vst [vmem:[%s311] sm:$0xff] %v2551
      %v2553 = vpack.c.bf16 %v2427, %v2426
      %v2554 = vpack.c.bf16 %v2429, %v2428
      %v2555 = vpack.c.bf16 %v2431, %v2430
      %v2556 = vpack.c.bf16 %v2433, %v2432
      %v2557 = vpack.c.bf16 %v2435, %v2434
      %v2558 = vpack.c.bf16 %v2437, %v2436
      %v2559 = vpack.c.bf16 %v2439, %v2438
      %v2560 = vpack.c.bf16 %v2441, %v2440
      %v2569 = vunpack.c.l.b16 %v2553
      %v2570 = vunpack.c.h.b16 %v2553
      %v2571 = vunpack.c.l.b16 %v2554
      %v2572 = vunpack.c.h.b16 %v2554
      %v2573 = vunpack.c.l.b16 %v2555
      %v2574 = vunpack.c.h.b16 %v2555
      %v2575 = vunpack.c.l.b16 %v2556
      %v2576 = vunpack.c.h.b16 %v2556
      %v2577 = vunpack.c.l.b16 %v2557
      %v2578 = vunpack.c.h.b16 %v2557
      %v2579 = vunpack.c.l.b16 %v2558
      %v2580 = vunpack.c.h.b16 %v2558
      %v2581 = vunpack.c.l.b16 %v2559
      %v2582 = vunpack.c.h.b16 %v2559
      %v2583 = vunpack.c.l.b16 %v2560
      %v2584 = vunpack.c.h.b16 %v2560
      %v2585 = vpack.c.b16 %v2569, %v2569
      %v2586 = vpack.c.b16 %v2570, %v2570
      %v2587 = vpack.c.b16 %v2571, %v2571
      %v2588 = vpack.c.b16 %v2572, %v2572
      %v2589 = vpack.c.b16 %v2573, %v2573
      %v2590 = vpack.c.b16 %v2574, %v2574
      %v2591 = vpack.c.b16 %v2575, %v2575
      %v2592 = vpack.c.b16 %v2576, %v2576
      %v2593 = vpack.c.b16 %v2577, %v2577
      %v2594 = vpack.c.b16 %v2578, %v2578
      %v2595 = vpack.c.b16 %v2579, %v2579
      %v2596 = vpack.c.b16 %v2580, %v2580
      %v2597 = vpack.c.b16 %v2581, %v2581
      %v2598 = vpack.c.b16 %v2582, %v2582
      %v2599 = vpack.c.b16 %v2583, %v2583
      %v2600 = vpack.c.b16 %v2584, %v2584
      %2617 = vst [vmem:[%s302] sm:$0xf] %v2585
      %2618 = vst [vmem:[%s302 + $0x4] sm:$0xf] %v2586
      %2619 = vst [vmem:[%s302 + $0x8] sm:$0xf] %v2587
      %2620 = vst [vmem:[%s302 + $0xc] sm:$0xf] %v2588
      %2621 = vst [vmem:[%s302 + $0x10] sm:$0xf] %v2589
      %2622 = vst [vmem:[%s302 + $0x14] sm:$0xf] %v2590
      %2623 = vst [vmem:[%s302 + $0x18] sm:$0xf] %v2591
      %2624 = vst [vmem:[%s302 + $0x1c] sm:$0xf] %v2592
      %2625 = vst [vmem:[%s302 + $0x20] sm:$0xf] %v2593
      %2626 = vst [vmem:[%s302 + $0x24] sm:$0xf] %v2594
      %2627 = vst [vmem:[%s302 + $0x28] sm:$0xf] %v2595
      %2628 = vst [vmem:[%s302 + $0x2c] sm:$0xf] %v2596
      %2629 = vst [vmem:[%s302 + $0x30] sm:$0xf] %v2597
      %2630 = vst [vmem:[%s302 + $0x34] sm:$0xf] %v2598
      %2631 = vst [vmem:[%s302 + $0x38] sm:$0xf] %v2599
      %2632 = vst [vmem:[%s302 + $0x3c] sm:$0xf] %v2600
      %s2633 = smul.u32 8, %s23
      %p2634 = scmp.lt.s32.totalorder %s22, 1
      %s2635 = scalar_select %p2634, %s22, 1
      %p2636 = scmp.lt.s32.totalorder %s2633, 15
      %s2637 = scalar_select %p2636, %s2633, 15
      %s2638 = smul.addr %s2637, 2
      %s2639 = smul.addr %s2635, 32
      %s2640 = sadd.s32 %s2638, %s2639
      %s2641 = smul.addr %s2640, 4
      %s2642 = scalar_lea.vmem %s5, %s2641
      %p2643 = scmp.lt.s32.totalorder %s22, 1
      %s2644 = scalar_select %p2643, %s22, 1
      %p2645 = scmp.lt.s32.totalorder %s23, 1
      %s2646 = scalar_select %p2645, %s23, 1
      %s2647 = smul.addr %s2644, 2
      %s2648 = sadd.s32 %s2646, %s2647
      %s2649 = smul.addr %s2648, 8
      %s2650 = scalar_lea.vmem %s6, %s2649
      // Predicated region
      $region41: #{_lambda_.3} parent=39 // pred_check
        %p2651 = pneg %p162
      $region42: #{_lambda_.3} parent=39 // pred_check_branch
        %2653 = sbr.rel (%p2651) target = $region44
      $region43: #{_lambda_.3} parent=39 // pred_region
        %s2654 = smul.u32 8, %s23
      $region44: #{_lambda_.3} parent=39 // pred_fallthru
        _
      // Predicated region
      $region45: #{_lambda_.3} parent=39 // pred_check
        %p2655 = pneg %p190
      $region46: #{_lambda_.3} parent=39 // pred_check_branch
        %2657 = sbr.rel (%p2655) target = $region48
      $region47: #{_lambda_.3} parent=39 // pred_region
        _
      $region48: #{_lambda_.3} parent=39 // pred_fallthru
        _
    $region40: #{_lambda_.3} parent=5 // pred_fallthru
      _
    %p2658 = scmp.le.s32.totalorder 2, %s13
    // Predicated region
    $region49: #{_lambda_.3} parent=5 // pred_check
      %p2659 = pneg %p2658
    $region50: #{_lambda_.3} parent=5 // pred_check_branch
      %2661 = sbr.rel (%p2659) target = $region52
    $region51: #{_lambda_.3} parent=5 // pred_region
      %s2662 = ssub.s32 %s13, 2
      // Predicated region
      $region53: #{_lambda_.3} parent=51 // pred_check
        %p2663 = pneg %p168
      $region54: #{_lambda_.3} parent=51 // pred_check_branch
        %2665 = sbr.rel (%p2663) target = $region56
      $region55: #{_lambda_.3} parent=51 // pred_region
        %s2666 = smul.u32 8, %s25
        %p2667 = scmp.lt.s32.totalorder %s24, 1
        %s2668 = scalar_select %p2667, %s24, 1
        %p2669 = scmp.lt.s32.totalorder %s2666, 15
        %s2670 = scalar_select %p2669, %s2666, 15
        %s2671 = smul.addr %s2670, 2
        %s2672 = smul.addr %s2668, 32
        %s2673 = sadd.s32 %s2671, %s2672
        %s2674 = smul.addr %s2673, 4
        %s2675 = scalar_lea.vmem %s5, %s2674
      $region56: #{_lambda_.3} parent=51 // pred_fallthru
        _
      // Predicated region
      $region57: #{_lambda_.3} parent=51 // pred_check
        %p2676 = pneg %p196
      $region58: #{_lambda_.3} parent=51 // pred_check_branch
        %2678 = sbr.rel (%p2676) target = $region60
      $region59: #{_lambda_.3} parent=51 // pred_region
        %p2679 = scmp.lt.s32.totalorder %s24, 1
        %s2680 = scalar_select %p2679, %s24, 1
        %p2681 = scmp.lt.s32.totalorder %s25, 1
        %s2682 = scalar_select %p2681, %s25, 1
        %s2683 = smul.addr %s2680, 2
        %s2684 = sadd.s32 %s2682, %s2683
        %s2685 = smul.addr %s2684, 8
        %s2686 = scalar_lea.vmem %s6, %s2685
      $region60: #{_lambda_.3} parent=51 // pred_fallthru
        _
    $region52: #{_lambda_.3} parent=5 // pred_fallthru
      _
  $region6: #{_lambda_.3} parent=0 // loop_footer
    %s17 = sadd.s32 1, %s13
  $region7: #{_lambda_.3} parent=0 // loop_footer_branch
    %12 = sbr.rel target = $region3
  $region8: #{_lambda_.3} parent=0 // loop_exit
    _

// kernel: _lambda_.2
$region0: #{_lambda_.2}
  #allocation0 [shape = 'u32[]', space=smem, size = 0x4, offset = 0x4, fixed_abs, tag = 'smem constant byte address 0x4 - core index']
  #allocation1 [shape = 'u32[144,128]{1,0:T(1,128)}', space=vmem, size = 0x12000, scoped, tag = 'internal scratch']
  %s0 = inlined_call_operand.vmem [shape: bf16[2,2,8,18,128], index: 0, kind: input, shape index: {}]
  %s1 = inlined_call_operand.vmem [shape: bf16[2,2,12,18,128], index: 1, kind: input, shape index: {}]
  %s2 = inlined_call_operand.vmem [shape: bf16[9,128,128], index: 2, kind: input, shape index: {}]
  %s3 = inlined_call_operand.vmem [shape: bf16[9,128,128], index: 3, kind: input, shape index: {}]
  %s4 = inlined_call_operand.vmem [shape: f32[1,128], index: 4, kind: input, shape index: {}]
  %s5 = inlined_call_operand.vmem [shape: bf16[2,2,10,18,128], index: 5, kind: output, shape index: {0}]
  %s6 = inlined_call_operand.vmem [shape: f32[2,2,8,128], index: 6, kind: output, shape index: {1}]
  %7 = xla_tuple %s5, %s6
  %s8 = sld [smem:[#allocation0]]
  $region61: #{_lambda_.2} parent=0
    _
  %s10 = ssub.s32 1, %s8
  %s11 = scalar_select 0, %s10, %s8
  loop: start=0, step=1, limit=6
  $region2: #{_lambda_.2} parent=0 // loop_pre_header
    _
  $region3: #{_lambda_.2} parent=0 // loop_header
    %s13 = sphi 0, %s17
    %p14 = scmp.ge.s32.totalorder %s13, 6
    %s20 = sphi 0, %s32
    %s21 = sphi 0, %s28
    %s22 = sphi 0, %s20
    %s23 = sphi 0, %s21
    %s24 = sphi 0, %s22
    %s25 = sphi 0, %s23
    %s37 = sphi 0, %s39
    %s40 = sphi 0, %s37
    %s41 = sphi 0, %s40
    %s57 = sphi 0, %s41
    %s65 = sphi 0, %s67
    %s68 = sphi 0, %s65
    %s69 = sphi 0, %s68
    %s85 = sphi 0, %s69
    %s89 = sphi 0, %s89
    %s91 = sphi 0, %s89
    %s92 = sphi 0, %s91
    %s106 = sphi 0, %s92
    %s110 = sphi 0, %s110
    %s112 = sphi 0, %s110
    %s113 = sphi 0, %s112
    %s127 = sphi 0, %s113
    %s131 = sphi 0, %s131
    %s133 = sphi 0, %s131
    %s134 = sphi 0, %s133
    %s148 = sphi 0, %s134
    %s156 = sphi 0, %s158
    %s159 = sphi 0, %s156
    %s160 = sphi 0, %s159
    %s176 = sphi 0, %s160
    %s184 = sphi 0, %s186
    %s187 = sphi 0, %s184
    %s188 = sphi 0, %s187
    %s204 = sphi 0, %s188
  $region4: #{_lambda_.2} parent=0 // loop_header_branch
    %16 = sbr.rel (%p14) target = $region8
  $region5: #{_lambda_.2} parent=0 // loop_body
    %s18 = ssub.s32 %s13, 1
    %s19 = ssub.s32 %s13, 2
    %s26 = sadd.s32 1, %s21
    %p27 = scmp.ge.s32.totalorder %s26, 2
    %s28 = scalar_select %p27, 0, %s26
    %s29 = sadd.s32 1, %s20
    %s30 = scalar_select %p27, %s29, %s20
    %p31 = scmp.ge.s32.totalorder %s30, 2
    %s32 = scalar_select %p31, 0, %s30
    %s33 = ssub.s32 %s20, %s32
    %s34 = ssub.s32 %s21, %s28
    %s35 = sor.u32 %s33, %s34
    %p36 = scmp.eq.s32.totalorder %s35, 0
    %s38 = sadd.s32 %s37, 1
    %s39 = scalar_select %p36, %s37, %s38
    %p42 = pneg %p36
    %p43 = scmp.eq.s32.totalorder %s13, 3
    %p44 = por %p42, %p43
    %p45 = scmp.ne.s32.totalorder %s37, %s40
    %p46 = scmp.eq.s32.totalorder %s13, 0
    %p47 = por %p45, %p46
    %p48 = scmp.ne.s32.totalorder %s37, %s40
    %p49 = scmp.eq.s32.totalorder %s18, 3
    %p50 = por %p48, %p49
    %p51 = scmp.ne.s32.totalorder %s40, %s41
    %p52 = scmp.eq.s32.totalorder %s18, 0
    %p53 = por %p51, %p52
    %p54 = scmp.ne.s32.totalorder %s40, %s41
    %p55 = scmp.eq.s32.totalorder %s19, 3
    %p56 = por %p54, %p55
    %p58 = scmp.ne.s32.totalorder %s41, %s57
    %p59 = scmp.eq.s32.totalorder %s19, 0
    %p60 = por %p58, %p59
    %s61 = ssub.s32 %s20, %s32
    %s62 = ssub.s32 %s21, %s28
    %s63 = sor.u32 %s61, %s62
    %p64 = scmp.eq.s32.totalorder %s63, 0
    %s66 = sadd.s32 %s65, 1
    %s67 = scalar_select %p64, %s65, %s66
    %p70 = pneg %p64
    %p71 = scmp.eq.s32.totalorder %s13, 3
    %p72 = por %p70, %p71
    %p73 = scmp.ne.s32.totalorder %s65, %s68
    %p74 = scmp.eq.s32.totalorder %s13, 0
    %p75 = por %p73, %p74
    %p76 = scmp.ne.s32.totalorder %s65, %s68
    %p77 = scmp.eq.s32.totalorder %s18, 3
    %p78 = por %p76, %p77
    %p79 = scmp.ne.s32.totalorder %s68, %s69
    %p80 = scmp.eq.s32.totalorder %s18, 0
    %p81 = por %p79, %p80
    %p82 = scmp.ne.s32.totalorder %s68, %s69
    %p83 = scmp.eq.s32.totalorder %s19, 3
    %p84 = por %p82, %p83
    %p86 = scmp.ne.s32.totalorder %s69, %s85
    %p87 = scmp.eq.s32.totalorder %s19, 0
    %p88 = por %p86, %p87
    %s90 = sadd.s32 %s89, 1
    %p93 = scmp.eq.s32.totalorder %s13, 3
    %p94 = scmp.ne.s32.totalorder %s89, %s91
    %p95 = scmp.eq.s32.totalorder %s13, 0
    %p96 = por %p94, %p95
    %p97 = scmp.ne.s32.totalorder %s89, %s91
    %p98 = scmp.eq.s32.totalorder %s18, 3
    %p99 = por %p97, %p98
    %p100 = scmp.ne.s32.totalorder %s91, %s92
    %p101 = scmp.eq.s32.totalorder %s18, 0
    %p102 = por %p100, %p101
    %p103 = scmp.ne.s32.totalorder %s91, %s92
    %p104 = scmp.eq.s32.totalorder %s19, 3
    %p105 = por %p103, %p104
    %p107 = scmp.ne.s32.totalorder %s92, %s106
    %p108 = scmp.eq.s32.totalorder %s19, 0
    %p109 = por %p107, %p108
    %s111 = sadd.s32 %s110, 1
    %p114 = scmp.eq.s32.totalorder %s13, 3
    %p115 = scmp.ne.s32.totalorder %s110, %s112
    %p116 = scmp.eq.s32.totalorder %s13, 0
    %p117 = por %p115, %p116
    %p118 = scmp.ne.s32.totalorder %s110, %s112
    %p119 = scmp.eq.s32.totalorder %s18, 3
    %p120 = por %p118, %p119
    %p121 = scmp.ne.s32.totalorder %s112, %s113
    %p122 = scmp.eq.s32.totalorder %s18, 0
    %p123 = por %p121, %p122
    %p124 = scmp.ne.s32.totalorder %s112, %s113
    %p125 = scmp.eq.s32.totalorder %s19, 3
    %p126 = por %p124, %p125
    %p128 = scmp.ne.s32.totalorder %s113, %s127
    %p129 = scmp.eq.s32.totalorder %s19, 0
    %p130 = por %p128, %p129
    %s132 = sadd.s32 %s131, 1
    %p135 = scmp.eq.s32.totalorder %s13, 3
    %p136 = scmp.ne.s32.totalorder %s131, %s133
    %p137 = scmp.eq.s32.totalorder %s13, 0
    %p138 = por %p136, %p137
    %p139 = scmp.ne.s32.totalorder %s131, %s133
    %p140 = scmp.eq.s32.totalorder %s18, 3
    %p141 = por %p139, %p140
    %p142 = scmp.ne.s32.totalorder %s133, %s134
    %p143 = scmp.eq.s32.totalorder %s18, 0
    %p144 = por %p142, %p143
    %p145 = scmp.ne.s32.totalorder %s133, %s134
    %p146 = scmp.eq.s32.totalorder %s19, 3
    %p147 = por %p145, %p146
    %p149 = scmp.ne.s32.totalorder %s134, %s148
    %p150 = scmp.eq.s32.totalorder %s19, 0
    %p151 = por %p149, %p150
    %s152 = ssub.s32 %s20, %s32
    %s153 = ssub.s32 %s21, %s28
    %s154 = sor.u32 %s152, %s153
    %p155 = scmp.eq.s32.totalorder %s154, 0
    %s157 = sadd.s32 %s156, 1
    %s158 = scalar_select %p155, %s156, %s157
    %p161 = pneg %p155
    %p162 = scmp.eq.s32.totalorder %s13, 3
    %p163 = por %p161, %p162
    %p164 = scmp.ne.s32.totalorder %s156, %s159
    %p165 = scmp.eq.s32.totalorder %s13, 0
    %p166 = por %p164, %p165
    %p167 = scmp.ne.s32.totalorder %s156, %s159
    %p168 = scmp.eq.s32.totalorder %s18, 3
    %p169 = por %p167, %p168
    %p170 = scmp.ne.s32.totalorder %s159, %s160
    %p171 = scmp.eq.s32.totalorder %s18, 0
    %p172 = por %p170, %p171
    %p173 = scmp.ne.s32.totalorder %s159, %s160
    %p174 = scmp.eq.s32.totalorder %s19, 3
    %p175 = por %p173, %p174
    %p177 = scmp.ne.s32.totalorder %s160, %s176
    %p178 = scmp.eq.s32.totalorder %s19, 0
    %p179 = por %p177, %p178
    %s180 = ssub.s32 %s20, %s32
    %s181 = ssub.s32 %s21, %s28
    %s182 = sor.u32 %s180, %s181
    %p183 = scmp.eq.s32.totalorder %s182, 0
    %s185 = sadd.s32 %s184, 1
    %s186 = scalar_select %p183, %s184, %s185
    %p189 = pneg %p183
    %p190 = scmp.eq.s32.totalorder %s13, 3
    %p191 = por %p189, %p190
    %p192 = scmp.ne.s32.totalorder %s184, %s187
    %p193 = scmp.eq.s32.totalorder %s13, 0
    %p194 = por %p192, %p193
    %p195 = scmp.ne.s32.totalorder %s184, %s187
    %p196 = scmp.eq.s32.totalorder %s18, 3
    %p197 = por %p195, %p196
    %p198 = scmp.ne.s32.totalorder %s187, %s188
    %p199 = scmp.eq.s32.totalorder %s18, 0
    %p200 = por %p198, %p199
    %p201 = scmp.ne.s32.totalorder %s187, %s188
    %p202 = scmp.eq.s32.totalorder %s19, 3
    %p203 = por %p201, %p202
    %p205 = scmp.ne.s32.totalorder %s188, %s204
    %p206 = scmp.eq.s32.totalorder %s19, 0
    %p207 = por %p205, %p206
    %p208 = scmp.le.s32.totalorder 1, %s13
    %p209 = scmp.lt.s32.totalorder %s13, 5
    %p210 = pnand %p208, %p209
    %p211 = pneg %p210
    // Predicated region
    $region9: #{_lambda_.2} parent=5 // pred_check
      _
    $region10: #{_lambda_.2} parent=5 // pred_check_branch
      %213 = sbr.rel (%p210) target = $region12
    $region11: #{_lambda_.2} parent=5 // pred_region
      %s214 = ssub.s32 %s13, 1
      // Predicated region
      $region13: #{_lambda_.2} parent=11 // pred_check
        %p215 = pneg %p102
      $region14: #{_lambda_.2} parent=11 // pred_check_branch
        %217 = sbr.rel (%p215) target = $region16
      $region15: #{_lambda_.2} parent=11 // pred_region
        _
      $region16: #{_lambda_.2} parent=11 // pred_fallthru
        _
      // Predicated region
      $region17: #{_lambda_.2} parent=11 // pred_check
        %p218 = pneg %p123
      $region18: #{_lambda_.2} parent=11 // pred_check_branch
        %220 = sbr.rel (%p218) target = $region20
      $region19: #{_lambda_.2} parent=11 // pred_region
        _
      $region20: #{_lambda_.2} parent=11 // pred_fallthru
        _
      // Predicated region
      $region21: #{_lambda_.2} parent=11 // pred_check
        %p221 = pneg %p144
      $region22: #{_lambda_.2} parent=11 // pred_check_branch
        %223 = sbr.rel (%p221) target = $region24
      $region23: #{_lambda_.2} parent=11 // pred_region
        _
      $region24: #{_lambda_.2} parent=11 // pred_fallthru
        _
    $region12: #{_lambda_.2} parent=5 // pred_fallthru
      _
    %p224 = scmp.lt.s32.totalorder %s13, 4
    // Predicated region
    $region25: #{_lambda_.2} parent=5 // pred_check
      %p225 = pneg %p224
    $region26: #{_lambda_.2} parent=5 // pred_check_branch
      %227 = sbr.rel (%p225) target = $region28
    $region27: #{_lambda_.2} parent=5 // pred_region
      // Predicated region
      $region29: #{_lambda_.2} parent=27 // pred_check
        %p228 = pneg %p47
      $region30: #{_lambda_.2} parent=27 // pred_check_branch
        %230 = sbr.rel (%p228) target = $region32
      $region31: #{_lambda_.2} parent=27 // pred_region
        %p231 = scmp.lt.s32.totalorder %s20, 1
        %s232 = scalar_select %p231, %s20, 1
        %p233 = scmp.lt.s32.totalorder %s21, 1
        %s234 = scalar_select %p233, %s21, 1
        %s235 = smul.addr %s234, 24
        %s236 = smul.addr %s232, 48
        %s237 = sadd.s32 %s235, %s236
        %s238 = smul.addr %s237, 4
        %s239 = scalar_lea.vmem %s0, %s238
      $region32: #{_lambda_.2} parent=27 // pred_fallthru
        _
      // Predicated region
      $region33: #{_lambda_.2} parent=27 // pred_check
        %p240 = pneg %p75
      $region34: #{_lambda_.2} parent=27 // pred_check_branch
        %242 = sbr.rel (%p240) target = $region36
      $region35: #{_lambda_.2} parent=27 // pred_region
        %p243 = scmp.lt.s32.totalorder %s20, 1
        %s244 = scalar_select %p243, %s20, 1
        %p245 = scmp.lt.s32.totalorder %s21, 1
        %s246 = scalar_select %p245, %s21, 1
        %s247 = smul.addr %s246, 36
        %s248 = smul.addr %s244, 72
        %s249 = sadd.s32 %s247, %s248
        %s250 = smul.addr %s249, 4
        %s251 = scalar_lea.vmem %s1, %s250
      $region36: #{_lambda_.2} parent=27 // pred_fallthru
        _
    $region28: #{_lambda_.2} parent=5 // pred_fallthru
      _
    %p252 = scmp.le.s32.totalorder 1, %s13
    %p253 = scmp.lt.s32.totalorder %s13, 5
    %p254 = pnand %p252, %p253
    %p255 = pneg %p254
    // Predicated region
    $region37: #{_lambda_.2} parent=5 // pred_check
      _
    $region38: #{_lambda_.2} parent=5 // pred_check_branch
      %257 = sbr.rel (%p254) target = $region40
    $region39: #{_lambda_.2} parent=5 // pred_region
      %s258 = ssub.s32 %s13, 1
      %p259 = scmp.lt.s32.totalorder %s22, 1
      %s260 = scalar_select %p259, %s22, 1
      %p261 = scmp.lt.s32.totalorder %s23, 1
      %s262 = scalar_select %p261, %s23, 1
      %s263 = smul.addr %s262, 24
      %s264 = smul.addr %s260, 48
      %s265 = sadd.s32 %s263, %s264
      %s266 = smul.addr %s265, 4
      %s267 = scalar_lea.vmem %s0, %s266
      %p268 = pneg %p53
      %p269 = pneg %p50
      %p270 = scmp.lt.s32.totalorder %s22, 1
      %s271 = scalar_select %p270, %s22, 1
      %p272 = scmp.lt.s32.totalorder %s23, 1
      %s273 = scalar_select %p272, %s23, 1
      %s274 = smul.addr %s273, 36
      %s275 = smul.addr %s271, 72
      %s276 = sadd.s32 %s274, %s275
      %s277 = smul.addr %s276, 4
      %s278 = scalar_lea.vmem %s1, %s277
      %p279 = pneg %p81
      %p280 = pneg %p78
      %p281 = pneg %p102
      %p282 = pneg %p99
      %p283 = pneg %p123
      %p284 = pneg %p120
      %p285 = pneg %p144
      %p286 = pneg %p141
      %p287 = pneg %p172
      %p288 = pneg %p169
      %p289 = scmp.lt.s32.totalorder %s22, 1
      %s290 = scalar_select %p289, %s22, 1
      %p291 = scmp.lt.s32.totalorder %s23, 1
      %s292 = scalar_select %p291, %s23, 1
      %s293 = smul.addr %s292, 30
      %s294 = smul.addr %s290, 60
      %s295 = sadd.s32 %s293, %s294
      %s296 = smul.addr %s295, 4
      %s297 = scalar_lea.vmem %s5, %s296
      %p298 = pneg %p200
      %p299 = pneg %p197
      %p300 = scmp.lt.s32.totalorder %s22, 1
      %s301 = scalar_select %p300, %s22, 1
      %p302 = scmp.lt.s32.totalorder %s23, 1
      %s303 = scalar_select %p302, %s23, 1
      %s304 = smul.addr %s301, 2
      %s305 = sadd.s32 %s303, %s304
      %s306 = smul.addr %s305, 8
      %s307 = scalar_lea.vmem %s6, %s306
      %p308 = scmp.lt.s32.totalorder %s22, 1
      %s309 = scalar_select %p308, %s22, 1
      %p310 = scmp.lt.s32.totalorder %s23, 1
      %s311 = scalar_select %p310, %s23, 1
      %s312 = smul.addr %s311, 24
      %s313 = smul.addr %s309, 48
      %s314 = sadd.s32 %s312, %s313
      %s315 = smul.addr %s314, 4
      %s316 = scalar_lea.vmem %s0, %s315
      %p317 = scmp.lt.s32.totalorder %s22, 1
      %s318 = scalar_select %p317, %s22, 1
      %p319 = scmp.lt.s32.totalorder %s23, 1
      %s320 = scalar_select %p319, %s23, 1
      %s321 = smul.addr %s320, 36
      %s322 = smul.addr %s318, 72
      %s323 = sadd.s32 %s321, %s322
      %s324 = smul.addr %s323, 4
      %s325 = scalar_lea.vmem %s1, %s324
      %p326 = scmp.lt.s32.totalorder %s22, 1
      %s327 = scalar_select %p326, %s22, 1
      %p328 = scmp.lt.s32.totalorder %s23, 1
      %s329 = scalar_select %p328, %s23, 1
      %s330 = smul.addr %s329, 30
      %s331 = smul.addr %s327, 60
      %s332 = sadd.s32 %s330, %s331
      %s333 = smul.addr %s332, 4
      %s334 = scalar_lea.vmem %s5, %s333
      %p335 = scmp.lt.s32.totalorder %s22, 1
      %s336 = scalar_select %p335, %s22, 1
      %p337 = scmp.lt.s32.totalorder %s23, 1
      %s338 = scalar_select %p337, %s23, 1
      %s339 = smul.addr %s336, 2
      %s340 = sadd.s32 %s338, %s339
      %s341 = smul.addr %s340, 8
      %s342 = scalar_lea.vmem %s6, %s341
      %v344 = vld [vmem:[%s316] sm:$0xf]
      %v345 = vld [vmem:[%s316 + $0x4] sm:$0xf]
      %v346 = vld [vmem:[%s316 + $0x8] sm:$0x1]
      %v347 = vld [vmem:[%s316 + $0xc] sm:$0xf]
      %v348 = vld [vmem:[%s316 + $0x10] sm:$0xf]
      %v349 = vld [vmem:[%s316 + $0x14] sm:$0x1]
      %v350 = vld [vmem:[%s316 + $0x18] sm:$0xf]
      %v351 = vld [vmem:[%s316 + $0x1c] sm:$0xf]
      %v352 = vld [vmem:[%s316 + $0x20] sm:$0x1]
      %v353 = vld [vmem:[%s316 + $0x24] sm:$0xf]
      %v354 = vld [vmem:[%s316 + $0x28] sm:$0xf]
      %v355 = vld [vmem:[%s316 + $0x2c] sm:$0x1]
      %v356 = vld [vmem:[%s316 + $0x30] sm:$0xf]
      %v357 = vld [vmem:[%s316 + $0x34] sm:$0xf]
      %v358 = vld [vmem:[%s316 + $0x38] sm:$0x1]
      %v359 = vld [vmem:[%s316 + $0x3c] sm:$0xf]
      %v360 = vld [vmem:[%s316 + $0x40] sm:$0xf]
      %v361 = vld [vmem:[%s316 + $0x44] sm:$0x1]
      %v362 = vld [vmem:[%s316 + $0x48] sm:$0xf]
      %v363 = vld [vmem:[%s316 + $0x4c] sm:$0xf]
      %v364 = vld [vmem:[%s316 + $0x50] sm:$0x1]
      %v365 = vld [vmem:[%s316 + $0x54] sm:$0xf]
      %v366 = vld [vmem:[%s316 + $0x58] sm:$0xf]
      %v367 = vld [vmem:[%s316 + $0x5c] sm:$0x1]
      %v368 = vunpack.c.l.bf16 %v344
      %v369 = vunpack.c.l.bf16 %v345
      %v370 = vunpack.c.l.bf16 %v346
      %v371 = vunpack.c.l.bf16 %v347
      %v372 = vunpack.c.l.bf16 %v348
      %v373 = vunpack.c.l.bf16 %v349
      %v374 = vunpack.c.l.bf16 %v350
      %v375 = vunpack.c.l.bf16 %v351
      %v376 = vunpack.c.l.bf16 %v352
      %v377 = vunpack.c.l.bf16 %v353
      %v378 = vunpack.c.l.bf16 %v354
      %v379 = vunpack.c.l.bf16 %v355
      %v380 = vunpack.c.l.bf16 %v356
      %v381 = vunpack.c.l.bf16 %v357
      %v382 = vunpack.c.l.bf16 %v358
      %v383 = vunpack.c.l.bf16 %v359
      %v384 = vunpack.c.l.bf16 %v360
      %v385 = vunpack.c.l.bf16 %v361
      %v386 = vunpack.c.l.bf16 %v362
      %v387 = vunpack.c.l.bf16 %v363
      %v388 = vunpack.c.l.bf16 %v364
      %v389 = vunpack.c.l.bf16 %v365
      %v390 = vunpack.c.l.bf16 %v366
      %v391 = vunpack.c.l.bf16 %v367
      %v392 = vmul.f32 %v368, 0.25
      %v393 = vmul.f32 %v369, 0.25
      %v394 = vmul.f32 %v370, 0.25
      %v395 = vmul.f32 %v371, 0.25
      %v396 = vmul.f32 %v372, 0.25
      %v397 = vmul.f32 %v373, 0.25
      %v398 = vmul.f32 %v374, 0.25
      %v399 = vmul.f32 %v375, 0.25
      %v400 = vmul.f32 %v376, 0.25
      %v401 = vmul.f32 %v377, 0.25
      %v402 = vmul.f32 %v378, 0.25
      %v403 = vmul.f32 %v379, 0.25
      %v404 = vmul.f32 %v380, 0.25
      %v405 = vmul.f32 %v381, 0.25
      %v406 = vmul.f32 %v382, 0.25
      %v407 = vmul.f32 %v383, 0.25
      %v408 = vmul.f32 %v384, 0.25
      %v409 = vmul.f32 %v385, 0.25
      %v410 = vmul.f32 %v371, 0.75
      %v411 = vmul.f32 %v372, 0.75
      %v412 = vmul.f32 %v373, 0.75
      %v413 = vmul.f32 %v374, 0.75
      %v414 = vmul.f32 %v375, 0.75
      %v415 = vmul.f32 %v376, 0.75
      %v416 = vmul.f32 %v377, 0.75
      %v417 = vmul.f32 %v378, 0.75
      %v418 = vmul.f32 %v379, 0.75
      %v419 = vmul.f32 %v380, 0.75
      %v420 = vmul.f32 %v381, 0.75
      %v421 = vmul.f32 %v382, 0.75
      %v422 = vmul.f32 %v383, 0.75
      %v423 = vmul.f32 %v384, 0.75
      %v424 = vmul.f32 %v385, 0.75
      %v425 = vmul.f32 %v386, 0.75
      %v426 = vmul.f32 %v387, 0.75
      %v427 = vmul.f32 %v388, 0.75
      %v428 = vadd.f32 %v392, %v410
      %v429 = vadd.f32 %v393, %v411
      %v430 = vadd.f32 %v394, %v412
      %v431 = vadd.f32 %v395, %v413
      %v432 = vadd.f32 %v396, %v414
      %v433 = vadd.f32 %v397, %v415
      %v434 = vadd.f32 %v398, %v416
      %v435 = vadd.f32 %v399, %v417
      %v436 = vadd.f32 %v400, %v418
      %v437 = vadd.f32 %v401, %v419
      %v438 = vadd.f32 %v402, %v420
      %v439 = vadd.f32 %v403, %v421
      %v440 = vadd.f32 %v404, %v422
      %v441 = vadd.f32 %v405, %v423
      %v442 = vadd.f32 %v406, %v424
      %v443 = vadd.f32 %v407, %v425
      %v444 = vadd.f32 %v408, %v426
      %v445 = vadd.f32 %v409, %v427
      %v446 = vmul.f32 %v386, 0.25
      %v447 = vmul.f32 %v387, 0.25
      %v448 = vmul.f32 %v388, 0.25
      %v449 = vmul.f32 %v389, 0.25
      %v450 = vmul.f32 %v390, 0.25
      %v451 = vmul.f32 %v391, 0.25
      %v452 = vadd.f32 %v410, %v398
      %v453 = vadd.f32 %v411, %v399
      %v454 = vadd.f32 %v412, %v400
      %v455 = vadd.f32 %v413, %v401
      %v456 = vadd.f32 %v414, %v402
      %v457 = vadd.f32 %v415, %v403
      %v458 = vadd.f32 %v416, %v404
      %v459 = vadd.f32 %v417, %v405
      %v460 = vadd.f32 %v418, %v406
      %v461 = vadd.f32 %v419, %v407
      %v462 = vadd.f32 %v420, %v408
      %v463 = vadd.f32 %v421, %v409
      %v464 = vadd.f32 %v422, %v446
      %v465 = vadd.f32 %v423, %v447
      %v466 = vadd.f32 %v424, %v448
      %v467 = vadd.f32 %v425, %v449
      %v468 = vadd.f32 %v426, %v450
      %v469 = vadd.f32 %v427, %v451
      %s470 = smul.u32 %s23, 8
      %s471 = ssub.s32 %s470, 2
      %v472 = vstv %s471
      %v473 = vadd.s32 %v472, 1
      %v474 = vadd.s32 %v472, 2
      %v475 = vadd.s32 %v472, 3
      %v476 = vadd.s32 %v472, 4
      %v477 = vadd.s32 %v472, 5
      %v478 = vadd.s32 %v472, 6
      %v479 = vadd.s32 %v472, 7
      %v480 = vadd.s32 %v472, 8
      %v481 = vadd.s32 %v472, 9
      %v482 = vadd.s32 %v472, 10
      %v483 = vadd.s32 %v472, 11
      %vm484 = vcmp.ge.s32.totalorder %v472, 0
      %vm485 = vcmp.ge.s32.totalorder %v473, 0
      %vm486 = vcmp.ge.s32.totalorder %v474, 0
      %vm487 = vcmp.ge.s32.totalorder %v475, 0
      %vm488 = vcmp.ge.s32.totalorder %v476, 0
      %vm489 = vcmp.ge.s32.totalorder %v477, 0
      %vm490 = vcmp.ge.s32.totalorder %v478, 0
      %vm491 = vcmp.ge.s32.totalorder %v479, 0
      %vm492 = vcmp.ge.s32.totalorder %v480, 0
      %vm493 = vcmp.ge.s32.totalorder %v481, 0
      %vm494 = vcmp.ge.s32.totalorder %v482, 0
      %vm495 = vcmp.ge.s32.totalorder %v483, 0
      %vm496 = vcmp.lt.s32.totalorder %v472, 16
      %vm497 = vcmp.lt.s32.totalorder %v473, 16
      %vm498 = vcmp.lt.s32.totalorder %v474, 16
      %vm499 = vcmp.lt.s32.totalorder %v475, 16
      %vm500 = vcmp.lt.s32.totalorder %v476, 16
      %vm501 = vcmp.lt.s32.totalorder %v477, 16
      %vm502 = vcmp.lt.s32.totalorder %v478, 16
      %vm503 = vcmp.lt.s32.totalorder %v479, 16
      %vm504 = vcmp.lt.s32.totalorder %v480, 16
      %vm505 = vcmp.lt.s32.totalorder %v481, 16
      %vm506 = vcmp.lt.s32.totalorder %v482, 16
      %vm507 = vcmp.lt.s32.totalorder %v483, 16
      %vm508 = vmand %vm484, %vm496
      %vm509 = vmand %vm485, %vm497
      %vm510 = vmand %vm486, %vm498
      %vm511 = vmand %vm487, %vm499
      %vm512 = vmand %vm488, %vm500
      %vm513 = vmand %vm489, %vm501
      %vm514 = vmand %vm490, %vm502
      %vm515 = vmand %vm491, %vm503
      %vm516 = vmand %vm492, %vm504
      %vm517 = vmand %vm493, %vm505
      %vm518 = vmand %vm494, %vm506
      %vm519 = vmand %vm495, %vm507
      %v520 = vsel %vm508, 1, 0
      %v521 = vsel %vm509, 1, 0
      %v522 = vsel %vm510, 1, 0
      %v523 = vsel %vm511, 1, 0
      %v524 = vsel %vm512, 1, 0
      %v525 = vsel %vm513, 1, 0
      %v526 = vsel %vm514, 1, 0
      %v527 = vsel %vm515, 1, 0
      %v528 = vsel %vm516, 1, 0
      %v529 = vsel %vm517, 1, 0
      %v530 = vsel %vm518, 1, 0
      %v531 = vsel %vm519, 1, 0
      %vm532 = vcmp.eq.s32.totalorder %v520, 1
      %vm533 = vcmp.eq.s32.totalorder %v521, 1
      %vm534 = vcmp.eq.s32.totalorder %v522, 1
      %vm535 = vcmp.eq.s32.totalorder %v523, 1
      %vm536 = vcmp.eq.s32.totalorder %v524, 1
      %vm537 = vcmp.eq.s32.totalorder %v525, 1
      %vm538 = vcmp.eq.s32.totalorder %v526, 1
      %vm539 = vcmp.eq.s32.totalorder %v527, 1
      %vm540 = vcmp.eq.s32.totalorder %v528, 1
      %vm541 = vcmp.eq.s32.totalorder %v529, 1
      %vm542 = vcmp.eq.s32.totalorder %v530, 1
      %vm543 = vcmp.eq.s32.totalorder %v531, 1
      %v544 = vsel %vm532, %v428, 0.0
      %v545 = vsel %vm532, %v429, 0.0
      %v546 = vsel %vm532, %v430, 0.0
      %v547 = vsel %vm533, %v452, 0.0
      %v548 = vsel %vm533, %v453, 0.0
      %v549 = vsel %vm533, %v454, 0.0
      %v550 = vsel %vm534, %v431, 0.0
      %v551 = vsel %vm534, %v432, 0.0
      %v552 = vsel %vm534, %v433, 0.0
      %v553 = vsel %vm535, %v455, 0.0
      %v554 = vsel %vm535, %v456, 0.0
      %v555 = vsel %vm535, %v457, 0.0
      %v556 = vsel %vm536, %v434, 0.0
      %v557 = vsel %vm536, %v435, 0.0
      %v558 = vsel %vm536, %v436, 0.0
      %v559 = vsel %vm537, %v458, 0.0
      %v560 = vsel %vm537, %v459, 0.0
      %v561 = vsel %vm537, %v460, 0.0
      %v562 = vsel %vm538, %v437, 0.0
      %v563 = vsel %vm538, %v438, 0.0
      %v564 = vsel %vm538, %v439, 0.0
      %v565 = vsel %vm539, %v461, 0.0
      %v566 = vsel %vm539, %v462, 0.0
      %v567 = vsel %vm539, %v463, 0.0
      %v568 = vsel %vm540, %v440, 0.0
      %v569 = vsel %vm540, %v441, 0.0
      %v570 = vsel %vm540, %v442, 0.0
      %v571 = vsel %vm541, %v464, 0.0
      %v572 = vsel %vm541, %v465, 0.0
      %v573 = vsel %vm541, %v466, 0.0
      %v574 = vsel %vm542, %v443, 0.0
      %v575 = vsel %vm542, %v444, 0.0
      %v576 = vsel %vm542, %v445, 0.0
      %v577 = vsel %vm543, %v467, 0.0
      %v578 = vsel %vm543, %v468, 0.0
      %v579 = vsel %vm543, %v469, 0.0
      %v580 = vpack.c.bf16 %v545, %v544
      %v581 = vpack.c.bf16 %v546, %v546
      %v582 = vpack.c.bf16 %v548, %v547
      %v583 = vpack.c.bf16 %v549, %v549
      %v584 = vpack.c.bf16 %v551, %v550
      %v585 = vpack.c.bf16 %v552, %v552
      %v586 = vpack.c.bf16 %v554, %v553
      %v587 = vpack.c.bf16 %v555, %v555
      %v588 = vpack.c.bf16 %v557, %v556
      %v589 = vpack.c.bf16 %v558, %v558
      %v590 = vpack.c.bf16 %v560, %v559
      %v591 = vpack.c.bf16 %v561, %v561
      %v592 = vpack.c.bf16 %v563, %v562
      %v593 = vpack.c.bf16 %v564, %v564
      %v594 = vpack.c.bf16 %v566, %v565
      %v595 = vpack.c.bf16 %v567, %v567
      %v596 = vpack.c.bf16 %v569, %v568
      %v597 = vpack.c.bf16 %v570, %v570
      %v598 = vpack.c.bf16 %v572, %v571
      %v599 = vpack.c.bf16 %v573, %v573
      %v600 = vpack.c.bf16 %v575, %v574
      %v601 = vpack.c.bf16 %v576, %v576
      %v602 = vpack.c.bf16 %v578, %v577
      %v603 = vpack.c.bf16 %v579, %v579
      %v604 = vld [vmem:[%s325] sm:$0xf]
      %v605 = vld [vmem:[%s325 + $0x4] sm:$0xf]
      %v606 = vld [vmem:[%s325 + $0x8] sm:$0x1]
      %v607 = vld [vmem:[%s325 + $0xc] sm:$0xf]
      %v608 = vld [vmem:[%s325 + $0x10] sm:$0xf]
      %v609 = vld [vmem:[%s325 + $0x14] sm:$0x1]
      %v610 = vld [vmem:[%s325 + $0x18] sm:$0xf]
      %v611 = vld [vmem:[%s325 + $0x1c] sm:$0xf]
      %v612 = vld [vmem:[%s325 + $0x20] sm:$0x1]
      %v613 = vld [vmem:[%s325 + $0x24] sm:$0xf]
      %v614 = vld [vmem:[%s325 + $0x28] sm:$0xf]
      %v615 = vld [vmem:[%s325 + $0x2c] sm:$0x1]
      %v616 = vld [vmem:[%s325 + $0x30] sm:$0xf]
      %v617 = vld [vmem:[%s325 + $0x34] sm:$0xf]
      %v618 = vld [vmem:[%s325 + $0x38] sm:$0x1]
      %v619 = vld [vmem:[%s325 + $0x3c] sm:$0xf]
      %v620 = vld [vmem:[%s325 + $0x40] sm:$0xf]
      %v621 = vld [vmem:[%s325 + $0x44] sm:$0x1]
      %v622 = vld [vmem:[%s325 + $0x48] sm:$0xf]
      %v623 = vld [vmem:[%s325 + $0x4c] sm:$0xf]
      %v624 = vld [vmem:[%s325 + $0x50] sm:$0x1]
      %v625 = vld [vmem:[%s325 + $0x54] sm:$0xf]
      %v626 = vld [vmem:[%s325 + $0x58] sm:$0xf]
      %v627 = vld [vmem:[%s325 + $0x5c] sm:$0x1]
      %v628 = vld [vmem:[%s325 + $0x60] sm:$0xf]
      %v629 = vld [vmem:[%s325 + $0x64] sm:$0xf]
      %v630 = vld [vmem:[%s325 + $0x68] sm:$0x1]
      %v631 = vld [vmem:[%s325 + $0x6c] sm:$0xf]
      %v632 = vld [vmem:[%s325 + $0x70] sm:$0xf]
      %v633 = vld [vmem:[%s325 + $0x74] sm:$0x1]
      %v634 = vld [vmem:[%s325 + $0x78] sm:$0xf]
      %v635 = vld [vmem:[%s325 + $0x7c] sm:$0xf]
      %v636 = vld [vmem:[%s325 + $0x80] sm:$0x1]
      %v637 = vld [vmem:[%s325 + $0x84] sm:$0xf]
      %v638 = vld [vmem:[%s325 + $0x88] sm:$0xf]
      %v639 = vld [vmem:[%s325 + $0x8c] sm:$0x1]
      %v640 = vld [vmem:[%s2] sm:$0xf]
      %v641 = vld [vmem:[%s2 + $0x4] sm:$0xf]
      %v642 = vld [vmem:[%s2 + $0x8] sm:$0xf]
      %v643 = vld [vmem:[%s2 + $0xc] sm:$0xf]
      %v644 = vld [vmem:[%s2 + $0x10] sm:$0xf]
      %v645 = vld [vmem:[%s2 + $0x14] sm:$0xf]
      %v646 = vld [vmem:[%s2 + $0x18] sm:$0xf]
      %v647 = vld [vmem:[%s2 + $0x1c] sm:$0xf]
      %v648 = vld [vmem:[%s2 + $0x20] sm:$0xf]
      %v649 = vld [vmem:[%s2 + $0x24] sm:$0xf]
      %v650 = vld [vmem:[%s2 + $0x28] sm:$0xf]
      %v651 = vld [vmem:[%s2 + $0x2c] sm:$0xf]
      %v652 = vld [vmem:[%s2 + $0x30] sm:$0xf]
      %v653 = vld [vmem:[%s2 + $0x34] sm:$0xf]
      %v654 = vld [vmem:[%s2 + $0x38] sm:$0xf]
      %v655 = vld [vmem:[%s2 + $0x3c] sm:$0xf]
      %v656 = vld [vmem:[%s3] sm:$0xf]
      %v657 = vld [vmem:[%s3 + $0x4] sm:$0xf]
      %v658 = vld [vmem:[%s3 + $0x8] sm:$0xf]
      %v659 = vld [vmem:[%s3 + $0xc] sm:$0xf]
      %v660 = vld [vmem:[%s3 + $0x10] sm:$0xf]
      %v661 = vld [vmem:[%s3 + $0x14] sm:$0xf]
      %v662 = vld [vmem:[%s3 + $0x18] sm:$0xf]
      %v663 = vld [vmem:[%s3 + $0x1c] sm:$0xf]
      %v664 = vld [vmem:[%s3 + $0x20] sm:$0xf]
      %v665 = vld [vmem:[%s3 + $0x24] sm:$0xf]
      %v666 = vld [vmem:[%s3 + $0x28] sm:$0xf]
      %v667 = vld [vmem:[%s3 + $0x2c] sm:$0xf]
      %v668 = vld [vmem:[%s3 + $0x30] sm:$0xf]
      %v669 = vld [vmem:[%s3 + $0x34] sm:$0xf]
      %v670 = vld [vmem:[%s3 + $0x38] sm:$0xf]
      %v671 = vld [vmem:[%s3 + $0x3c] sm:$0xf]
      %v692 = vunpack.c.l.b16 %v604
      %v693 = vunpack.c.l.b16 %v605
      %v694 = vunpack.c.l.b16 %v607
      %v695 = vunpack.c.l.b16 %v608
      %v696 = vunpack.c.l.b16 %v610
      %v697 = vunpack.c.l.b16 %v611
      %v698 = vunpack.c.l.b16 %v613
      %v699 = vunpack.c.l.b16 %v614
      %v700 = vunpack.c.l.b16 %v616
      %v701 = vunpack.c.l.b16 %v617
      %v702 = vunpack.c.l.b16 %v619
      %v703 = vunpack.c.l.b16 %v620
      %v704 = vunpack.c.l.b16 %v622
      %v705 = vunpack.c.l.b16 %v623
      %v706 = vunpack.c.l.b16 %v625
      %v707 = vunpack.c.l.b16 %v626
      %v708 = vunpack.c.l.b16 %v628
      %v709 = vunpack.c.l.b16 %v629
      %v710 = vunpack.c.l.b16 %v631
      %v711 = vunpack.c.l.b16 %v632
      %v712 = vpack.c.b16 %v693, %v692
      %v713 = vpack.c.b16 %v695, %v694
      %v714 = vpack.c.b16 %v697, %v696
      %v715 = vpack.c.b16 %v699, %v698
      %v716 = vpack.c.b16 %v701, %v700
      %v717 = vpack.c.b16 %v703, %v702
      %v718 = vpack.c.b16 %v705, %v704
      %v719 = vpack.c.b16 %v707, %v706
      %v720 = vpack.c.b16 %v709, %v708
      %v721 = vpack.c.b16 %v711, %v710
      %v748 = vunpack.c.l.b16 %v656
      %v749 = vunpack.c.l.b16 %v657
      %v750 = vunpack.c.l.b16 %v658
      %v751 = vunpack.c.l.b16 %v659
      %v752 = vunpack.c.l.b16 %v660
      %v753 = vunpack.c.l.b16 %v661
      %v754 = vunpack.c.l.b16 %v662
      %v755 = vunpack.c.l.b16 %v663
      %v756 = vunpack.c.l.b16 %v664
      %v757 = vunpack.c.l.b16 %v665
      %v758 = vunpack.c.l.b16 %v666
      %v759 = vunpack.c.l.b16 %v667
      %v760 = vunpack.c.l.b16 %v668
      %v761 = vunpack.c.l.b16 %v669
      %v762 = vunpack.c.l.b16 %v670
      %v763 = vunpack.c.l.b16 %v671
      %v764 = vpack.c.b16 %v749, %v748
      %v765 = vpack.c.b16 %v751, %v750
      %v766 = vpack.c.b16 %v753, %v752
      %v767 = vpack.c.b16 %v755, %v754
      %v768 = vpack.c.b16 %v757, %v756
      %v769 = vpack.c.b16 %v759, %v758
      %v770 = vpack.c.b16 %v761, %v760
      %v771 = vpack.c.b16 %v763, %v762
      %780 = vmatprep.subr.bf16.mxu0 0
      %781 = vmatpush1.bf16.msra.mxu0 %v764
      %782 = vmatprep.subr.bf16.mxu0 0
      %783 = vmatpush1.bf16.msra.mxu0 %v765
      %784 = vmatprep.subr.bf16.mxu0 0
      %785 = vmatpush1.bf16.msra.mxu0 %v766
      %786 = vmatprep.subr.bf16.mxu0 0
      %787 = vmatpush1.bf16.msra.mxu0 %v767
      %788 = vmatprep.subr.bf16.mxu0 0
      %789 = vmatpush1.bf16.msra.mxu0 %v768
      %790 = vmatprep.subr.bf16.mxu0 0
      %791 = vmatpush1.bf16.msra.mxu0 %v769
      %792 = vmatprep.subr.bf16.mxu0 0
      %793 = vmatpush1.bf16.msra.mxu0 %v770
      %794 = vmatprep.subr.bf16.mxu0 0
      %795 = vmatpush1.bf16.msra.mxu0 %v771
      %796 = vmatprep.subr.bf16.mxu0 0
      %797 = vmatpush1.bf16.msra.mxu0 0
      %798 = vmatprep.subr.bf16.mxu0 0
      %799 = vmatpush1.bf16.msra.mxu0 0
      %800 = vmatprep.subr.bf16.mxu0 0
      %801 = vmatpush1.bf16.msra.mxu0 0
      %802 = vmatprep.subr.bf16.mxu0 0
      %803 = vmatpush1.bf16.msra.mxu0 0
      %804 = vmatprep.subr.bf16.mxu0 0
      %805 = vmatpush1.bf16.msra.mxu0 0
      %806 = vmatprep.subr.bf16.mxu0 0
      %807 = vmatpush1.bf16.msra.mxu0 0
      %808 = vmatprep.subr.bf16.mxu0 0
      %809 = vmatpush1.bf16.msra.mxu0 0
      %810 = vmatprep.subr.bf16.mxu0 0
      %811 = vmatpush1.bf16.msra.mxu0 0
      %812 = vmatprep.mubr.bf16.mxu0 0
      %813 = vmatmul.mubr.bf16.gmra.mrb[0].mxu0 %v712
      %v814 = vpop.f32.mrb[0].mxu0
      %v815 = vadd.f32 0.0, %v814
      %v816 = vpop.f32.mrb[0].mxu0
      %v817 = vpop.f32.mrb[0].mxu0
      %v818 = vadd.f32 0.0, %v817
      %v819 = vpop.f32.mrb[0].mxu0
      %820 = vmatprep.mubr.bf16.mxu0 0
      %821 = vmatmul.mubr.bf16.gmra.mrb[0].mxu0 %v713
      %v822 = vpop.f32.mrb[0].mxu0
      %v823 = vadd.f32 0.0, %v822
      %v824 = vpop.f32.mrb[0].mxu0
      %v825 = vpop.f32.mrb[0].mxu0
      %v826 = vadd.f32 0.0, %v825
      %v827 = vpop.f32.mrb[0].mxu0
      %828 = vmatprep.mubr.bf16.mxu0 0
      %829 = vmatmul.mubr.bf16.gmra.mrb[0].mxu0 %v714
      %v830 = vpop.f32.mrb[0].mxu0
      %v831 = vadd.f32 0.0, %v830
      %v832 = vpop.f32.mrb[0].mxu0
      %v833 = vpop.f32.mrb[0].mxu0
      %v834 = vadd.f32 0.0, %v833
      %v835 = vpop.f32.mrb[0].mxu0
      %836 = vmatprep.mubr.bf16.mxu0 0
      %837 = vmatmul.mubr.bf16.gmra.mrb[0].mxu0 %v715
      %v838 = vpop.f32.mrb[0].mxu0
      %v839 = vadd.f32 0.0, %v838
      %v840 = vpop.f32.mrb[0].mxu0
      %v841 = vpop.f32.mrb[0].mxu0
      %v842 = vadd.f32 0.0, %v841
      %v843 = vpop.f32.mrb[0].mxu0
      %844 = vmatprep.mubr.bf16.mxu0 0
      %845 = vmatmul.mubr.bf16.gmra.mrb[0].mxu0 %v716
      %v846 = vpop.f32.mrb[0].mxu0
      %v847 = vadd.f32 0.0, %v846
      %v848 = vpop.f32.mrb[0].mxu0
      %v849 = vpop.f32.mrb[0].mxu0
      %v850 = vadd.f32 0.0, %v849
      %v851 = vpop.f32.mrb[0].mxu0
      %852 = vmatprep.mubr.bf16.mxu0 0
      %853 = vmatmul.mubr.bf16.gmra.mrb[0].mxu0 %v717
      %v854 = vpop.f32.mrb[0].mxu0
      %v855 = vadd.f32 0.0, %v854
      %v856 = vpop.f32.mrb[0].mxu0
      %v857 = vpop.f32.mrb[0].mxu0
      %v858 = vadd.f32 0.0, %v857
      %v859 = vpop.f32.mrb[0].mxu0
      %860 = vmatprep.mubr.bf16.mxu0 0
      %861 = vmatmul.mubr.bf16.gmra.mrb[0].mxu0 %v718
      %v862 = vpop.f32.mrb[0].mxu0
      %v863 = vadd.f32 0.0, %v862
      %v864 = vpop.f32.mrb[0].mxu0
      %v865 = vpop.f32.mrb[0].mxu0
      %v866 = vadd.f32 0.0, %v865
      %v867 = vpop.f32.mrb[0].mxu0
      %868 = vmatprep.mubr.bf16.mxu0 0
      %869 = vmatmul.mubr.bf16.gmra.mrb[0].mxu0 %v719
      %v870 = vpop.f32.mrb[0].mxu0
      %v871 = vadd.f32 0.0, %v870
      %v872 = vpop.f32.mrb[0].mxu0
      %v873 = vpop.f32.mrb[0].mxu0
      %v874 = vadd.f32 0.0, %v873
      %v875 = vpop.f32.mrb[0].mxu0
      %876 = vmatprep.mubr.bf16.mxu0 0
      %877 = vmatmul.mubr.bf16.gmra.mrb[0].mxu0 %v720
      %v878 = vpop.f32.mrb[0].mxu0
      %v879 = vadd.f32 0.0, %v878
      %v880 = vpop.f32.mrb[0].mxu0
      %v881 = vpop.f32.mrb[0].mxu0
      %v882 = vadd.f32 0.0, %v881
      %v883 = vpop.f32.mrb[0].mxu0
      %884 = vmatprep.mubr.bf16.mxu0 0
      %885 = vmatmul.mubr.bf16.gmra.mrb[0].mxu0 %v721
      %v886 = vpop.f32.mrb[0].mxu0
      %v887 = vadd.f32 0.0, %v886
      %v888 = vpop.f32.mrb[0].mxu0
      %v889 = vpop.f32.mrb[0].mxu0
      %v890 = vadd.f32 0.0, %v889
      %v891 = vpop.f32.mrb[0].mxu0
      %892 = vdwg.mxu0
      %v909 = vunpack.c.l.b16 %v640
      %v910 = vunpack.c.l.b16 %v641
      %v911 = vunpack.c.l.b16 %v642
      %v912 = vunpack.c.l.b16 %v643
      %v913 = vunpack.c.l.b16 %v644
      %v914 = vunpack.c.l.b16 %v645
      %v915 = vunpack.c.l.b16 %v646
      %v916 = vunpack.c.l.b16 %v647
      %v917 = vunpack.c.l.b16 %v648
      %v918 = vunpack.c.l.b16 %v649
      %v919 = vunpack.c.l.b16 %v650
      %v920 = vunpack.c.l.b16 %v651
      %v921 = vunpack.c.l.b16 %v652
      %v922 = vunpack.c.l.b16 %v653
      %v923 = vunpack.c.l.b16 %v654
      %v924 = vunpack.c.l.b16 %v655
      %v925 = vpack.c.b16 %v910, %v909
      %v926 = vpack.c.b16 %v912, %v911
      %v927 = vpack.c.b16 %v914, %v913
      %v928 = vpack.c.b16 %v916, %v915
      %v929 = vpack.c.b16 %v918, %v917
      %v930 = vpack.c.b16 %v920, %v919
      %v931 = vpack.c.b16 %v922, %v921
      %v932 = vpack.c.b16 %v924, %v923
      %941 = vmatprep.subr.bf16.mxu0 0
      %942 = vmatpush1.bf16.msra.mxu0 %v925
      %943 = vmatprep.subr.bf16.mxu0 0
      %944 = vmatpush1.bf16.msra.mxu0 %v926
      %945 = vmatprep.subr.bf16.mxu0 0
      %946 = vmatpush1.bf16.msra.mxu0 %v927
      %947 = vmatprep.subr.bf16.mxu0 0
      %948 = vmatpush1.bf16.msra.mxu0 %v928
      %949 = vmatprep.subr.bf16.mxu0 0
      %950 = vmatpush1.bf16.msra.mxu0 %v929
      %951 = vmatprep.subr.bf16.mxu0 0
      %952 = vmatpush1.bf16.msra.mxu0 %v930
      %953 = vmatprep.subr.bf16.mxu0 0
      %954 = vmatpush1.bf16.msra.mxu0 %v931
      %955 = vmatprep.subr.bf16.mxu0 0
      %956 = vmatpush1.bf16.msra.mxu0 %v932
      %957 = vmatprep.subr.bf16.mxu0 0
      %958 = vmatpush1.bf16.msra.mxu0 0
      %959 = vmatprep.subr.bf16.mxu0 0
      %960 = vmatpush1.bf16.msra.mxu0 0
      %961 = vmatprep.subr.bf16.mxu0 0
      %962 = vmatpush1.bf16.msra.mxu0 0
      %963 = vmatprep.subr.bf16.mxu0 0
      %964 = vmatpush1.bf16.msra.mxu0 0
      %965 = vmatprep.subr.bf16.mxu0 0
      %966 = vmatpush1.bf16.msra.mxu0 0
      %967 = vmatprep.subr.bf16.mxu0 0
      %968 = vmatpush1.bf16.msra.mxu0 0
      %969 = vmatprep.subr.bf16.mxu0 0
      %970 = vmatpush1.bf16.msra.mxu0 0
      %971 = vmatprep.subr.bf16.mxu0 0
      %972 = vmatpush1.bf16.msra.mxu0 0
      %973 = vmatprep.mubr.bf16.mxu0 0
      %974 = vmatmul.mubr.bf16.gmra.mrb[0].mxu0 %v580
      %v975 = vpop.f32.mrb[0].mxu0
      %v976 = vadd.f32 %v815, %v975
      %v977 = vpop.f32.mrb[0].mxu0
      %v978 = vpop.f32.mrb[0].mxu0
      %v979 = vadd.f32 %v818, %v978
      %v980 = vpop.f32.mrb[0].mxu0
      %981 = vmatprep.mubr.bf16.mxu0 0
      %982 = vmatmul.mubr.bf16.gmra.mrb[0].mxu0 %v582
      %v983 = vpop.f32.mrb[0].mxu0
      %v984 = vadd.f32 %v823, %v983
      %v985 = vpop.f32.mrb[0].mxu0
      %v986 = vpop.f32.mrb[0].mxu0
      %v987 = vadd.f32 %v826, %v986
      %v988 = vpop.f32.mrb[0].mxu0
      %989 = vmatprep.mubr.bf16.mxu0 0
      %990 = vmatmul.mubr.bf16.gmra.mrb[0].mxu0 %v584
      %v991 = vpop.f32.mrb[0].mxu0
      %v992 = vadd.f32 %v831, %v991
      %v993 = vpop.f32.mrb[0].mxu0
      %v994 = vpop.f32.mrb[0].mxu0
      %v995 = vadd.f32 %v834, %v994
      %v996 = vpop.f32.mrb[0].mxu0
      %997 = vmatprep.mubr.bf16.mxu0 0
      %998 = vmatmul.mubr.bf16.gmra.mrb[0].mxu0 %v586
      %v999 = vpop.f32.mrb[0].mxu0
      %v1000 = vadd.f32 %v839, %v999
      %v1001 = vpop.f32.mrb[0].mxu0
      %v1002 = vpop.f32.mrb[0].mxu0
      %v1003 = vadd.f32 %v842, %v1002
      %v1004 = vpop.f32.mrb[0].mxu0
      %1005 = vmatprep.mubr.bf16.mxu0 0
      %1006 = vmatmul.mubr.bf16.gmra.mrb[0].mxu0 %v588
      %v1007 = vpop.f32.mrb[0].mxu0
      %v1008 = vadd.f32 %v847, %v1007
      %v1009 = vpop.f32.mrb[0].mxu0
      %v1010 = vpop.f32.mrb[0].mxu0
      %v1011 = vadd.f32 %v850, %v1010
      %v1012 = vpop.f32.mrb[0].mxu0
      %1013 = vmatprep.mubr.bf16.mxu0 0
      %1014 = vmatmul.mubr.bf16.gmra.mrb[0].mxu0 %v590
      %v1015 = vpop.f32.mrb[0].mxu0
      %v1016 = vadd.f32 %v855, %v1015
      %v1017 = vpop.f32.mrb[0].mxu0
      %v1018 = vpop.f32.mrb[0].mxu0
      %v1019 = vadd.f32 %v858, %v1018
      %v1020 = vpop.f32.mrb[0].mxu0
      %1021 = vmatprep.mubr.bf16.mxu0 0
      %1022 = vmatmul.mubr.bf16.gmra.mrb[0].mxu0 %v592
      %v1023 = vpop.f32.mrb[0].mxu0
      %v1024 = vadd.f32 %v863, %v1023
      %v1025 = vpop.f32.mrb[0].mxu0
      %v1026 = vpop.f32.mrb[0].mxu0
      %v1027 = vadd.f32 %v866, %v1026
      %v1028 = vpop.f32.mrb[0].mxu0
      %1029 = vmatprep.mubr.bf16.mxu0 0
      %1030 = vmatmul.mubr.bf16.gmra.mrb[0].mxu0 %v594
      %v1031 = vpop.f32.mrb[0].mxu0
      %v1032 = vadd.f32 %v871, %v1031
      %v1033 = vpop.f32.mrb[0].mxu0
      %v1034 = vpop.f32.mrb[0].mxu0
      %v1035 = vadd.f32 %v874, %v1034
      %v1036 = vpop.f32.mrb[0].mxu0
      %1037 = vmatprep.mubr.bf16.mxu0 0
      %1038 = vmatmul.mubr.bf16.gmra.mrb[0].mxu0 %v596
      %v1039 = vpop.f32.mrb[0].mxu0
      %v1040 = vadd.f32 %v879, %v1039
      %v1041 = vpop.f32.mrb[0].mxu0
      %v1042 = vpop.f32.mrb[0].mxu0
      %v1043 = vadd.f32 %v882, %v1042
      %v1044 = vpop.f32.mrb[0].mxu0
      %1045 = vmatprep.mubr.bf16.mxu0 0
      %1046 = vmatmul.mubr.bf16.gmra.mrb[0].mxu0 %v598
      %v1047 = vpop.f32.mrb[0].mxu0
      %v1048 = vadd.f32 %v887, %v1047
      %v1049 = vpop.f32.mrb[0].mxu0
      %v1050 = vpop.f32.mrb[0].mxu0
      %v1051 = vadd.f32 %v890, %v1050
      %v1052 = vpop.f32.mrb[0].mxu0
      %1053 = vdwg.mxu0
      %vm1054 = vsmask.f32 7424
      %v1056 = vshrl.u32 %v580, 16
      %v1058 = vshll.u32 %v580, 16
      %v1060 = vrot.slane %v1058, 1
      %v1061 = vor.u32 %v1056, %v1060
      %v1063 = vshll.u32 %v581, 16
      %v1065 = vrot.slane %v1063, 1
      %v1066 = vsel %vm1054, %v1061, %v1065
      %v1068 = vshrl.u32 %v582, 16
      %v1070 = vshll.u32 %v582, 16
      %v1072 = vrot.slane %v1070, 1
      %v1073 = vor.u32 %v1068, %v1072
      %v1075 = vshll.u32 %v583, 16
      %v1077 = vrot.slane %v1075, 1
      %v1078 = vsel %vm1054, %v1073, %v1077
      %v1080 = vshrl.u32 %v584, 16
      %v1082 = vshll.u32 %v584, 16
      %v1084 = vrot.slane %v1082, 1
      %v1085 = vor.u32 %v1080, %v1084
      %v1087 = vshll.u32 %v585, 16
      %v1089 = vrot.slane %v1087, 1
      %v1090 = vsel %vm1054, %v1085, %v1089
      %v1092 = vshrl.u32 %v586, 16
      %v1094 = vshll.u32 %v586, 16
      %v1096 = vrot.slane %v1094, 1
      %v1097 = vor.u32 %v1092, %v1096
      %v1099 = vshll.u32 %v587, 16
      %v1101 = vrot.slane %v1099, 1
      %v1102 = vsel %vm1054, %v1097, %v1101
      %v1104 = vshrl.u32 %v588, 16
      %v1106 = vshll.u32 %v588, 16
      %v1108 = vrot.slane %v1106, 1
      %v1109 = vor.u32 %v1104, %v1108
      %v1111 = vshll.u32 %v589, 16
      %v1113 = vrot.slane %v1111, 1
      %v1114 = vsel %vm1054, %v1109, %v1113
      %v1116 = vshrl.u32 %v590, 16
      %v1118 = vshll.u32 %v590, 16
      %v1120 = vrot.slane %v1118, 1
      %v1121 = vor.u32 %v1116, %v1120
      %v1123 = vshll.u32 %v591, 16
      %v1125 = vrot.slane %v1123, 1
      %v1126 = vsel %vm1054, %v1121, %v1125
      %v1128 = vshrl.u32 %v592, 16
      %v1130 = vshll.u32 %v592, 16
      %v1132 = vrot.slane %v1130, 1
      %v1133 = vor.u32 %v1128, %v1132
      %v1135 = vshll.u32 %v593, 16
      %v1137 = vrot.slane %v1135, 1
      %v1138 = vsel %vm1054, %v1133, %v1137
      %v1140 = vshrl.u32 %v594, 16
      %v1142 = vshll.u32 %v594, 16
      %v1144 = vrot.slane %v1142, 1
      %v1145 = vor.u32 %v1140, %v1144
      %v1147 = vshll.u32 %v595, 16
      %v1149 = vrot.slane %v1147, 1
      %v1150 = vsel %vm1054, %v1145, %v1149
      %v1152 = vshrl.u32 %v596, 16
      %v1154 = vshll.u32 %v596, 16
      %v1156 = vrot.slane %v1154, 1
      %v1157 = vor.u32 %v1152, %v1156
      %v1159 = vshll.u32 %v597, 16
      %v1161 = vrot.slane %v1159, 1
      %v1162 = vsel %vm1054, %v1157, %v1161
      %v1164 = vshrl.u32 %v598, 16
      %v1166 = vshll.u32 %v598, 16
      %v1168 = vrot.slane %v1166, 1
      %v1169 = vor.u32 %v1164, %v1168
      %v1171 = vshll.u32 %v599, 16
      %v1173 = vrot.slane %v1171, 1
      %v1174 = vsel %vm1054, %v1169, %v1173
      %vm1185 = vsmask.f32 3328
      %vm1186 = vsmask.f32 7440
      %vm1187 = vmor %vm1185, %vm1186
      %v1189 = vshrl.u32 %v604, 16
      %v1191 = vrot.slane %v1189, 4
      %v1192 = vshll.u32 %v604, 16
      %v1194 = vrot.slane %v1192, 5
      %v1195 = vor.u32 %v1191, %v1194
      %v1196 = vrot.slane %v1195, 4
      %v1198 = vshll.u32 %v605, 16
      %v1200 = vrot.slane %v1198, 5
      %v1201 = vsel %vm1187, %v1196, %v1200
      %v1202 = vshrl.u32 %v605, 16
      %v1204 = vrot.slane %v1202, 4
      %v1205 = vor.u32 %v1204, %v1200
      %v1206 = vrot.slane %v1205, 4
      %v1208 = vshll.u32 %v606, 16
      %v1210 = vrot.slane %v1208, 5
      %v1211 = vsel %vm1187, %v1206, %v1210
      %v1213 = vshrl.u32 %v607, 16
      %v1215 = vrot.slane %v1213, 4
      %v1216 = vshll.u32 %v607, 16
      %v1218 = vrot.slane %v1216, 5
      %v1219 = vor.u32 %v1215, %v1218
      %v1220 = vrot.slane %v1219, 4
      %v1222 = vshll.u32 %v608, 16
      %v1224 = vrot.slane %v1222, 5
      %v1225 = vsel %vm1187, %v1220, %v1224
      %v1226 = vshrl.u32 %v608, 16
      %v1228 = vrot.slane %v1226, 4
      %v1229 = vor.u32 %v1228, %v1224
      %v1230 = vrot.slane %v1229, 4
      %v1232 = vshll.u32 %v609, 16
      %v1234 = vrot.slane %v1232, 5
      %v1235 = vsel %vm1187, %v1230, %v1234
      %v1237 = vshrl.u32 %v610, 16
      %v1239 = vrot.slane %v1237, 4
      %v1240 = vshll.u32 %v610, 16
      %v1242 = vrot.slane %v1240, 5
      %v1243 = vor.u32 %v1239, %v1242
      %v1244 = vrot.slane %v1243, 4
      %v1246 = vshll.u32 %v611, 16
      %v1248 = vrot.slane %v1246, 5
      %v1249 = vsel %vm1187, %v1244, %v1248
      %v1250 = vshrl.u32 %v611, 16
      %v1252 = vrot.slane %v1250, 4
      %v1253 = vor.u32 %v1252, %v1248
      %v1254 = vrot.slane %v1253, 4
      %v1256 = vshll.u32 %v612, 16
      %v1258 = vrot.slane %v1256, 5
      %v1259 = vsel %vm1187, %v1254, %v1258
      %v1261 = vshrl.u32 %v613, 16
      %v1263 = vrot.slane %v1261, 4
      %v1264 = vshll.u32 %v613, 16
      %v1266 = vrot.slane %v1264, 5
      %v1267 = vor.u32 %v1263, %v1266
      %v1268 = vrot.slane %v1267, 4
      %v1270 = vshll.u32 %v614, 16
      %v1272 = vrot.slane %v1270, 5
      %v1273 = vsel %vm1187, %v1268, %v1272
      %v1274 = vshrl.u32 %v614, 16
      %v1276 = vrot.slane %v1274, 4
      %v1277 = vor.u32 %v1276, %v1272
      %v1278 = vrot.slane %v1277, 4
      %v1280 = vshll.u32 %v615, 16
      %v1282 = vrot.slane %v1280, 5
      %v1283 = vsel %vm1187, %v1278, %v1282
      %v1285 = vshrl.u32 %v616, 16
      %v1287 = vrot.slane %v1285, 4
      %v1288 = vshll.u32 %v616, 16
      %v1290 = vrot.slane %v1288, 5
      %v1291 = vor.u32 %v1287, %v1290
      %v1292 = vrot.slane %v1291, 4
      %v1294 = vshll.u32 %v617, 16
      %v1296 = vrot.slane %v1294, 5
      %v1297 = vsel %vm1187, %v1292, %v1296
      %v1298 = vshrl.u32 %v617, 16
      %v1300 = vrot.slane %v1298, 4
      %v1301 = vor.u32 %v1300, %v1296
      %v1302 = vrot.slane %v1301, 4
      %v1304 = vshll.u32 %v618, 16
      %v1306 = vrot.slane %v1304, 5
      %v1307 = vsel %vm1187, %v1302, %v1306
      %v1309 = vshrl.u32 %v619, 16
      %v1311 = vrot.slane %v1309, 4
      %v1312 = vshll.u32 %v619, 16
      %v1314 = vrot.slane %v1312, 5
      %v1315 = vor.u32 %v1311, %v1314
      %v1316 = vrot.slane %v1315, 4
      %v1318 = vshll.u32 %v620, 16
      %v1320 = vrot.slane %v1318, 5
      %v1321 = vsel %vm1187, %v1316, %v1320
      %v1322 = vshrl.u32 %v620, 16
      %v1324 = vrot.slane %v1322, 4
      %v1325 = vor.u32 %v1324, %v1320
      %v1326 = vrot.slane %v1325, 4
      %v1328 = vshll.u32 %v621, 16
      %v1330 = vrot.slane %v1328, 5
      %v1331 = vsel %vm1187, %v1326, %v1330
      %v1333 = vshrl.u32 %v622, 16
      %v1335 = vrot.slane %v1333, 4
      %v1336 = vshll.u32 %v622, 16
      %v1338 = vrot.slane %v1336, 5
      %v1339 = vor.u32 %v1335, %v1338
      %v1340 = vrot.slane %v1339, 4
      %v1342 = vshll.u32 %v623, 16
      %v1344 = vrot.slane %v1342, 5
      %v1345 = vsel %vm1187, %v1340, %v1344
      %v1346 = vshrl.u32 %v623, 16
      %v1348 = vrot.slane %v1346, 4
      %v1349 = vor.u32 %v1348, %v1344
      %v1350 = vrot.slane %v1349, 4
      %v1352 = vshll.u32 %v624, 16
      %v1354 = vrot.slane %v1352, 5
      %v1355 = vsel %vm1187, %v1350, %v1354
      %v1357 = vshrl.u32 %v625, 16
      %v1359 = vrot.slane %v1357, 4
      %v1360 = vshll.u32 %v625, 16
      %v1362 = vrot.slane %v1360, 5
      %v1363 = vor.u32 %v1359, %v1362
      %v1364 = vrot.slane %v1363, 4
      %v1366 = vshll.u32 %v626, 16
      %v1368 = vrot.slane %v1366, 5
      %v1369 = vsel %vm1187, %v1364, %v1368
      %v1370 = vshrl.u32 %v626, 16
      %v1372 = vrot.slane %v1370, 4
      %v1373 = vor.u32 %v1372, %v1368
      %v1374 = vrot.slane %v1373, 4
      %v1376 = vshll.u32 %v627, 16
      %v1378 = vrot.slane %v1376, 5
      %v1379 = vsel %vm1187, %v1374, %v1378
      %v1381 = vshrl.u32 %v628, 16
      %v1383 = vrot.slane %v1381, 4
      %v1384 = vshll.u32 %v628, 16
      %v1386 = vrot.slane %v1384, 5
      %v1387 = vor.u32 %v1383, %v1386
      %v1388 = vrot.slane %v1387, 4
      %v1390 = vshll.u32 %v629, 16
      %v1392 = vrot.slane %v1390, 5
      %v1393 = vsel %vm1187, %v1388, %v1392
      %v1394 = vshrl.u32 %v629, 16
      %v1396 = vrot.slane %v1394, 4
      %v1397 = vor.u32 %v1396, %v1392
      %v1398 = vrot.slane %v1397, 4
      %v1400 = vshll.u32 %v630, 16
      %v1402 = vrot.slane %v1400, 5
      %v1403 = vsel %vm1187, %v1398, %v1402
      %v1405 = vshrl.u32 %v631, 16
      %v1407 = vrot.slane %v1405, 4
      %v1408 = vshll.u32 %v631, 16
      %v1410 = vrot.slane %v1408, 5
      %v1411 = vor.u32 %v1407, %v1410
      %v1412 = vrot.slane %v1411, 4
      %v1414 = vshll.u32 %v632, 16
      %v1416 = vrot.slane %v1414, 5
      %v1417 = vsel %vm1187, %v1412, %v1416
      %v1418 = vshrl.u32 %v632, 16
      %v1420 = vrot.slane %v1418, 4
      %v1421 = vor.u32 %v1420, %v1416
      %v1422 = vrot.slane %v1421, 4
      %v1424 = vshll.u32 %v633, 16
      %v1426 = vrot.slane %v1424, 5
      %v1427 = vsel %vm1187, %v1422, %v1426
      %s1428 = scalar_lea.vmem %s2, 64
      %v1429 = vld [vmem:[%s1428] sm:$0xf]
      %v1430 = vld [vmem:[%s1428 + $0x4] sm:$0xf]
      %v1431 = vld [vmem:[%s1428 + $0x8] sm:$0xf]
      %v1432 = vld [vmem:[%s1428 + $0xc] sm:$0xf]
      %v1433 = vld [vmem:[%s1428 + $0x10] sm:$0xf]
      %v1434 = vld [vmem:[%s1428 + $0x14] sm:$0xf]
      %v1435 = vld [vmem:[%s1428 + $0x18] sm:$0xf]
      %v1436 = vld [vmem:[%s1428 + $0x1c] sm:$0xf]
      %v1437 = vld [vmem:[%s1428 + $0x20] sm:$0xf]
      %v1438 = vld [vmem:[%s1428 + $0x24] sm:$0xf]
      %v1439 = vld [vmem:[%s1428 + $0x28] sm:$0xf]
      %v1440 = vld [vmem:[%s1428 + $0x2c] sm:$0xf]
      %v1441 = vld [vmem:[%s1428 + $0x30] sm:$0xf]
      %v1442 = vld [vmem:[%s1428 + $0x34] sm:$0xf]
      %v1443 = vld [vmem:[%s1428 + $0x38] sm:$0xf]
      %v1444 = vld [vmem:[%s1428 + $0x3c] sm:$0xf]
      %v1461 = vunpack.c.l.b16 %v1429
      %v1462 = vunpack.c.l.b16 %v1430
      %v1463 = vunpack.c.l.b16 %v1431
      %v1464 = vunpack.c.l.b16 %v1432
      %v1465 = vunpack.c.l.b16 %v1433
      %v1466 = vunpack.c.l.b16 %v1434
      %v1467 = vunpack.c.l.b16 %v1435
      %v1468 = vunpack.c.l.b16 %v1436
      %v1469 = vunpack.c.l.b16 %v1437
      %v1470 = vunpack.c.l.b16 %v1438
      %v1471 = vunpack.c.l.b16 %v1439
      %v1472 = vunpack.c.l.b16 %v1440
      %v1473 = vunpack.c.l.b16 %v1441
      %v1474 = vunpack.c.l.b16 %v1442
      %v1475 = vunpack.c.l.b16 %v1443
      %v1476 = vunpack.c.l.b16 %v1444
      %v1477 = vpack.c.b16 %v1462, %v1461
      %v1478 = vpack.c.b16 %v1464, %v1463
      %v1479 = vpack.c.b16 %v1466, %v1465
      %v1480 = vpack.c.b16 %v1468, %v1467
      %v1481 = vpack.c.b16 %v1470, %v1469
      %v1482 = vpack.c.b16 %v1472, %v1471
      %v1483 = vpack.c.b16 %v1474, %v1473
      %v1484 = vpack.c.b16 %v1476, %v1475
      %1493 = vmatprep.subr.bf16.mxu0 0
      %1494 = vmatpush1.bf16.msra.mxu0 %v1477
      %1495 = vmatprep.subr.bf16.mxu0 0
      %1496 = vmatpush1.bf16.msra.mxu0 %v1478
      %1497 = vmatprep.subr.bf16.mxu0 0
      %1498 = vmatpush1.bf16.msra.mxu0 %v1479
      %1499 = vmatprep.subr.bf16.mxu0 0
      %1500 = vmatpush1.bf16.msra.mxu0 %v1480
      %1501 = vmatprep.subr.bf16.mxu0 0
      %1502 = vmatpush1.bf16.msra.mxu0 %v1481
      %1503 = vmatprep.subr.bf16.mxu0 0
      %1504 = vmatpush1.bf16.msra.mxu0 %v1482
      %1505 = vmatprep.subr.bf16.mxu0 0
      %1506 = vmatpush1.bf16.msra.mxu0 %v1483
      %1507 = vmatprep.subr.bf16.mxu0 0
      %1508 = vmatpush1.bf16.msra.mxu0 %v1484
      %1509 = vmatprep.subr.bf16.mxu0 0
      %1510 = vmatpush1.bf16.msra.mxu0 0
      %1511 = vmatprep.subr.bf16.mxu0 0
      %1512 = vmatpush1.bf16.msra.mxu0 0
      %1513 = vmatprep.subr.bf16.mxu0 0
      %1514 = vmatpush1.bf16.msra.mxu0 0
      %1515 = vmatprep.subr.bf16.mxu0 0
      %1516 = vmatpush1.bf16.msra.mxu0 0
      %1517 = vmatprep.subr.bf16.mxu0 0
      %1518 = vmatpush1.bf16.msra.mxu0 0
      %1519 = vmatprep.subr.bf16.mxu0 0
      %1520 = vmatpush1.bf16.msra.mxu0 0
      %1521 = vmatprep.subr.bf16.mxu0 0
      %1522 = vmatpush1.bf16.msra.mxu0 0
      %1523 = vmatprep.subr.bf16.mxu0 0
      %1524 = vmatpush1.bf16.msra.mxu0 0
      %1525 = vmatprep.mubr.bf16.mxu0 0
      %1526 = vmatmul.mubr.bf16.gmra.mrb[0].mxu0 %v1066
      %v1527 = vpop.f32.mrb[0].mxu0
      %v1528 = vadd.f32 0.0, %v1527
      %v1529 = vpop.f32.mrb[0].mxu0
      %v1530 = vpop.f32.mrb[0].mxu0
      %v1531 = vadd.f32 0.0, %v1530
      %v1532 = vpop.f32.mrb[0].mxu0
      %1533 = vmatprep.mubr.bf16.mxu0 0
      %1534 = vmatmul.mubr.bf16.gmra.mrb[0].mxu0 %v1078
      %v1535 = vpop.f32.mrb[0].mxu0
      %v1536 = vadd.f32 0.0, %v1535
      %v1537 = vpop.f32.mrb[0].mxu0
      %v1538 = vpop.f32.mrb[0].mxu0
      %v1539 = vadd.f32 0.0, %v1538
      %v1540 = vpop.f32.mrb[0].mxu0
      %1541 = vmatprep.mubr.bf16.mxu0 0
      %1542 = vmatmul.mubr.bf16.gmra.mrb[0].mxu0 %v1090
      %v1543 = vpop.f32.mrb[0].mxu0
      %v1544 = vadd.f32 0.0, %v1543
      %v1545 = vpop.f32.mrb[0].mxu0
      %v1546 = vpop.f32.mrb[0].mxu0
      %v1547 = vadd.f32 0.0, %v1546
      %v1548 = vpop.f32.mrb[0].mxu0
      %1549 = vmatprep.mubr.bf16.mxu0 0
      %1550 = vmatmul.mubr.bf16.gmra.mrb[0].mxu0 %v1102
      %v1551 = vpop.f32.mrb[0].mxu0
      %v1552 = vadd.f32 0.0, %v1551
      %v1553 = vpop.f32.mrb[0].mxu0
      %v1554 = vpop.f32.mrb[0].mxu0
      %v1555 = vadd.f32 0.0, %v1554
      %v1556 = vpop.f32.mrb[0].mxu0
      %1557 = vmatprep.mubr.bf16.mxu0 0
      %1558 = vmatmul.mubr.bf16.gmra.mrb[0].mxu0 %v1114
      %v1559 = vpop.f32.mrb[0].mxu0
      %v1560 = vadd.f32 0.0, %v1559
      %v1561 = vpop.f32.mrb[0].mxu0
      %v1562 = vpop.f32.mrb[0].mxu0
      %v1563 = vadd.f32 0.0, %v1562
      %v1564 = vpop.f32.mrb[0].mxu0
      %1565 = vmatprep.mubr.bf16.mxu0 0
      %1566 = vmatmul.mubr.bf16.gmra.mrb[0].mxu0 %v1126
      %v1567 = vpop.f32.mrb[0].mxu0
      %v1568 = vadd.f32 0.0, %v1567
      %v1569 = vpop.f32.mrb[0].mxu0
      %v1570 = vpop.f32.mrb[0].mxu0
      %v1571 = vadd.f32 0.0, %v1570
      %v1572 = vpop.f32.mrb[0].mxu0
      %1573 = vmatprep.mubr.bf16.mxu0 0
      %1574 = vmatmul.mubr.bf16.gmra.mrb[0].mxu0 %v1138
      %v1575 = vpop.f32.mrb[0].mxu0
      %v1576 = vadd.f32 0.0, %v1575
      %v1577 = vpop.f32.mrb[0].mxu0
      %v1578 = vpop.f32.mrb[0].mxu0
      %v1579 = vadd.f32 0.0, %v1578
      %v1580 = vpop.f32.mrb[0].mxu0
      %1581 = vmatprep.mubr.bf16.mxu0 0
      %1582 = vmatmul.mubr.bf16.gmra.mrb[0].mxu0 %v1150
      %v1583 = vpop.f32.mrb[0].mxu0
      %v1584 = vadd.f32 0.0, %v1583
      %v1585 = vpop.f32.mrb[0].mxu0
      %v1586 = vpop.f32.mrb[0].mxu0
      %v1587 = vadd.f32 0.0, %v1586
      %v1588 = vpop.f32.mrb[0].mxu0
      %1589 = vmatprep.mubr.bf16.mxu0 0
      %1590 = vmatmul.mubr.bf16.gmra.mrb[0].mxu0 %v1162
      %v1591 = vpop.f32.mrb[0].mxu0
      %v1592 = vadd.f32 0.0, %v1591
      %v1593 = vpop.f32.mrb[0].mxu0
      %v1594 = vpop.f32.mrb[0].mxu0
      %v1595 = vadd.f32 0.0, %v1594
      %v1596 = vpop.f32.mrb[0].mxu0
      %1597 = vmatprep.mubr.bf16.mxu0 0
      %1598 = vmatmul.mubr.bf16.gmra.mrb[0].mxu0 %v1174
      %v1599 = vpop.f32.mrb[0].mxu0
      %v1600 = vadd.f32 0.0, %v1599
      %v1601 = vpop.f32.mrb[0].mxu0
      %v1602 = vpop.f32.mrb[0].mxu0
      %v1603 = vadd.f32 0.0, %v1602
      %v1604 = vpop.f32.mrb[0].mxu0
      %1605 = vdwg.mxu0
      %v1606 = vadd.f32 %v976, %v1528
      %v1607 = vadd.f32 %v979, %v1531
      %v1608 = vadd.f32 %v984, %v1536
      %v1609 = vadd.f32 %v987, %v1539
      %v1610 = vadd.f32 %v992, %v1544
      %v1611 = vadd.f32 %v995, %v1547
      %v1612 = vadd.f32 %v1000, %v1552
      %v1613 = vadd.f32 %v1003, %v1555
      %v1614 = vadd.f32 %v1008, %v1560
      %v1615 = vadd.f32 %v1011, %v1563
      %v1616 = vadd.f32 %v1016, %v1568
      %v1617 = vadd.f32 %v1019, %v1571
      %v1618 = vadd.f32 %v1024, %v1576
      %v1619 = vadd.f32 %v1027, %v1579
      %v1620 = vadd.f32 %v1032, %v1584
      %v1621 = vadd.f32 %v1035, %v1587
      %v1622 = vadd.f32 %v1040, %v1592
      %v1623 = vadd.f32 %v1043, %v1595
      %v1624 = vadd.f32 %v1048, %v1600
      %v1625 = vadd.f32 %v1051, %v1603
      %s1626 = scalar_lea.vmem %s3, 64
      %v1627 = vld [vmem:[%s1626] sm:$0xf]
      %v1628 = vld [vmem:[%s1626 + $0x4] sm:$0xf]
      %v1629 = vld [vmem:[%s1626 + $0x8] sm:$0xf]
      %v1630 = vld [vmem:[%s1626 + $0xc] sm:$0xf]
      %v1631 = vld [vmem:[%s1626 + $0x10] sm:$0xf]
      %v1632 = vld [vmem:[%s1626 + $0x14] sm:$0xf]
      %v1633 = vld [vmem:[%s1626 + $0x18] sm:$0xf]
      %v1634 = vld [vmem:[%s1626 + $0x1c] sm:$0xf]
      %v1635 = vld [vmem:[%s1626 + $0x20] sm:$0xf]
      %v1636 = vld [vmem:[%s1626 + $0x24] sm:$0xf]
      %v1637 = vld [vmem:[%s1626 + $0x28] sm:$0xf]
      %v1638 = vld [vmem:[%s1626 + $0x2c] sm:$0xf]
      %v1639 = vld [vmem:[%s1626 + $0x30] sm:$0xf]
      %v1640 = vld [vmem:[%s1626 + $0x34] sm:$0xf]
      %v1641 = vld [vmem:[%s1626 + $0x38] sm:$0xf]
      %v1642 = vld [vmem:[%s1626 + $0x3c] sm:$0xf]
      %v1643 = vunpack.c.l.b16 %v1201
      %v1644 = vunpack.c.l.b16 %v1211
      %v1645 = vunpack.c.l.b16 %v1225
      %v1646 = vunpack.c.l.b16 %v1235
      %v1647 = vunpack.c.l.b16 %v1249
      %v1648 = vunpack.c.l.b16 %v1259
      %v1649 = vunpack.c.l.b16 %v1273
      %v1650 = vunpack.c.l.b16 %v1283
      %v1651 = vunpack.c.l.b16 %v1297
      %v1652 = vunpack.c.l.b16 %v1307
      %v1653 = vunpack.c.l.b16 %v1321
      %v1654 = vunpack.c.l.b16 %v1331
      %v1655 = vunpack.c.l.b16 %v1345
      %v1656 = vunpack.c.l.b16 %v1355
      %v1657 = vunpack.c.l.b16 %v1369
      %v1658 = vunpack.c.l.b16 %v1379
      %v1659 = vunpack.c.l.b16 %v1393
      %v1660 = vunpack.c.l.b16 %v1403
      %v1661 = vunpack.c.l.b16 %v1417
      %v1662 = vunpack.c.l.b16 %v1427
      %v1663 = vpack.c.b16 %v1644, %v1643
      %v1664 = vpack.c.b16 %v1646, %v1645
      %v1665 = vpack.c.b16 %v1648, %v1647
      %v1666 = vpack.c.b16 %v1650, %v1649
      %v1667 = vpack.c.b16 %v1652, %v1651
      %v1668 = vpack.c.b16 %v1654, %v1653
      %v1669 = vpack.c.b16 %v1656, %v1655
      %v1670 = vpack.c.b16 %v1658, %v1657
      %v1671 = vpack.c.b16 %v1660, %v1659
      %v1672 = vpack.c.b16 %v1662, %v1661
      %v1699 = vunpack.c.l.b16 %v1627
      %v1700 = vunpack.c.l.b16 %v1628
      %v1701 = vunpack.c.l.b16 %v1629
      %v1702 = vunpack.c.l.b16 %v1630
      %v1703 = vunpack.c.l.b16 %v1631
      %v1704 = vunpack.c.l.b16 %v1632
      %v1705 = vunpack.c.l.b16 %v1633
      %v1706 = vunpack.c.l.b16 %v1634
      %v1707 = vunpack.c.l.b16 %v1635
      %v1708 = vunpack.c.l.b16 %v1636
      %v1709 = vunpack.c.l.b16 %v1637
      %v1710 = vunpack.c.l.b16 %v1638
      %v1711 = vunpack.c.l.b16 %v1639
      %v1712 = vunpack.c.l.b16 %v1640
      %v1713 = vunpack.c.l.b16 %v1641
      %v1714 = vunpack.c.l.b16 %v1642
      %v1715 = vpack.c.b16 %v1700, %v1699
      %v1716 = vpack.c.b16 %v1702, %v1701
      %v1717 = vpack.c.b16 %v1704, %v1703
      %v1718 = vpack.c.b16 %v1706, %v1705
      %v1719 = vpack.c.b16 %v1708, %v1707
      %v1720 = vpack.c.b16 %v1710, %v1709
      %v1721 = vpack.c.b16 %v1712, %v1711
      %v1722 = vpack.c.b16 %v1714, %v1713
      %1731 = vmatprep.subr.bf16.mxu0 0
      %1732 = vmatpush1.bf16.msra.mxu0 %v1715
      %1733 = vmatprep.subr.bf16.mxu0 0
      %1734 = vmatpush1.bf16.msra.mxu0 %v1716
      %1735 = vmatprep.subr.bf16.mxu0 0
      %1736 = vmatpush1.bf16.msra.mxu0 %v1717
      %1737 = vmatprep.subr.bf16.mxu0 0
      %1738 = vmatpush1.bf16.msra.mxu0 %v1718
      %1739 = vmatprep.subr.bf16.mxu0 0
      %1740 = vmatpush1.bf16.msra.mxu0 %v1719
      %1741 = vmatprep.subr.bf16.mxu0 0
      %1742 = vmatpush1.bf16.msra.mxu0 %v1720
      %1743 = vmatprep.subr.bf16.mxu0 0
      %1744 = vmatpush1.bf16.msra.mxu0 %v1721
      %1745 = vmatprep.subr.bf16.mxu0 0
      %1746 = vmatpush1.bf16.msra.mxu0 %v1722
      %1747 = vmatprep.subr.bf16.mxu0 0
      %1748 = vmatpush1.bf16.msra.mxu0 0
      %1749 = vmatprep.subr.bf16.mxu0 0
      %1750 = vmatpush1.bf16.msra.mxu0 0
      %1751 = vmatprep.subr.bf16.mxu0 0
      %1752 = vmatpush1.bf16.msra.mxu0 0
      %1753 = vmatprep.subr.bf16.mxu0 0
      %1754 = vmatpush1.bf16.msra.mxu0 0
      %1755 = vmatprep.subr.bf16.mxu0 0
      %1756 = vmatpush1.bf16.msra.mxu0 0
      %1757 = vmatprep.subr.bf16.mxu0 0
      %1758 = vmatpush1.bf16.msra.mxu0 0
      %1759 = vmatprep.subr.bf16.mxu0 0
      %1760 = vmatpush1.bf16.msra.mxu0 0
      %1761 = vmatprep.subr.bf16.mxu0 0
      %1762 = vmatpush1.bf16.msra.mxu0 0
      %1763 = vmatprep.mubr.bf16.mxu0 0
      %1764 = vmatmul.mubr.bf16.gmra.mrb[0].mxu0 %v1663
      %v1765 = vpop.f32.mrb[0].mxu0
      %v1766 = vadd.f32 0.0, %v1765
      %v1767 = vpop.f32.mrb[0].mxu0
      %v1768 = vpop.f32.mrb[0].mxu0
      %v1769 = vadd.f32 0.0, %v1768
      %v1770 = vpop.f32.mrb[0].mxu0
      %1771 = vmatprep.mubr.bf16.mxu0 0
      %1772 = vmatmul.mubr.bf16.gmra.mrb[0].mxu0 %v1664
      %v1773 = vpop.f32.mrb[0].mxu0
      %v1774 = vadd.f32 0.0, %v1773
      %v1775 = vpop.f32.mrb[0].mxu0
      %v1776 = vpop.f32.mrb[0].mxu0
      %v1777 = vadd.f32 0.0, %v1776
      %v1778 = vpop.f32.mrb[0].mxu0
      %1779 = vmatprep.mubr.bf16.mxu0 0
      %1780 = vmatmul.mubr.bf16.gmra.mrb[0].mxu0 %v1665
      %v1781 = vpop.f32.mrb[0].mxu0
      %v1782 = vadd.f32 0.0, %v1781
      %v1783 = vpop.f32.mrb[0].mxu0
      %v1784 = vpop.f32.mrb[0].mxu0
      %v1785 = vadd.f32 0.0, %v1784
      %v1786 = vpop.f32.mrb[0].mxu0
      %1787 = vmatprep.mubr.bf16.mxu0 0
      %1788 = vmatmul.mubr.bf16.gmra.mrb[0].mxu0 %v1666
      %v1789 = vpop.f32.mrb[0].mxu0
      %v1790 = vadd.f32 0.0, %v1789
      %v1791 = vpop.f32.mrb[0].mxu0
      %v1792 = vpop.f32.mrb[0].mxu0
      %v1793 = vadd.f32 0.0, %v1792
      %v1794 = vpop.f32.mrb[0].mxu0
      %1795 = vmatprep.mubr.bf16.mxu0 0
      %1796 = vmatmul.mubr.bf16.gmra.mrb[0].mxu0 %v1667
      %v1797 = vpop.f32.mrb[0].mxu0
      %v1798 = vadd.f32 0.0, %v1797
      %v1799 = vpop.f32.mrb[0].mxu0
      %v1800 = vpop.f32.mrb[0].mxu0
      %v1801 = vadd.f32 0.0, %v1800
      %v1802 = vpop.f32.mrb[0].mxu0
      %1803 = vmatprep.mubr.bf16.mxu0 0
      %1804 = vmatmul.mubr.bf16.gmra.mrb[0].mxu0 %v1668
      %v1805 = vpop.f32.mrb[0].mxu0
      %v1806 = vadd.f32 0.0, %v1805
      %v1807 = vpop.f32.mrb[0].mxu0
      %v1808 = vpop.f32.mrb[0].mxu0
      %v1809 = vadd.f32 0.0, %v1808
      %v1810 = vpop.f32.mrb[0].mxu0
      %1811 = vmatprep.mubr.bf16.mxu0 0
      %1812 = vmatmul.mubr.bf16.gmra.mrb[0].mxu0 %v1669
      %v1813 = vpop.f32.mrb[0].mxu0
      %v1814 = vadd.f32 0.0, %v1813
      %v1815 = vpop.f32.mrb[0].mxu0
      %v1816 = vpop.f32.mrb[0].mxu0
      %v1817 = vadd.f32 0.0, %v1816
      %v1818 = vpop.f32.mrb[0].mxu0
      %1819 = vmatprep.mubr.bf16.mxu0 0
      %1820 = vmatmul.mubr.bf16.gmra.mrb[0].mxu0 %v1670
      %v1821 = vpop.f32.mrb[0].mxu0
      %v1822 = vadd.f32 0.0, %v1821
      %v1823 = vpop.f32.mrb[0].mxu0
      %v1824 = vpop.f32.mrb[0].mxu0
      %v1825 = vadd.f32 0.0, %v1824
      %v1826 = vpop.f32.mrb[0].mxu0
      %1827 = vmatprep.mubr.bf16.mxu0 0
      %1828 = vmatmul.mubr.bf16.gmra.mrb[0].mxu0 %v1671
      %v1829 = vpop.f32.mrb[0].mxu0
      %v1830 = vadd.f32 0.0, %v1829
      %v1831 = vpop.f32.mrb[0].mxu0
      %v1832 = vpop.f32.mrb[0].mxu0
      %v1833 = vadd.f32 0.0, %v1832
      %v1834 = vpop.f32.mrb[0].mxu0
      %1835 = vmatprep.mubr.bf16.mxu0 0
      %1836 = vmatmul.mubr.bf16.gmra.mrb[0].mxu0 %v1672
      %v1837 = vpop.f32.mrb[0].mxu0
      %v1838 = vadd.f32 0.0, %v1837
      %v1839 = vpop.f32.mrb[0].mxu0
      %v1840 = vpop.f32.mrb[0].mxu0
      %v1841 = vadd.f32 0.0, %v1840
      %v1842 = vpop.f32.mrb[0].mxu0
      %1843 = vdwg.mxu0
      %v1844 = vadd.f32 %v1606, %v1766
      %v1845 = vadd.f32 %v1607, %v1769
      %v1846 = vadd.f32 %v1608, %v1774
      %v1847 = vadd.f32 %v1609, %v1777
      %v1848 = vadd.f32 %v1610, %v1782
      %v1849 = vadd.f32 %v1611, %v1785
      %v1850 = vadd.f32 %v1612, %v1790
      %v1851 = vadd.f32 %v1613, %v1793
      %v1852 = vadd.f32 %v1614, %v1798
      %v1853 = vadd.f32 %v1615, %v1801
      %v1854 = vadd.f32 %v1616, %v1806
      %v1855 = vadd.f32 %v1617, %v1809
      %v1856 = vadd.f32 %v1618, %v1814
      %v1857 = vadd.f32 %v1619, %v1817
      %v1858 = vadd.f32 %v1620, %v1822
      %v1859 = vadd.f32 %v1621, %v1825
      %v1860 = vadd.f32 %v1622, %v1830
      %v1861 = vadd.f32 %v1623, %v1833
      %v1862 = vadd.f32 %v1624, %v1838
      %v1863 = vadd.f32 %v1625, %v1841
      %vm1884 = vcmask 1046528
      %v1885 = vrot.slane %v580, 1
      %v1886 = vrot.slane %v581, 1
      %v1887 = vsel %vm1884, %v1885, %v1886
      %v1888 = vrot.slane %v582, 1
      %v1889 = vrot.slane %v583, 1
      %v1890 = vsel %vm1884, %v1888, %v1889
      %v1891 = vrot.slane %v584, 1
      %v1892 = vrot.slane %v585, 1
      %v1893 = vsel %vm1884, %v1891, %v1892
      %v1894 = vrot.slane %v586, 1
      %v1895 = vrot.slane %v587, 1
      %v1896 = vsel %vm1884, %v1894, %v1895
      %v1897 = vrot.slane %v588, 1
      %v1898 = vrot.slane %v589, 1
      %v1899 = vsel %vm1884, %v1897, %v1898
      %v1900 = vrot.slane %v590, 1
      %v1901 = vrot.slane %v591, 1
      %v1902 = vsel %vm1884, %v1900, %v1901
      %v1903 = vrot.slane %v592, 1
      %v1904 = vrot.slane %v593, 1
      %v1905 = vsel %vm1884, %v1903, %v1904
      %v1906 = vrot.slane %v594, 1
      %v1907 = vrot.slane %v595, 1
      %v1908 = vsel %vm1884, %v1906, %v1907
      %v1909 = vrot.slane %v596, 1
      %v1910 = vrot.slane %v597, 1
      %v1911 = vsel %vm1884, %v1909, %v1910
      %v1912 = vrot.slane %v598, 1
      %v1913 = vrot.slane %v599, 1
      %v1914 = vsel %vm1884, %v1912, %v1913
      %vm1935 = vcmask 1042432
      %vm1936 = vcmask 1046532
      %vm1937 = vmor %vm1935, %vm1936
      %v1938 = vrot.slane %v604, 5
      %v1939 = vrot.slane %v1938, 4
      %v1940 = vrot.slane %v605, 5
      %v1941 = vsel %vm1937, %v1939, %v1940
      %v1942 = vrot.slane %v1940, 4
      %v1943 = vrot.slane %v606, 5
      %v1944 = vsel %vm1937, %v1942, %v1943
      %v1945 = vrot.slane %v607, 5
      %v1946 = vrot.slane %v1945, 4
      %v1947 = vrot.slane %v608, 5
      %v1948 = vsel %vm1937, %v1946, %v1947
      %v1949 = vrot.slane %v1947, 4
      %v1950 = vrot.slane %v609, 5
      %v1951 = vsel %vm1937, %v1949, %v1950
      %v1952 = vrot.slane %v610, 5
      %v1953 = vrot.slane %v1952, 4
      %v1954 = vrot.slane %v611, 5
      %v1955 = vsel %vm1937, %v1953, %v1954
      %v1956 = vrot.slane %v1954, 4
      %v1957 = vrot.slane %v612, 5
      %v1958 = vsel %vm1937, %v1956, %v1957
      %v1959 = vrot.slane %v613, 5
      %v1960 = vrot.slane %v1959, 4
      %v1961 = vrot.slane %v614, 5
      %v1962 = vsel %vm1937, %v1960, %v1961
      %v1963 = vrot.slane %v1961, 4
      %v1964 = vrot.slane %v615, 5
      %v1965 = vsel %vm1937, %v1963, %v1964
      %v1966 = vrot.slane %v616, 5
      %v1967 = vrot.slane %v1966, 4
      %v1968 = vrot.slane %v617, 5
      %v1969 = vsel %vm1937, %v1967, %v1968
      %v1970 = vrot.slane %v1968, 4
      %v1971 = vrot.slane %v618, 5
      %v1972 = vsel %vm1937, %v1970, %v1971
      %v1973 = vrot.slane %v619, 5
      %v1974 = vrot.slane %v1973, 4
      %v1975 = vrot.slane %v620, 5
      %v1976 = vsel %vm1937, %v1974, %v1975
      %v1977 = vrot.slane %v1975, 4
      %v1978 = vrot.slane %v621, 5
      %v1979 = vsel %vm1937, %v1977, %v1978
      %v1980 = vrot.slane %v622, 5
      %v1981 = vrot.slane %v1980, 4
      %v1982 = vrot.slane %v623, 5
      %v1983 = vsel %vm1937, %v1981, %v1982
      %v1984 = vrot.slane %v1982, 4
      %v1985 = vrot.slane %v624, 5
      %v1986 = vsel %vm1937, %v1984, %v1985
      %v1987 = vrot.slane %v625, 5
      %v1988 = vrot.slane %v1987, 4
      %v1989 = vrot.slane %v626, 5
      %v1990 = vsel %vm1937, %v1988, %v1989
      %v1991 = vrot.slane %v1989, 4
      %v1992 = vrot.slane %v627, 5
      %v1993 = vsel %vm1937, %v1991, %v1992
      %v1994 = vrot.slane %v628, 5
      %v1995 = vrot.slane %v1994, 4
      %v1996 = vrot.slane %v629, 5
      %v1997 = vsel %vm1937, %v1995, %v1996
      %v1998 = vrot.slane %v1996, 4
      %v1999 = vrot.slane %v630, 5
      %v2000 = vsel %vm1937, %v1998, %v1999
      %v2001 = vrot.slane %v631, 5
      %v2002 = vrot.slane %v2001, 4
      %v2003 = vrot.slane %v632, 5
      %v2004 = vsel %vm1937, %v2002, %v2003
      %v2005 = vrot.slane %v2003, 4
      %v2006 = vrot.slane %v633, 5
      %v2007 = vsel %vm1937, %v2005, %v2006
      %s2008 = scalar_lea.vmem %s2, 128
      %v2009 = vld [vmem:[%s2008] sm:$0xf]
      %v2010 = vld [vmem:[%s2008 + $0x4] sm:$0xf]
      %v2011 = vld [vmem:[%s2008 + $0x8] sm:$0xf]
      %v2012 = vld [vmem:[%s2008 + $0xc] sm:$0xf]
      %v2013 = vld [vmem:[%s2008 + $0x10] sm:$0xf]
      %v2014 = vld [vmem:[%s2008 + $0x14] sm:$0xf]
      %v2015 = vld [vmem:[%s2008 + $0x18] sm:$0xf]
      %v2016 = vld [vmem:[%s2008 + $0x1c] sm:$0xf]
      %v2017 = vld [vmem:[%s2008 + $0x20] sm:$0xf]
      %v2018 = vld [vmem:[%s2008 + $0x24] sm:$0xf]
      %v2019 = vld [vmem:[%s2008 + $0x28] sm:$0xf]
      %v2020 = vld [vmem:[%s2008 + $0x2c] sm:$0xf]
      %v2021 = vld [vmem:[%s2008 + $0x30] sm:$0xf]
      %v2022 = vld [vmem:[%s2008 + $0x34] sm:$0xf]
      %v2023 = vld [vmem:[%s2008 + $0x38] sm:$0xf]
      %v2024 = vld [vmem:[%s2008 + $0x3c] sm:$0xf]
      %v2041 = vunpack.c.l.b16 %v2009
      %v2042 = vunpack.c.l.b16 %v2010
      %v2043 = vunpack.c.l.b16 %v2011
      %v2044 = vunpack.c.l.b16 %v2012
      %v2045 = vunpack.c.l.b16 %v2013
      %v2046 = vunpack.c.l.b16 %v2014
      %v2047 = vunpack.c.l.b16 %v2015
      %v2048 = vunpack.c.l.b16 %v2016
      %v2049 = vunpack.c.l.b16 %v2017
      %v2050 = vunpack.c.l.b16 %v2018
      %v2051 = vunpack.c.l.b16 %v2019
      %v2052 = vunpack.c.l.b16 %v2020
      %v2053 = vunpack.c.l.b16 %v2021
      %v2054 = vunpack.c.l.b16 %v2022
      %v2055 = vunpack.c.l.b16 %v2023
      %v2056 = vunpack.c.l.b16 %v2024
      %v2057 = vpack.c.b16 %v2042, %v2041
      %v2058 = vpack.c.b16 %v2044, %v2043
      %v2059 = vpack.c.b16 %v2046, %v2045
      %v2060 = vpack.c.b16 %v2048, %v2047
      %v2061 = vpack.c.b16 %v2050, %v2049
      %v2062 = vpack.c.b16 %v2052, %v2051
      %v2063 = vpack.c.b16 %v2054, %v2053
      %v2064 = vpack.c.b16 %v2056, %v2055
      %2073 = vmatprep.subr.bf16.mxu0 0
      %2074 = vmatpush1.bf16.msra.mxu0 %v2057
      %2075 = vmatprep.subr.bf16.mxu0 0
      %2076 = vmatpush1.bf16.msra.mxu0 %v2058
      %2077 = vmatprep.subr.bf16.mxu0 0
      %2078 = vmatpush1.bf16.msra.mxu0 %v2059
      %2079 = vmatprep.subr.bf16.mxu0 0
      %2080 = vmatpush1.bf16.msra.mxu0 %v2060
      %2081 = vmatprep.subr.bf16.mxu0 0
      %2082 = vmatpush1.bf16.msra.mxu0 %v2061
      %2083 = vmatprep.subr.bf16.mxu0 0
      %2084 = vmatpush1.bf16.msra.mxu0 %v2062
      %2085 = vmatprep.subr.bf16.mxu0 0
      %2086 = vmatpush1.bf16.msra.mxu0 %v2063
      %2087 = vmatprep.subr.bf16.mxu0 0
      %2088 = vmatpush1.bf16.msra.mxu0 %v2064
      %2089 = vmatprep.subr.bf16.mxu0 0
      %2090 = vmatpush1.bf16.msra.mxu0 0
      %2091 = vmatprep.subr.bf16.mxu0 0
      %2092 = vmatpush1.bf16.msra.mxu0 0
      %2093 = vmatprep.subr.bf16.mxu0 0
      %2094 = vmatpush1.bf16.msra.mxu0 0
      %2095 = vmatprep.subr.bf16.mxu0 0
      %2096 = vmatpush1.bf16.msra.mxu0 0
      %2097 = vmatprep.subr.bf16.mxu0 0
      %2098 = vmatpush1.bf16.msra.mxu0 0
      %2099 = vmatprep.subr.bf16.mxu0 0
      %2100 = vmatpush1.bf16.msra.mxu0 0
      %2101 = vmatprep.subr.bf16.mxu0 0
      %2102 = vmatpush1.bf16.msra.mxu0 0
      %2103 = vmatprep.subr.bf16.mxu0 0
      %2104 = vmatpush1.bf16.msra.mxu0 0
      %2105 = vmatprep.mubr.bf16.mxu0 0
      %2106 = vmatmul.mubr.bf16.gmra.mrb[0].mxu0 %v1887
      %v2107 = vpop.f32.mrb[0].mxu0
      %v2108 = vadd.f32 0.0, %v2107
      %v2109 = vpop.f32.mrb[0].mxu0
      %v2110 = vpop.f32.mrb[0].mxu0
      %v2111 = vadd.f32 0.0, %v2110
      %v2112 = vpop.f32.mrb[0].mxu0
      %2113 = vmatprep.mubr.bf16.mxu0 0
      %2114 = vmatmul.mubr.bf16.gmra.mrb[0].mxu0 %v1890
      %v2115 = vpop.f32.mrb[0].mxu0
      %v2116 = vadd.f32 0.0, %v2115
      %v2117 = vpop.f32.mrb[0].mxu0
      %v2118 = vpop.f32.mrb[0].mxu0
      %v2119 = vadd.f32 0.0, %v2118
      %v2120 = vpop.f32.mrb[0].mxu0
      %2121 = vmatprep.mubr.bf16.mxu0 0
      %2122 = vmatmul.mubr.bf16.gmra.mrb[0].mxu0 %v1893
      %v2123 = vpop.f32.mrb[0].mxu0
      %v2124 = vadd.f32 0.0, %v2123
      %v2125 = vpop.f32.mrb[0].mxu0
      %v2126 = vpop.f32.mrb[0].mxu0
      %v2127 = vadd.f32 0.0, %v2126
      %v2128 = vpop.f32.mrb[0].mxu0
      %2129 = vmatprep.mubr.bf16.mxu0 0
      %2130 = vmatmul.mubr.bf16.gmra.mrb[0].mxu0 %v1896
      %v2131 = vpop.f32.mrb[0].mxu0
      %v2132 = vadd.f32 0.0, %v2131
      %v2133 = vpop.f32.mrb[0].mxu0
      %v2134 = vpop.f32.mrb[0].mxu0
      %v2135 = vadd.f32 0.0, %v2134
      %v2136 = vpop.f32.mrb[0].mxu0
      %2137 = vmatprep.mubr.bf16.mxu0 0
      %2138 = vmatmul.mubr.bf16.gmra.mrb[0].mxu0 %v1899
      %v2139 = vpop.f32.mrb[0].mxu0
      %v2140 = vadd.f32 0.0, %v2139
      %v2141 = vpop.f32.mrb[0].mxu0
      %v2142 = vpop.f32.mrb[0].mxu0
      %v2143 = vadd.f32 0.0, %v2142
      %v2144 = vpop.f32.mrb[0].mxu0
      %2145 = vmatprep.mubr.bf16.mxu0 0
      %2146 = vmatmul.mubr.bf16.gmra.mrb[0].mxu0 %v1902
      %v2147 = vpop.f32.mrb[0].mxu0
      %v2148 = vadd.f32 0.0, %v2147
      %v2149 = vpop.f32.mrb[0].mxu0
      %v2150 = vpop.f32.mrb[0].mxu0
      %v2151 = vadd.f32 0.0, %v2150
      %v2152 = vpop.f32.mrb[0].mxu0
      %2153 = vmatprep.mubr.bf16.mxu0 0
      %2154 = vmatmul.mubr.bf16.gmra.mrb[0].mxu0 %v1905
      %v2155 = vpop.f32.mrb[0].mxu0
      %v2156 = vadd.f32 0.0, %v2155
      %v2157 = vpop.f32.mrb[0].mxu0
      %v2158 = vpop.f32.mrb[0].mxu0
      %v2159 = vadd.f32 0.0, %v2158
      %v2160 = vpop.f32.mrb[0].mxu0
      %2161 = vmatprep.mubr.bf16.mxu0 0
      %2162 = vmatmul.mubr.bf16.gmra.mrb[0].mxu0 %v1908
      %v2163 = vpop.f32.mrb[0].mxu0
      %v2164 = vadd.f32 0.0, %v2163
      %v2165 = vpop.f32.mrb[0].mxu0
      %v2166 = vpop.f32.mrb[0].mxu0
      %v2167 = vadd.f32 0.0, %v2166
      %v2168 = vpop.f32.mrb[0].mxu0
      %2169 = vmatprep.mubr.bf16.mxu0 0
      %2170 = vmatmul.mubr.bf16.gmra.mrb[0].mxu0 %v1911
      %v2171 = vpop.f32.mrb[0].mxu0
      %v2172 = vadd.f32 0.0, %v2171
      %v2173 = vpop.f32.mrb[0].mxu0
      %v2174 = vpop.f32.mrb[0].mxu0
      %v2175 = vadd.f32 0.0, %v2174
      %v2176 = vpop.f32.mrb[0].mxu0
      %2177 = vmatprep.mubr.bf16.mxu0 0
      %2178 = vmatmul.mubr.bf16.gmra.mrb[0].mxu0 %v1914
      %v2179 = vpop.f32.mrb[0].mxu0
      %v2180 = vadd.f32 0.0, %v2179
      %v2181 = vpop.f32.mrb[0].mxu0
      %v2182 = vpop.f32.mrb[0].mxu0
      %v2183 = vadd.f32 0.0, %v2182
      %v2184 = vpop.f32.mrb[0].mxu0
      %2185 = vdwg.mxu0
      %v2186 = vadd.f32 %v1844, %v2108
      %v2187 = vadd.f32 %v1845, %v2111
      %v2188 = vadd.f32 %v1846, %v2116
      %v2189 = vadd.f32 %v1847, %v2119
      %v2190 = vadd.f32 %v1848, %v2124
      %v2191 = vadd.f32 %v1849, %v2127
      %v2192 = vadd.f32 %v1850, %v2132
      %v2193 = vadd.f32 %v1851, %v2135
      %v2194 = vadd.f32 %v1852, %v2140
      %v2195 = vadd.f32 %v1853, %v2143
      %v2196 = vadd.f32 %v1854, %v2148
      %v2197 = vadd.f32 %v1855, %v2151
      %v2198 = vadd.f32 %v1856, %v2156
      %v2199 = vadd.f32 %v1857, %v2159
      %v2200 = vadd.f32 %v1858, %v2164
      %v2201 = vadd.f32 %v1859, %v2167
      %v2202 = vadd.f32 %v1860, %v2172
      %v2203 = vadd.f32 %v1861, %v2175
      %v2204 = vadd.f32 %v1862, %v2180
      %v2205 = vadd.f32 %v1863, %v2183
      %s2206 = scalar_lea.vmem %s3, 128
      %v2207 = vld [vmem:[%s2206] sm:$0xf]
      %v2208 = vld [vmem:[%s2206 + $0x4] sm:$0xf]
      %v2209 = vld [vmem:[%s2206 + $0x8] sm:$0xf]
      %v2210 = vld [vmem:[%s2206 + $0xc] sm:$0xf]
      %v2211 = vld [vmem:[%s2206 + $0x10] sm:$0xf]
      %v2212 = vld [vmem:[%s2206 + $0x14] sm:$0xf]
      %v2213 = vld [vmem:[%s2206 + $0x18] sm:$0xf]
      %v2214 = vld [vmem:[%s2206 + $0x1c] sm:$0xf]
      %v2215 = vld [vmem:[%s2206 + $0x20] sm:$0xf]
      %v2216 = vld [vmem:[%s2206 + $0x24] sm:$0xf]
      %v2217 = vld [vmem:[%s2206 + $0x28] sm:$0xf]
      %v2218 = vld [vmem:[%s2206 + $0x2c] sm:$0xf]
      %v2219 = vld [vmem:[%s2206 + $0x30] sm:$0xf]
      %v2220 = vld [vmem:[%s2206 + $0x34] sm:$0xf]
      %v2221 = vld [vmem:[%s2206 + $0x38] sm:$0xf]
      %v2222 = vld [vmem:[%s2206 + $0x3c] sm:$0xf]
      %v2223 = vunpack.c.l.b16 %v1941
      %v2224 = vunpack.c.l.b16 %v1944
      %v2225 = vunpack.c.l.b16 %v1948
      %v2226 = vunpack.c.l.b16 %v1951
      %v2227 = vunpack.c.l.b16 %v1955
      %v2228 = vunpack.c.l.b16 %v1958
      %v2229 = vunpack.c.l.b16 %v1962
      %v2230 = vunpack.c.l.b16 %v1965
      %v2231 = vunpack.c.l.b16 %v1969
      %v2232 = vunpack.c.l.b16 %v1972
      %v2233 = vunpack.c.l.b16 %v1976
      %v2234 = vunpack.c.l.b16 %v1979
      %v2235 = vunpack.c.l.b16 %v1983
      %v2236 = vunpack.c.l.b16 %v1986
      %v2237 = vunpack.c.l.b16 %v1990
      %v2238 = vunpack.c.l.b16 %v1993
      %v2239 = vunpack.c.l.b16 %v1997
      %v2240 = vunpack.c.l.b16 %v2000
      %v2241 = vunpack.c.l.b16 %v2004
      %v2242 = vunpack.c.l.b16 %v2007
      %v2243 = vpack.c.b16 %v2224, %v2223
      %v2244 = vpack.c.b16 %v2226, %v2225
      %v2245 = vpack.c.b16 %v2228, %v2227
      %v2246 = vpack.c.b16 %v2230, %v2229
      %v2247 = vpack.c.b16 %v2232, %v2231
      %v2248 = vpack.c.b16 %v2234, %v2233
      %v2249 = vpack.c.b16 %v2236, %v2235
      %v2250 = vpack.c.b16 %v2238, %v2237
      %v2251 = vpack.c.b16 %v2240, %v2239
      %v2252 = vpack.c.b16 %v2242, %v2241
      %v2279 = vunpack.c.l.b16 %v2207
      %v2280 = vunpack.c.l.b16 %v2208
      %v2281 = vunpack.c.l.b16 %v2209
      %v2282 = vunpack.c.l.b16 %v2210
      %v2283 = vunpack.c.l.b16 %v2211
      %v2284 = vunpack.c.l.b16 %v2212
      %v2285 = vunpack.c.l.b16 %v2213
      %v2286 = vunpack.c.l.b16 %v2214
      %v2287 = vunpack.c.l.b16 %v2215
      %v2288 = vunpack.c.l.b16 %v2216
      %v2289 = vunpack.c.l.b16 %v2217
      %v2290 = vunpack.c.l.b16 %v2218
      %v2291 = vunpack.c.l.b16 %v2219
      %v2292 = vunpack.c.l.b16 %v2220
      %v2293 = vunpack.c.l.b16 %v2221
      %v2294 = vunpack.c.l.b16 %v2222
      %v2295 = vpack.c.b16 %v2280, %v2279
      %v2296 = vpack.c.b16 %v2282, %v2281
      %v2297 = vpack.c.b16 %v2284, %v2283
      %v2298 = vpack.c.b16 %v2286, %v2285
      %v2299 = vpack.c.b16 %v2288, %v2287
      %v2300 = vpack.c.b16 %v2290, %v2289
      %v2301 = vpack.c.b16 %v2292, %v2291
      %v2302 = vpack.c.b16 %v2294, %v2293
      %2311 = vmatprep.subr.bf16.mxu0 0
      %2312 = vmatpush1.bf16.msra.mxu0 %v2295
      %2313 = vmatprep.subr.bf16.mxu0 0
      %2314 = vmatpush1.bf16.msra.mxu0 %v2296
      %2315 = vmatprep.subr.bf16.mxu0 0
      %2316 = vmatpush1.bf16.msra.mxu0 %v2297
      %2317 = vmatprep.subr.bf16.mxu0 0
      %2318 = vmatpush1.bf16.msra.mxu0 %v2298
      %2319 = vmatprep.subr.bf16.mxu0 0
      %2320 = vmatpush1.bf16.msra.mxu0 %v2299
      %2321 = vmatprep.subr.bf16.mxu0 0
      %2322 = vmatpush1.bf16.msra.mxu0 %v2300
      %2323 = vmatprep.subr.bf16.mxu0 0
      %2324 = vmatpush1.bf16.msra.mxu0 %v2301
      %2325 = vmatprep.subr.bf16.mxu0 0
      %2326 = vmatpush1.bf16.msra.mxu0 %v2302
      %2327 = vmatprep.subr.bf16.mxu0 0
      %2328 = vmatpush1.bf16.msra.mxu0 0
      %2329 = vmatprep.subr.bf16.mxu0 0
      %2330 = vmatpush1.bf16.msra.mxu0 0
      %2331 = vmatprep.subr.bf16.mxu0 0
      %2332 = vmatpush1.bf16.msra.mxu0 0
      %2333 = vmatprep.subr.bf16.mxu0 0
      %2334 = vmatpush1.bf16.msra.mxu0 0
      %2335 = vmatprep.subr.bf16.mxu0 0
      %2336 = vmatpush1.bf16.msra.mxu0 0
      %2337 = vmatprep.subr.bf16.mxu0 0
      %2338 = vmatpush1.bf16.msra.mxu0 0
      %2339 = vmatprep.subr.bf16.mxu0 0
      %2340 = vmatpush1.bf16.msra.mxu0 0
      %2341 = vmatprep.subr.bf16.mxu0 0
      %2342 = vmatpush1.bf16.msra.mxu0 0
      %2343 = vmatprep.mubr.bf16.mxu0 0
      %2344 = vmatmul.mubr.bf16.gmra.mrb[0].mxu0 %v2243
      %v2345 = vpop.f32.mrb[0].mxu0
      %v2346 = vadd.f32 0.0, %v2345
      %v2347 = vpop.f32.mrb[0].mxu0
      %v2348 = vpop.f32.mrb[0].mxu0
      %v2349 = vadd.f32 0.0, %v2348
      %v2350 = vpop.f32.mrb[0].mxu0
      %2351 = vmatprep.mubr.bf16.mxu0 0
      %2352 = vmatmul.mubr.bf16.gmra.mrb[0].mxu0 %v2244
      %v2353 = vpop.f32.mrb[0].mxu0
      %v2354 = vadd.f32 0.0, %v2353
      %v2355 = vpop.f32.mrb[0].mxu0
      %v2356 = vpop.f32.mrb[0].mxu0
      %v2357 = vadd.f32 0.0, %v2356
      %v2358 = vpop.f32.mrb[0].mxu0
      %2359 = vmatprep.mubr.bf16.mxu0 0
      %2360 = vmatmul.mubr.bf16.gmra.mrb[0].mxu0 %v2245
      %v2361 = vpop.f32.mrb[0].mxu0
      %v2362 = vadd.f32 0.0, %v2361
      %v2363 = vpop.f32.mrb[0].mxu0
      %v2364 = vpop.f32.mrb[0].mxu0
      %v2365 = vadd.f32 0.0, %v2364
      %v2366 = vpop.f32.mrb[0].mxu0
      %2367 = vmatprep.mubr.bf16.mxu0 0
      %2368 = vmatmul.mubr.bf16.gmra.mrb[0].mxu0 %v2246
      %v2369 = vpop.f32.mrb[0].mxu0
      %v2370 = vadd.f32 0.0, %v2369
      %v2371 = vpop.f32.mrb[0].mxu0
      %v2372 = vpop.f32.mrb[0].mxu0
      %v2373 = vadd.f32 0.0, %v2372
      %v2374 = vpop.f32.mrb[0].mxu0
      %2375 = vmatprep.mubr.bf16.mxu0 0
      %2376 = vmatmul.mubr.bf16.gmra.mrb[0].mxu0 %v2247
      %v2377 = vpop.f32.mrb[0].mxu0
      %v2378 = vadd.f32 0.0, %v2377
      %v2379 = vpop.f32.mrb[0].mxu0
      %v2380 = vpop.f32.mrb[0].mxu0
      %v2381 = vadd.f32 0.0, %v2380
      %v2382 = vpop.f32.mrb[0].mxu0
      %2383 = vmatprep.mubr.bf16.mxu0 0
      %2384 = vmatmul.mubr.bf16.gmra.mrb[0].mxu0 %v2248
      %v2385 = vpop.f32.mrb[0].mxu0
      %v2386 = vadd.f32 0.0, %v2385
      %v2387 = vpop.f32.mrb[0].mxu0
      %v2388 = vpop.f32.mrb[0].mxu0
      %v2389 = vadd.f32 0.0, %v2388
      %v2390 = vpop.f32.mrb[0].mxu0
      %2391 = vmatprep.mubr.bf16.mxu0 0
      %2392 = vmatmul.mubr.bf16.gmra.mrb[0].mxu0 %v2249
      %v2393 = vpop.f32.mrb[0].mxu0
      %v2394 = vadd.f32 0.0, %v2393
      %v2395 = vpop.f32.mrb[0].mxu0
      %v2396 = vpop.f32.mrb[0].mxu0
      %v2397 = vadd.f32 0.0, %v2396
      %v2398 = vpop.f32.mrb[0].mxu0
      %2399 = vmatprep.mubr.bf16.mxu0 0
      %2400 = vmatmul.mubr.bf16.gmra.mrb[0].mxu0 %v2250
      %v2401 = vpop.f32.mrb[0].mxu0
      %v2402 = vadd.f32 0.0, %v2401
      %v2403 = vpop.f32.mrb[0].mxu0
      %v2404 = vpop.f32.mrb[0].mxu0
      %v2405 = vadd.f32 0.0, %v2404
      %v2406 = vpop.f32.mrb[0].mxu0
      %2407 = vmatprep.mubr.bf16.mxu0 0
      %2408 = vmatmul.mubr.bf16.gmra.mrb[0].mxu0 %v2251
      %v2409 = vpop.f32.mrb[0].mxu0
      %v2410 = vadd.f32 0.0, %v2409
      %v2411 = vpop.f32.mrb[0].mxu0
      %v2412 = vpop.f32.mrb[0].mxu0
      %v2413 = vadd.f32 0.0, %v2412
      %v2414 = vpop.f32.mrb[0].mxu0
      %2415 = vmatprep.mubr.bf16.mxu0 0
      %2416 = vmatmul.mubr.bf16.gmra.mrb[0].mxu0 %v2252
      %v2417 = vpop.f32.mrb[0].mxu0
      %v2418 = vadd.f32 0.0, %v2417
      %v2419 = vpop.f32.mrb[0].mxu0
      %v2420 = vpop.f32.mrb[0].mxu0
      %v2421 = vadd.f32 0.0, %v2420
      %v2422 = vpop.f32.mrb[0].mxu0
      %2423 = vdwg.mxu0
      %v2424 = vadd.f32 %v2186, %v2346
      %v2425 = vadd.f32 %v2187, %v2349
      %v2426 = vadd.f32 %v2188, %v2354
      %v2427 = vadd.f32 %v2189, %v2357
      %v2428 = vadd.f32 %v2190, %v2362
      %v2429 = vadd.f32 %v2191, %v2365
      %v2430 = vadd.f32 %v2192, %v2370
      %v2431 = vadd.f32 %v2193, %v2373
      %v2432 = vadd.f32 %v2194, %v2378
      %v2433 = vadd.f32 %v2195, %v2381
      %v2434 = vadd.f32 %v2196, %v2386
      %v2435 = vadd.f32 %v2197, %v2389
      %v2436 = vadd.f32 %v2198, %v2394
      %v2437 = vadd.f32 %v2199, %v2397
      %v2438 = vadd.f32 %v2200, %v2402
      %v2439 = vadd.f32 %v2201, %v2405
      %v2440 = vadd.f32 %v2202, %v2410
      %v2441 = vadd.f32 %v2203, %v2413
      %v2442 = vadd.f32 %v2204, %v2418
      %v2443 = vadd.f32 %v2205, %v2421
      %s2444 = scalar_lea.vmem %s2, 192
      %v2445 = vld [vmem:[%s2444] sm:$0xf]
      %v2446 = vld [vmem:[%s2444 + $0x4] sm:$0xf]
      %v2447 = vld [vmem:[%s2444 + $0x8] sm:$0xf]
      %v2448 = vld [vmem:[%s2444 + $0xc] sm:$0xf]
      %v2449 = vld [vmem:[%s2444 + $0x10] sm:$0xf]
      %v2450 = vld [vmem:[%s2444 + $0x14] sm:$0xf]
      %v2451 = vld [vmem:[%s2444 + $0x18] sm:$0xf]
      %v2452 = vld [vmem:[%s2444 + $0x1c] sm:$0xf]
      %v2453 = vld [vmem:[%s2444 + $0x20] sm:$0xf]
      %v2454 = vld [vmem:[%s2444 + $0x24] sm:$0xf]
      %v2455 = vld [vmem:[%s2444 + $0x28] sm:$0xf]
      %v2456 = vld [vmem:[%s2444 + $0x2c] sm:$0xf]
      %v2457 = vld [vmem:[%s2444 + $0x30] sm:$0xf]
      %v2458 = vld [vmem:[%s2444 + $0x34] sm:$0xf]
      %v2459 = vld [vmem:[%s2444 + $0x38] sm:$0xf]
      %v2460 = vld [vmem:[%s2444 + $0x3c] sm:$0xf]
      %v2477 = vunpack.c.l.b16 %v2445
      %v2478 = vunpack.c.l.b16 %v2446
      %v2479 = vunpack.c.l.b16 %v2447
      %v2480 = vunpack.c.l.b16 %v2448
      %v2481 = vunpack.c.l.b16 %v2449
      %v2482 = vunpack.c.l.b16 %v2450
      %v2483 = vunpack.c.l.b16 %v2451
      %v2484 = vunpack.c.l.b16 %v2452
      %v2485 = vunpack.c.l.b16 %v2453
      %v2486 = vunpack.c.l.b16 %v2454
      %v2487 = vunpack.c.l.b16 %v2455
      %v2488 = vunpack.c.l.b16 %v2456
      %v2489 = vunpack.c.l.b16 %v2457
      %v2490 = vunpack.c.l.b16 %v2458
      %v2491 = vunpack.c.l.b16 %v2459
      %v2492 = vunpack.c.l.b16 %v2460
      %v2493 = vpack.c.b16 %v2478, %v2477
      %v2494 = vpack.c.b16 %v2480, %v2479
      %v2495 = vpack.c.b16 %v2482, %v2481
      %v2496 = vpack.c.b16 %v2484, %v2483
      %v2497 = vpack.c.b16 %v2486, %v2485
      %v2498 = vpack.c.b16 %v2488, %v2487
      %v2499 = vpack.c.b16 %v2490, %v2489
      %v2500 = vpack.c.b16 %v2492, %v2491
      %2509 = vmatprep.subr.bf16.mxu0 0
      %2510 = vmatpush1.bf16.msra.mxu0 %v2493
      %2511 = vmatprep.subr.bf16.mxu0 0
      %2512 = vmatpush1.bf16.msra.mxu0 %v2494
      %2513 = vmatprep.subr.bf16.mxu0 0
      %2514 = vmatpush1.bf16.msra.mxu0 %v2495
      %2515 = vmatprep.subr.bf16.mxu0 0
      %2516 = vmatpush1.bf16.msra.mxu0 %v2496
      %2517 = vmatprep.subr.bf16.mxu0 0
      %2518 = vmatpush1.bf16.msra.mxu0 %v2497
      %2519 = vmatprep.subr.bf16.mxu0 0
      %2520 = vmatpush1.bf16.msra.mxu0 %v2498
      %2521 = vmatprep.subr.bf16.mxu0 0
      %2522 = vmatpush1.bf16.msra.mxu0 %v2499
      %2523 = vmatprep.subr.bf16.mxu0 0
      %2524 = vmatpush1.bf16.msra.mxu0 %v2500
      %2525 = vmatprep.subr.bf16.mxu0 0
      %2526 = vmatpush1.bf16.msra.mxu0 0
      %2527 = vmatprep.subr.bf16.mxu0 0
      %2528 = vmatpush1.bf16.msra.mxu0 0
      %2529 = vmatprep.subr.bf16.mxu0 0
      %2530 = vmatpush1.bf16.msra.mxu0 0
      %2531 = vmatprep.subr.bf16.mxu0 0
      %2532 = vmatpush1.bf16.msra.mxu0 0
      %2533 = vmatprep.subr.bf16.mxu0 0
      %2534 = vmatpush1.bf16.msra.mxu0 0
      %2535 = vmatprep.subr.bf16.mxu0 0
      %2536 = vmatpush1.bf16.msra.mxu0 0
      %2537 = vmatprep.subr.bf16.mxu0 0
      %2538 = vmatpush1.bf16.msra.mxu0 0
      %2539 = vmatprep.subr.bf16.mxu0 0
      %2540 = vmatpush1.bf16.msra.mxu0 0
      %2541 = vmatprep.mubr.bf16.mxu0 0
      %2542 = vmatmul.mubr.bf16.gmra.mrb[0].mxu0 %v582
      %v2543 = vpop.f32.mrb[0].mxu0
      %v2544 = vadd.f32 0.0, %v2543
      %v2545 = vpop.f32.mrb[0].mxu0
      %v2546 = vpop.f32.mrb[0].mxu0
      %v2547 = vadd.f32 0.0, %v2546
      %v2548 = vpop.f32.mrb[0].mxu0
      %2549 = vmatprep.mubr.bf16.mxu0 0
      %2550 = vmatmul.mubr.bf16.gmra.mrb[0].mxu0 %v584
      %v2551 = vpop.f32.mrb[0].mxu0
      %v2552 = vadd.f32 0.0, %v2551
      %v2553 = vpop.f32.mrb[0].mxu0
      %v2554 = vpop.f32.mrb[0].mxu0
      %v2555 = vadd.f32 0.0, %v2554
      %v2556 = vpop.f32.mrb[0].mxu0
      %2557 = vmatprep.mubr.bf16.mxu0 0
      %2558 = vmatmul.mubr.bf16.gmra.mrb[0].mxu0 %v586
      %v2559 = vpop.f32.mrb[0].mxu0
      %v2560 = vadd.f32 0.0, %v2559
      %v2561 = vpop.f32.mrb[0].mxu0
      %v2562 = vpop.f32.mrb[0].mxu0
      %v2563 = vadd.f32 0.0, %v2562
      %v2564 = vpop.f32.mrb[0].mxu0
      %2565 = vmatprep.mubr.bf16.mxu0 0
      %2566 = vmatmul.mubr.bf16.gmra.mrb[0].mxu0 %v588
      %v2567 = vpop.f32.mrb[0].mxu0
      %v2568 = vadd.f32 0.0, %v2567
      %v2569 = vpop.f32.mrb[0].mxu0
      %v2570 = vpop.f32.mrb[0].mxu0
      %v2571 = vadd.f32 0.0, %v2570
      %v2572 = vpop.f32.mrb[0].mxu0
      %2573 = vmatprep.mubr.bf16.mxu0 0
      %2574 = vmatmul.mubr.bf16.gmra.mrb[0].mxu0 %v590
      %v2575 = vpop.f32.mrb[0].mxu0
      %v2576 = vadd.f32 0.0, %v2575
      %v2577 = vpop.f32.mrb[0].mxu0
      %v2578 = vpop.f32.mrb[0].mxu0
      %v2579 = vadd.f32 0.0, %v2578
      %v2580 = vpop.f32.mrb[0].mxu0
      %2581 = vmatprep.mubr.bf16.mxu0 0
      %2582 = vmatmul.mubr.bf16.gmra.mrb[0].mxu0 %v592
      %v2583 = vpop.f32.mrb[0].mxu0
      %v2584 = vadd.f32 0.0, %v2583
      %v2585 = vpop.f32.mrb[0].mxu0
      %v2586 = vpop.f32.mrb[0].mxu0
      %v2587 = vadd.f32 0.0, %v2586
      %v2588 = vpop.f32.mrb[0].mxu0
      %2589 = vmatprep.mubr.bf16.mxu0 0
      %2590 = vmatmul.mubr.bf16.gmra.mrb[0].mxu0 %v594
      %v2591 = vpop.f32.mrb[0].mxu0
      %v2592 = vadd.f32 0.0, %v2591
      %v2593 = vpop.f32.mrb[0].mxu0
      %v2594 = vpop.f32.mrb[0].mxu0
      %v2595 = vadd.f32 0.0, %v2594
      %v2596 = vpop.f32.mrb[0].mxu0
      %2597 = vmatprep.mubr.bf16.mxu0 0
      %2598 = vmatmul.mubr.bf16.gmra.mrb[0].mxu0 %v596
      %v2599 = vpop.f32.mrb[0].mxu0
      %v2600 = vadd.f32 0.0, %v2599
      %v2601 = vpop.f32.mrb[0].mxu0
      %v2602 = vpop.f32.mrb[0].mxu0
      %v2603 = vadd.f32 0.0, %v2602
      %v2604 = vpop.f32.mrb[0].mxu0
      %2605 = vmatprep.mubr.bf16.mxu0 0
      %2606 = vmatmul.mubr.bf16.gmra.mrb[0].mxu0 %v598
      %v2607 = vpop.f32.mrb[0].mxu0
      %v2608 = vadd.f32 0.0, %v2607
      %v2609 = vpop.f32.mrb[0].mxu0
      %v2610 = vpop.f32.mrb[0].mxu0
      %v2611 = vadd.f32 0.0, %v2610
      %v2612 = vpop.f32.mrb[0].mxu0
      %2613 = vmatprep.mubr.bf16.mxu0 0
      %2614 = vmatmul.mubr.bf16.gmra.mrb[0].mxu0 %v600
      %v2615 = vpop.f32.mrb[0].mxu0
      %v2616 = vadd.f32 0.0, %v2615
      %v2617 = vpop.f32.mrb[0].mxu0
      %v2618 = vpop.f32.mrb[0].mxu0
      %v2619 = vadd.f32 0.0, %v2618
      %v2620 = vpop.f32.mrb[0].mxu0
      %2621 = vdwg.mxu0
      %v2622 = vadd.f32 %v2424, %v2544
      %v2623 = vadd.f32 %v2425, %v2547
      %v2624 = vadd.f32 %v2426, %v2552
      %v2625 = vadd.f32 %v2427, %v2555
      %v2626 = vadd.f32 %v2428, %v2560
      %v2627 = vadd.f32 %v2429, %v2563
      %v2628 = vadd.f32 %v2430, %v2568
      %v2629 = vadd.f32 %v2431, %v2571
      %v2630 = vadd.f32 %v2432, %v2576
      %v2631 = vadd.f32 %v2433, %v2579
      %v2632 = vadd.f32 %v2434, %v2584
      %v2633 = vadd.f32 %v2435, %v2587
      %v2634 = vadd.f32 %v2436, %v2592
      %v2635 = vadd.f32 %v2437, %v2595
      %v2636 = vadd.f32 %v2438, %v2600
      %v2637 = vadd.f32 %v2439, %v2603
      %v2638 = vadd.f32 %v2440, %v2608
      %v2639 = vadd.f32 %v2441, %v2611
      %v2640 = vadd.f32 %v2442, %v2616
      %v2641 = vadd.f32 %v2443, %v2619
      %s2642 = scalar_lea.vmem %s3, 192
      %v2643 = vld [vmem:[%s2642] sm:$0xf]
      %v2644 = vld [vmem:[%s2642 + $0x4] sm:$0xf]
      %v2645 = vld [vmem:[%s2642 + $0x8] sm:$0xf]
      %v2646 = vld [vmem:[%s2642 + $0xc] sm:$0xf]
      %v2647 = vld [vmem:[%s2642 + $0x10] sm:$0xf]
      %v2648 = vld [vmem:[%s2642 + $0x14] sm:$0xf]
      %v2649 = vld [vmem:[%s2642 + $0x18] sm:$0xf]
      %v2650 = vld [vmem:[%s2642 + $0x1c] sm:$0xf]
      %v2651 = vld [vmem:[%s2642 + $0x20] sm:$0xf]
      %v2652 = vld [vmem:[%s2642 + $0x24] sm:$0xf]
      %v2653 = vld [vmem:[%s2642 + $0x28] sm:$0xf]
      %v2654 = vld [vmem:[%s2642 + $0x2c] sm:$0xf]
      %v2655 = vld [vmem:[%s2642 + $0x30] sm:$0xf]
      %v2656 = vld [vmem:[%s2642 + $0x34] sm:$0xf]
      %v2657 = vld [vmem:[%s2642 + $0x38] sm:$0xf]
      %v2658 = vld [vmem:[%s2642 + $0x3c] sm:$0xf]
      %v2661 = vunpack.c.l.b16 %v634
      %v2662 = vunpack.c.l.b16 %v635
      %v2663 = vpack.c.b16 %v2662, %v2661
      %v2681 = vunpack.c.l.b16 %v2643
      %v2682 = vunpack.c.l.b16 %v2644
      %v2683 = vunpack.c.l.b16 %v2645
      %v2684 = vunpack.c.l.b16 %v2646
      %v2685 = vunpack.c.l.b16 %v2647
      %v2686 = vunpack.c.l.b16 %v2648
      %v2687 = vunpack.c.l.b16 %v2649
      %v2688 = vunpack.c.l.b16 %v2650
      %v2689 = vunpack.c.l.b16 %v2651
      %v2690 = vunpack.c.l.b16 %v2652
      %v2691 = vunpack.c.l.b16 %v2653
      %v2692 = vunpack.c.l.b16 %v2654
      %v2693 = vunpack.c.l.b16 %v2655
      %v2694 = vunpack.c.l.b16 %v2656
      %v2695 = vunpack.c.l.b16 %v2657
      %v2696 = vunpack.c.l.b16 %v2658
      %v2697 = vpack.c.b16 %v2682, %v2681
      %v2698 = vpack.c.b16 %v2684, %v2683
      %v2699 = vpack.c.b16 %v2686, %v2685
      %v2700 = vpack.c.b16 %v2688, %v2687
      %v2701 = vpack.c.b16 %v2690, %v2689
      %v2702 = vpack.c.b16 %v2692, %v2691
      %v2703 = vpack.c.b16 %v2694, %v2693
      %v2704 = vpack.c.b16 %v2696, %v2695
      %2713 = vmatprep.subr.bf16.mxu0 0
      %2714 = vmatpush1.bf16.msra.mxu0 %v2697
      %2715 = vmatprep.subr.bf16.mxu0 0
      %2716 = vmatpush1.bf16.msra.mxu0 %v2698
      %2717 = vmatprep.subr.bf16.mxu0 0
      %2718 = vmatpush1.bf16.msra.mxu0 %v2699
      %2719 = vmatprep.subr.bf16.mxu0 0
      %2720 = vmatpush1.bf16.msra.mxu0 %v2700
      %2721 = vmatprep.subr.bf16.mxu0 0
      %2722 = vmatpush1.bf16.msra.mxu0 %v2701
      %2723 = vmatprep.subr.bf16.mxu0 0
      %2724 = vmatpush1.bf16.msra.mxu0 %v2702
      %2725 = vmatprep.subr.bf16.mxu0 0
      %2726 = vmatpush1.bf16.msra.mxu0 %v2703
      %2727 = vmatprep.subr.bf16.mxu0 0
      %2728 = vmatpush1.bf16.msra.mxu0 %v2704
      %2729 = vmatprep.subr.bf16.mxu0 0
      %2730 = vmatpush1.bf16.msra.mxu0 0
      %2731 = vmatprep.subr.bf16.mxu0 0
      %2732 = vmatpush1.bf16.msra.mxu0 0
      %2733 = vmatprep.subr.bf16.mxu0 0
      %2734 = vmatpush1.bf16.msra.mxu0 0
      %2735 = vmatprep.subr.bf16.mxu0 0
      %2736 = vmatpush1.bf16.msra.mxu0 0
      %2737 = vmatprep.subr.bf16.mxu0 0
      %2738 = vmatpush1.bf16.msra.mxu0 0
      %2739 = vmatprep.subr.bf16.mxu0 0
      %2740 = vmatpush1.bf16.msra.mxu0 0
      %2741 = vmatprep.subr.bf16.mxu0 0
      %2742 = vmatpush1.bf16.msra.mxu0 0
      %2743 = vmatprep.subr.bf16.mxu0 0
      %2744 = vmatpush1.bf16.msra.mxu0 0
      %2745 = vmatprep.mubr.bf16.mxu0 0
      %2746 = vmatmul.mubr.bf16.gmra.mrb[0].mxu0 %v713
      %v2747 = vpop.f32.mrb[0].mxu0
      %v2748 = vadd.f32 0.0, %v2747
      %v2749 = vpop.f32.mrb[0].mxu0
      %v2750 = vpop.f32.mrb[0].mxu0
      %v2751 = vadd.f32 0.0, %v2750
      %v2752 = vpop.f32.mrb[0].mxu0
      %2753 = vmatprep.mubr.bf16.mxu0 0
      %2754 = vmatmul.mubr.bf16.gmra.mrb[0].mxu0 %v714
      %v2755 = vpop.f32.mrb[0].mxu0
      %v2756 = vadd.f32 0.0, %v2755
      %v2757 = vpop.f32.mrb[0].mxu0
      %v2758 = vpop.f32.mrb[0].mxu0
      %v2759 = vadd.f32 0.0, %v2758
      %v2760 = vpop.f32.mrb[0].mxu0
      %2761 = vmatprep.mubr.bf16.mxu0 0
      %2762 = vmatmul.mubr.bf16.gmra.mrb[0].mxu0 %v715
      %v2763 = vpop.f32.mrb[0].mxu0
      %v2764 = vadd.f32 0.0, %v2763
      %v2765 = vpop.f32.mrb[0].mxu0
      %v2766 = vpop.f32.mrb[0].mxu0
      %v2767 = vadd.f32 0.0, %v2766
      %v2768 = vpop.f32.mrb[0].mxu0
      %2769 = vmatprep.mubr.bf16.mxu0 0
      %2770 = vmatmul.mubr.bf16.gmra.mrb[0].mxu0 %v716
      %v2771 = vpop.f32.mrb[0].mxu0
      %v2772 = vadd.f32 0.0, %v2771
      %v2773 = vpop.f32.mrb[0].mxu0
      %v2774 = vpop.f32.mrb[0].mxu0
      %v2775 = vadd.f32 0.0, %v2774
      %v2776 = vpop.f32.mrb[0].mxu0
      %2777 = vmatprep.mubr.bf16.mxu0 0
      %2778 = vmatmul.mubr.bf16.gmra.mrb[0].mxu0 %v717
      %v2779 = vpop.f32.mrb[0].mxu0
      %v2780 = vadd.f32 0.0, %v2779
      %v2781 = vpop.f32.mrb[0].mxu0
      %v2782 = vpop.f32.mrb[0].mxu0
      %v2783 = vadd.f32 0.0, %v2782
      %v2784 = vpop.f32.mrb[0].mxu0
      %2785 = vmatprep.mubr.bf16.mxu0 0
      %2786 = vmatmul.mubr.bf16.gmra.mrb[0].mxu0 %v718
      %v2787 = vpop.f32.mrb[0].mxu0
      %v2788 = vadd.f32 0.0, %v2787
      %v2789 = vpop.f32.mrb[0].mxu0
      %v2790 = vpop.f32.mrb[0].mxu0
      %v2791 = vadd.f32 0.0, %v2790
      %v2792 = vpop.f32.mrb[0].mxu0
      %2793 = vmatprep.mubr.bf16.mxu0 0
      %2794 = vmatmul.mubr.bf16.gmra.mrb[0].mxu0 %v719
      %v2795 = vpop.f32.mrb[0].mxu0
      %v2796 = vadd.f32 0.0, %v2795
      %v2797 = vpop.f32.mrb[0].mxu0
      %v2798 = vpop.f32.mrb[0].mxu0
      %v2799 = vadd.f32 0.0, %v2798
      %v2800 = vpop.f32.mrb[0].mxu0
      %2801 = vmatprep.mubr.bf16.mxu0 0
      %2802 = vmatmul.mubr.bf16.gmra.mrb[0].mxu0 %v720
      %v2803 = vpop.f32.mrb[0].mxu0
      %v2804 = vadd.f32 0.0, %v2803
      %v2805 = vpop.f32.mrb[0].mxu0
      %v2806 = vpop.f32.mrb[0].mxu0
      %v2807 = vadd.f32 0.0, %v2806
      %v2808 = vpop.f32.mrb[0].mxu0
      %2809 = vmatprep.mubr.bf16.mxu0 0
      %2810 = vmatmul.mubr.bf16.gmra.mrb[0].mxu0 %v721
      %v2811 = vpop.f32.mrb[0].mxu0
      %v2812 = vadd.f32 0.0, %v2811
      %v2813 = vpop.f32.mrb[0].mxu0
      %v2814 = vpop.f32.mrb[0].mxu0
      %v2815 = vadd.f32 0.0, %v2814
      %v2816 = vpop.f32.mrb[0].mxu0
      %2817 = vmatprep.mubr.bf16.mxu0 0
      %2818 = vmatmul.mubr.bf16.gmra.mrb[0].mxu0 %v2663
      %v2819 = vpop.f32.mrb[0].mxu0
      %v2820 = vadd.f32 0.0, %v2819
      %v2821 = vpop.f32.mrb[0].mxu0
      %v2822 = vpop.f32.mrb[0].mxu0
      %v2823 = vadd.f32 0.0, %v2822
      %v2824 = vpop.f32.mrb[0].mxu0
      %2825 = vdwg.mxu0
      %v2826 = vadd.f32 %v2622, %v2748
      %v2827 = vadd.f32 %v2623, %v2751
      %v2828 = vadd.f32 %v2624, %v2756
      %v2829 = vadd.f32 %v2625, %v2759
      %v2830 = vadd.f32 %v2626, %v2764
      %v2831 = vadd.f32 %v2627, %v2767
      %v2832 = vadd.f32 %v2628, %v2772
      %v2833 = vadd.f32 %v2629, %v2775
      %v2834 = vadd.f32 %v2630, %v2780
      %v2835 = vadd.f32 %v2631, %v2783
      %v2836 = vadd.f32 %v2632, %v2788
      %v2837 = vadd.f32 %v2633, %v2791
      %v2838 = vadd.f32 %v2634, %v2796
      %v2839 = vadd.f32 %v2635, %v2799
      %v2840 = vadd.f32 %v2636, %v2804
      %v2841 = vadd.f32 %v2637, %v2807
      %v2842 = vadd.f32 %v2638, %v2812
      %v2843 = vadd.f32 %v2639, %v2815
      %v2844 = vadd.f32 %v2640, %v2820
      %v2845 = vadd.f32 %v2641, %v2823
      %v2847 = vshrl.u32 %v600, 16
      %v2849 = vshll.u32 %v600, 16
      %v2851 = vrot.slane %v2849, 1
      %v2852 = vor.u32 %v2847, %v2851
      %v2854 = vshll.u32 %v601, 16
      %v2856 = vrot.slane %v2854, 1
      %v2857 = vsel %vm1054, %v2852, %v2856
      %v2860 = vshrl.u32 %v634, 16
      %v2862 = vrot.slane %v2860, 4
      %v2863 = vshll.u32 %v634, 16
      %v2865 = vrot.slane %v2863, 5
      %v2866 = vor.u32 %v2862, %v2865
      %v2867 = vrot.slane %v2866, 4
      %v2869 = vshll.u32 %v635, 16
      %v2871 = vrot.slane %v2869, 5
      %v2872 = vsel %vm1187, %v2867, %v2871
      %v2873 = vshrl.u32 %v635, 16
      %v2875 = vrot.slane %v2873, 4
      %v2876 = vor.u32 %v2875, %v2871
      %v2877 = vrot.slane %v2876, 4
      %v2879 = vshll.u32 %v636, 16
      %v2881 = vrot.slane %v2879, 5
      %v2882 = vsel %vm1187, %v2877, %v2881
      %s2883 = scalar_lea.vmem %s2, 256
      %v2884 = vld [vmem:[%s2883] sm:$0xf]
      %v2885 = vld [vmem:[%s2883 + $0x4] sm:$0xf]
      %v2886 = vld [vmem:[%s2883 + $0x8] sm:$0xf]
      %v2887 = vld [vmem:[%s2883 + $0xc] sm:$0xf]
      %v2888 = vld [vmem:[%s2883 + $0x10] sm:$0xf]
      %v2889 = vld [vmem:[%s2883 + $0x14] sm:$0xf]
      %v2890 = vld [vmem:[%s2883 + $0x18] sm:$0xf]
      %v2891 = vld [vmem:[%s2883 + $0x1c] sm:$0xf]
      %v2892 = vld [vmem:[%s2883 + $0x20] sm:$0xf]
      %v2893 = vld [vmem:[%s2883 + $0x24] sm:$0xf]
      %v2894 = vld [vmem:[%s2883 + $0x28] sm:$0xf]
      %v2895 = vld [vmem:[%s2883 + $0x2c] sm:$0xf]
      %v2896 = vld [vmem:[%s2883 + $0x30] sm:$0xf]
      %v2897 = vld [vmem:[%s2883 + $0x34] sm:$0xf]
      %v2898 = vld [vmem:[%s2883 + $0x38] sm:$0xf]
      %v2899 = vld [vmem:[%s2883 + $0x3c] sm:$0xf]
      %v2916 = vunpack.c.l.b16 %v2884
      %v2917 = vunpack.c.l.b16 %v2885
      %v2918 = vunpack.c.l.b16 %v2886
      %v2919 = vunpack.c.l.b16 %v2887
      %v2920 = vunpack.c.l.b16 %v2888
      %v2921 = vunpack.c.l.b16 %v2889
      %v2922 = vunpack.c.l.b16 %v2890
      %v2923 = vunpack.c.l.b16 %v2891
      %v2924 = vunpack.c.l.b16 %v2892
      %v2925 = vunpack.c.l.b16 %v2893
      %v2926 = vunpack.c.l.b16 %v2894
      %v2927 = vunpack.c.l.b16 %v2895
      %v2928 = vunpack.c.l.b16 %v2896
      %v2929 = vunpack.c.l.b16 %v2897
      %v2930 = vunpack.c.l.b16 %v2898
      %v2931 = vunpack.c.l.b16 %v2899
      %v2932 = vpack.c.b16 %v2917, %v2916
      %v2933 = vpack.c.b16 %v2919, %v2918
      %v2934 = vpack.c.b16 %v2921, %v2920
      %v2935 = vpack.c.b16 %v2923, %v2922
      %v2936 = vpack.c.b16 %v2925, %v2924
      %v2937 = vpack.c.b16 %v2927, %v2926
      %v2938 = vpack.c.b16 %v2929, %v2928
      %v2939 = vpack.c.b16 %v2931, %v2930
      %2948 = vmatprep.subr.bf16.mxu0 0
      %2949 = vmatpush1.bf16.msra.mxu0 %v2932
      %2950 = vmatprep.subr.bf16.mxu0 0
      %2951 = vmatpush1.bf16.msra.mxu0 %v2933
      %2952 = vmatprep.subr.bf16.mxu0 0
      %2953 = vmatpush1.bf16.msra.mxu0 %v2934
      %2954 = vmatprep.subr.bf16.mxu0 0
      %2955 = vmatpush1.bf16.msra.mxu0 %v2935
      %2956 = vmatprep.subr.bf16.mxu0 0
      %2957 = vmatpush1.bf16.msra.mxu0 %v2936
      %2958 = vmatprep.subr.bf16.mxu0 0
      %2959 = vmatpush1.bf16.msra.mxu0 %v2937
      %2960 = vmatprep.subr.bf16.mxu0 0
      %2961 = vmatpush1.bf16.msra.mxu0 %v2938
      %2962 = vmatprep.subr.bf16.mxu0 0
      %2963 = vmatpush1.bf16.msra.mxu0 %v2939
      %2964 = vmatprep.subr.bf16.mxu0 0
      %2965 = vmatpush1.bf16.msra.mxu0 0
      %2966 = vmatprep.subr.bf16.mxu0 0
      %2967 = vmatpush1.bf16.msra.mxu0 0
      %2968 = vmatprep.subr.bf16.mxu0 0
      %2969 = vmatpush1.bf16.msra.mxu0 0
      %2970 = vmatprep.subr.bf16.mxu0 0
      %2971 = vmatpush1.bf16.msra.mxu0 0
      %2972 = vmatprep.subr.bf16.mxu0 0
      %2973 = vmatpush1.bf16.msra.mxu0 0
      %2974 = vmatprep.subr.bf16.mxu0 0
      %2975 = vmatpush1.bf16.msra.mxu0 0
      %2976 = vmatprep.subr.bf16.mxu0 0
      %2977 = vmatpush1.bf16.msra.mxu0 0
      %2978 = vmatprep.subr.bf16.mxu0 0
      %2979 = vmatpush1.bf16.msra.mxu0 0
      %2980 = vmatprep.mubr.bf16.mxu0 0
      %2981 = vmatmul.mubr.bf16.gmra.mrb[0].mxu0 %v1078
      %v2982 = vpop.f32.mrb[0].mxu0
      %v2983 = vadd.f32 0.0, %v2982
      %v2984 = vpop.f32.mrb[0].mxu0
      %v2985 = vpop.f32.mrb[0].mxu0
      %v2986 = vadd.f32 0.0, %v2985
      %v2987 = vpop.f32.mrb[0].mxu0
      %2988 = vmatprep.mubr.bf16.mxu0 0
      %2989 = vmatmul.mubr.bf16.gmra.mrb[0].mxu0 %v1090
      %v2990 = vpop.f32.mrb[0].mxu0
      %v2991 = vadd.f32 0.0, %v2990
      %v2992 = vpop.f32.mrb[0].mxu0
      %v2993 = vpop.f32.mrb[0].mxu0
      %v2994 = vadd.f32 0.0, %v2993
      %v2995 = vpop.f32.mrb[0].mxu0
      %2996 = vmatprep.mubr.bf16.mxu0 0
      %2997 = vmatmul.mubr.bf16.gmra.mrb[0].mxu0 %v1102
      %v2998 = vpop.f32.mrb[0].mxu0
      %v2999 = vadd.f32 0.0, %v2998
      %v3000 = vpop.f32.mrb[0].mxu0
      %v3001 = vpop.f32.mrb[0].mxu0
      %v3002 = vadd.f32 0.0, %v3001
      %v3003 = vpop.f32.mrb[0].mxu0
      %3004 = vmatprep.mubr.bf16.mxu0 0
      %3005 = vmatmul.mubr.bf16.gmra.mrb[0].mxu0 %v1114
      %v3006 = vpop.f32.mrb[0].mxu0
      %v3007 = vadd.f32 0.0, %v3006
      %v3008 = vpop.f32.mrb[0].mxu0
      %v3009 = vpop.f32.mrb[0].mxu0
      %v3010 = vadd.f32 0.0, %v3009
      %v3011 = vpop.f32.mrb[0].mxu0
      %3012 = vmatprep.mubr.bf16.mxu0 0
      %3013 = vmatmul.mubr.bf16.gmra.mrb[0].mxu0 %v1126
      %v3014 = vpop.f32.mrb[0].mxu0
      %v3015 = vadd.f32 0.0, %v3014
      %v3016 = vpop.f32.mrb[0].mxu0
      %v3017 = vpop.f32.mrb[0].mxu0
      %v3018 = vadd.f32 0.0, %v3017
      %v3019 = vpop.f32.mrb[0].mxu0
      %3020 = vmatprep.mubr.bf16.mxu0 0
      %3021 = vmatmul.mubr.bf16.gmra.mrb[0].mxu0 %v1138
      %v3022 = vpop.f32.mrb[0].mxu0
      %v3023 = vadd.f32 0.0, %v3022
      %v3024 = vpop.f32.mrb[0].mxu0
      %v3025 = vpop.f32.mrb[0].mxu0
      %v3026 = vadd.f32 0.0, %v3025
      %v3027 = vpop.f32.mrb[0].mxu0
      %3028 = vmatprep.mubr.bf16.mxu0 0
      %3029 = vmatmul.mubr.bf16.gmra.mrb[0].mxu0 %v1150
      %v3030 = vpop.f32.mrb[0].mxu0
      %v3031 = vadd.f32 0.0, %v3030
      %v3032 = vpop.f32.mrb[0].mxu0
      %v3033 = vpop.f32.mrb[0].mxu0
      %v3034 = vadd.f32 0.0, %v3033
      %v3035 = vpop.f32.mrb[0].mxu0
      %3036 = vmatprep.mubr.bf16.mxu0 0
      %3037 = vmatmul.mubr.bf16.gmra.mrb[0].mxu0 %v1162
      %v3038 = vpop.f32.mrb[0].mxu0
      %v3039 = vadd.f32 0.0, %v3038
      %v3040 = vpop.f32.mrb[0].mxu0
      %v3041 = vpop.f32.mrb[0].mxu0
      %v3042 = vadd.f32 0.0, %v3041
      %v3043 = vpop.f32.mrb[0].mxu0
      %3044 = vmatprep.mubr.bf16.mxu0 0
      %3045 = vmatmul.mubr.bf16.gmra.mrb[0].mxu0 %v1174
      %v3046 = vpop.f32.mrb[0].mxu0
      %v3047 = vadd.f32 0.0, %v3046
      %v3048 = vpop.f32.mrb[0].mxu0
      %v3049 = vpop.f32.mrb[0].mxu0
      %v3050 = vadd.f32 0.0, %v3049
      %v3051 = vpop.f32.mrb[0].mxu0
      %3052 = vmatprep.mubr.bf16.mxu0 0
      %3053 = vmatmul.mubr.bf16.gmra.mrb[0].mxu0 %v2857
      %v3054 = vpop.f32.mrb[0].mxu0
      %v3055 = vadd.f32 0.0, %v3054
      %v3056 = vpop.f32.mrb[0].mxu0
      %v3057 = vpop.f32.mrb[0].mxu0
      %v3058 = vadd.f32 0.0, %v3057
      %v3059 = vpop.f32.mrb[0].mxu0
      %3060 = vdwg.mxu0
      %v3061 = vadd.f32 %v2826, %v2983
      %v3062 = vadd.f32 %v2827, %v2986
      %v3063 = vadd.f32 %v2828, %v2991
      %v3064 = vadd.f32 %v2829, %v2994
      %v3065 = vadd.f32 %v2830, %v2999
      %v3066 = vadd.f32 %v2831, %v3002
      %v3067 = vadd.f32 %v2832, %v3007
      %v3068 = vadd.f32 %v2833, %v3010
      %v3069 = vadd.f32 %v2834, %v3015
      %v3070 = vadd.f32 %v2835, %v3018
      %v3071 = vadd.f32 %v2836, %v3023
      %v3072 = vadd.f32 %v2837, %v3026
      %v3073 = vadd.f32 %v2838, %v3031
      %v3074 = vadd.f32 %v2839, %v3034
      %v3075 = vadd.f32 %v2840, %v3039
      %v3076 = vadd.f32 %v2841, %v3042
      %v3077 = vadd.f32 %v2842, %v3047
      %v3078 = vadd.f32 %v2843, %v3050
      %v3079 = vadd.f32 %v2844, %v3055
      %v3080 = vadd.f32 %v2845, %v3058
      %s3081 = scalar_lea.vmem %s3, 256
      %v3082 = vld [vmem:[%s3081] sm:$0xf]
      %v3083 = vld [vmem:[%s3081 + $0x4] sm:$0xf]
      %v3084 = vld [vmem:[%s3081 + $0x8] sm:$0xf]
      %v3085 = vld [vmem:[%s3081 + $0xc] sm:$0xf]
      %v3086 = vld [vmem:[%s3081 + $0x10] sm:$0xf]
      %v3087 = vld [vmem:[%s3081 + $0x14] sm:$0xf]
      %v3088 = vld [vmem:[%s3081 + $0x18] sm:$0xf]
      %v3089 = vld [vmem:[%s3081 + $0x1c] sm:$0xf]
      %v3090 = vld [vmem:[%s3081 + $0x20] sm:$0xf]
      %v3091 = vld [vmem:[%s3081 + $0x24] sm:$0xf]
      %v3092 = vld [vmem:[%s3081 + $0x28] sm:$0xf]
      %v3093 = vld [vmem:[%s3081 + $0x2c] sm:$0xf]
      %v3094 = vld [vmem:[%s3081 + $0x30] sm:$0xf]
      %v3095 = vld [vmem:[%s3081 + $0x34] sm:$0xf]
      %v3096 = vld [vmem:[%s3081 + $0x38] sm:$0xf]
      %v3097 = vld [vmem:[%s3081 + $0x3c] sm:$0xf]
      %v3098 = vunpack.c.l.b16 %v2872
      %v3099 = vunpack.c.l.b16 %v2882
      %v3100 = vpack.c.b16 %v3099, %v3098
      %v3118 = vunpack.c.l.b16 %v3082
      %v3119 = vunpack.c.l.b16 %v3083
      %v3120 = vunpack.c.l.b16 %v3084
      %v3121 = vunpack.c.l.b16 %v3085
      %v3122 = vunpack.c.l.b16 %v3086
      %v3123 = vunpack.c.l.b16 %v3087
      %v3124 = vunpack.c.l.b16 %v3088
      %v3125 = vunpack.c.l.b16 %v3089
      %v3126 = vunpack.c.l.b16 %v3090
      %v3127 = vunpack.c.l.b16 %v3091
      %v3128 = vunpack.c.l.b16 %v3092
      %v3129 = vunpack.c.l.b16 %v3093
      %v3130 = vunpack.c.l.b16 %v3094
      %v3131 = vunpack.c.l.b16 %v3095
      %v3132 = vunpack.c.l.b16 %v3096
      %v3133 = vunpack.c.l.b16 %v3097
      %v3134 = vpack.c.b16 %v3119, %v3118
      %v3135 = vpack.c.b16 %v3121, %v3120
      %v3136 = vpack.c.b16 %v3123, %v3122
      %v3137 = vpack.c.b16 %v3125, %v3124
      %v3138 = vpack.c.b16 %v3127, %v3126
      %v3139 = vpack.c.b16 %v3129, %v3128
      %v3140 = vpack.c.b16 %v3131, %v3130
      %v3141 = vpack.c.b16 %v3133, %v3132
      %3150 = vmatprep.subr.bf16.mxu0 0
      %3151 = vmatpush1.bf16.msra.mxu0 %v3134
      %3152 = vmatprep.subr.bf16.mxu0 0
      %3153 = vmatpush1.bf16.msra.mxu0 %v3135
      %3154 = vmatprep.subr.bf16.mxu0 0
      %3155 = vmatpush1.bf16.msra.mxu0 %v3136
      %3156 = vmatprep.subr.bf16.mxu0 0
      %3157 = vmatpush1.bf16.msra.mxu0 %v3137
      %3158 = vmatprep.subr.bf16.mxu0 0
      %3159 = vmatpush1.bf16.msra.mxu0 %v3138
      %3160 = vmatprep.subr.bf16.mxu0 0
      %3161 = vmatpush1.bf16.msra.mxu0 %v3139
      %3162 = vmatprep.subr.bf16.mxu0 0
      %3163 = vmatpush1.bf16.msra.mxu0 %v3140
      %3164 = vmatprep.subr.bf16.mxu0 0
      %3165 = vmatpush1.bf16.msra.mxu0 %v3141
      %3166 = vmatprep.subr.bf16.mxu0 0
      %3167 = vmatpush1.bf16.msra.mxu0 0
      %3168 = vmatprep.subr.bf16.mxu0 0
      %3169 = vmatpush1.bf16.msra.mxu0 0
      %3170 = vmatprep.subr.bf16.mxu0 0
      %3171 = vmatpush1.bf16.msra.mxu0 0
      %3172 = vmatprep.subr.bf16.mxu0 0
      %3173 = vmatpush1.bf16.msra.mxu0 0
      %3174 = vmatprep.subr.bf16.mxu0 0
      %3175 = vmatpush1.bf16.msra.mxu0 0
      %3176 = vmatprep.subr.bf16.mxu0 0
      %3177 = vmatpush1.bf16.msra.mxu0 0
      %3178 = vmatprep.subr.bf16.mxu0 0
      %3179 = vmatpush1.bf16.msra.mxu0 0
      %3180 = vmatprep.subr.bf16.mxu0 0
      %3181 = vmatpush1.bf16.msra.mxu0 0
      %3182 = vmatprep.mubr.bf16.mxu0 0
      %3183 = vmatmul.mubr.bf16.gmra.mrb[0].mxu0 %v1664
      %v3184 = vpop.f32.mrb[0].mxu0
      %v3185 = vadd.f32 0.0, %v3184
      %v3186 = vpop.f32.mrb[0].mxu0
      %v3187 = vpop.f32.mrb[0].mxu0
      %v3188 = vadd.f32 0.0, %v3187
      %v3189 = vpop.f32.mrb[0].mxu0
      %3190 = vmatprep.mubr.bf16.mxu0 0
      %3191 = vmatmul.mubr.bf16.gmra.mrb[0].mxu0 %v1665
      %v3192 = vpop.f32.mrb[0].mxu0
      %v3193 = vadd.f32 0.0, %v3192
      %v3194 = vpop.f32.mrb[0].mxu0
      %v3195 = vpop.f32.mrb[0].mxu0
      %v3196 = vadd.f32 0.0, %v3195
      %v3197 = vpop.f32.mrb[0].mxu0
      %3198 = vmatprep.mubr.bf16.mxu0 0
      %3199 = vmatmul.mubr.bf16.gmra.mrb[0].mxu0 %v1666
      %v3200 = vpop.f32.mrb[0].mxu0
      %v3201 = vadd.f32 0.0, %v3200
      %v3202 = vpop.f32.mrb[0].mxu0
      %v3203 = vpop.f32.mrb[0].mxu0
      %v3204 = vadd.f32 0.0, %v3203
      %v3205 = vpop.f32.mrb[0].mxu0
      %3206 = vmatprep.mubr.bf16.mxu0 0
      %3207 = vmatmul.mubr.bf16.gmra.mrb[0].mxu0 %v1667
      %v3208 = vpop.f32.mrb[0].mxu0
      %v3209 = vadd.f32 0.0, %v3208
      %v3210 = vpop.f32.mrb[0].mxu0
      %v3211 = vpop.f32.mrb[0].mxu0
      %v3212 = vadd.f32 0.0, %v3211
      %v3213 = vpop.f32.mrb[0].mxu0
      %3214 = vmatprep.mubr.bf16.mxu0 0
      %3215 = vmatmul.mubr.bf16.gmra.mrb[0].mxu0 %v1668
      %v3216 = vpop.f32.mrb[0].mxu0
      %v3217 = vadd.f32 0.0, %v3216
      %v3218 = vpop.f32.mrb[0].mxu0
      %v3219 = vpop.f32.mrb[0].mxu0
      %v3220 = vadd.f32 0.0, %v3219
      %v3221 = vpop.f32.mrb[0].mxu0
      %3222 = vmatprep.mubr.bf16.mxu0 0
      %3223 = vmatmul.mubr.bf16.gmra.mrb[0].mxu0 %v1669
      %v3224 = vpop.f32.mrb[0].mxu0
      %v3225 = vadd.f32 0.0, %v3224
      %v3226 = vpop.f32.mrb[0].mxu0
      %v3227 = vpop.f32.mrb[0].mxu0
      %v3228 = vadd.f32 0.0, %v3227
      %v3229 = vpop.f32.mrb[0].mxu0
      %3230 = vmatprep.mubr.bf16.mxu0 0
      %3231 = vmatmul.mubr.bf16.gmra.mrb[0].mxu0 %v1670
      %v3232 = vpop.f32.mrb[0].mxu0
      %v3233 = vadd.f32 0.0, %v3232
      %v3234 = vpop.f32.mrb[0].mxu0
      %v3235 = vpop.f32.mrb[0].mxu0
      %v3236 = vadd.f32 0.0, %v3235
      %v3237 = vpop.f32.mrb[0].mxu0
      %3238 = vmatprep.mubr.bf16.mxu0 0
      %3239 = vmatmul.mubr.bf16.gmra.mrb[0].mxu0 %v1671
      %v3240 = vpop.f32.mrb[0].mxu0
      %v3241 = vadd.f32 0.0, %v3240
      %v3242 = vpop.f32.mrb[0].mxu0
      %v3243 = vpop.f32.mrb[0].mxu0
      %v3244 = vadd.f32 0.0, %v3243
      %v3245 = vpop.f32.mrb[0].mxu0
      %3246 = vmatprep.mubr.bf16.mxu0 0
      %3247 = vmatmul.mubr.bf16.gmra.mrb[0].mxu0 %v1672
      %v3248 = vpop.f32.mrb[0].mxu0
      %v3249 = vadd.f32 0.0, %v3248
      %v3250 = vpop.f32.mrb[0].mxu0
      %v3251 = vpop.f32.mrb[0].mxu0
      %v3252 = vadd.f32 0.0, %v3251
      %v3253 = vpop.f32.mrb[0].mxu0
      %3254 = vmatprep.mubr.bf16.mxu0 0
      %3255 = vmatmul.mubr.bf16.gmra.mrb[0].mxu0 %v3100
      %v3256 = vpop.f32.mrb[0].mxu0
      %v3257 = vadd.f32 0.0, %v3256
      %v3258 = vpop.f32.mrb[0].mxu0
      %v3259 = vpop.f32.mrb[0].mxu0
      %v3260 = vadd.f32 0.0, %v3259
      %v3261 = vpop.f32.mrb[0].mxu0
      %3262 = vdwg.mxu0
      %v3263 = vadd.f32 %v3061, %v3185
      %v3264 = vadd.f32 %v3062, %v3188
      %v3265 = vadd.f32 %v3063, %v3193
      %v3266 = vadd.f32 %v3064, %v3196
      %v3267 = vadd.f32 %v3065, %v3201
      %v3268 = vadd.f32 %v3066, %v3204
      %v3269 = vadd.f32 %v3067, %v3209
      %v3270 = vadd.f32 %v3068, %v3212
      %v3271 = vadd.f32 %v3069, %v3217
      %v3272 = vadd.f32 %v3070, %v3220
      %v3273 = vadd.f32 %v3071, %v3225
      %v3274 = vadd.f32 %v3072, %v3228
      %v3275 = vadd.f32 %v3073, %v3233
      %v3276 = vadd.f32 %v3074, %v3236
      %v3277 = vadd.f32 %v3075, %v3241
      %v3278 = vadd.f32 %v3076, %v3244
      %v3279 = vadd.f32 %v3077, %v3249
      %v3280 = vadd.f32 %v3078, %v3252
      %v3281 = vadd.f32 %v3079, %v3257
      %v3282 = vadd.f32 %v3080, %v3260
      %v3285 = vrot.slane %v600, 1
      %v3286 = vrot.slane %v601, 1
      %v3287 = vsel %vm1884, %v3285, %v3286
      %v3290 = vrot.slane %v634, 5
      %v3291 = vrot.slane %v3290, 4
      %v3292 = vrot.slane %v635, 5
      %v3293 = vsel %vm1937, %v3291, %v3292
      %v3294 = vrot.slane %v3292, 4
      %v3295 = vrot.slane %v636, 5
      %v3296 = vsel %vm1937, %v3294, %v3295
      %s3297 = scalar_lea.vmem %s2, 320
      %v3298 = vld [vmem:[%s3297] sm:$0xf]
      %v3299 = vld [vmem:[%s3297 + $0x4] sm:$0xf]
      %v3300 = vld [vmem:[%s3297 + $0x8] sm:$0xf]
      %v3301 = vld [vmem:[%s3297 + $0xc] sm:$0xf]
      %v3302 = vld [vmem:[%s3297 + $0x10] sm:$0xf]
      %v3303 = vld [vmem:[%s3297 + $0x14] sm:$0xf]
      %v3304 = vld [vmem:[%s3297 + $0x18] sm:$0xf]
      %v3305 = vld [vmem:[%s3297 + $0x1c] sm:$0xf]
      %v3306 = vld [vmem:[%s3297 + $0x20] sm:$0xf]
      %v3307 = vld [vmem:[%s3297 + $0x24] sm:$0xf]
      %v3308 = vld [vmem:[%s3297 + $0x28] sm:$0xf]
      %v3309 = vld [vmem:[%s3297 + $0x2c] sm:$0xf]
      %v3310 = vld [vmem:[%s3297 + $0x30] sm:$0xf]
      %v3311 = vld [vmem:[%s3297 + $0x34] sm:$0xf]
      %v3312 = vld [vmem:[%s3297 + $0x38] sm:$0xf]
      %v3313 = vld [vmem:[%s3297 + $0x3c] sm:$0xf]
      %v3330 = vunpack.c.l.b16 %v3298
      %v3331 = vunpack.c.l.b16 %v3299
      %v3332 = vunpack.c.l.b16 %v3300
      %v3333 = vunpack.c.l.b16 %v3301
      %v3334 = vunpack.c.l.b16 %v3302
      %v3335 = vunpack.c.l.b16 %v3303
      %v3336 = vunpack.c.l.b16 %v3304
      %v3337 = vunpack.c.l.b16 %v3305
      %v3338 = vunpack.c.l.b16 %v3306
      %v3339 = vunpack.c.l.b16 %v3307
      %v3340 = vunpack.c.l.b16 %v3308
      %v3341 = vunpack.c.l.b16 %v3309
      %v3342 = vunpack.c.l.b16 %v3310
      %v3343 = vunpack.c.l.b16 %v3311
      %v3344 = vunpack.c.l.b16 %v3312
      %v3345 = vunpack.c.l.b16 %v3313
      %v3346 = vpack.c.b16 %v3331, %v3330
      %v3347 = vpack.c.b16 %v3333, %v3332
      %v3348 = vpack.c.b16 %v3335, %v3334
      %v3349 = vpack.c.b16 %v3337, %v3336
      %v3350 = vpack.c.b16 %v3339, %v3338
      %v3351 = vpack.c.b16 %v3341, %v3340
      %v3352 = vpack.c.b16 %v3343, %v3342
      %v3353 = vpack.c.b16 %v3345, %v3344
      %3362 = vmatprep.subr.bf16.mxu0 0
      %3363 = vmatpush1.bf16.msra.mxu0 %v3346
      %3364 = vmatprep.subr.bf16.mxu0 0
      %3365 = vmatpush1.bf16.msra.mxu0 %v3347
      %3366 = vmatprep.subr.bf16.mxu0 0
      %3367 = vmatpush1.bf16.msra.mxu0 %v3348
      %3368 = vmatprep.subr.bf16.mxu0 0
      %3369 = vmatpush1.bf16.msra.mxu0 %v3349
      %3370 = vmatprep.subr.bf16.mxu0 0
      %3371 = vmatpush1.bf16.msra.mxu0 %v3350
      %3372 = vmatprep.subr.bf16.mxu0 0
      %3373 = vmatpush1.bf16.msra.mxu0 %v3351
      %3374 = vmatprep.subr.bf16.mxu0 0
      %3375 = vmatpush1.bf16.msra.mxu0 %v3352
      %3376 = vmatprep.subr.bf16.mxu0 0
      %3377 = vmatpush1.bf16.msra.mxu0 %v3353
      %3378 = vmatprep.subr.bf16.mxu0 0
      %3379 = vmatpush1.bf16.msra.mxu0 0
      %3380 = vmatprep.subr.bf16.mxu0 0
      %3381 = vmatpush1.bf16.msra.mxu0 0
      %3382 = vmatprep.subr.bf16.mxu0 0
      %3383 = vmatpush1.bf16.msra.mxu0 0
      %3384 = vmatprep.subr.bf16.mxu0 0
      %3385 = vmatpush1.bf16.msra.mxu0 0
      %3386 = vmatprep.subr.bf16.mxu0 0
      %3387 = vmatpush1.bf16.msra.mxu0 0
      %3388 = vmatprep.subr.bf16.mxu0 0
      %3389 = vmatpush1.bf16.msra.mxu0 0
      %3390 = vmatprep.subr.bf16.mxu0 0
      %3391 = vmatpush1.bf16.msra.mxu0 0
      %3392 = vmatprep.subr.bf16.mxu0 0
      %3393 = vmatpush1.bf16.msra.mxu0 0
      %3394 = vmatprep.mubr.bf16.mxu0 0
      %3395 = vmatmul.mubr.bf16.gmra.mrb[0].mxu0 %v1890
      %v3396 = vpop.f32.mrb[0].mxu0
      %v3397 = vadd.f32 0.0, %v3396
      %v3398 = vpop.f32.mrb[0].mxu0
      %v3399 = vpop.f32.mrb[0].mxu0
      %v3400 = vadd.f32 0.0, %v3399
      %v3401 = vpop.f32.mrb[0].mxu0
      %3402 = vmatprep.mubr.bf16.mxu0 0
      %3403 = vmatmul.mubr.bf16.gmra.mrb[0].mxu0 %v1893
      %v3404 = vpop.f32.mrb[0].mxu0
      %v3405 = vadd.f32 0.0, %v3404
      %v3406 = vpop.f32.mrb[0].mxu0
      %v3407 = vpop.f32.mrb[0].mxu0
      %v3408 = vadd.f32 0.0, %v3407
      %v3409 = vpop.f32.mrb[0].mxu0
      %3410 = vmatprep.mubr.bf16.mxu0 0
      %3411 = vmatmul.mubr.bf16.gmra.mrb[0].mxu0 %v1896
      %v3412 = vpop.f32.mrb[0].mxu0
      %v3413 = vadd.f32 0.0, %v3412
      %v3414 = vpop.f32.mrb[0].mxu0
      %v3415 = vpop.f32.mrb[0].mxu0
      %v3416 = vadd.f32 0.0, %v3415
      %v3417 = vpop.f32.mrb[0].mxu0
      %3418 = vmatprep.mubr.bf16.mxu0 0
      %3419 = vmatmul.mubr.bf16.gmra.mrb[0].mxu0 %v1899
      %v3420 = vpop.f32.mrb[0].mxu0
      %v3421 = vadd.f32 0.0, %v3420
      %v3422 = vpop.f32.mrb[0].mxu0
      %v3423 = vpop.f32.mrb[0].mxu0
      %v3424 = vadd.f32 0.0, %v3423
      %v3425 = vpop.f32.mrb[0].mxu0
      %3426 = vmatprep.mubr.bf16.mxu0 0
      %3427 = vmatmul.mubr.bf16.gmra.mrb[0].mxu0 %v1902
      %v3428 = vpop.f32.mrb[0].mxu0
      %v3429 = vadd.f32 0.0, %v3428
      %v3430 = vpop.f32.mrb[0].mxu0
      %v3431 = vpop.f32.mrb[0].mxu0
      %v3432 = vadd.f32 0.0, %v3431
      %v3433 = vpop.f32.mrb[0].mxu0
      %3434 = vmatprep.mubr.bf16.mxu0 0
      %3435 = vmatmul.mubr.bf16.gmra.mrb[0].mxu0 %v1905
      %v3436 = vpop.f32.mrb[0].mxu0
      %v3437 = vadd.f32 0.0, %v3436
      %v3438 = vpop.f32.mrb[0].mxu0
      %v3439 = vpop.f32.mrb[0].mxu0
      %v3440 = vadd.f32 0.0, %v3439
      %v3441 = vpop.f32.mrb[0].mxu0
      %3442 = vmatprep.mubr.bf16.mxu0 0
      %3443 = vmatmul.mubr.bf16.gmra.mrb[0].mxu0 %v1908
      %v3444 = vpop.f32.mrb[0].mxu0
      %v3445 = vadd.f32 0.0, %v3444
      %v3446 = vpop.f32.mrb[0].mxu0
      %v3447 = vpop.f32.mrb[0].mxu0
      %v3448 = vadd.f32 0.0, %v3447
      %v3449 = vpop.f32.mrb[0].mxu0
      %3450 = vmatprep.mubr.bf16.mxu0 0
      %3451 = vmatmul.mubr.bf16.gmra.mrb[0].mxu0 %v1911
      %v3452 = vpop.f32.mrb[0].mxu0
      %v3453 = vadd.f32 0.0, %v3452
      %v3454 = vpop.f32.mrb[0].mxu0
      %v3455 = vpop.f32.mrb[0].mxu0
      %v3456 = vadd.f32 0.0, %v3455
      %v3457 = vpop.f32.mrb[0].mxu0
      %3458 = vmatprep.mubr.bf16.mxu0 0
      %3459 = vmatmul.mubr.bf16.gmra.mrb[0].mxu0 %v1914
      %v3460 = vpop.f32.mrb[0].mxu0
      %v3461 = vadd.f32 0.0, %v3460
      %v3462 = vpop.f32.mrb[0].mxu0
      %v3463 = vpop.f32.mrb[0].mxu0
      %v3464 = vadd.f32 0.0, %v3463
      %v3465 = vpop.f32.mrb[0].mxu0
      %3466 = vmatprep.mubr.bf16.mxu0 0
      %3467 = vmatmul.mubr.bf16.gmra.mrb[0].mxu0 %v3287
      %v3468 = vpop.f32.mrb[0].mxu0
      %v3469 = vadd.f32 0.0, %v3468
      %v3470 = vpop.f32.mrb[0].mxu0
      %v3471 = vpop.f32.mrb[0].mxu0
      %v3472 = vadd.f32 0.0, %v3471
      %v3473 = vpop.f32.mrb[0].mxu0
      %3474 = vdwg.mxu0
      %v3475 = vadd.f32 %v3263, %v3397
      %v3476 = vadd.f32 %v3264, %v3400
      %v3477 = vadd.f32 %v3265, %v3405
      %v3478 = vadd.f32 %v3266, %v3408
      %v3479 = vadd.f32 %v3267, %v3413
      %v3480 = vadd.f32 %v3268, %v3416
      %v3481 = vadd.f32 %v3269, %v3421
      %v3482 = vadd.f32 %v3270, %v3424
      %v3483 = vadd.f32 %v3271, %v3429
      %v3484 = vadd.f32 %v3272, %v3432
      %v3485 = vadd.f32 %v3273, %v3437
      %v3486 = vadd.f32 %v3274, %v3440
      %v3487 = vadd.f32 %v3275, %v3445
      %v3488 = vadd.f32 %v3276, %v3448
      %v3489 = vadd.f32 %v3277, %v3453
      %v3490 = vadd.f32 %v3278, %v3456
      %v3491 = vadd.f32 %v3279, %v3461
      %v3492 = vadd.f32 %v3280, %v3464
      %v3493 = vadd.f32 %v3281, %v3469
      %v3494 = vadd.f32 %v3282, %v3472
      %s3495 = scalar_lea.vmem %s3, 320
      %v3496 = vld [vmem:[%s3495] sm:$0xf]
      %v3497 = vld [vmem:[%s3495 + $0x4] sm:$0xf]
      %v3498 = vld [vmem:[%s3495 + $0x8] sm:$0xf]
      %v3499 = vld [vmem:[%s3495 + $0xc] sm:$0xf]
      %v3500 = vld [vmem:[%s3495 + $0x10] sm:$0xf]
      %v3501 = vld [vmem:[%s3495 + $0x14] sm:$0xf]
      %v3502 = vld [vmem:[%s3495 + $0x18] sm:$0xf]
      %v3503 = vld [vmem:[%s3495 + $0x1c] sm:$0xf]
      %v3504 = vld [vmem:[%s3495 + $0x20] sm:$0xf]
      %v3505 = vld [vmem:[%s3495 + $0x24] sm:$0xf]
      %v3506 = vld [vmem:[%s3495 + $0x28] sm:$0xf]
      %v3507 = vld [vmem:[%s3495 + $0x2c] sm:$0xf]
      %v3508 = vld [vmem:[%s3495 + $0x30] sm:$0xf]
      %v3509 = vld [vmem:[%s3495 + $0x34] sm:$0xf]
      %v3510 = vld [vmem:[%s3495 + $0x38] sm:$0xf]
      %v3511 = vld [vmem:[%s3495 + $0x3c] sm:$0xf]
      %v3512 = vunpack.c.l.b16 %v3293
      %v3513 = vunpack.c.l.b16 %v3296
      %v3514 = vpack.c.b16 %v3513, %v3512
      %v3532 = vunpack.c.l.b16 %v3496
      %v3533 = vunpack.c.l.b16 %v3497
      %v3534 = vunpack.c.l.b16 %v3498
      %v3535 = vunpack.c.l.b16 %v3499
      %v3536 = vunpack.c.l.b16 %v3500
      %v3537 = vunpack.c.l.b16 %v3501
      %v3538 = vunpack.c.l.b16 %v3502
      %v3539 = vunpack.c.l.b16 %v3503
      %v3540 = vunpack.c.l.b16 %v3504
      %v3541 = vunpack.c.l.b16 %v3505
      %v3542 = vunpack.c.l.b16 %v3506
      %v3543 = vunpack.c.l.b16 %v3507
      %v3544 = vunpack.c.l.b16 %v3508
      %v3545 = vunpack.c.l.b16 %v3509
      %v3546 = vunpack.c.l.b16 %v3510
      %v3547 = vunpack.c.l.b16 %v3511
      %v3548 = vpack.c.b16 %v3533, %v3532
      %v3549 = vpack.c.b16 %v3535, %v3534
      %v3550 = vpack.c.b16 %v3537, %v3536
      %v3551 = vpack.c.b16 %v3539, %v3538
      %v3552 = vpack.c.b16 %v3541, %v3540
      %v3553 = vpack.c.b16 %v3543, %v3542
      %v3554 = vpack.c.b16 %v3545, %v3544
      %v3555 = vpack.c.b16 %v3547, %v3546
      %3564 = vmatprep.subr.bf16.mxu0 0
      %3565 = vmatpush1.bf16.msra.mxu0 %v3548
      %3566 = vmatprep.subr.bf16.mxu0 0
      %3567 = vmatpush1.bf16.msra.mxu0 %v3549
      %3568 = vmatprep.subr.bf16.mxu0 0
      %3569 = vmatpush1.bf16.msra.mxu0 %v3550
      %3570 = vmatprep.subr.bf16.mxu0 0
      %3571 = vmatpush1.bf16.msra.mxu0 %v3551
      %3572 = vmatprep.subr.bf16.mxu0 0
      %3573 = vmatpush1.bf16.msra.mxu0 %v3552
      %3574 = vmatprep.subr.bf16.mxu0 0
      %3575 = vmatpush1.bf16.msra.mxu0 %v3553
      %3576 = vmatprep.subr.bf16.mxu0 0
      %3577 = vmatpush1.bf16.msra.mxu0 %v3554
      %3578 = vmatprep.subr.bf16.mxu0 0
      %3579 = vmatpush1.bf16.msra.mxu0 %v3555
      %3580 = vmatprep.subr.bf16.mxu0 0
      %3581 = vmatpush1.bf16.msra.mxu0 0
      %3582 = vmatprep.subr.bf16.mxu0 0
      %3583 = vmatpush1.bf16.msra.mxu0 0
      %3584 = vmatprep.subr.bf16.mxu0 0
      %3585 = vmatpush1.bf16.msra.mxu0 0
      %3586 = vmatprep.subr.bf16.mxu0 0
      %3587 = vmatpush1.bf16.msra.mxu0 0
      %3588 = vmatprep.subr.bf16.mxu0 0
      %3589 = vmatpush1.bf16.msra.mxu0 0
      %3590 = vmatprep.subr.bf16.mxu0 0
      %3591 = vmatpush1.bf16.msra.mxu0 0
      %3592 = vmatprep.subr.bf16.mxu0 0
      %3593 = vmatpush1.bf16.msra.mxu0 0
      %3594 = vmatprep.subr.bf16.mxu0 0
      %3595 = vmatpush1.bf16.msra.mxu0 0
      %3596 = vmatprep.mubr.bf16.mxu0 0
      %3597 = vmatmul.mubr.bf16.gmra.mrb[0].mxu0 %v2244
      %v3598 = vpop.f32.mrb[0].mxu0
      %v3599 = vadd.f32 0.0, %v3598
      %v3600 = vpop.f32.mrb[0].mxu0
      %v3601 = vpop.f32.mrb[0].mxu0
      %v3602 = vadd.f32 0.0, %v3601
      %v3603 = vpop.f32.mrb[0].mxu0
      %3604 = vmatprep.mubr.bf16.mxu0 0
      %3605 = vmatmul.mubr.bf16.gmra.mrb[0].mxu0 %v2245
      %v3606 = vpop.f32.mrb[0].mxu0
      %v3607 = vadd.f32 0.0, %v3606
      %v3608 = vpop.f32.mrb[0].mxu0
      %v3609 = vpop.f32.mrb[0].mxu0
      %v3610 = vadd.f32 0.0, %v3609
      %v3611 = vpop.f32.mrb[0].mxu0
      %3612 = vmatprep.mubr.bf16.mxu0 0
      %3613 = vmatmul.mubr.bf16.gmra.mrb[0].mxu0 %v2246
      %v3614 = vpop.f32.mrb[0].mxu0
      %v3615 = vadd.f32 0.0, %v3614
      %v3616 = vpop.f32.mrb[0].mxu0
      %v3617 = vpop.f32.mrb[0].mxu0
      %v3618 = vadd.f32 0.0, %v3617
      %v3619 = vpop.f32.mrb[0].mxu0
      %3620 = vmatprep.mubr.bf16.mxu0 0
      %3621 = vmatmul.mubr.bf16.gmra.mrb[0].mxu0 %v2247
      %v3622 = vpop.f32.mrb[0].mxu0
      %v3623 = vadd.f32 0.0, %v3622
      %v3624 = vpop.f32.mrb[0].mxu0
      %v3625 = vpop.f32.mrb[0].mxu0
      %v3626 = vadd.f32 0.0, %v3625
      %v3627 = vpop.f32.mrb[0].mxu0
      %3628 = vmatprep.mubr.bf16.mxu0 0
      %3629 = vmatmul.mubr.bf16.gmra.mrb[0].mxu0 %v2248
      %v3630 = vpop.f32.mrb[0].mxu0
      %v3631 = vadd.f32 0.0, %v3630
      %v3632 = vpop.f32.mrb[0].mxu0
      %v3633 = vpop.f32.mrb[0].mxu0
      %v3634 = vadd.f32 0.0, %v3633
      %v3635 = vpop.f32.mrb[0].mxu0
      %3636 = vmatprep.mubr.bf16.mxu0 0
      %3637 = vmatmul.mubr.bf16.gmra.mrb[0].mxu0 %v2249
      %v3638 = vpop.f32.mrb[0].mxu0
      %v3639 = vadd.f32 0.0, %v3638
      %v3640 = vpop.f32.mrb[0].mxu0
      %v3641 = vpop.f32.mrb[0].mxu0
      %v3642 = vadd.f32 0.0, %v3641
      %v3643 = vpop.f32.mrb[0].mxu0
      %3644 = vmatprep.mubr.bf16.mxu0 0
      %3645 = vmatmul.mubr.bf16.gmra.mrb[0].mxu0 %v2250
      %v3646 = vpop.f32.mrb[0].mxu0
      %v3647 = vadd.f32 0.0, %v3646
      %v3648 = vpop.f32.mrb[0].mxu0
      %v3649 = vpop.f32.mrb[0].mxu0
      %v3650 = vadd.f32 0.0, %v3649
      %v3651 = vpop.f32.mrb[0].mxu0
      %3652 = vmatprep.mubr.bf16.mxu0 0
      %3653 = vmatmul.mubr.bf16.gmra.mrb[0].mxu0 %v2251
      %v3654 = vpop.f32.mrb[0].mxu0
      %v3655 = vadd.f32 0.0, %v3654
      %v3656 = vpop.f32.mrb[0].mxu0
      %v3657 = vpop.f32.mrb[0].mxu0
      %v3658 = vadd.f32 0.0, %v3657
      %v3659 = vpop.f32.mrb[0].mxu0
      %3660 = vmatprep.mubr.bf16.mxu0 0
      %3661 = vmatmul.mubr.bf16.gmra.mrb[0].mxu0 %v2252
      %v3662 = vpop.f32.mrb[0].mxu0
      %v3663 = vadd.f32 0.0, %v3662
      %v3664 = vpop.f32.mrb[0].mxu0
      %v3665 = vpop.f32.mrb[0].mxu0
      %v3666 = vadd.f32 0.0, %v3665
      %v3667 = vpop.f32.mrb[0].mxu0
      %3668 = vmatprep.mubr.bf16.mxu0 0
      %3669 = vmatmul.mubr.bf16.gmra.mrb[0].mxu0 %v3514
      %v3670 = vpop.f32.mrb[0].mxu0
      %v3671 = vadd.f32 0.0, %v3670
      %v3672 = vpop.f32.mrb[0].mxu0
      %v3673 = vpop.f32.mrb[0].mxu0
      %v3674 = vadd.f32 0.0, %v3673
      %v3675 = vpop.f32.mrb[0].mxu0
      %3676 = vdwg.mxu0
      %v3677 = vadd.f32 %v3475, %v3599
      %v3678 = vadd.f32 %v3476, %v3602
      %v3679 = vadd.f32 %v3477, %v3607
      %v3680 = vadd.f32 %v3478, %v3610
      %v3681 = vadd.f32 %v3479, %v3615
      %v3682 = vadd.f32 %v3480, %v3618
      %v3683 = vadd.f32 %v3481, %v3623
      %v3684 = vadd.f32 %v3482, %v3626
      %v3685 = vadd.f32 %v3483, %v3631
      %v3686 = vadd.f32 %v3484, %v3634
      %v3687 = vadd.f32 %v3485, %v3639
      %v3688 = vadd.f32 %v3486, %v3642
      %v3689 = vadd.f32 %v3487, %v3647
      %v3690 = vadd.f32 %v3488, %v3650
      %v3691 = vadd.f32 %v3489, %v3655
      %v3692 = vadd.f32 %v3490, %v3658
      %v3693 = vadd.f32 %v3491, %v3663
      %v3694 = vadd.f32 %v3492, %v3666
      %v3695 = vadd.f32 %v3493, %v3671
      %v3696 = vadd.f32 %v3494, %v3674
      %s3697 = scalar_lea.vmem %s2, 384
      %v3698 = vld [vmem:[%s3697] sm:$0xf]
      %v3699 = vld [vmem:[%s3697 + $0x4] sm:$0xf]
      %v3700 = vld [vmem:[%s3697 + $0x8] sm:$0xf]
      %v3701 = vld [vmem:[%s3697 + $0xc] sm:$0xf]
      %v3702 = vld [vmem:[%s3697 + $0x10] sm:$0xf]
      %v3703 = vld [vmem:[%s3697 + $0x14] sm:$0xf]
      %v3704 = vld [vmem:[%s3697 + $0x18] sm:$0xf]
      %v3705 = vld [vmem:[%s3697 + $0x1c] sm:$0xf]
      %v3706 = vld [vmem:[%s3697 + $0x20] sm:$0xf]
      %v3707 = vld [vmem:[%s3697 + $0x24] sm:$0xf]
      %v3708 = vld [vmem:[%s3697 + $0x28] sm:$0xf]
      %v3709 = vld [vmem:[%s3697 + $0x2c] sm:$0xf]
      %v3710 = vld [vmem:[%s3697 + $0x30] sm:$0xf]
      %v3711 = vld [vmem:[%s3697 + $0x34] sm:$0xf]
      %v3712 = vld [vmem:[%s3697 + $0x38] sm:$0xf]
      %v3713 = vld [vmem:[%s3697 + $0x3c] sm:$0xf]
      %v3730 = vunpack.c.l.b16 %v3698
      %v3731 = vunpack.c.l.b16 %v3699
      %v3732 = vunpack.c.l.b16 %v3700
      %v3733 = vunpack.c.l.b16 %v3701
      %v3734 = vunpack.c.l.b16 %v3702
      %v3735 = vunpack.c.l.b16 %v3703
      %v3736 = vunpack.c.l.b16 %v3704
      %v3737 = vunpack.c.l.b16 %v3705
      %v3738 = vunpack.c.l.b16 %v3706
      %v3739 = vunpack.c.l.b16 %v3707
      %v3740 = vunpack.c.l.b16 %v3708
      %v3741 = vunpack.c.l.b16 %v3709
      %v3742 = vunpack.c.l.b16 %v3710
      %v3743 = vunpack.c.l.b16 %v3711
      %v3744 = vunpack.c.l.b16 %v3712
      %v3745 = vunpack.c.l.b16 %v3713
      %v3746 = vpack.c.b16 %v3731, %v3730
      %v3747 = vpack.c.b16 %v3733, %v3732
      %v3748 = vpack.c.b16 %v3735, %v3734
      %v3749 = vpack.c.b16 %v3737, %v3736
      %v3750 = vpack.c.b16 %v3739, %v3738
      %v3751 = vpack.c.b16 %v3741, %v3740
      %v3752 = vpack.c.b16 %v3743, %v3742
      %v3753 = vpack.c.b16 %v3745, %v3744
      %3762 = vmatprep.subr.bf16.mxu0 0
      %3763 = vmatpush1.bf16.msra.mxu0 %v3746
      %3764 = vmatprep.subr.bf16.mxu0 0
      %3765 = vmatpush1.bf16.msra.mxu0 %v3747
      %3766 = vmatprep.subr.bf16.mxu0 0
      %3767 = vmatpush1.bf16.msra.mxu0 %v3748
      %3768 = vmatprep.subr.bf16.mxu0 0
      %3769 = vmatpush1.bf16.msra.mxu0 %v3749
      %3770 = vmatprep.subr.bf16.mxu0 0
      %3771 = vmatpush1.bf16.msra.mxu0 %v3750
      %3772 = vmatprep.subr.bf16.mxu0 0
      %3773 = vmatpush1.bf16.msra.mxu0 %v3751
      %3774 = vmatprep.subr.bf16.mxu0 0
      %3775 = vmatpush1.bf16.msra.mxu0 %v3752
      %3776 = vmatprep.subr.bf16.mxu0 0
      %3777 = vmatpush1.bf16.msra.mxu0 %v3753
      %3778 = vmatprep.subr.bf16.mxu0 0
      %3779 = vmatpush1.bf16.msra.mxu0 0
      %3780 = vmatprep.subr.bf16.mxu0 0
      %3781 = vmatpush1.bf16.msra.mxu0 0
      %3782 = vmatprep.subr.bf16.mxu0 0
      %3783 = vmatpush1.bf16.msra.mxu0 0
      %3784 = vmatprep.subr.bf16.mxu0 0
      %3785 = vmatpush1.bf16.msra.mxu0 0
      %3786 = vmatprep.subr.bf16.mxu0 0
      %3787 = vmatpush1.bf16.msra.mxu0 0
      %3788 = vmatprep.subr.bf16.mxu0 0
      %3789 = vmatpush1.bf16.msra.mxu0 0
      %3790 = vmatprep.subr.bf16.mxu0 0
      %3791 = vmatpush1.bf16.msra.mxu0 0
      %3792 = vmatprep.subr.bf16.mxu0 0
      %3793 = vmatpush1.bf16.msra.mxu0 0
      %3794 = vmatprep.mubr.bf16.mxu0 0
      %3795 = vmatmul.mubr.bf16.gmra.mrb[0].mxu0 %v584
      %v3796 = vpop.f32.mrb[0].mxu0
      %v3797 = vadd.f32 0.0, %v3796
      %v3798 = vpop.f32.mrb[0].mxu0
      %v3799 = vpop.f32.mrb[0].mxu0
      %v3800 = vadd.f32 0.0, %v3799
      %v3801 = vpop.f32.mrb[0].mxu0
      %3802 = vmatprep.mubr.bf16.mxu0 0
      %3803 = vmatmul.mubr.bf16.gmra.mrb[0].mxu0 %v586
      %v3804 = vpop.f32.mrb[0].mxu0
      %v3805 = vadd.f32 0.0, %v3804
      %v3806 = vpop.f32.mrb[0].mxu0
      %v3807 = vpop.f32.mrb[0].mxu0
      %v3808 = vadd.f32 0.0, %v3807
      %v3809 = vpop.f32.mrb[0].mxu0
      %3810 = vmatprep.mubr.bf16.mxu0 0
      %3811 = vmatmul.mubr.bf16.gmra.mrb[0].mxu0 %v588
      %v3812 = vpop.f32.mrb[0].mxu0
      %v3813 = vadd.f32 0.0, %v3812
      %v3814 = vpop.f32.mrb[0].mxu0
      %v3815 = vpop.f32.mrb[0].mxu0
      %v3816 = vadd.f32 0.0, %v3815
      %v3817 = vpop.f32.mrb[0].mxu0
      %3818 = vmatprep.mubr.bf16.mxu0 0
      %3819 = vmatmul.mubr.bf16.gmra.mrb[0].mxu0 %v590
      %v3820 = vpop.f32.mrb[0].mxu0
      %v3821 = vadd.f32 0.0, %v3820
      %v3822 = vpop.f32.mrb[0].mxu0
      %v3823 = vpop.f32.mrb[0].mxu0
      %v3824 = vadd.f32 0.0, %v3823
      %v3825 = vpop.f32.mrb[0].mxu0
      %3826 = vmatprep.mubr.bf16.mxu0 0
      %3827 = vmatmul.mubr.bf16.gmra.mrb[0].mxu0 %v592
      %v3828 = vpop.f32.mrb[0].mxu0
      %v3829 = vadd.f32 0.0, %v3828
      %v3830 = vpop.f32.mrb[0].mxu0
      %v3831 = vpop.f32.mrb[0].mxu0
      %v3832 = vadd.f32 0.0, %v3831
      %v3833 = vpop.f32.mrb[0].mxu0
      %3834 = vmatprep.mubr.bf16.mxu0 0
      %3835 = vmatmul.mubr.bf16.gmra.mrb[0].mxu0 %v594
      %v3836 = vpop.f32.mrb[0].mxu0
      %v3837 = vadd.f32 0.0, %v3836
      %v3838 = vpop.f32.mrb[0].mxu0
      %v3839 = vpop.f32.mrb[0].mxu0
      %v3840 = vadd.f32 0.0, %v3839
      %v3841 = vpop.f32.mrb[0].mxu0
      %3842 = vmatprep.mubr.bf16.mxu0 0
      %3843 = vmatmul.mubr.bf16.gmra.mrb[0].mxu0 %v596
      %v3844 = vpop.f32.mrb[0].mxu0
      %v3845 = vadd.f32 0.0, %v3844
      %v3846 = vpop.f32.mrb[0].mxu0
      %v3847 = vpop.f32.mrb[0].mxu0
      %v3848 = vadd.f32 0.0, %v3847
      %v3849 = vpop.f32.mrb[0].mxu0
      %3850 = vmatprep.mubr.bf16.mxu0 0
      %3851 = vmatmul.mubr.bf16.gmra.mrb[0].mxu0 %v598
      %v3852 = vpop.f32.mrb[0].mxu0
      %v3853 = vadd.f32 0.0, %v3852
      %v3854 = vpop.f32.mrb[0].mxu0
      %v3855 = vpop.f32.mrb[0].mxu0
      %v3856 = vadd.f32 0.0, %v3855
      %v3857 = vpop.f32.mrb[0].mxu0
      %3858 = vmatprep.mubr.bf16.mxu0 0
      %3859 = vmatmul.mubr.bf16.gmra.mrb[0].mxu0 %v600
      %v3860 = vpop.f32.mrb[0].mxu0
      %v3861 = vadd.f32 0.0, %v3860
      %v3862 = vpop.f32.mrb[0].mxu0
      %v3863 = vpop.f32.mrb[0].mxu0
      %v3864 = vadd.f32 0.0, %v3863
      %v3865 = vpop.f32.mrb[0].mxu0
      %3866 = vmatprep.mubr.bf16.mxu0 0
      %3867 = vmatmul.mubr.bf16.gmra.mrb[0].mxu0 %v602
      %v3868 = vpop.f32.mrb[0].mxu0
      %v3869 = vadd.f32 0.0, %v3868
      %v3870 = vpop.f32.mrb[0].mxu0
      %v3871 = vpop.f32.mrb[0].mxu0
      %v3872 = vadd.f32 0.0, %v3871
      %v3873 = vpop.f32.mrb[0].mxu0
      %3874 = vdwg.mxu0
      %v3875 = vadd.f32 %v3677, %v3797
      %v3876 = vadd.f32 %v3678, %v3800
      %v3877 = vadd.f32 %v3679, %v3805
      %v3878 = vadd.f32 %v3680, %v3808
      %v3879 = vadd.f32 %v3681, %v3813
      %v3880 = vadd.f32 %v3682, %v3816
      %v3881 = vadd.f32 %v3683, %v3821
      %v3882 = vadd.f32 %v3684, %v3824
      %v3883 = vadd.f32 %v3685, %v3829
      %v3884 = vadd.f32 %v3686, %v3832
      %v3885 = vadd.f32 %v3687, %v3837
      %v3886 = vadd.f32 %v3688, %v3840
      %v3887 = vadd.f32 %v3689, %v3845
      %v3888 = vadd.f32 %v3690, %v3848
      %v3889 = vadd.f32 %v3691, %v3853
      %v3890 = vadd.f32 %v3692, %v3856
      %v3891 = vadd.f32 %v3693, %v3861
      %v3892 = vadd.f32 %v3694, %v3864
      %v3893 = vadd.f32 %v3695, %v3869
      %v3894 = vadd.f32 %v3696, %v3872
      %s3895 = scalar_lea.vmem %s3, 384
      %v3896 = vld [vmem:[%s3895] sm:$0xf]
      %v3897 = vld [vmem:[%s3895 + $0x4] sm:$0xf]
      %v3898 = vld [vmem:[%s3895 + $0x8] sm:$0xf]
      %v3899 = vld [vmem:[%s3895 + $0xc] sm:$0xf]
      %v3900 = vld [vmem:[%s3895 + $0x10] sm:$0xf]
      %v3901 = vld [vmem:[%s3895 + $0x14] sm:$0xf]
      %v3902 = vld [vmem:[%s3895 + $0x18] sm:$0xf]
      %v3903 = vld [vmem:[%s3895 + $0x1c] sm:$0xf]
      %v3904 = vld [vmem:[%s3895 + $0x20] sm:$0xf]
      %v3905 = vld [vmem:[%s3895 + $0x24] sm:$0xf]
      %v3906 = vld [vmem:[%s3895 + $0x28] sm:$0xf]
      %v3907 = vld [vmem:[%s3895 + $0x2c] sm:$0xf]
      %v3908 = vld [vmem:[%s3895 + $0x30] sm:$0xf]
      %v3909 = vld [vmem:[%s3895 + $0x34] sm:$0xf]
      %v3910 = vld [vmem:[%s3895 + $0x38] sm:$0xf]
      %v3911 = vld [vmem:[%s3895 + $0x3c] sm:$0xf]
      %v3914 = vunpack.c.l.b16 %v637
      %v3915 = vunpack.c.l.b16 %v638
      %v3916 = vpack.c.b16 %v3915, %v3914
      %v3934 = vunpack.c.l.b16 %v3896
      %v3935 = vunpack.c.l.b16 %v3897
      %v3936 = vunpack.c.l.b16 %v3898
      %v3937 = vunpack.c.l.b16 %v3899
      %v3938 = vunpack.c.l.b16 %v3900
      %v3939 = vunpack.c.l.b16 %v3901
      %v3940 = vunpack.c.l.b16 %v3902
      %v3941 = vunpack.c.l.b16 %v3903
      %v3942 = vunpack.c.l.b16 %v3904
      %v3943 = vunpack.c.l.b16 %v3905
      %v3944 = vunpack.c.l.b16 %v3906
      %v3945 = vunpack.c.l.b16 %v3907
      %v3946 = vunpack.c.l.b16 %v3908
      %v3947 = vunpack.c.l.b16 %v3909
      %v3948 = vunpack.c.l.b16 %v3910
      %v3949 = vunpack.c.l.b16 %v3911
      %v3950 = vpack.c.b16 %v3935, %v3934
      %v3951 = vpack.c.b16 %v3937, %v3936
      %v3952 = vpack.c.b16 %v3939, %v3938
      %v3953 = vpack.c.b16 %v3941, %v3940
      %v3954 = vpack.c.b16 %v3943, %v3942
      %v3955 = vpack.c.b16 %v3945, %v3944
      %v3956 = vpack.c.b16 %v3947, %v3946
      %v3957 = vpack.c.b16 %v3949, %v3948
      %3966 = vmatprep.subr.bf16.mxu0 0
      %3967 = vmatpush1.bf16.msra.mxu0 %v3950
      %3968 = vmatprep.subr.bf16.mxu0 0
      %3969 = vmatpush1.bf16.msra.mxu0 %v3951
      %3970 = vmatprep.subr.bf16.mxu0 0
      %3971 = vmatpush1.bf16.msra.mxu0 %v3952
      %3972 = vmatprep.subr.bf16.mxu0 0
      %3973 = vmatpush1.bf16.msra.mxu0 %v3953
      %3974 = vmatprep.subr.bf16.mxu0 0
      %3975 = vmatpush1.bf16.msra.mxu0 %v3954
      %3976 = vmatprep.subr.bf16.mxu0 0
      %3977 = vmatpush1.bf16.msra.mxu0 %v3955
      %3978 = vmatprep.subr.bf16.mxu0 0
      %3979 = vmatpush1.bf16.msra.mxu0 %v3956
      %3980 = vmatprep.subr.bf16.mxu0 0
      %3981 = vmatpush1.bf16.msra.mxu0 %v3957
      %3982 = vmatprep.subr.bf16.mxu0 0
      %3983 = vmatpush1.bf16.msra.mxu0 0
      %3984 = vmatprep.subr.bf16.mxu0 0
      %3985 = vmatpush1.bf16.msra.mxu0 0
      %3986 = vmatprep.subr.bf16.mxu0 0
      %3987 = vmatpush1.bf16.msra.mxu0 0
      %3988 = vmatprep.subr.bf16.mxu0 0
      %3989 = vmatpush1.bf16.msra.mxu0 0
      %3990 = vmatprep.subr.bf16.mxu0 0
      %3991 = vmatpush1.bf16.msra.mxu0 0
      %3992 = vmatprep.subr.bf16.mxu0 0
      %3993 = vmatpush1.bf16.msra.mxu0 0
      %3994 = vmatprep.subr.bf16.mxu0 0
      %3995 = vmatpush1.bf16.msra.mxu0 0
      %3996 = vmatprep.subr.bf16.mxu0 0
      %3997 = vmatpush1.bf16.msra.mxu0 0
      %3998 = vmatprep.mubr.bf16.mxu0 0
      %3999 = vmatmul.mubr.bf16.gmra.mrb[0].mxu0 %v714
      %v4000 = vpop.f32.mrb[0].mxu0
      %v4001 = vadd.f32 0.0, %v4000
      %v4002 = vpop.f32.mrb[0].mxu0
      %v4003 = vpop.f32.mrb[0].mxu0
      %v4004 = vadd.f32 0.0, %v4003
      %v4005 = vpop.f32.mrb[0].mxu0
      %4006 = vmatprep.mubr.bf16.mxu0 0
      %4007 = vmatmul.mubr.bf16.gmra.mrb[0].mxu0 %v715
      %v4008 = vpop.f32.mrb[0].mxu0
      %v4009 = vadd.f32 0.0, %v4008
      %v4010 = vpop.f32.mrb[0].mxu0
      %v4011 = vpop.f32.mrb[0].mxu0
      %v4012 = vadd.f32 0.0, %v4011
      %v4013 = vpop.f32.mrb[0].mxu0
      %4014 = vmatprep.mubr.bf16.mxu0 0
      %4015 = vmatmul.mubr.bf16.gmra.mrb[0].mxu0 %v716
      %v4016 = vpop.f32.mrb[0].mxu0
      %v4017 = vadd.f32 0.0, %v4016
      %v4018 = vpop.f32.mrb[0].mxu0
      %v4019 = vpop.f32.mrb[0].mxu0
      %v4020 = vadd.f32 0.0, %v4019
      %v4021 = vpop.f32.mrb[0].mxu0
      %4022 = vmatprep.mubr.bf16.mxu0 0
      %4023 = vmatmul.mubr.bf16.gmra.mrb[0].mxu0 %v717
      %v4024 = vpop.f32.mrb[0].mxu0
      %v4025 = vadd.f32 0.0, %v4024
      %v4026 = vpop.f32.mrb[0].mxu0
      %v4027 = vpop.f32.mrb[0].mxu0
      %v4028 = vadd.f32 0.0, %v4027
      %v4029 = vpop.f32.mrb[0].mxu0
      %4030 = vmatprep.mubr.bf16.mxu0 0
      %4031 = vmatmul.mubr.bf16.gmra.mrb[0].mxu0 %v718
      %v4032 = vpop.f32.mrb[0].mxu0
      %v4033 = vadd.f32 0.0, %v4032
      %v4034 = vpop.f32.mrb[0].mxu0
      %v4035 = vpop.f32.mrb[0].mxu0
      %v4036 = vadd.f32 0.0, %v4035
      %v4037 = vpop.f32.mrb[0].mxu0
      %4038 = vmatprep.mubr.bf16.mxu0 0
      %4039 = vmatmul.mubr.bf16.gmra.mrb[0].mxu0 %v719
      %v4040 = vpop.f32.mrb[0].mxu0
      %v4041 = vadd.f32 0.0, %v4040
      %v4042 = vpop.f32.mrb[0].mxu0
      %v4043 = vpop.f32.mrb[0].mxu0
      %v4044 = vadd.f32 0.0, %v4043
      %v4045 = vpop.f32.mrb[0].mxu0
      %4046 = vmatprep.mubr.bf16.mxu0 0
      %4047 = vmatmul.mubr.bf16.gmra.mrb[0].mxu0 %v720
      %v4048 = vpop.f32.mrb[0].mxu0
      %v4049 = vadd.f32 0.0, %v4048
      %v4050 = vpop.f32.mrb[0].mxu0
      %v4051 = vpop.f32.mrb[0].mxu0
      %v4052 = vadd.f32 0.0, %v4051
      %v4053 = vpop.f32.mrb[0].mxu0
      %4054 = vmatprep.mubr.bf16.mxu0 0
      %4055 = vmatmul.mubr.bf16.gmra.mrb[0].mxu0 %v721
      %v4056 = vpop.f32.mrb[0].mxu0
      %v4057 = vadd.f32 0.0, %v4056
      %v4058 = vpop.f32.mrb[0].mxu0
      %v4059 = vpop.f32.mrb[0].mxu0
      %v4060 = vadd.f32 0.0, %v4059
      %v4061 = vpop.f32.mrb[0].mxu0
      %4062 = vmatprep.mubr.bf16.mxu0 0
      %4063 = vmatmul.mubr.bf16.gmra.mrb[0].mxu0 %v2663
      %v4064 = vpop.f32.mrb[0].mxu0
      %v4065 = vadd.f32 0.0, %v4064
      %v4066 = vpop.f32.mrb[0].mxu0
      %v4067 = vpop.f32.mrb[0].mxu0
      %v4068 = vadd.f32 0.0, %v4067
      %v4069 = vpop.f32.mrb[0].mxu0
      %4070 = vmatprep.mubr.bf16.mxu0 0
      %4071 = vmatmul.mubr.bf16.gmra.mrb[0].mxu0 %v3916
      %v4072 = vpop.f32.mrb[0].mxu0
      %v4073 = vadd.f32 0.0, %v4072
      %v4074 = vpop.f32.mrb[0].mxu0
      %v4075 = vpop.f32.mrb[0].mxu0
      %v4076 = vadd.f32 0.0, %v4075
      %v4077 = vpop.f32.mrb[0].mxu0
      %4078 = vdwg.mxu0
      %v4079 = vadd.f32 %v3875, %v4001
      %v4080 = vadd.f32 %v3876, %v4004
      %v4081 = vadd.f32 %v3877, %v4009
      %v4082 = vadd.f32 %v3878, %v4012
      %v4083 = vadd.f32 %v3879, %v4017
      %v4084 = vadd.f32 %v3880, %v4020
      %v4085 = vadd.f32 %v3881, %v4025
      %v4086 = vadd.f32 %v3882, %v4028
      %v4087 = vadd.f32 %v3883, %v4033
      %v4088 = vadd.f32 %v3884, %v4036
      %v4089 = vadd.f32 %v3885, %v4041
      %v4090 = vadd.f32 %v3886, %v4044
      %v4091 = vadd.f32 %v3887, %v4049
      %v4092 = vadd.f32 %v3888, %v4052
      %v4093 = vadd.f32 %v3889, %v4057
      %v4094 = vadd.f32 %v3890, %v4060
      %v4095 = vadd.f32 %v3891, %v4065
      %v4096 = vadd.f32 %v3892, %v4068
      %v4097 = vadd.f32 %v3893, %v4073
      %v4098 = vadd.f32 %v3894, %v4076
      %v4100 = vshrl.u32 %v602, 16
      %v4102 = vshll.u32 %v602, 16
      %v4104 = vrot.slane %v4102, 1
      %v4105 = vor.u32 %v4100, %v4104
      %v4107 = vshll.u32 %v603, 16
      %v4109 = vrot.slane %v4107, 1
      %v4110 = vsel %vm1054, %v4105, %v4109
      %v4113 = vshrl.u32 %v637, 16
      %v4115 = vrot.slane %v4113, 4
      %v4116 = vshll.u32 %v637, 16
      %v4118 = vrot.slane %v4116, 5
      %v4119 = vor.u32 %v4115, %v4118
      %v4120 = vrot.slane %v4119, 4
      %v4122 = vshll.u32 %v638, 16
      %v4124 = vrot.slane %v4122, 5
      %v4125 = vsel %vm1187, %v4120, %v4124
      %v4126 = vshrl.u32 %v638, 16
      %v4128 = vrot.slane %v4126, 4
      %v4129 = vor.u32 %v4128, %v4124
      %v4130 = vrot.slane %v4129, 4
      %v4132 = vshll.u32 %v639, 16
      %v4134 = vrot.slane %v4132, 5
      %v4135 = vsel %vm1187, %v4130, %v4134
      %s4136 = scalar_lea.vmem %s2, 448
      %v4137 = vld [vmem:[%s4136] sm:$0xf]
      %v4138 = vld [vmem:[%s4136 + $0x4] sm:$0xf]
      %v4139 = vld [vmem:[%s4136 + $0x8] sm:$0xf]
      %v4140 = vld [vmem:[%s4136 + $0xc] sm:$0xf]
      %v4141 = vld [vmem:[%s4136 + $0x10] sm:$0xf]
      %v4142 = vld [vmem:[%s4136 + $0x14] sm:$0xf]
      %v4143 = vld [vmem:[%s4136 + $0x18] sm:$0xf]
      %v4144 = vld [vmem:[%s4136 + $0x1c] sm:$0xf]
      %v4145 = vld [vmem:[%s4136 + $0x20] sm:$0xf]
      %v4146 = vld [vmem:[%s4136 + $0x24] sm:$0xf]
      %v4147 = vld [vmem:[%s4136 + $0x28] sm:$0xf]
      %v4148 = vld [vmem:[%s4136 + $0x2c] sm:$0xf]
      %v4149 = vld [vmem:[%s4136 + $0x30] sm:$0xf]
      %v4150 = vld [vmem:[%s4136 + $0x34] sm:$0xf]
      %v4151 = vld [vmem:[%s4136 + $0x38] sm:$0xf]
      %v4152 = vld [vmem:[%s4136 + $0x3c] sm:$0xf]
      %v4169 = vunpack.c.l.b16 %v4137
      %v4170 = vunpack.c.l.b16 %v4138
      %v4171 = vunpack.c.l.b16 %v4139
      %v4172 = vunpack.c.l.b16 %v4140
      %v4173 = vunpack.c.l.b16 %v4141
      %v4174 = vunpack.c.l.b16 %v4142
      %v4175 = vunpack.c.l.b16 %v4143
      %v4176 = vunpack.c.l.b16 %v4144
      %v4177 = vunpack.c.l.b16 %v4145
      %v4178 = vunpack.c.l.b16 %v4146
      %v4179 = vunpack.c.l.b16 %v4147
      %v4180 = vunpack.c.l.b16 %v4148
      %v4181 = vunpack.c.l.b16 %v4149
      %v4182 = vunpack.c.l.b16 %v4150
      %v4183 = vunpack.c.l.b16 %v4151
      %v4184 = vunpack.c.l.b16 %v4152
      %v4185 = vpack.c.b16 %v4170, %v4169
      %v4186 = vpack.c.b16 %v4172, %v4171
      %v4187 = vpack.c.b16 %v4174, %v4173
      %v4188 = vpack.c.b16 %v4176, %v4175
      %v4189 = vpack.c.b16 %v4178, %v4177
      %v4190 = vpack.c.b16 %v4180, %v4179
      %v4191 = vpack.c.b16 %v4182, %v4181
      %v4192 = vpack.c.b16 %v4184, %v4183
      %4201 = vmatprep.subr.bf16.mxu0 0
      %4202 = vmatpush1.bf16.msra.mxu0 %v4185
      %4203 = vmatprep.subr.bf16.mxu0 0
      %4204 = vmatpush1.bf16.msra.mxu0 %v4186
      %4205 = vmatprep.subr.bf16.mxu0 0
      %4206 = vmatpush1.bf16.msra.mxu0 %v4187
      %4207 = vmatprep.subr.bf16.mxu0 0
      %4208 = vmatpush1.bf16.msra.mxu0 %v4188
      %4209 = vmatprep.subr.bf16.mxu0 0
      %4210 = vmatpush1.bf16.msra.mxu0 %v4189
      %4211 = vmatprep.subr.bf16.mxu0 0
      %4212 = vmatpush1.bf16.msra.mxu0 %v4190
      %4213 = vmatprep.subr.bf16.mxu0 0
      %4214 = vmatpush1.bf16.msra.mxu0 %v4191
      %4215 = vmatprep.subr.bf16.mxu0 0
      %4216 = vmatpush1.bf16.msra.mxu0 %v4192
      %4217 = vmatprep.subr.bf16.mxu0 0
      %4218 = vmatpush1.bf16.msra.mxu0 0
      %4219 = vmatprep.subr.bf16.mxu0 0
      %4220 = vmatpush1.bf16.msra.mxu0 0
      %4221 = vmatprep.subr.bf16.mxu0 0
      %4222 = vmatpush1.bf16.msra.mxu0 0
      %4223 = vmatprep.subr.bf16.mxu0 0
      %4224 = vmatpush1.bf16.msra.mxu0 0
      %4225 = vmatprep.subr.bf16.mxu0 0
      %4226 = vmatpush1.bf16.msra.mxu0 0
      %4227 = vmatprep.subr.bf16.mxu0 0
      %4228 = vmatpush1.bf16.msra.mxu0 0
      %4229 = vmatprep.subr.bf16.mxu0 0
      %4230 = vmatpush1.bf16.msra.mxu0 0
      %4231 = vmatprep.subr.bf16.mxu0 0
      %4232 = vmatpush1.bf16.msra.mxu0 0
      %4233 = vmatprep.mubr.bf16.mxu0 0
      %4234 = vmatmul.mubr.bf16.gmra.mrb[0].mxu0 %v1090
      %v4235 = vpop.f32.mrb[0].mxu0
      %v4236 = vadd.f32 0.0, %v4235
      %v4237 = vpop.f32.mrb[0].mxu0
      %v4238 = vpop.f32.mrb[0].mxu0
      %v4239 = vadd.f32 0.0, %v4238
      %v4240 = vpop.f32.mrb[0].mxu0
      %4241 = vmatprep.mubr.bf16.mxu0 0
      %4242 = vmatmul.mubr.bf16.gmra.mrb[0].mxu0 %v1102
      %v4243 = vpop.f32.mrb[0].mxu0
      %v4244 = vadd.f32 0.0, %v4243
      %v4245 = vpop.f32.mrb[0].mxu0
      %v4246 = vpop.f32.mrb[0].mxu0
      %v4247 = vadd.f32 0.0, %v4246
      %v4248 = vpop.f32.mrb[0].mxu0
      %4249 = vmatprep.mubr.bf16.mxu0 0
      %4250 = vmatmul.mubr.bf16.gmra.mrb[0].mxu0 %v1114
      %v4251 = vpop.f32.mrb[0].mxu0
      %v4252 = vadd.f32 0.0, %v4251
      %v4253 = vpop.f32.mrb[0].mxu0
      %v4254 = vpop.f32.mrb[0].mxu0
      %v4255 = vadd.f32 0.0, %v4254
      %v4256 = vpop.f32.mrb[0].mxu0
      %4257 = vmatprep.mubr.bf16.mxu0 0
      %4258 = vmatmul.mubr.bf16.gmra.mrb[0].mxu0 %v1126
      %v4259 = vpop.f32.mrb[0].mxu0
      %v4260 = vadd.f32 0.0, %v4259
      %v4261 = vpop.f32.mrb[0].mxu0
      %v4262 = vpop.f32.mrb[0].mxu0
      %v4263 = vadd.f32 0.0, %v4262
      %v4264 = vpop.f32.mrb[0].mxu0
      %4265 = vmatprep.mubr.bf16.mxu0 0
      %4266 = vmatmul.mubr.bf16.gmra.mrb[0].mxu0 %v1138
      %v4267 = vpop.f32.mrb[0].mxu0
      %v4268 = vadd.f32 0.0, %v4267
      %v4269 = vpop.f32.mrb[0].mxu0
      %v4270 = vpop.f32.mrb[0].mxu0
      %v4271 = vadd.f32 0.0, %v4270
      %v4272 = vpop.f32.mrb[0].mxu0
      %4273 = vmatprep.mubr.bf16.mxu0 0
      %4274 = vmatmul.mubr.bf16.gmra.mrb[0].mxu0 %v1150
      %v4275 = vpop.f32.mrb[0].mxu0
      %v4276 = vadd.f32 0.0, %v4275
      %v4277 = vpop.f32.mrb[0].mxu0
      %v4278 = vpop.f32.mrb[0].mxu0
      %v4279 = vadd.f32 0.0, %v4278
      %v4280 = vpop.f32.mrb[0].mxu0
      %4281 = vmatprep.mubr.bf16.mxu0 0
      %4282 = vmatmul.mubr.bf16.gmra.mrb[0].mxu0 %v1162
      %v4283 = vpop.f32.mrb[0].mxu0
      %v4284 = vadd.f32 0.0, %v4283
      %v4285 = vpop.f32.mrb[0].mxu0
      %v4286 = vpop.f32.mrb[0].mxu0
      %v4287 = vadd.f32 0.0, %v4286
      %v4288 = vpop.f32.mrb[0].mxu0
      %4289 = vmatprep.mubr.bf16.mxu0 0
      %4290 = vmatmul.mubr.bf16.gmra.mrb[0].mxu0 %v1174
      %v4291 = vpop.f32.mrb[0].mxu0
      %v4292 = vadd.f32 0.0, %v4291
      %v4293 = vpop.f32.mrb[0].mxu0
      %v4294 = vpop.f32.mrb[0].mxu0
      %v4295 = vadd.f32 0.0, %v4294
      %v4296 = vpop.f32.mrb[0].mxu0
      %4297 = vmatprep.mubr.bf16.mxu0 0
      %4298 = vmatmul.mubr.bf16.gmra.mrb[0].mxu0 %v2857
      %v4299 = vpop.f32.mrb[0].mxu0
      %v4300 = vadd.f32 0.0, %v4299
      %v4301 = vpop.f32.mrb[0].mxu0
      %v4302 = vpop.f32.mrb[0].mxu0
      %v4303 = vadd.f32 0.0, %v4302
      %v4304 = vpop.f32.mrb[0].mxu0
      %4305 = vmatprep.mubr.bf16.mxu0 0
      %4306 = vmatmul.mubr.bf16.gmra.mrb[0].mxu0 %v4110
      %v4307 = vpop.f32.mrb[0].mxu0
      %v4308 = vadd.f32 0.0, %v4307
      %v4309 = vpop.f32.mrb[0].mxu0
      %v4310 = vpop.f32.mrb[0].mxu0
      %v4311 = vadd.f32 0.0, %v4310
      %v4312 = vpop.f32.mrb[0].mxu0
      %4313 = vdwg.mxu0
      %v4314 = vadd.f32 %v4079, %v4236
      %v4315 = vadd.f32 %v4080, %v4239
      %v4316 = vadd.f32 %v4081, %v4244
      %v4317 = vadd.f32 %v4082, %v4247
      %v4318 = vadd.f32 %v4083, %v4252
      %v4319 = vadd.f32 %v4084, %v4255
      %v4320 = vadd.f32 %v4085, %v4260
      %v4321 = vadd.f32 %v4086, %v4263
      %v4322 = vadd.f32 %v4087, %v4268
      %v4323 = vadd.f32 %v4088, %v4271
      %v4324 = vadd.f32 %v4089, %v4276
      %v4325 = vadd.f32 %v4090, %v4279
      %v4326 = vadd.f32 %v4091, %v4284
      %v4327 = vadd.f32 %v4092, %v4287
      %v4328 = vadd.f32 %v4093, %v4292
      %v4329 = vadd.f32 %v4094, %v4295
      %v4330 = vadd.f32 %v4095, %v4300
      %v4331 = vadd.f32 %v4096, %v4303
      %v4332 = vadd.f32 %v4097, %v4308
      %v4333 = vadd.f32 %v4098, %v4311
      %s4334 = scalar_lea.vmem %s3, 448
      %v4335 = vld [vmem:[%s4334] sm:$0xf]
      %v4336 = vld [vmem:[%s4334 + $0x4] sm:$0xf]
      %v4337 = vld [vmem:[%s4334 + $0x8] sm:$0xf]
      %v4338 = vld [vmem:[%s4334 + $0xc] sm:$0xf]
      %v4339 = vld [vmem:[%s4334 + $0x10] sm:$0xf]
      %v4340 = vld [vmem:[%s4334 + $0x14] sm:$0xf]
      %v4341 = vld [vmem:[%s4334 + $0x18] sm:$0xf]
      %v4342 = vld [vmem:[%s4334 + $0x1c] sm:$0xf]
      %v4343 = vld [vmem:[%s4334 + $0x20] sm:$0xf]
      %v4344 = vld [vmem:[%s4334 + $0x24] sm:$0xf]
      %v4345 = vld [vmem:[%s4334 + $0x28] sm:$0xf]
      %v4346 = vld [vmem:[%s4334 + $0x2c] sm:$0xf]
      %v4347 = vld [vmem:[%s4334 + $0x30] sm:$0xf]
      %v4348 = vld [vmem:[%s4334 + $0x34] sm:$0xf]
      %v4349 = vld [vmem:[%s4334 + $0x38] sm:$0xf]
      %v4350 = vld [vmem:[%s4334 + $0x3c] sm:$0xf]
      %v4351 = vunpack.c.l.b16 %v4125
      %v4352 = vunpack.c.l.b16 %v4135
      %v4353 = vpack.c.b16 %v4352, %v4351
      %v4371 = vunpack.c.l.b16 %v4335
      %v4372 = vunpack.c.l.b16 %v4336
      %v4373 = vunpack.c.l.b16 %v4337
      %v4374 = vunpack.c.l.b16 %v4338
      %v4375 = vunpack.c.l.b16 %v4339
      %v4376 = vunpack.c.l.b16 %v4340
      %v4377 = vunpack.c.l.b16 %v4341
      %v4378 = vunpack.c.l.b16 %v4342
      %v4379 = vunpack.c.l.b16 %v4343
      %v4380 = vunpack.c.l.b16 %v4344
      %v4381 = vunpack.c.l.b16 %v4345
      %v4382 = vunpack.c.l.b16 %v4346
      %v4383 = vunpack.c.l.b16 %v4347
      %v4384 = vunpack.c.l.b16 %v4348
      %v4385 = vunpack.c.l.b16 %v4349
      %v4386 = vunpack.c.l.b16 %v4350
      %v4387 = vpack.c.b16 %v4372, %v4371
      %v4388 = vpack.c.b16 %v4374, %v4373
      %v4389 = vpack.c.b16 %v4376, %v4375
      %v4390 = vpack.c.b16 %v4378, %v4377
      %v4391 = vpack.c.b16 %v4380, %v4379
      %v4392 = vpack.c.b16 %v4382, %v4381
      %v4393 = vpack.c.b16 %v4384, %v4383
      %v4394 = vpack.c.b16 %v4386, %v4385
      %4403 = vmatprep.subr.bf16.mxu0 0
      %4404 = vmatpush1.bf16.msra.mxu0 %v4387
      %4405 = vmatprep.subr.bf16.mxu0 0
      %4406 = vmatpush1.bf16.msra.mxu0 %v4388
      %4407 = vmatprep.subr.bf16.mxu0 0
      %4408 = vmatpush1.bf16.msra.mxu0 %v4389
      %4409 = vmatprep.subr.bf16.mxu0 0
      %4410 = vmatpush1.bf16.msra.mxu0 %v4390
      %4411 = vmatprep.subr.bf16.mxu0 0
      %4412 = vmatpush1.bf16.msra.mxu0 %v4391
      %4413 = vmatprep.subr.bf16.mxu0 0
      %4414 = vmatpush1.bf16.msra.mxu0 %v4392
      %4415 = vmatprep.subr.bf16.mxu0 0
      %4416 = vmatpush1.bf16.msra.mxu0 %v4393
      %4417 = vmatprep.subr.bf16.mxu0 0
      %4418 = vmatpush1.bf16.msra.mxu0 %v4394
      %4419 = vmatprep.subr.bf16.mxu0 0
      %4420 = vmatpush1.bf16.msra.mxu0 0
      %4421 = vmatprep.subr.bf16.mxu0 0
      %4422 = vmatpush1.bf16.msra.mxu0 0
      %4423 = vmatprep.subr.bf16.mxu0 0
      %4424 = vmatpush1.bf16.msra.mxu0 0
      %4425 = vmatprep.subr.bf16.mxu0 0
      %4426 = vmatpush1.bf16.msra.mxu0 0
      %4427 = vmatprep.subr.bf16.mxu0 0
      %4428 = vmatpush1.bf16.msra.mxu0 0
      %4429 = vmatprep.subr.bf16.mxu0 0
      %4430 = vmatpush1.bf16.msra.mxu0 0
      %4431 = vmatprep.subr.bf16.mxu0 0
      %4432 = vmatpush1.bf16.msra.mxu0 0
      %4433 = vmatprep.subr.bf16.mxu0 0
      %4434 = vmatpush1.bf16.msra.mxu0 0
      %4435 = vmatprep.mubr.bf16.mxu0 0
      %4436 = vmatmul.mubr.bf16.gmra.mrb[0].mxu0 %v1665
      %v4437 = vpop.f32.mrb[0].mxu0
      %v4438 = vadd.f32 0.0, %v4437
      %v4439 = vpop.f32.mrb[0].mxu0
      %v4440 = vpop.f32.mrb[0].mxu0
      %v4441 = vadd.f32 0.0, %v4440
      %v4442 = vpop.f32.mrb[0].mxu0
      %4443 = vmatprep.mubr.bf16.mxu0 0
      %4444 = vmatmul.mubr.bf16.gmra.mrb[0].mxu0 %v1666
      %v4445 = vpop.f32.mrb[0].mxu0
      %v4446 = vadd.f32 0.0, %v4445
      %v4447 = vpop.f32.mrb[0].mxu0
      %v4448 = vpop.f32.mrb[0].mxu0
      %v4449 = vadd.f32 0.0, %v4448
      %v4450 = vpop.f32.mrb[0].mxu0
      %4451 = vmatprep.mubr.bf16.mxu0 0
      %4452 = vmatmul.mubr.bf16.gmra.mrb[0].mxu0 %v1667
      %v4453 = vpop.f32.mrb[0].mxu0
      %v4454 = vadd.f32 0.0, %v4453
      %v4455 = vpop.f32.mrb[0].mxu0
      %v4456 = vpop.f32.mrb[0].mxu0
      %v4457 = vadd.f32 0.0, %v4456
      %v4458 = vpop.f32.mrb[0].mxu0
      %4459 = vmatprep.mubr.bf16.mxu0 0
      %4460 = vmatmul.mubr.bf16.gmra.mrb[0].mxu0 %v1668
      %v4461 = vpop.f32.mrb[0].mxu0
      %v4462 = vadd.f32 0.0, %v4461
      %v4463 = vpop.f32.mrb[0].mxu0
      %v4464 = vpop.f32.mrb[0].mxu0
      %v4465 = vadd.f32 0.0, %v4464
      %v4466 = vpop.f32.mrb[0].mxu0
      %4467 = vmatprep.mubr.bf16.mxu0 0
      %4468 = vmatmul.mubr.bf16.gmra.mrb[0].mxu0 %v1669
      %v4469 = vpop.f32.mrb[0].mxu0
      %v4470 = vadd.f32 0.0, %v4469
      %v4471 = vpop.f32.mrb[0].mxu0
      %v4472 = vpop.f32.mrb[0].mxu0
      %v4473 = vadd.f32 0.0, %v4472
      %v4474 = vpop.f32.mrb[0].mxu0
      %4475 = vmatprep.mubr.bf16.mxu0 0
      %4476 = vmatmul.mubr.bf16.gmra.mrb[0].mxu0 %v1670
      %v4477 = vpop.f32.mrb[0].mxu0
      %v4478 = vadd.f32 0.0, %v4477
      %v4479 = vpop.f32.mrb[0].mxu0
      %v4480 = vpop.f32.mrb[0].mxu0
      %v4481 = vadd.f32 0.0, %v4480
      %v4482 = vpop.f32.mrb[0].mxu0
      %4483 = vmatprep.mubr.bf16.mxu0 0
      %4484 = vmatmul.mubr.bf16.gmra.mrb[0].mxu0 %v1671
      %v4485 = vpop.f32.mrb[0].mxu0
      %v4486 = vadd.f32 0.0, %v4485
      %v4487 = vpop.f32.mrb[0].mxu0
      %v4488 = vpop.f32.mrb[0].mxu0
      %v4489 = vadd.f32 0.0, %v4488
      %v4490 = vpop.f32.mrb[0].mxu0
      %4491 = vmatprep.mubr.bf16.mxu0 0
      %4492 = vmatmul.mubr.bf16.gmra.mrb[0].mxu0 %v1672
      %v4493 = vpop.f32.mrb[0].mxu0
      %v4494 = vadd.f32 0.0, %v4493
      %v4495 = vpop.f32.mrb[0].mxu0
      %v4496 = vpop.f32.mrb[0].mxu0
      %v4497 = vadd.f32 0.0, %v4496
      %v4498 = vpop.f32.mrb[0].mxu0
      %4499 = vmatprep.mubr.bf16.mxu0 0
      %4500 = vmatmul.mubr.bf16.gmra.mrb[0].mxu0 %v3100
      %v4501 = vpop.f32.mrb[0].mxu0
      %v4502 = vadd.f32 0.0, %v4501
      %v4503 = vpop.f32.mrb[0].mxu0
      %v4504 = vpop.f32.mrb[0].mxu0
      %v4505 = vadd.f32 0.0, %v4504
      %v4506 = vpop.f32.mrb[0].mxu0
      %4507 = vmatprep.mubr.bf16.mxu0 0
      %4508 = vmatmul.mubr.bf16.gmra.mrb[0].mxu0 %v4353
      %v4509 = vpop.f32.mrb[0].mxu0
      %v4510 = vadd.f32 0.0, %v4509
      %v4511 = vpop.f32.mrb[0].mxu0
      %v4512 = vpop.f32.mrb[0].mxu0
      %v4513 = vadd.f32 0.0, %v4512
      %v4514 = vpop.f32.mrb[0].mxu0
      %4515 = vdwg.mxu0
      %v4516 = vadd.f32 %v4314, %v4438
      %v4517 = vadd.f32 %v4315, %v4441
      %v4518 = vadd.f32 %v4316, %v4446
      %v4519 = vadd.f32 %v4317, %v4449
      %v4520 = vadd.f32 %v4318, %v4454
      %v4521 = vadd.f32 %v4319, %v4457
      %v4522 = vadd.f32 %v4320, %v4462
      %v4523 = vadd.f32 %v4321, %v4465
      %v4524 = vadd.f32 %v4322, %v4470
      %v4525 = vadd.f32 %v4323, %v4473
      %v4526 = vadd.f32 %v4324, %v4478
      %v4527 = vadd.f32 %v4325, %v4481
      %v4528 = vadd.f32 %v4326, %v4486
      %v4529 = vadd.f32 %v4327, %v4489
      %v4530 = vadd.f32 %v4328, %v4494
      %v4531 = vadd.f32 %v4329, %v4497
      %v4532 = vadd.f32 %v4330, %v4502
      %v4533 = vadd.f32 %v4331, %v4505
      %v4534 = vadd.f32 %v4332, %v4510
      %v4535 = vadd.f32 %v4333, %v4513
      %v4538 = vrot.slane %v602, 1
      %v4539 = vrot.slane %v603, 1
      %v4540 = vsel %vm1884, %v4538, %v4539
      %v4543 = vrot.slane %v637, 5
      %v4544 = vrot.slane %v4543, 4
      %v4545 = vrot.slane %v638, 5
      %v4546 = vsel %vm1937, %v4544, %v4545
      %v4547 = vrot.slane %v4545, 4
      %v4548 = vrot.slane %v639, 5
      %v4549 = vsel %vm1937, %v4547, %v4548
      %s4550 = scalar_lea.vmem %s2, 512
      %v4551 = vld [vmem:[%s4550] sm:$0xf]
      %v4552 = vld [vmem:[%s4550 + $0x4] sm:$0xf]
      %v4553 = vld [vmem:[%s4550 + $0x8] sm:$0xf]
      %v4554 = vld [vmem:[%s4550 + $0xc] sm:$0xf]
      %v4555 = vld [vmem:[%s4550 + $0x10] sm:$0xf]
      %v4556 = vld [vmem:[%s4550 + $0x14] sm:$0xf]
      %v4557 = vld [vmem:[%s4550 + $0x18] sm:$0xf]
      %v4558 = vld [vmem:[%s4550 + $0x1c] sm:$0xf]
      %v4559 = vld [vmem:[%s4550 + $0x20] sm:$0xf]
      %v4560 = vld [vmem:[%s4550 + $0x24] sm:$0xf]
      %v4561 = vld [vmem:[%s4550 + $0x28] sm:$0xf]
      %v4562 = vld [vmem:[%s4550 + $0x2c] sm:$0xf]
      %v4563 = vld [vmem:[%s4550 + $0x30] sm:$0xf]
      %v4564 = vld [vmem:[%s4550 + $0x34] sm:$0xf]
      %v4565 = vld [vmem:[%s4550 + $0x38] sm:$0xf]
      %v4566 = vld [vmem:[%s4550 + $0x3c] sm:$0xf]
      %v4583 = vunpack.c.l.b16 %v4551
      %v4584 = vunpack.c.l.b16 %v4552
      %v4585 = vunpack.c.l.b16 %v4553
      %v4586 = vunpack.c.l.b16 %v4554
      %v4587 = vunpack.c.l.b16 %v4555
      %v4588 = vunpack.c.l.b16 %v4556
      %v4589 = vunpack.c.l.b16 %v4557
      %v4590 = vunpack.c.l.b16 %v4558
      %v4591 = vunpack.c.l.b16 %v4559
      %v4592 = vunpack.c.l.b16 %v4560
      %v4593 = vunpack.c.l.b16 %v4561
      %v4594 = vunpack.c.l.b16 %v4562
      %v4595 = vunpack.c.l.b16 %v4563
      %v4596 = vunpack.c.l.b16 %v4564
      %v4597 = vunpack.c.l.b16 %v4565
      %v4598 = vunpack.c.l.b16 %v4566
      %v4599 = vpack.c.b16 %v4584, %v4583
      %v4600 = vpack.c.b16 %v4586, %v4585
      %v4601 = vpack.c.b16 %v4588, %v4587
      %v4602 = vpack.c.b16 %v4590, %v4589
      %v4603 = vpack.c.b16 %v4592, %v4591
      %v4604 = vpack.c.b16 %v4594, %v4593
      %v4605 = vpack.c.b16 %v4596, %v4595
      %v4606 = vpack.c.b16 %v4598, %v4597
      %4615 = vmatprep.subr.bf16.mxu0 0
      %4616 = vmatpush1.bf16.msra.mxu0 %v4599
      %4617 = vmatprep.subr.bf16.mxu0 0
      %4618 = vmatpush1.bf16.msra.mxu0 %v4600
      %4619 = vmatprep.subr.bf16.mxu0 0
      %4620 = vmatpush1.bf16.msra.mxu0 %v4601
      %4621 = vmatprep.subr.bf16.mxu0 0
      %4622 = vmatpush1.bf16.msra.mxu0 %v4602
      %4623 = vmatprep.subr.bf16.mxu0 0
      %4624 = vmatpush1.bf16.msra.mxu0 %v4603
      %4625 = vmatprep.subr.bf16.mxu0 0
      %4626 = vmatpush1.bf16.msra.mxu0 %v4604
      %4627 = vmatprep.subr.bf16.mxu0 0
      %4628 = vmatpush1.bf16.msra.mxu0 %v4605
      %4629 = vmatprep.subr.bf16.mxu0 0
      %4630 = vmatpush1.bf16.msra.mxu0 %v4606
      %4631 = vmatprep.subr.bf16.mxu0 0
      %4632 = vmatpush1.bf16.msra.mxu0 0
      %4633 = vmatprep.subr.bf16.mxu0 0
      %4634 = vmatpush1.bf16.msra.mxu0 0
      %4635 = vmatprep.subr.bf16.mxu0 0
      %4636 = vmatpush1.bf16.msra.mxu0 0
      %4637 = vmatprep.subr.bf16.mxu0 0
      %4638 = vmatpush1.bf16.msra.mxu0 0
      %4639 = vmatprep.subr.bf16.mxu0 0
      %4640 = vmatpush1.bf16.msra.mxu0 0
      %4641 = vmatprep.subr.bf16.mxu0 0
      %4642 = vmatpush1.bf16.msra.mxu0 0
      %4643 = vmatprep.subr.bf16.mxu0 0
      %4644 = vmatpush1.bf16.msra.mxu0 0
      %4645 = vmatprep.subr.bf16.mxu0 0
      %4646 = vmatpush1.bf16.msra.mxu0 0
      %4647 = vmatprep.mubr.bf16.mxu0 0
      %4648 = vmatmul.mubr.bf16.gmra.mrb[0].mxu0 %v1893
      %v4649 = vpop.f32.mrb[0].mxu0
      %v4650 = vadd.f32 0.0, %v4649
      %v4651 = vpop.f32.mrb[0].mxu0
      %v4652 = vpop.f32.mrb[0].mxu0
      %v4653 = vadd.f32 0.0, %v4652
      %v4654 = vpop.f32.mrb[0].mxu0
      %4655 = vmatprep.mubr.bf16.mxu0 0
      %4656 = vmatmul.mubr.bf16.gmra.mrb[0].mxu0 %v1896
      %v4657 = vpop.f32.mrb[0].mxu0
      %v4658 = vadd.f32 0.0, %v4657
      %v4659 = vpop.f32.mrb[0].mxu0
      %v4660 = vpop.f32.mrb[0].mxu0
      %v4661 = vadd.f32 0.0, %v4660
      %v4662 = vpop.f32.mrb[0].mxu0
      %4663 = vmatprep.mubr.bf16.mxu0 0
      %4664 = vmatmul.mubr.bf16.gmra.mrb[0].mxu0 %v1899
      %v4665 = vpop.f32.mrb[0].mxu0
      %v4666 = vadd.f32 0.0, %v4665
      %v4667 = vpop.f32.mrb[0].mxu0
      %v4668 = vpop.f32.mrb[0].mxu0
      %v4669 = vadd.f32 0.0, %v4668
      %v4670 = vpop.f32.mrb[0].mxu0
      %4671 = vmatprep.mubr.bf16.mxu0 0
      %4672 = vmatmul.mubr.bf16.gmra.mrb[0].mxu0 %v1902
      %v4673 = vpop.f32.mrb[0].mxu0
      %v4674 = vadd.f32 0.0, %v4673
      %v4675 = vpop.f32.mrb[0].mxu0
      %v4676 = vpop.f32.mrb[0].mxu0
      %v4677 = vadd.f32 0.0, %v4676
      %v4678 = vpop.f32.mrb[0].mxu0
      %4679 = vmatprep.mubr.bf16.mxu0 0
      %4680 = vmatmul.mubr.bf16.gmra.mrb[0].mxu0 %v1905
      %v4681 = vpop.f32.mrb[0].mxu0
      %v4682 = vadd.f32 0.0, %v4681
      %v4683 = vpop.f32.mrb[0].mxu0
      %v4684 = vpop.f32.mrb[0].mxu0
      %v4685 = vadd.f32 0.0, %v4684
      %v4686 = vpop.f32.mrb[0].mxu0
      %4687 = vmatprep.mubr.bf16.mxu0 0
      %4688 = vmatmul.mubr.bf16.gmra.mrb[0].mxu0 %v1908
      %v4689 = vpop.f32.mrb[0].mxu0
      %v4690 = vadd.f32 0.0, %v4689
      %v4691 = vpop.f32.mrb[0].mxu0
      %v4692 = vpop.f32.mrb[0].mxu0
      %v4693 = vadd.f32 0.0, %v4692
      %v4694 = vpop.f32.mrb[0].mxu0
      %4695 = vmatprep.mubr.bf16.mxu0 0
      %4696 = vmatmul.mubr.bf16.gmra.mrb[0].mxu0 %v1911
      %v4697 = vpop.f32.mrb[0].mxu0
      %v4698 = vadd.f32 0.0, %v4697
      %v4699 = vpop.f32.mrb[0].mxu0
      %v4700 = vpop.f32.mrb[0].mxu0
      %v4701 = vadd.f32 0.0, %v4700
      %v4702 = vpop.f32.mrb[0].mxu0
      %4703 = vmatprep.mubr.bf16.mxu0 0
      %4704 = vmatmul.mubr.bf16.gmra.mrb[0].mxu0 %v1914
      %v4705 = vpop.f32.mrb[0].mxu0
      %v4706 = vadd.f32 0.0, %v4705
      %v4707 = vpop.f32.mrb[0].mxu0
      %v4708 = vpop.f32.mrb[0].mxu0
      %v4709 = vadd.f32 0.0, %v4708
      %v4710 = vpop.f32.mrb[0].mxu0
      %4711 = vmatprep.mubr.bf16.mxu0 0
      %4712 = vmatmul.mubr.bf16.gmra.mrb[0].mxu0 %v3287
      %v4713 = vpop.f32.mrb[0].mxu0
      %v4714 = vadd.f32 0.0, %v4713
      %v4715 = vpop.f32.mrb[0].mxu0
      %v4716 = vpop.f32.mrb[0].mxu0
      %v4717 = vadd.f32 0.0, %v4716
      %v4718 = vpop.f32.mrb[0].mxu0
      %4719 = vmatprep.mubr.bf16.mxu0 0
      %4720 = vmatmul.mubr.bf16.gmra.mrb[0].mxu0 %v4540
      %v4721 = vpop.f32.mrb[0].mxu0
      %v4722 = vadd.f32 0.0, %v4721
      %v4723 = vpop.f32.mrb[0].mxu0
      %v4724 = vpop.f32.mrb[0].mxu0
      %v4725 = vadd.f32 0.0, %v4724
      %v4726 = vpop.f32.mrb[0].mxu0
      %4727 = vdwg.mxu0
      %v4728 = vadd.f32 %v4516, %v4650
      %v4729 = vadd.f32 %v4517, %v4653
      %v4730 = vadd.f32 %v4518, %v4658
      %v4731 = vadd.f32 %v4519, %v4661
      %v4732 = vadd.f32 %v4520, %v4666
      %v4733 = vadd.f32 %v4521, %v4669
      %v4734 = vadd.f32 %v4522, %v4674
      %v4735 = vadd.f32 %v4523, %v4677
      %v4736 = vadd.f32 %v4524, %v4682
      %v4737 = vadd.f32 %v4525, %v4685
      %v4738 = vadd.f32 %v4526, %v4690
      %v4739 = vadd.f32 %v4527, %v4693
      %v4740 = vadd.f32 %v4528, %v4698
      %v4741 = vadd.f32 %v4529, %v4701
      %v4742 = vadd.f32 %v4530, %v4706
      %v4743 = vadd.f32 %v4531, %v4709
      %v4744 = vadd.f32 %v4532, %v4714
      %v4745 = vadd.f32 %v4533, %v4717
      %v4746 = vadd.f32 %v4534, %v4722
      %v4747 = vadd.f32 %v4535, %v4725
      %s4748 = scalar_lea.vmem %s3, 512
      %v4749 = vld [vmem:[%s4748] sm:$0xf]
      %v4750 = vld [vmem:[%s4748 + $0x4] sm:$0xf]
      %v4751 = vld [vmem:[%s4748 + $0x8] sm:$0xf]
      %v4752 = vld [vmem:[%s4748 + $0xc] sm:$0xf]
      %v4753 = vld [vmem:[%s4748 + $0x10] sm:$0xf]
      %v4754 = vld [vmem:[%s4748 + $0x14] sm:$0xf]
      %v4755 = vld [vmem:[%s4748 + $0x18] sm:$0xf]
      %v4756 = vld [vmem:[%s4748 + $0x1c] sm:$0xf]
      %v4757 = vld [vmem:[%s4748 + $0x20] sm:$0xf]
      %v4758 = vld [vmem:[%s4748 + $0x24] sm:$0xf]
      %v4759 = vld [vmem:[%s4748 + $0x28] sm:$0xf]
      %v4760 = vld [vmem:[%s4748 + $0x2c] sm:$0xf]
      %v4761 = vld [vmem:[%s4748 + $0x30] sm:$0xf]
      %v4762 = vld [vmem:[%s4748 + $0x34] sm:$0xf]
      %v4763 = vld [vmem:[%s4748 + $0x38] sm:$0xf]
      %v4764 = vld [vmem:[%s4748 + $0x3c] sm:$0xf]
      %v4765 = vunpack.c.l.b16 %v4546
      %v4766 = vunpack.c.l.b16 %v4549
      %v4767 = vpack.c.b16 %v4766, %v4765
      %v4785 = vunpack.c.l.b16 %v4749
      %v4786 = vunpack.c.l.b16 %v4750
      %v4787 = vunpack.c.l.b16 %v4751
      %v4788 = vunpack.c.l.b16 %v4752
      %v4789 = vunpack.c.l.b16 %v4753
      %v4790 = vunpack.c.l.b16 %v4754
      %v4791 = vunpack.c.l.b16 %v4755
      %v4792 = vunpack.c.l.b16 %v4756
      %v4793 = vunpack.c.l.b16 %v4757
      %v4794 = vunpack.c.l.b16 %v4758
      %v4795 = vunpack.c.l.b16 %v4759
      %v4796 = vunpack.c.l.b16 %v4760
      %v4797 = vunpack.c.l.b16 %v4761
      %v4798 = vunpack.c.l.b16 %v4762
      %v4799 = vunpack.c.l.b16 %v4763
      %v4800 = vunpack.c.l.b16 %v4764
      %v4801 = vpack.c.b16 %v4786, %v4785
      %v4802 = vpack.c.b16 %v4788, %v4787
      %v4803 = vpack.c.b16 %v4790, %v4789
      %v4804 = vpack.c.b16 %v4792, %v4791
      %v4805 = vpack.c.b16 %v4794, %v4793
      %v4806 = vpack.c.b16 %v4796, %v4795
      %v4807 = vpack.c.b16 %v4798, %v4797
      %v4808 = vpack.c.b16 %v4800, %v4799
      %4817 = vmatprep.subr.bf16.mxu0 0
      %4818 = vmatpush1.bf16.msra.mxu0 %v4801
      %4819 = vmatprep.subr.bf16.mxu0 0
      %4820 = vmatpush1.bf16.msra.mxu0 %v4802
      %4821 = vmatprep.subr.bf16.mxu0 0
      %4822 = vmatpush1.bf16.msra.mxu0 %v4803
      %4823 = vmatprep.subr.bf16.mxu0 0
      %4824 = vmatpush1.bf16.msra.mxu0 %v4804
      %4825 = vmatprep.subr.bf16.mxu0 0
      %4826 = vmatpush1.bf16.msra.mxu0 %v4805
      %4827 = vmatprep.subr.bf16.mxu0 0
      %4828 = vmatpush1.bf16.msra.mxu0 %v4806
      %4829 = vmatprep.subr.bf16.mxu0 0
      %4830 = vmatpush1.bf16.msra.mxu0 %v4807
      %4831 = vmatprep.subr.bf16.mxu0 0
      %4832 = vmatpush1.bf16.msra.mxu0 %v4808
      %4833 = vmatprep.subr.bf16.mxu0 0
      %4834 = vmatpush1.bf16.msra.mxu0 0
      %4835 = vmatprep.subr.bf16.mxu0 0
      %4836 = vmatpush1.bf16.msra.mxu0 0
      %4837 = vmatprep.subr.bf16.mxu0 0
      %4838 = vmatpush1.bf16.msra.mxu0 0
      %4839 = vmatprep.subr.bf16.mxu0 0
      %4840 = vmatpush1.bf16.msra.mxu0 0
      %4841 = vmatprep.subr.bf16.mxu0 0
      %4842 = vmatpush1.bf16.msra.mxu0 0
      %4843 = vmatprep.subr.bf16.mxu0 0
      %4844 = vmatpush1.bf16.msra.mxu0 0
      %4845 = vmatprep.subr.bf16.mxu0 0
      %4846 = vmatpush1.bf16.msra.mxu0 0
      %4847 = vmatprep.subr.bf16.mxu0 0
      %4848 = vmatpush1.bf16.msra.mxu0 0
      %4849 = vmatprep.mubr.bf16.mxu0 0
      %4850 = vmatmul.mubr.bf16.gmra.mrb[0].mxu0 %v2245
      %v4851 = vpop.f32.mrb[0].mxu0
      %v4852 = vadd.f32 0.0, %v4851
      %v4853 = vpop.f32.mrb[0].mxu0
      %v4854 = vpop.f32.mrb[0].mxu0
      %v4855 = vadd.f32 0.0, %v4854
      %v4856 = vpop.f32.mrb[0].mxu0
      %4857 = vmatprep.mubr.bf16.mxu0 0
      %4858 = vmatmul.mubr.bf16.gmra.mrb[0].mxu0 %v2246
      %v4859 = vpop.f32.mrb[0].mxu0
      %v4860 = vadd.f32 0.0, %v4859
      %v4861 = vpop.f32.mrb[0].mxu0
      %v4862 = vpop.f32.mrb[0].mxu0
      %v4863 = vadd.f32 0.0, %v4862
      %v4864 = vpop.f32.mrb[0].mxu0
      %4865 = vmatprep.mubr.bf16.mxu0 0
      %4866 = vmatmul.mubr.bf16.gmra.mrb[0].mxu0 %v2247
      %v4867 = vpop.f32.mrb[0].mxu0
      %v4868 = vadd.f32 0.0, %v4867
      %v4869 = vpop.f32.mrb[0].mxu0
      %v4870 = vpop.f32.mrb[0].mxu0
      %v4871 = vadd.f32 0.0, %v4870
      %v4872 = vpop.f32.mrb[0].mxu0
      %4873 = vmatprep.mubr.bf16.mxu0 0
      %4874 = vmatmul.mubr.bf16.gmra.mrb[0].mxu0 %v2248
      %v4875 = vpop.f32.mrb[0].mxu0
      %v4876 = vadd.f32 0.0, %v4875
      %v4877 = vpop.f32.mrb[0].mxu0
      %v4878 = vpop.f32.mrb[0].mxu0
      %v4879 = vadd.f32 0.0, %v4878
      %v4880 = vpop.f32.mrb[0].mxu0
      %4881 = vmatprep.mubr.bf16.mxu0 0
      %4882 = vmatmul.mubr.bf16.gmra.mrb[0].mxu0 %v2249
      %v4883 = vpop.f32.mrb[0].mxu0
      %v4884 = vadd.f32 0.0, %v4883
      %v4885 = vpop.f32.mrb[0].mxu0
      %v4886 = vpop.f32.mrb[0].mxu0
      %v4887 = vadd.f32 0.0, %v4886
      %v4888 = vpop.f32.mrb[0].mxu0
      %4889 = vmatprep.mubr.bf16.mxu0 0
      %4890 = vmatmul.mubr.bf16.gmra.mrb[0].mxu0 %v2250
      %v4891 = vpop.f32.mrb[0].mxu0
      %v4892 = vadd.f32 0.0, %v4891
      %v4893 = vpop.f32.mrb[0].mxu0
      %v4894 = vpop.f32.mrb[0].mxu0
      %v4895 = vadd.f32 0.0, %v4894
      %v4896 = vpop.f32.mrb[0].mxu0
      %4897 = vmatprep.mubr.bf16.mxu0 0
      %4898 = vmatmul.mubr.bf16.gmra.mrb[0].mxu0 %v2251
      %v4899 = vpop.f32.mrb[0].mxu0
      %v4900 = vadd.f32 0.0, %v4899
      %v4901 = vpop.f32.mrb[0].mxu0
      %v4902 = vpop.f32.mrb[0].mxu0
      %v4903 = vadd.f32 0.0, %v4902
      %v4904 = vpop.f32.mrb[0].mxu0
      %4905 = vmatprep.mubr.bf16.mxu0 0
      %4906 = vmatmul.mubr.bf16.gmra.mrb[0].mxu0 %v2252
      %v4907 = vpop.f32.mrb[0].mxu0
      %v4908 = vadd.f32 0.0, %v4907
      %v4909 = vpop.f32.mrb[0].mxu0
      %v4910 = vpop.f32.mrb[0].mxu0
      %v4911 = vadd.f32 0.0, %v4910
      %v4912 = vpop.f32.mrb[0].mxu0
      %4913 = vmatprep.mubr.bf16.mxu0 0
      %4914 = vmatmul.mubr.bf16.gmra.mrb[0].mxu0 %v3514
      %v4915 = vpop.f32.mrb[0].mxu0
      %v4916 = vadd.f32 0.0, %v4915
      %v4917 = vpop.f32.mrb[0].mxu0
      %v4918 = vpop.f32.mrb[0].mxu0
      %v4919 = vadd.f32 0.0, %v4918
      %v4920 = vpop.f32.mrb[0].mxu0
      %4921 = vmatprep.mubr.bf16.mxu0 0
      %4922 = vmatmul.mubr.bf16.gmra.mrb[0].mxu0 %v4767
      %v4923 = vpop.f32.mrb[0].mxu0
      %v4924 = vadd.f32 0.0, %v4923
      %v4925 = vpop.f32.mrb[0].mxu0
      %v4926 = vpop.f32.mrb[0].mxu0
      %v4927 = vadd.f32 0.0, %v4926
      %v4928 = vpop.f32.mrb[0].mxu0
      %4929 = vdwg.mxu0
      %v4930 = vadd.f32 %v4728, %v4852
      %v4931 = vadd.f32 %v4729, %v4855
      %v4932 = vadd.f32 %v4730, %v4860
      %v4933 = vadd.f32 %v4731, %v4863
      %v4934 = vadd.f32 %v4732, %v4868
      %v4935 = vadd.f32 %v4733, %v4871
      %v4936 = vadd.f32 %v4734, %v4876
      %v4937 = vadd.f32 %v4735, %v4879
      %v4938 = vadd.f32 %v4736, %v4884
      %v4939 = vadd.f32 %v4737, %v4887
      %v4940 = vadd.f32 %v4738, %v4892
      %v4941 = vadd.f32 %v4739, %v4895
      %v4942 = vadd.f32 %v4740, %v4900
      %v4943 = vadd.f32 %v4741, %v4903
      %v4944 = vadd.f32 %v4742, %v4908
      %v4945 = vadd.f32 %v4743, %v4911
      %v4946 = vadd.f32 %v4744, %v4916
      %v4947 = vadd.f32 %v4745, %v4919
      %v4948 = vadd.f32 %v4746, %v4924
      %v4949 = vadd.f32 %v4747, %v4927
      %v4950 = vld [vmem:[%s4] sm:$0x1]
      %v4952 = vlaneseq
      %v4953 = vshrl.u32 %v4952, 7
      %v4954 = vsub.s32 0, %v4953
      %v4955 = vrot.slane %v4950, %v4954
      %v4957 = vadd.f32 %v4930, %v4955
      %v4958 = vadd.f32 %v4931, %v4955
      %v4959 = vadd.f32 %v4932, %v4955
      %v4960 = vadd.f32 %v4933, %v4955
      %v4961 = vadd.f32 %v4934, %v4955
      %v4962 = vadd.f32 %v4935, %v4955
      %v4963 = vadd.f32 %v4936, %v4955
      %v4964 = vadd.f32 %v4937, %v4955
      %v4965 = vadd.f32 %v4938, %v4955
      %v4966 = vadd.f32 %v4939, %v4955
      %v4967 = vadd.f32 %v4940, %v4955
      %v4968 = vadd.f32 %v4941, %v4955
      %v4969 = vadd.f32 %v4942, %v4955
      %v4970 = vadd.f32 %v4943, %v4955
      %v4971 = vadd.f32 %v4944, %v4955
      %v4972 = vadd.f32 %v4945, %v4955
      %v4973 = vadd.f32 %v4946, %v4955
      %v4974 = vadd.f32 %v4947, %v4955
      %v4975 = vadd.f32 %v4948, %v4955
      %v4976 = vadd.f32 %v4949, %v4955
      %v4977 = vmax.f32 %v4957, 0.0
      %v4978 = vmax.f32 %v4958, 0.0
      %v4979 = vmax.f32 %v4959, 0.0
      %v4980 = vmax.f32 %v4960, 0.0
      %v4981 = vmax.f32 %v4961, 0.0
      %v4982 = vmax.f32 %v4962, 0.0
      %v4983 = vmax.f32 %v4963, 0.0
      %v4984 = vmax.f32 %v4964, 0.0
      %v4985 = vmax.f32 %v4965, 0.0
      %v4986 = vmax.f32 %v4966, 0.0
      %v4987 = vmax.f32 %v4967, 0.0
      %v4988 = vmax.f32 %v4968, 0.0
      %v4989 = vmax.f32 %v4969, 0.0
      %v4990 = vmax.f32 %v4970, 0.0
      %v4991 = vmax.f32 %v4971, 0.0
      %v4992 = vmax.f32 %v4972, 0.0
      %v4993 = vmax.f32 %v4973, 0.0
      %v4994 = vmax.f32 %v4974, 0.0
      %v4995 = vmax.f32 %v4975, 0.0
      %v4996 = vmax.f32 %v4976, 0.0
      %v4997 = vstv %s470
      %v4998 = vadd.s32 %v4997, 1
      %v4999 = vadd.s32 %v4997, 2
      %v5000 = vadd.s32 %v4997, 3
      %v5001 = vadd.s32 %v4997, 4
      %v5002 = vadd.s32 %v4997, 5
      %v5003 = vadd.s32 %v4997, 6
      %v5004 = vadd.s32 %v4997, 7
      %vm5005 = vcmp.lt.s32.totalorder %v4997, 16
      %vm5006 = vcmp.lt.s32.totalorder %v4998, 16
      %vm5007 = vcmp.lt.s32.totalorder %v4999, 16
      %vm5008 = vcmp.lt.s32.totalorder %v5000, 16
      %vm5009 = vcmp.lt.s32.totalorder %v5001, 16
      %vm5010 = vcmp.lt.s32.totalorder %v5002, 16
      %vm5011 = vcmp.lt.s32.totalorder %v5003, 16
      %vm5012 = vcmp.lt.s32.totalorder %v5004, 16
      %v5013 = vsel %vm5005, 1, 0
      %v5014 = vsel %vm5006, 1, 0
      %v5015 = vsel %vm5007, 1, 0
      %v5016 = vsel %vm5008, 1, 0
      %v5017 = vsel %vm5009, 1, 0
      %v5018 = vsel %vm5010, 1, 0
      %v5019 = vsel %vm5011, 1, 0
      %v5020 = vsel %vm5012, 1, 0
      %vm5021 = vcmp.eq.s32.totalorder %v5013, 1
      %vm5022 = vcmp.eq.s32.totalorder %v5014, 1
      %vm5023 = vcmp.eq.s32.totalorder %v5015, 1
      %vm5024 = vcmp.eq.s32.totalorder %v5016, 1
      %vm5025 = vcmp.eq.s32.totalorder %v5017, 1
      %vm5026 = vcmp.eq.s32.totalorder %v5018, 1
      %vm5027 = vcmp.eq.s32.totalorder %v5019, 1
      %vm5028 = vcmp.eq.s32.totalorder %v5020, 1
      %v5029 = vsel %vm5021, %v4979, 0.0
      %v5030 = vsel %vm5021, %v4980, 0.0
      %v5031 = vsel %vm5022, %v4981, 0.0
      %v5032 = vsel %vm5022, %v4982, 0.0
      %v5033 = vsel %vm5023, %v4983, 0.0
      %v5034 = vsel %vm5023, %v4984, 0.0
      %v5035 = vsel %vm5024, %v4985, 0.0
      %v5036 = vsel %vm5024, %v4986, 0.0
      %v5037 = vsel %vm5025, %v4987, 0.0
      %v5038 = vsel %vm5025, %v4988, 0.0
      %v5039 = vsel %vm5026, %v4989, 0.0
      %v5040 = vsel %vm5026, %v4990, 0.0
      %v5041 = vsel %vm5027, %v4991, 0.0
      %v5042 = vsel %vm5027, %v4992, 0.0
      %v5043 = vsel %vm5028, %v4993, 0.0
      %v5044 = vsel %vm5028, %v4994, 0.0
      %v5045 = vadd.f32 %v5029, %v5030
      %v5046 = vadd.f32 %v5045, %v5031
      %v5047 = vadd.f32 %v5046, %v5032
      %v5048 = vadd.f32 %v5047, %v5033
      %v5049 = vadd.f32 %v5048, %v5034
      %v5050 = vadd.f32 %v5049, %v5035
      %v5051 = vadd.f32 %v5050, %v5036
      %v5052 = vadd.f32 %v5051, %v5037
      %v5053 = vadd.f32 %v5052, %v5038
      %v5054 = vadd.f32 %v5053, %v5039
      %v5055 = vadd.f32 %v5054, %v5040
      %v5056 = vadd.f32 %v5055, %v5041
      %v5057 = vadd.f32 %v5056, %v5042
      %v5058 = vadd.f32 %v5057, %v5043
      %v5059 = vadd.f32 %v5058, %v5044
      %v5060 = vrot.slane %v5059, 4
      %v5061 = vadd.f32 %v5059, %v5060
      %v5062 = vrot.slane %v5061, 2
      %v5063 = vadd.f32 %v5061, %v5062
      %v5064 = vrot.slane %v5063, 1
      %v5065 = vadd.f32 %v5063, %v5064
      %v5066 = vmul.f32 %v5029, %v4979
      %v5067 = vmul.f32 %v5030, %v4980
      %v5068 = vmul.f32 %v5031, %v4981
      %v5069 = vmul.f32 %v5032, %v4982
      %v5070 = vmul.f32 %v5033, %v4983
      %v5071 = vmul.f32 %v5034, %v4984
      %v5072 = vmul.f32 %v5035, %v4985
      %v5073 = vmul.f32 %v5036, %v4986
      %v5074 = vmul.f32 %v5037, %v4987
      %v5075 = vmul.f32 %v5038, %v4988
      %v5076 = vmul.f32 %v5039, %v4989
      %v5077 = vmul.f32 %v5040, %v4990
      %v5078 = vmul.f32 %v5041, %v4991
      %v5079 = vmul.f32 %v5042, %v4992
      %v5080 = vmul.f32 %v5043, %v4993
      %v5081 = vmul.f32 %v5044, %v4994
      %v5082 = vadd.f32 %v5066, %v5067
      %v5083 = vadd.f32 %v5082, %v5068
      %v5084 = vadd.f32 %v5083, %v5069
      %v5085 = vadd.f32 %v5084, %v5070
      %v5086 = vadd.f32 %v5085, %v5071
      %v5087 = vadd.f32 %v5086, %v5072
      %v5088 = vadd.f32 %v5087, %v5073
      %v5089 = vadd.f32 %v5088, %v5074
      %v5090 = vadd.f32 %v5089, %v5075
      %v5091 = vadd.f32 %v5090, %v5076
      %v5092 = vadd.f32 %v5091, %v5077
      %v5093 = vadd.f32 %v5092, %v5078
      %v5094 = vadd.f32 %v5093, %v5079
      %v5095 = vadd.f32 %v5094, %v5080
      %v5096 = vadd.f32 %v5095, %v5081
      %v5097 = vrot.slane %v5096, 4
      %v5098 = vadd.f32 %v5096, %v5097
      %v5099 = vrot.slane %v5098, 2
      %v5100 = vadd.f32 %v5098, %v5099
      %v5101 = vrot.slane %v5100, 1
      %v5102 = vadd.f32 %v5100, %v5101
      %vm5103 = vcmask 1040384
      %v5104 = vsel %vm5103, %v5065, %v5102
      %vm5105 = vcmask 1041408
      %v5106 = vsel %vm5105, %v5104, 0.0
      %5107 = vst [vmem:[%s342] sm:$0xff] %v5106
      %v5108 = vpack.c.bf16 %v4978, %v4977
      %v5109 = vpack.c.bf16 %v4980, %v4979
      %v5110 = vpack.c.bf16 %v4982, %v4981
      %v5111 = vpack.c.bf16 %v4984, %v4983
      %v5112 = vpack.c.bf16 %v4986, %v4985
      %v5113 = vpack.c.bf16 %v4988, %v4987
      %v5114 = vpack.c.bf16 %v4990, %v4989
      %v5115 = vpack.c.bf16 %v4992, %v4991
      %v5116 = vpack.c.bf16 %v4994, %v4993
      %v5117 = vpack.c.bf16 %v4996, %v4995
      %v5119 = vshrl.u32 %v5108, 16
      %v5121 = vrot.slane %v5119, 7
      %v5122 = vshll.u32 %v5108, 16
      %v5124 = vor.u32 %v5121, %v5122
      %v5126 = vshrl.u32 %v5109, 16
      %v5128 = vrot.slane %v5126, 7
      %v5129 = vshll.u32 %v5109, 16
      %v5131 = vor.u32 %v5128, %v5129
      %v5133 = vshrl.u32 %v5110, 16
      %v5135 = vrot.slane %v5133, 7
      %v5136 = vshll.u32 %v5110, 16
      %v5138 = vor.u32 %v5135, %v5136
      %v5140 = vshrl.u32 %v5111, 16
      %v5142 = vrot.slane %v5140, 7
      %v5143 = vshll.u32 %v5111, 16
      %v5145 = vor.u32 %v5142, %v5143
      %v5147 = vshrl.u32 %v5112, 16
      %v5149 = vrot.slane %v5147, 7
      %v5150 = vshll.u32 %v5112, 16
      %v5152 = vor.u32 %v5149, %v5150
      %v5154 = vshrl.u32 %v5113, 16
      %v5156 = vrot.slane %v5154, 7
      %v5157 = vshll.u32 %v5113, 16
      %v5159 = vor.u32 %v5156, %v5157
      %v5161 = vshrl.u32 %v5114, 16
      %v5163 = vrot.slane %v5161, 7
      %v5164 = vshll.u32 %v5114, 16
      %v5166 = vor.u32 %v5163, %v5164
      %v5168 = vshrl.u32 %v5115, 16
      %v5170 = vrot.slane %v5168, 7
      %v5171 = vshll.u32 %v5115, 16
      %v5173 = vor.u32 %v5170, %v5171
      %v5175 = vshrl.u32 %v5116, 16
      %v5177 = vrot.slane %v5175, 7
      %v5178 = vshll.u32 %v5116, 16
      %v5180 = vor.u32 %v5177, %v5178
      %v5182 = vshrl.u32 %v5117, 16
      %v5184 = vrot.slane %v5182, 7
      %v5185 = vshll.u32 %v5117, 16
      %v5187 = vor.u32 %v5184, %v5185
      %vm5208 = vcmask 1040384
      %vm5209 = vsmask.f32 256
      %vm5210 = vmand %vm5208, %vm5209
      %v5211 = vsel %vm5210, 0, %v5124
      %v5212 = vsel %vm5210, 0, %v5131
      %v5213 = vsel %vm5210, 0, %v5138
      %v5214 = vsel %vm5210, 0, %v5145
      %v5215 = vsel %vm5210, 0, %v5152
      %v5216 = vsel %vm5210, 0, %v5159
      %v5217 = vsel %vm5210, 0, %v5166
      %v5218 = vsel %vm5210, 0, %v5173
      %v5219 = vsel %vm5210, 0, %v5180
      %v5220 = vsel %vm5210, 0, %v5187
      %v5221 = vsel %vm5210, %v5121, 0
      %v5222 = vsel %vm5210, %v5128, 0
      %v5223 = vsel %vm5210, %v5135, 0
      %v5224 = vsel %vm5210, %v5142, 0
      %v5225 = vsel %vm5210, %v5149, 0
      %v5226 = vsel %vm5210, %v5156, 0
      %v5227 = vsel %vm5210, %v5163, 0
      %v5228 = vsel %vm5210, %v5170, 0
      %v5229 = vsel %vm5210, %v5177, 0
      %v5230 = vsel %vm5210, %v5184, 0
      %v5251 = vunpack.c.l.b16 %v5211
      %v5252 = vunpack.c.h.b16 %v5211
      %v5253 = vunpack.c.l.b16 %v5221
      %v5254 = vunpack.c.l.b16 %v5212
      %v5255 = vunpack.c.h.b16 %v5212
      %v5256 = vunpack.c.l.b16 %v5222
      %v5257 = vunpack.c.l.b16 %v5213
      %v5258 = vunpack.c.h.b16 %v5213
      %v5259 = vunpack.c.l.b16 %v5223
      %v5260 = vunpack.c.l.b16 %v5214
      %v5261 = vunpack.c.h.b16 %v5214
      %v5262 = vunpack.c.l.b16 %v5224
      %v5263 = vunpack.c.l.b16 %v5215
      %v5264 = vunpack.c.h.b16 %v5215
      %v5265 = vunpack.c.l.b16 %v5225
      %v5266 = vunpack.c.l.b16 %v5216
      %v5267 = vunpack.c.h.b16 %v5216
      %v5268 = vunpack.c.l.b16 %v5226
      %v5269 = vunpack.c.l.b16 %v5217
      %v5270 = vunpack.c.h.b16 %v5217
      %v5271 = vunpack.c.l.b16 %v5227
      %v5272 = vunpack.c.l.b16 %v5218
      %v5273 = vunpack.c.h.b16 %v5218
      %v5274 = vunpack.c.l.b16 %v5228
      %v5275 = vunpack.c.l.b16 %v5219
      %v5276 = vunpack.c.h.b16 %v5219
      %v5277 = vunpack.c.l.b16 %v5229
      %v5278 = vunpack.c.l.b16 %v5220
      %v5279 = vunpack.c.h.b16 %v5220
      %v5280 = vunpack.c.l.b16 %v5230
      %v5281 = vpack.c.b16 %v5251, %v5251
      %v5282 = vpack.c.b16 %v5252, %v5252
      %v5283 = vpack.c.b16 %v5253, %v5253
      %v5284 = vpack.c.b16 %v5254, %v5254
      %v5285 = vpack.c.b16 %v5255, %v5255
      %v5286 = vpack.c.b16 %v5256, %v5256
      %v5287 = vpack.c.b16 %v5257, %v5257
      %v5288 = vpack.c.b16 %v5258, %v5258
      %v5289 = vpack.c.b16 %v5259, %v5259
      %v5290 = vpack.c.b16 %v5260, %v5260
      %v5291 = vpack.c.b16 %v5261, %v5261
      %v5292 = vpack.c.b16 %v5262, %v5262
      %v5293 = vpack.c.b16 %v5263, %v5263
      %v5294 = vpack.c.b16 %v5264, %v5264
      %v5295 = vpack.c.b16 %v5265, %v5265
      %v5296 = vpack.c.b16 %v5266, %v5266
      %v5297 = vpack.c.b16 %v5267, %v5267
      %v5298 = vpack.c.b16 %v5268, %v5268
      %v5299 = vpack.c.b16 %v5269, %v5269
      %v5300 = vpack.c.b16 %v5270, %v5270
      %v5301 = vpack.c.b16 %v5271, %v5271
      %v5302 = vpack.c.b16 %v5272, %v5272
      %v5303 = vpack.c.b16 %v5273, %v5273
      %v5304 = vpack.c.b16 %v5274, %v5274
      %v5305 = vpack.c.b16 %v5275, %v5275
      %v5306 = vpack.c.b16 %v5276, %v5276
      %v5307 = vpack.c.b16 %v5277, %v5277
      %v5308 = vpack.c.b16 %v5278, %v5278
      %v5309 = vpack.c.b16 %v5279, %v5279
      %v5310 = vpack.c.b16 %v5280, %v5280
      %5341 = vst [vmem:[%s334] sm:$0xf] %v5281
      %5342 = vst [vmem:[%s334 + $0x4] sm:$0xf] %v5282
      %5343 = vst [vmem:[%s334 + $0x8] sm:$0x1] %v5283
      %5344 = vst [vmem:[%s334 + $0xc] sm:$0xf] %v5284
      %5345 = vst [vmem:[%s334 + $0x10] sm:$0xf] %v5285
      %5346 = vst [vmem:[%s334 + $0x14] sm:$0x1] %v5286
      %5347 = vst [vmem:[%s334 + $0x18] sm:$0xf] %v5287
      %5348 = vst [vmem:[%s334 + $0x1c] sm:$0xf] %v5288
      %5349 = vst [vmem:[%s334 + $0x20] sm:$0x1] %v5289
      %5350 = vst [vmem:[%s334 + $0x24] sm:$0xf] %v5290
      %5351 = vst [vmem:[%s334 + $0x28] sm:$0xf] %v5291
      %5352 = vst [vmem:[%s334 + $0x2c] sm:$0x1] %v5292
      %5353 = vst [vmem:[%s334 + $0x30] sm:$0xf] %v5293
      %5354 = vst [vmem:[%s334 + $0x34] sm:$0xf] %v5294
      %5355 = vst [vmem:[%s334 + $0x38] sm:$0x1] %v5295
      %5356 = vst [vmem:[%s334 + $0x3c] sm:$0xf] %v5296
      %5357 = vst [vmem:[%s334 + $0x40] sm:$0xf] %v5297
      %5358 = vst [vmem:[%s334 + $0x44] sm:$0x1] %v5298
      %5359 = vst [vmem:[%s334 + $0x48] sm:$0xf] %v5299
      %5360 = vst [vmem:[%s334 + $0x4c] sm:$0xf] %v5300
      %5361 = vst [vmem:[%s334 + $0x50] sm:$0x1] %v5301
      %5362 = vst [vmem:[%s334 + $0x54] sm:$0xf] %v5302
      %5363 = vst [vmem:[%s334 + $0x58] sm:$0xf] %v5303
      %5364 = vst [vmem:[%s334 + $0x5c] sm:$0x1] %v5304
      %5365 = vst [vmem:[%s334 + $0x60] sm:$0xf] %v5305
      %5366 = vst [vmem:[%s334 + $0x64] sm:$0xf] %v5306
      %5367 = vst [vmem:[%s334 + $0x68] sm:$0x1] %v5307
      %5368 = vst [vmem:[%s334 + $0x6c] sm:$0xf] %v5308
      %5369 = vst [vmem:[%s334 + $0x70] sm:$0xf] %v5309
      %5370 = vst [vmem:[%s334 + $0x74] sm:$0x1] %v5310
      %p5371 = scmp.lt.s32.totalorder %s22, 1
      %s5372 = scalar_select %p5371, %s22, 1
      %p5373 = scmp.lt.s32.totalorder %s23, 1
      %s5374 = scalar_select %p5373, %s23, 1
      %s5375 = smul.addr %s5374, 30
      %s5376 = smul.addr %s5372, 60
      %s5377 = sadd.s32 %s5375, %s5376
      %s5378 = smul.addr %s5377, 4
      %s5379 = scalar_lea.vmem %s5, %s5378
      %p5380 = scmp.lt.s32.totalorder %s22, 1
      %s5381 = scalar_select %p5380, %s22, 1
      %p5382 = scmp.lt.s32.totalorder %s23, 1
      %s5383 = scalar_select %p5382, %s23, 1
      %s5384 = smul.addr %s5381, 2
      %s5385 = sadd.s32 %s5383, %s5384
      %s5386 = smul.addr %s5385, 8
      %s5387 = scalar_lea.vmem %s6, %s5386
      // Predicated region
      $region41: #{_lambda_.2} parent=39 // pred_check
        %p5388 = pneg %p169
      $region42: #{_lambda_.2} parent=39 // pred_check_branch
        %5390 = sbr.rel (%p5388) target = $region44
      $region43: #{_lambda_.2} parent=39 // pred_region
        _
      $region44: #{_lambda_.2} parent=39 // pred_fallthru
        _
      // Predicated region
      $region45: #{_lambda_.2} parent=39 // pred_check
        %p5391 = pneg %p197
      $region46: #{_lambda_.2} parent=39 // pred_check_branch
        %5393 = sbr.rel (%p5391) target = $region48
      $region47: #{_lambda_.2} parent=39 // pred_region
        _
      $region48: #{_lambda_.2} parent=39 // pred_fallthru
        _
    $region40: #{_lambda_.2} parent=5 // pred_fallthru
      _
    %p5394 = scmp.le.s32.totalorder 2, %s13
    // Predicated region
    $region49: #{_lambda_.2} parent=5 // pred_check
      %p5395 = pneg %p5394
    $region50: #{_lambda_.2} parent=5 // pred_check_branch
      %5397 = sbr.rel (%p5395) target = $region52
    $region51: #{_lambda_.2} parent=5 // pred_region
      %s5398 = ssub.s32 %s13, 2
      // Predicated region
      $region53: #{_lambda_.2} parent=51 // pred_check
        %p5399 = pneg %p175
      $region54: #{_lambda_.2} parent=51 // pred_check_branch
        %5401 = sbr.rel (%p5399) target = $region56
      $region55: #{_lambda_.2} parent=51 // pred_region
        %p5402 = scmp.lt.s32.totalorder %s24, 1
        %s5403 = scalar_select %p5402, %s24, 1
        %p5404 = scmp.lt.s32.totalorder %s25, 1
        %s5405 = scalar_select %p5404, %s25, 1
        %s5406 = smul.addr %s5405, 30
        %s5407 = smul.addr %s5403, 60
        %s5408 = sadd.s32 %s5406, %s5407
        %s5409 = smul.addr %s5408, 4
        %s5410 = scalar_lea.vmem %s5, %s5409
      $region56: #{_lambda_.2} parent=51 // pred_fallthru
        _
      // Predicated region
      $region57: #{_lambda_.2} parent=51 // pred_check
        %p5411 = pneg %p203
      $region58: #{_lambda_.2} parent=51 // pred_check_branch
        %5413 = sbr.rel (%p5411) target = $region60
      $region59: #{_lambda_.2} parent=51 // pred_region
        %p5414 = scmp.lt.s32.totalorder %s24, 1
        %s5415 = scalar_select %p5414, %s24, 1
        %p5416 = scmp.lt.s32.totalorder %s25, 1
        %s5417 = scalar_select %p5416, %s25, 1
        %s5418 = smul.addr %s5415, 2
        %s5419 = sadd.s32 %s5417, %s5418
        %s5420 = smul.addr %s5419, 8
        %s5421 = scalar_lea.vmem %s6, %s5420
      $region60: #{_lambda_.2} parent=51 // pred_fallthru
        _
    $region52: #{_lambda_.2} parent=5 // pred_fallthru
      _
  $region6: #{_lambda_.2} parent=0 // loop_footer
    %s17 = sadd.s32 1, %s13
  $region7: #{_lambda_.2} parent=0 // loop_footer_branch
    %12 = sbr.rel target = $region3
  $region8: #{_lambda_.2} parent=0 // loop_exit
    _

</llo_original>
